<compile_context>
chip_gen: v6e
topology: v6e:2x2x1
jax: 0.10.0
libtpu: 0.0.40
codegen_flags: <defaults>
</compile_context>

<pallas_src>
import functools
import math

import jax
import jax.numpy as jnp
from jax.experimental import pallas as pl
from jax.experimental.pallas import tpu as pltpu


# ----------------------------------------------------------------------------
# Config
# ----------------------------------------------------------------------------
MXU_DTYPE = jnp.bfloat16            # MXU operand dtype (f32 accumulation everywhere);
                                    # set to jnp.float32 for bit-accurate f32 matmuls.
_VMEM_LIMIT = 32 * 1024 * 1024      # <= default scoped VMEM on v6e/v7x, safe on v5e.
_XFORMER_TOKENS = 256               # target tokens (spb*K) per transformer grid block
_RNN_ROWS_TARGET = 512              # target batch rows per RNN-scan grid block
_MATMUL_BLOCK_M = 512               # row tile for the generic matmul


def _cparams():
    return pltpu.CompilerParams(dimension_semantics=("parallel",),
                                vmem_limit_bytes=_VMEM_LIMIT)


def _mxu(a):
    return a.astype(MXU_DTYPE)


def _pick_block(n, target):
    """Largest divisor of n that is <= target (>= 1)."""
    d = min(n, max(1, target))
    while n % d:
        d -= 1
    return d


def _full_spec(a):
    nd = a.ndim
    return pl.BlockSpec(a.shape, lambda i: (0,) * nd)


def _layernorm(x, w, b, eps=1e-5):
    """Per-token LayerNorm in f32 (PyTorch default eps for TransformerEncoderLayer)."""
    mean = jnp.mean(x, axis=-1, keepdims=True)
    var = jnp.mean((x - mean) ** 2, axis=-1, keepdims=True)
    return (x - mean) * jax.lax.rsqrt(var + eps) * w + b


# ----------------------------------------------------------------------------
# Fused TransformerEncoderLayer (post-norm, relu, dropout=0)
# ----------------------------------------------------------------------------
def _xformer_layer_kernel(x_ref, wqkv_ref, bqkv_ref, wo_ref, bo_ref,
                          ln1w_ref, ln1b_ref, w1_ref, b1_ref,
                          w2_ref, b2_ref, ln2w_ref, ln2b_ref,
                          o_ref, *, nhead):
    spb, L, N = x_ref.shape
    dh = N // nhead
    scale = 1.0 / math.sqrt(dh)

    x = x_ref[...].reshape(spb * L, N)                    # tokens (f32)

    # ---- multi-head self-attention (attention over the L tokens of each seq) ----
    qkv = jnp.dot(_mxu(x), wqkv_ref[...],
                  preferred_element_type=jnp.float32) + bqkv_ref[...]
    q = qkv[:, :N].reshape(spb, L, N)
    k = qkv[:, N:2 * N].reshape(spb, L, N)
    v = qkv[:, 2 * N:].reshape(spb, L, N)

    heads = []
    for h in range(nhead):                                # nhead=4, unrolled at trace time
        sl = slice(h * dh, (h + 1) * dh)
        s = jnp.einsum("bqd,bkd->bqk", _mxu(q[:, :, sl]), _mxu(k[:, :, sl]),
                       preferred_element_type=jnp.float32) * scale
        s = s - jnp.max(s, axis=-1, keepdims=True)        # softmax stats in f32
        p = jnp.exp(s)
        p = p * pl.reciprocal(jnp.sum(p, axis=-1, keepdims=True), approx=True)
        heads.append(jnp.einsum("bqk,bkd->bqd", _mxu(p), _mxu(v[:, :, sl]),
                                preferred_element_type=jnp.float32))
    attn = jnp.concatenate(heads, axis=-1).reshape(spb * L, N)
    attn = jnp.dot(_mxu(attn), wo_ref[...],
                   preferred_element_type=jnp.float32) + bo_ref[...]

    # ---- post-norm + FFN (512-wide intermediate stays in VMEM) + post-norm ----
    h1 = _layernorm(x + attn, ln1w_ref[...], ln1b_ref[...])
    ff = jnp.maximum(jnp.dot(_mxu(h1), w1_ref[...],
                             preferred_element_type=jnp.float32) + b1_ref[...], 0.0)
    ff = jnp.dot(_mxu(ff), w2_ref[...],
                 preferred_element_type=jnp.float32) + b2_ref[...]
    h2 = _layernorm(h1 + ff, ln2w_ref[...], ln2b_ref[...])

    o_ref[...] = h2.reshape(spb, L, N)


def transformer_layer(x_seq, p, *, nhead=4):
    """x_seq: [n_seq, K, N] independent sequences -> same shape."""
    n_seq, K, N = x_seq.shape
    spb = _pick_block(n_seq, max(1, _XFORMER_TOKENS // K))   # sequences per block
    args = [
        p["wqkv"], p["bqkv"].reshape(1, -1),
        p["wo"], p["bo"].reshape(1, -1),
        p["ln1_w"].reshape(1, -1), p["ln1_b"].reshape(1, -1),
        p["w1"], p["b1"].reshape(1, -1),
        p["w2"], p["b2"].reshape(1, -1),
        p["ln2_w"].reshape(1, -1), p["ln2_b"].reshape(1, -1),
    ]
    xspec = pl.BlockSpec((spb, K, N), lambda i: (i, 0, 0))
    return pl.pallas_call(
        functools.partial(_xformer_layer_kernel, nhead=nhead),
        out_shape=jax.ShapeDtypeStruct((n_seq, K, N), jnp.float32),
        grid=(n_seq // spb,),
        in_specs=[xspec] + [_full_spec(a) for a in args],
        out_specs=xspec,
        compiler_params=_cparams(),
    )(x_seq, *args)


# ----------------------------------------------------------------------------
# GlobalLayerNorm (+ residual), optionally fused with the preceding Linear
# ----------------------------------------------------------------------------
# TODO(synk): for very long K*S a per-batch block may exceed v7x VMEM; a
# two-pass (stats then apply) tiled variant would be needed at those sizes.
def _gln_residual_kernel(x_ref, r_ref, w_ref, b_ref, o_ref, *, eps):
    x = x_ref[0]                                          # (T, N), whole batch element
    mean = jnp.mean(x, axis=(0, 1), keepdims=True)
    var = jnp.mean((x - mean) ** 2, axis=(0, 1), keepdims=True)
    y = (x - mean) * jax.lax.rsqrt(var + eps)
    o_ref[0] = w_ref[...] * y + b_ref[...] + r_ref[0]


def gln_residual(x, res, w, b, eps=1e-8):
    """GLN over all (tokens, channels) of each batch element + residual add.
    x, res: [B, T, N] (channel last); w, b: per-channel (N,)."""
    B, T, N = x.shape
    xspec = pl.BlockSpec((1, T, N), lambda i: (i, 0, 0))
    vspec = pl.BlockSpec((1, N), lambda i: (0, 0))
    return pl.pallas_call(
        functools.partial(_gln_residual_kernel, eps=eps),
        out_shape=jax.ShapeDtypeStruct((B, T, N), jnp.float32),
        grid=(B,),
        in_specs=[xspec, xspec, vspec, vspec],
        out_specs=xspec,
        compiler_params=_cparams(),
    )(x, res, w.reshape(1, N), b.reshape(1, N))


def _linear_gln_residual_kernel(z_ref, r_ref, w_ref, b_ref, gw_ref, gb_ref,
                                o_ref, *, eps):
    z = z_ref[0]                                          # (T, 2H)
    y = jnp.dot(_mxu(z), w_ref[...],
                preferred_element_type=jnp.float32) + b_ref[...]   # (T, N)
    mean = jnp.mean(y, axis=(0, 1), keepdims=True)
    var = jnp.mean((y - mean) ** 2, axis=(0, 1), keepdims=True)
    y = (y - mean) * jax.lax.rsqrt(var + eps)
    o_ref[0] = gw_ref[...] * y + gb_ref[...] + r_ref[0]


def linear_gln_residual(z, res, w, b, gw, gb, eps=1e-8):
    """inter_linear + GlobalLayerNorm + residual, fused (one block = one batch)."""
    B, T, F2 = z.shape
    N = w.shape[1]
    zspec = pl.BlockSpec((1, T, F2), lambda i: (i, 0, 0))
    rspec = pl.BlockSpec((1, T, N), lambda i: (i, 0, 0))
    vspec = pl.BlockSpec((1, N), lambda i: (0, 0))
    return pl.pallas_call(
        functools.partial(_linear_gln_residual_kernel, eps=eps),
        out_shape=jax.ShapeDtypeStruct((B, T, N), jnp.float32),
        grid=(B,),
        in_specs=[zspec, rspec, pl.BlockSpec((F2, N), lambda i: (0, 0)),
                  vspec, vspec, vspec],
        out_specs=rspec,
        compiler_params=_cparams(),
    )(z, res, w, b.reshape(1, N), gw.reshape(1, N), gb.reshape(1, N))


# ----------------------------------------------------------------------------
# Fused bidirectional tanh-RNN scan (both directions per time step)
# ----------------------------------------------------------------------------
def _birnn_scan_kernel(xp_ref, whh_ref, o_ref):
    S = xp_ref.shape[0]
    cbk = xp_ref.shape[2]
    H = xp_ref.shape[3]
    w = whh_ref[...]
    wf, wb = w[0], w[1]

    def step(t, carry):
        hf, hb = carry
        xpt = xp_ref[t]                                   # (2, cbk, H)
        hf = jnp.tanh(xpt[0] + jnp.dot(hf, wf, preferred_element_type=jnp.float32))
        hb = jnp.tanh(xpt[1] + jnp.dot(hb, wb, preferred_element_type=jnp.float32))
        o_ref[t] = jnp.concatenate([hf[None], hb[None]], axis=0)
        return (hf, hb)

    h0 = jnp.zeros((cbk, H), jnp.float32)
    jax.lax.fori_loop(0, S, step, (h0, h0), unroll=(S <= 64))


def birnn_scan(xp, w_hh):
    """xp: [S, 2, Bk, H] time-major pre-projected inputs (dir 0 = forward time t,
    dir 1 = backward input for time S-1-t). w_hh: [2, H, H] = [Whh_f^T, Whh_b^T]."""
    S, _, Bk, H = xp.shape
    cbk = _pick_block(Bk, _RNN_ROWS_TARGET)
    if cbk != Bk and cbk % 8:                             # keep sublane dim tiling legal
        cbk = Bk
    xspec = pl.BlockSpec((S, 2, cbk, H), lambda i: (0, 0, i, 0))
    return pl.pallas_call(
        _birnn_scan_kernel,
        out_shape=jax.ShapeDtypeStruct((S, 2, Bk, H), jnp.float32),
        grid=(Bk // cbk,),
        in_specs=[xspec, pl.BlockSpec((2, H, H), lambda i: (0, 0, 0))],
        out_specs=xspec,
        compiler_params=_cparams(),
    )(xp, w_hh)


# ----------------------------------------------------------------------------
# Generic M-tiled matmul + bias (used for the RNN input projection)
# ----------------------------------------------------------------------------
def _matmul_bias_kernel(x_ref, w_ref, b_ref, o_ref):
    o_ref[...] = (jnp.dot(x_ref[...].astype(w_ref.dtype), w_ref[...],
                          preferred_element_type=jnp.float32) + b_ref[...])


def matmul_bias(x, w, b):
    M, Kd = x.shape
    Nout = w.shape[1]
    bm = M if M <= _MATMUL_BLOCK_M else _MATMUL_BLOCK_M
    return pl.pallas_call(
        _matmul_bias_kernel,
        out_shape=jax.ShapeDtypeStruct((M, Nout), jnp.float32),
        grid=(pl.cdiv(M, bm),),
        in_specs=[pl.BlockSpec((bm, Kd), lambda i: (i, 0)),
                  pl.BlockSpec((Kd, Nout), lambda i: (0, 0)),
                  pl.BlockSpec((1, Nout), lambda i: (0, 0))],
        out_specs=pl.BlockSpec((bm, Nout), lambda i: (i, 0)),
        compiler_params=_cparams(),
    )(x, w, b.reshape(1, Nout))


# ----------------------------------------------------------------------------
# Dual_RNN_Block forward
# ----------------------------------------------------------------------------
def dual_rnn_block_forward(x, params, *, nhead=4):
    """x: [B, N, K, S] -> out: [B, N, K, S] (matches Dual_RNN_Block.forward)."""
    B, N, K, S = x.shape
    H = params["rnn_w_hh"].shape[-1]

    # -------- intra path: transformer over K for each (b, s) --------
    x_perm = jnp.transpose(x, (0, 3, 2, 1))               # [B, S, K, N]
    intra = x_perm.reshape(B * S, K, N)
    for lp in params["transformer"]:
        intra = transformer_layer(intra, lp, nhead=nhead)
    # GlobalLayerNorm (stats over all of (S,K,N) per batch) + residual, token layout
    intra = gln_residual(intra.reshape(B, S * K, N),
                         x_perm.reshape(B, S * K, N),
                         params["intra_norm_w"], params["intra_norm_b"])
    intra_bskn = intra.reshape(B, S, K, N)

    # -------- inter path: bidirectional RNN over S for each (b, k) --------
    inter_in = jnp.transpose(intra_bskn, (0, 2, 1, 3))    # [B, K, S, N]
    Bk = B * K
    tok = inter_in.reshape(Bk * S, N)
    # input projection for both directions (b_ih + b_hh folded in), one matmul
    xp = matmul_bias(tok, params["rnn_w_ih"], params["rnn_b"])      # [Bk*S, 2H]
    xp = xp.reshape(Bk, S, 2, H)
    xp_f = jnp.transpose(xp[:, :, 0], (1, 0, 2))          # [S, Bk, H] forward
    xp_b = jnp.transpose(xp[:, ::-1, 1], (1, 0, 2))       # [S, Bk, H] backward (reversed)
    h_tm = birnn_scan(jnp.stack([xp_f, xp_b], axis=1), params["rnn_w_hh"])  # [S,2,Bk,H]

    hf = jnp.transpose(h_tm[:, 0], (1, 0, 2))             # [Bk, S, H]
    hb = jnp.transpose(h_tm[::-1, 1], (1, 0, 2))          # [Bk, S, H] (un-reversed)
    rnn_out = jnp.concatenate([hf, hb], axis=-1)          # [Bk, S, 2H]

    # inter_linear + GlobalLayerNorm + residual(intra), fused per batch
    out_bksn = linear_gln_residual(
        rnn_out.reshape(B, K * S, 2 * H),
        inter_in.reshape(B, K * S, N),
        params["inter_lin_w"], params["inter_lin_b"],
        params["inter_norm_w"], params["inter_norm_b"])   # [B, K*S, N]

    return jnp.transpose(out_bksn.reshape(B, K, S, N), (0, 3, 1, 2))  # [B, N, K, S]


# ----------------------------------------------------------------------------
# Deterministic synthetic parameters (pre-transposed / pre-packed layouts)
# ----------------------------------------------------------------------------
def init_params(key, N=64, H=32, d_ffn=512, num_layers=2):
    keys = iter(jax.random.split(key, 64))

    def rnd(shape, scale, dtype=jnp.float32):
        return (scale * jax.random.normal(next(keys), shape)).astype(dtype)

    layers = []
    for _ in range(num_layers):
        layers.append(dict(
            wqkv=rnd((N, 3 * N), 0.1, MXU_DTYPE),   # = in_proj_weight.T
            bqkv=rnd((3 * N,), 0.02),
            wo=rnd((N, N), 0.1, MXU_DTYPE),         # = out_proj.weight.T
            bo=rnd((N,), 0.02),
            ln1_w=jnp.ones((N,), jnp.float32), ln1_b=jnp.zeros((N,), jnp.float32),
            w1=rnd((N, d_ffn), 0.05, MXU_DTYPE),    # = linear1.weight.T
            b1=rnd((d_ffn,), 0.02),
            w2=rnd((d_ffn, N), 0.05, MXU_DTYPE),    # = linear2.weight.T
            b2=rnd((N,), 0.02),
            ln2_w=jnp.ones((N,), jnp.float32), ln2_b=jnp.zeros((N,), jnp.float32),
        ))

    return dict(
        transformer=layers,
        # bidirectional nn.RNN: [W_ih_f^T | W_ih_b^T], [b_ih+b_hh per dir], [W_hh^T per dir]
        rnn_w_ih=rnd((N, 2 * H), 0.1, MXU_DTYPE),
        rnn_b=rnd((2 * H,), 0.02),
        rnn_w_hh=rnd((2, H, H), 0.1),               # f32 recurrence
        inter_lin_w=rnd((2 * H, N), 0.1, MXU_DTYPE),    # = inter_linear.weight.T
        inter_lin_b=rnd((N,), 0.02),
        intra_norm_w=jnp.ones((N,), jnp.float32),   # GlobalLayerNorm weight (N,1,1)
        intra_norm_b=jnp.zeros((N,), jnp.float32),
        inter_norm_w=jnp.ones((N,), jnp.float32),
        inter_norm_b=jnp.zeros((N,), jnp.float32),
    )


# ----------------------------------------------------------------------------
if __name__ == "__main__":
    # N (=out_channels) must be 64 because SBTransformerBlock hardcodes d_model=64.
    B, N, K, S = 2, 64, 8, 8
    H = 32  # hidden_channels

    key = jax.random.PRNGKey(0)
    kx, kp = jax.random.split(key)
    x = jax.random.normal(kx, (B, N, K, S), dtype=jnp.float32)
    params = init_params(kp, N=N, H=H)

    fwd = jax.jit(dual_rnn_block_forward)
    out = fwd(x, params)
    jax.block_until_ready(out)
    assert out.shape == (B, N, K, S) and out.dtype == jnp.float32
    print("KERNEL_OK")
</pallas_src>

<mosaic_0001>
module attributes {stable_mosaic.version = 11 : i64} {
  func.func @_gln_residual_kernel(%arg0: i32, %arg1: memref<1x64x64xf32, #tpu.memory_space<vmem>>, %arg2: memref<1x64x64xf32, #tpu.memory_space<vmem>>, %arg3: memref<1x64xf32, #tpu.memory_space<vmem>>, %arg4: memref<1x64xf32, #tpu.memory_space<vmem>>, %arg5: memref<1x64x64xf32, #tpu.memory_space<vmem>>) attributes {dimension_semantics = [#tpu.dimension_semantics<parallel>], iteration_bounds = array<i64: 2>, scalar_prefetch = 0 : i64, scratch_operands = 0 : i64, tpu.core_type = #tpu.core_type<tc>, window_params = [{transform_indices = @transform_0, window_bounds = array<i64: 1, 64, 64>}, {transform_indices = @transform_1, window_bounds = array<i64: 1, 64, 64>}, {pipeline_mode = #tpu.pipeline_mode<synchronous>, transform_indices = @transform_2, window_bounds = array<i64: 1, 64>}, {pipeline_mode = #tpu.pipeline_mode<synchronous>, transform_indices = @transform_3, window_bounds = array<i64: 1, 64>}, {transform_indices = @transform_4, window_bounds = array<i64: 1, 64, 64>}]} {
    %c0 = arith.constant 0 : index
    %c0_0 = arith.constant 0 : index
    %c0_1 = arith.constant 0 : index
    %0 = vector.load %arg1[%c0, %c0_0, %c0_1] : memref<1x64x64xf32, #tpu.memory_space<vmem>>, vector<1x64x64xf32>
    %1 = vector.shape_cast %0 : vector<1x64x64xf32> to vector<64x64xf32>
    %2 = vector.shape_cast %1 : vector<64x64xf32> to vector<1x64x64xf32>
    %cst = arith.constant dense<0.000000e+00> : vector<1xf32>
    %3 = vector.multi_reduction <add>, %2, %cst [1, 2] : vector<1x64x64xf32> to vector<1xf32>
    %4 = vector.shape_cast %3 : vector<1xf32> to vector<1x1x1xf32>
    %5 = vector.extract %4[0, 0, 0] : f32 from vector<1x1x1xf32>
    %6 = vector.broadcast %5 : f32 to vector<1x1xf32>
    %cst_2 = arith.constant 4.096000e+03 : f32
    %7 = vector.broadcast %cst_2 : f32 to vector<1x1xf32>
    %8 = arith.divf %6, %7 : vector<1x1xf32>
    %9 = vector.broadcast %8 : vector<1x1xf32> to vector<64x64xf32>
    %10 = arith.subf %1, %9 : vector<64x64xf32>
    %11 = arith.mulf %10, %10 : vector<64x64xf32>
    %12 = vector.shape_cast %11 : vector<64x64xf32> to vector<1x64x64xf32>
    %cst_3 = arith.constant dense<0.000000e+00> : vector<1xf32>
    %13 = vector.multi_reduction <add>, %12, %cst_3 [1, 2] : vector<1x64x64xf32> to vector<1xf32>
    %14 = vector.shape_cast %13 : vector<1xf32> to vector<1x1x1xf32>
    %15 = vector.extract %14[0, 0, 0] : f32 from vector<1x1x1xf32>
    %16 = vector.broadcast %15 : f32 to vector<1x1xf32>
    %cst_4 = arith.constant 4.096000e+03 : f32
    %17 = vector.broadcast %cst_4 : f32 to vector<1x1xf32>
    %18 = arith.divf %16, %17 : vector<1x1xf32>
    %19 = vector.broadcast %8 : vector<1x1xf32> to vector<64x64xf32>
    %20 = arith.subf %1, %19 : vector<64x64xf32>
    %cst_5 = arith.constant 9.99999993E-9 : f32
    %21 = vector.broadcast %cst_5 : f32 to vector<1x1xf32>
    %22 = arith.addf %18, %21 : vector<1x1xf32>
    %23 = math.rsqrt %22 : vector<1x1xf32>
    %24 = vector.broadcast %23 : vector<1x1xf32> to vector<64x64xf32>
    %25 = arith.mulf %20, %24 : vector<64x64xf32>
    %c0_6 = arith.constant 0 : index
    %c0_7 = arith.constant 0 : index
    %26 = vector.load %arg3[%c0_6, %c0_7] : memref<1x64xf32, #tpu.memory_space<vmem>>, vector<1x64xf32>
    %27 = vector.broadcast %26 : vector<1x64xf32> to vector<64x64xf32>
    %28 = arith.mulf %27, %25 : vector<64x64xf32>
    %c0_8 = arith.constant 0 : index
    %c0_9 = arith.constant 0 : index
    %29 = vector.load %arg4[%c0_8, %c0_9] : memref<1x64xf32, #tpu.memory_space<vmem>>, vector<1x64xf32>
    %30 = vector.broadcast %29 : vector<1x64xf32> to vector<64x64xf32>
    %31 = arith.addf %28, %30 : vector<64x64xf32>
    %c0_10 = arith.constant 0 : index
    %c0_11 = arith.constant 0 : index
    %c0_12 = arith.constant 0 : index
    %32 = vector.load %arg2[%c0_10, %c0_11, %c0_12] : memref<1x64x64xf32, #tpu.memory_space<vmem>>, vector<1x64x64xf32>
    %33 = vector.shape_cast %32 : vector<1x64x64xf32> to vector<64x64xf32>
    %34 = arith.addf %31, %33 : vector<64x64xf32>
    %c0_13 = arith.constant 0 : index
    %c0_14 = arith.constant 0 : index
    %c0_15 = arith.constant 0 : index
    %35 = vector.load %arg5[%c0_13, %c0_14, %c0_15] : memref<1x64x64xf32, #tpu.memory_space<vmem>>, vector<1x64x64xf32>
    %36 = vector.shape_cast %35 : vector<1x64x64xf32> to vector<64x64xf32>
    %37 = vector.shape_cast %34 : vector<64x64xf32> to vector<1x64x64xf32>
    tpu.vector_store %arg5[%c0_13, %c0_14, %c0_15], %37 {strides = array<i32>} : memref<1x64x64xf32, #tpu.memory_space<vmem>>, vector<1x64x64xf32>,
    return
  }
  func.func @transform_0(%arg0: i32) -> (i32, i32, i32) {
    %c0_i32 = arith.constant 0 : i32
    %c0_i32_0 = arith.constant 0 : i32
    %c0_i32_1 = arith.constant 0 : i32
    return %arg0, %c0_i32, %c0_i32_0 : i32, i32, i32
  }
  func.func @transform_1(%arg0: i32) -> (i32, i32, i32) {
    %c0_i32 = arith.constant 0 : i32
    %c0_i32_0 = arith.constant 0 : i32
    %c0_i32_1 = arith.constant 0 : i32
    return %arg0, %c0_i32, %c0_i32_0 : i32, i32, i32
  }
  func.func @transform_2(%arg0: i32) -> (i32, i32) {
    %c0_i32 = arith.constant 0 : i32
    %c0_i32_0 = arith.constant 0 : i32
    %c0_i32_1 = arith.constant 0 : i32
    return %c0_i32, %c0_i32_0 : i32, i32
  }
  func.func @transform_3(%arg0: i32) -> (i32, i32) {
    %c0_i32 = arith.constant 0 : i32
    %c0_i32_0 = arith.constant 0 : i32
    %c0_i32_1 = arith.constant 0 : i32
    return %c0_i32, %c0_i32_0 : i32, i32
  }
  func.func @transform_4(%arg0: i32) -> (i32, i32, i32) {
    %c0_i32 = arith.constant 0 : i32
    %c0_i32_0 = arith.constant 0 : i32
    %c0_i32_1 = arith.constant 0 : i32
    return %arg0, %c0_i32, %c0_i32_0 : i32, i32, i32
  }
}

module attributes {stable_mosaic.version = 11 : i64} {
  func.func @_xformer_layer_kernel(%arg0: i32, %arg1: memref<16x8x64xf32, #tpu.memory_space<vmem>>, %arg2: memref<64x192xbf16, #tpu.memory_space<vmem>>, %arg3: memref<1x192xf32, #tpu.memory_space<vmem>>, %arg4: memref<64x64xbf16, #tpu.memory_space<vmem>>, %arg5: memref<1x64xf32, #tpu.memory_space<vmem>>, %arg6: memref<1x64xf32, #tpu.memory_space<vmem>>, %arg7: memref<1x64xf32, #tpu.memory_space<vmem>>, %arg8: memref<64x512xbf16, #tpu.memory_space<vmem>>, %arg9: memref<1x512xf32, #tpu.memory_space<vmem>>, %arg10: memref<512x64xbf16, #tpu.memory_space<vmem>>, %arg11: memref<1x64xf32, #tpu.memory_space<vmem>>, %arg12: memref<1x64xf32, #tpu.memory_space<vmem>>, %arg13: memref<1x64xf32, #tpu.memory_space<vmem>>, %arg14: memref<16x8x64xf32, #tpu.memory_space<vmem>>) attributes {dimension_semantics = [#tpu.dimension_semantics<parallel>], iteration_bounds = array<i64: 1>, scalar_prefetch = 0 : i64, scratch_operands = 0 : i64, tpu.core_type = #tpu.core_type<tc>, window_params = [{transform_indices = @transform_0, window_bounds = array<i64: 16, 8, 64>}, {pipeline_mode = #tpu.pipeline_mode<synchronous>, transform_indices = @transform_1, window_bounds = array<i64: 64, 192>}, {pipeline_mode = #tpu.pipeline_mode<synchronous>, transform_indices = @transform_2, window_bounds = array<i64: 1, 192>}, {pipeline_mode = #tpu.pipeline_mode<synchronous>, transform_indices = @transform_3, window_bounds = array<i64: 64, 64>}, {pipeline_mode = #tpu.pipeline_mode<synchronous>, transform_indices = @transform_4, window_bounds = array<i64: 1, 64>}, {pipeline_mode = #tpu.pipeline_mode<synchronous>, transform_indices = @transform_5, window_bounds = array<i64: 1, 64>}, {pipeline_mode = #tpu.pipeline_mode<synchronous>, transform_indices = @transform_6, window_bounds = array<i64: 1, 64>}, {pipeline_mode = #tpu.pipeline_mode<synchronous>, transform_indices = @transform_7, window_bounds = array<i64: 64, 512>}, {pipeline_mode = #tpu.pipeline_mode<synchronous>, transform_indices = @transform_8, window_bounds = array<i64: 1, 512>}, {pipeline_mode = #tpu.pipeline_mode<synchronous>, transform_indices = @transform_9, window_bounds = array<i64: 512, 64>}, {pipeline_mode = #tpu.pipeline_mode<synchronous>, transform_indices = @transform_10, window_bounds = array<i64: 1, 64>}, {pipeline_mode = #tpu.pipeline_mode<synchronous>, transform_indices = @transform_11, window_bounds = array<i64: 1, 64>}, {pipeline_mode = #tpu.pipeline_mode<synchronous>, transform_indices = @transform_12, window_bounds = array<i64: 1, 64>}, {transform_indices = @transform_13, window_bounds = array<i64: 16, 8, 64>}]} {
    %c0 = arith.constant 0 : index
    %c0_0 = arith.constant 0 : index
    %c0_1 = arith.constant 0 : index
    %0 = vector.load %arg1[%c0, %c0_0, %c0_1] : memref<16x8x64xf32, #tpu.memory_space<vmem>>, vector<16x8x64xf32>
    %1 = vector.shape_cast %0 : vector<16x8x64xf32> to vector<128x64xf32>
    %2 = arith.truncf %1 : vector<128x64xf32> to vector<128x64xbf16>
    %c0_2 = arith.constant 0 : index
    %c0_3 = arith.constant 0 : index
    %3 = vector.load %arg2[%c0_2, %c0_3] : memref<64x192xbf16, #tpu.memory_space<vmem>>, vector<64x192xbf16>
    %cst = arith.constant dense<0.000000e+00> : vector<128x192xf32>
    %4 = tpu.matmul %2, %3, %cst {dimension_numbers = #tpu.dot_dimension_numbers<[1], [0], [0], [1], [0, 0, 1, 1], [], []>} : vector<128x64xbf16>, vector<64x192xbf16>, vector<128x192xf32> -> vector<128x192xf32>
    %c0_4 = arith.constant 0 : index
    %c0_5 = arith.constant 0 : index
    %5 = vector.load %arg3[%c0_4, %c0_5] : memref<1x192xf32, #tpu.memory_space<vmem>>, vector<1x192xf32>
    %6 = vector.broadcast %5 : vector<1x192xf32> to vector<128x192xf32>
    %7 = arith.addf %4, %6 : vector<128x192xf32>
    %8 = vector.extract_strided_slice %7 {offsets = [0, 0], sizes = [128, 64], strides = [1, 1]} : vector<128x192xf32> to vector<128x64xf32>
    %9 = vector.shape_cast %8 : vector<128x64xf32> to vector<16x8x64xf32>
    %10 = vector.extract_strided_slice %7 {offsets = [0, 64], sizes = [128, 64], strides = [1, 1]} : vector<128x192xf32> to vector<128x64xf32>
    %11 = vector.shape_cast %10 : vector<128x64xf32> to vector<16x8x64xf32>
    %12 = vector.extract_strided_slice %7 {offsets = [0, 128], sizes = [128, 64], strides = [1, 1]} : vector<128x192xf32> to vector<128x64xf32>
    %13 = vector.shape_cast %12 : vector<128x64xf32> to vector<16x8x64xf32>
    %14 = vector.extract_strided_slice %9 {offsets = [0, 0, 0], sizes = [16, 8, 16], strides = [1, 1, 1]} : vector<16x8x64xf32> to vector<16x8x16xf32>
    %15 = arith.truncf %14 : vector<16x8x16xf32> to vector<16x8x16xbf16>
    %16 = vector.extract_strided_slice %11 {offsets = [0, 0, 0], sizes = [16, 8, 16], strides = [1, 1, 1]} : vector<16x8x64xf32> to vector<16x8x16xf32>
    %17 = arith.truncf %16 : vector<16x8x16xf32> to vector<16x8x16xbf16>
    "tpu.trace_start"() <{level = 10 : i32, message = "bqd,bkd->bqk"}> : () -> ()
    %cst_6 = arith.constant dense<0.000000e+00> : vector<16x8x8xf32>
    %18 = tpu.matmul %15, %17, %cst_6 {dimension_numbers = #tpu.dot_dimension_numbers<[2], [2], [1], [1], [0, 0, 0, 1, 1, 1], [0], [0]>} : vector<16x8x16xbf16>, vector<16x8x16xbf16>, vector<16x8x8xf32> -> vector<16x8x8xf32>
    "tpu.trace_stop"() : () -> ()
    %cst_7 = arith.constant 2.500000e-01 : f32
    %19 = vector.broadcast %cst_7 : f32 to vector<16x8x8xf32>
    %20 = arith.mulf %18, %19 : vector<16x8x8xf32>
    %cst_8 = arith.constant dense<0xFF800000> : vector<16x8xf32>
    %21 = vector.multi_reduction <maximumf>, %20, %cst_8 [2] : vector<16x8x8xf32> to vector<16x8xf32>
    %22 = vector.shape_cast %21 : vector<16x8xf32> to vector<16x8x1xf32>
    %23 = vector.broadcast %22 : vector<16x8x1xf32> to vector<16x8x8xf32>
    %24 = arith.subf %20, %23 : vector<16x8x8xf32>
    %25 = math.exp %24 : vector<16x8x8xf32>
    %cst_9 = arith.constant dense<0.000000e+00> : vector<16x8xf32>
    %26 = vector.multi_reduction <add>, %25, %cst_9 [2] : vector<16x8x8xf32> to vector<16x8xf32>
    %27 = vector.shape_cast %26 : vector<16x8xf32> to vector<16x8x1xf32>
    %28 = tpu.reciprocal %27 {approx = true} : vector<16x8x1xf32> -> vector<16x8x1xf32>
    %29 = vector.broadcast %28 : vector<16x8x1xf32> to vector<16x8x8xf32>
    %30 = arith.mulf %25, %29 : vector<16x8x8xf32>
    %31 = arith.truncf %30 : vector<16x8x8xf32> to vector<16x8x8xbf16>
    %32 = vector.extract_strided_slice %13 {offsets = [0, 0, 0], sizes = [16, 8, 16], strides = [1, 1, 1]} : vector<16x8x64xf32> to vector<16x8x16xf32>
    %33 = arith.truncf %32 : vector<16x8x16xf32> to vector<16x8x16xbf16>
    "tpu.trace_start"() <{level = 10 : i32, message = "bqk,bkd->bqd"}> : () -> ()
    %cst_10 = arith.constant dense<0.000000e+00> : vector<16x8x16xf32>
    %34 = tpu.matmul %31, %33, %cst_10 {dimension_numbers = #tpu.dot_dimension_numbers<[2], [1], [1], [2], [0, 0, 0, 1, 1, 2], [0], [0]>} : vector<16x8x8xbf16>, vector<16x8x16xbf16>, vector<16x8x16xf32> -> vector<16x8x16xf32>
    "tpu.trace_stop"() : () -> ()
    %35 = vector.extract_strided_slice %9 {offsets = [0, 0, 16], sizes = [16, 8, 16], strides = [1, 1, 1]} : vector<16x8x64xf32> to vector<16x8x16xf32>
    %36 = arith.truncf %35 : vector<16x8x16xf32> to vector<16x8x16xbf16>
    %37 = vector.extract_strided_slice %11 {offsets = [0, 0, 16], sizes = [16, 8, 16], strides = [1, 1, 1]} : vector<16x8x64xf32> to vector<16x8x16xf32>
    %38 = arith.truncf %37 : vector<16x8x16xf32> to vector<16x8x16xbf16>
    "tpu.trace_start"() <{level = 10 : i32, message = "bqd,bkd->bqk"}> : () -> ()
    %cst_11 = arith.constant dense<0.000000e+00> : vector<16x8x8xf32>
    %39 = tpu.matmul %36, %38, %cst_11 {dimension_numbers = #tpu.dot_dimension_numbers<[2], [2], [1], [1], [0, 0, 0, 1, 1, 1], [0], [0]>} : vector<16x8x16xbf16>, vector<16x8x16xbf16>, vector<16x8x8xf32> -> vector<16x8x8xf32>
    "tpu.trace_stop"() : () -> ()
    %cst_12 = arith.constant 2.500000e-01 : f32
    %40 = vector.broadcast %cst_12 : f32 to vector<16x8x8xf32>
    %41 = arith.mulf %39, %40 : vector<16x8x8xf32>
    %cst_13 = arith.constant dense<0xFF800000> : vector<16x8xf32>
    %42 = vector.multi_reduction <maximumf>, %41, %cst_13 [2] : vector<16x8x8xf32> to vector<16x8xf32>
    %43 = vector.shape_cast %42 : vector<16x8xf32> to vector<16x8x1xf32>
    %44 = vector.broadcast %43 : vector<16x8x1xf32> to vector<16x8x8xf32>
    %45 = arith.subf %41, %44 : vector<16x8x8xf32>
    %46 = math.exp %45 : vector<16x8x8xf32>
    %cst_14 = arith.constant dense<0.000000e+00> : vector<16x8xf32>
    %47 = vector.multi_reduction <add>, %46, %cst_14 [2] : vector<16x8x8xf32> to vector<16x8xf32>
    %48 = vector.shape_cast %47 : vector<16x8xf32> to vector<16x8x1xf32>
    %49 = tpu.reciprocal %48 {approx = true} : vector<16x8x1xf32> -> vector<16x8x1xf32>
    %50 = vector.broadcast %49 : vector<16x8x1xf32> to vector<16x8x8xf32>
    %51 = arith.mulf %46, %50 : vector<16x8x8xf32>
    %52 = arith.truncf %51 : vector<16x8x8xf32> to vector<16x8x8xbf16>
    %53 = vector.extract_strided_slice %13 {offsets = [0, 0, 16], sizes = [16, 8, 16], strides = [1, 1, 1]} : vector<16x8x64xf32> to vector<16x8x16xf32>
    %54 = arith.truncf %53 : vector<16x8x16xf32> to vector<16x8x16xbf16>
    "tpu.trace_start"() <{level = 10 : i32, message = "bqk,bkd->bqd"}> : () -> ()
    %cst_15 = arith.constant dense<0.000000e+00> : vector<16x8x16xf32>
    %55 = tpu.matmul %52, %54, %cst_15 {dimension_numbers = #tpu.dot_dimension_numbers<[2], [1], [1], [2], [0, 0, 0, 1, 1, 2], [0], [0]>} : vector<16x8x8xbf16>, vector<16x8x16xbf16>, vector<16x8x16xf32> -> vector<16x8x16xf32>
    "tpu.trace_stop"() : () -> ()
    %56 = vector.extract_strided_slice %9 {offsets = [0, 0, 32], sizes = [16, 8, 16], strides = [1, 1, 1]} : vector<16x8x64xf32> to vector<16x8x16xf32>
    %57 = arith.truncf %56 : vector<16x8x16xf32> to vector<16x8x16xbf16>
    %58 = vector.extract_strided_slice %11 {offsets = [0, 0, 32], sizes = [16, 8, 16], strides = [1, 1, 1]} : vector<16x8x64xf32> to vector<16x8x16xf32>
    %59 = arith.truncf %58 : vector<16x8x16xf32> to vector<16x8x16xbf16>
    "tpu.trace_start"() <{level = 10 : i32, message = "bqd,bkd->bqk"}> : () -> ()
    %cst_16 = arith.constant dense<0.000000e+00> : vector<16x8x8xf32>
    %60 = tpu.matmul %57, %59, %cst_16 {dimension_numbers = #tpu.dot_dimension_numbers<[2], [2], [1], [1], [0, 0, 0, 1, 1, 1], [0], [0]>} : vector<16x8x16xbf16>, vector<16x8x16xbf16>, vector<16x8x8xf32> -> vector<16x8x8xf32>
    "tpu.trace_stop"() : () -> ()
    %cst_17 = arith.constant 2.500000e-01 : f32
    %61 = vector.broadcast %cst_17 : f32 to vector<16x8x8xf32>
    %62 = arith.mulf %60, %61 : vector<16x8x8xf32>
    %cst_18 = arith.constant dense<0xFF800000> : vector<16x8xf32>
    %63 = vector.multi_reduction <maximumf>, %62, %cst_18 [2] : vector<16x8x8xf32> to vector<16x8xf32>
    %64 = vector.shape_cast %63 : vector<16x8xf32> to vector<16x8x1xf32>
    %65 = vector.broadcast %64 : vector<16x8x1xf32> to vector<16x8x8xf32>
    %66 = arith.subf %62, %65 : vector<16x8x8xf32>
    %67 = math.exp %66 : vector<16x8x8xf32>
    %cst_19 = arith.constant dense<0.000000e+00> : vector<16x8xf32>
    %68 = vector.multi_reduction <add>, %67, %cst_19 [2] : vector<16x8x8xf32> to vector<16x8xf32>
    %69 = vector.shape_cast %68 : vector<16x8xf32> to vector<16x8x1xf32>
    %70 = tpu.reciprocal %69 {approx = true} : vector<16x8x1xf32> -> vector<16x8x1xf32>
    %71 = vector.broadcast %70 : vector<16x8x1xf32> to vector<16x8x8xf32>
    %72 = arith.mulf %67, %71 : vector<16x8x8xf32>
    %73 = arith.truncf %72 : vector<16x8x8xf32> to vector<16x8x8xbf16>
    %74 = vector.extract_strided_slice %13 {offsets = [0, 0, 32], sizes = [16, 8, 16], strides = [1, 1, 1]} : vector<16x8x64xf32> to vector<16x8x16xf32>
    %75 = arith.truncf %74 : vector<16x8x16xf32> to vector<16x8x16xbf16>
    "tpu.trace_start"() <{level = 10 : i32, message = "bqk,bkd->bqd"}> : () -> ()
    %cst_20 = arith.constant dense<0.000000e+00> : vector<16x8x16xf32>
    %76 = tpu.matmul %73, %75, %cst_20 {dimension_numbers = #tpu.dot_dimension_numbers<[2], [1], [1], [2], [0, 0, 0, 1, 1, 2], [0], [0]>} : vector<16x8x8xbf16>, vector<16x8x16xbf16>, vector<16x8x16xf32> -> vector<16x8x16xf32>
    "tpu.trace_stop"() : () -> ()
    %77 = vector.extract_strided_slice %9 {offsets = [0, 0, 48], sizes = [16, 8, 16], strides = [1, 1, 1]} : vector<16x8x64xf32> to vector<16x8x16xf32>
    %78 = arith.truncf %77 : vector<16x8x16xf32> to vector<16x8x16xbf16>
    %79 = vector.extract_strided_slice %11 {offsets = [0, 0, 48], sizes = [16, 8, 16], strides = [1, 1, 1]} : vector<16x8x64xf32> to vector<16x8x16xf32>
    %80 = arith.truncf %79 : vector<16x8x16xf32> to vector<16x8x16xbf16>
    "tpu.trace_start"() <{level = 10 : i32, message = "bqd,bkd->bqk"}> : () -> ()
    %cst_21 = arith.constant dense<0.000000e+00> : vector<16x8x8xf32>
    %81 = tpu.matmul %78, %80, %cst_21 {dimension_numbers = #tpu.dot_dimension_numbers<[2], [2], [1], [1], [0, 0, 0, 1, 1, 1], [0], [0]>} : vector<16x8x16xbf16>, vector<16x8x16xbf16>, vector<16x8x8xf32> -> vector<16x8x8xf32>
    "tpu.trace_stop"() : () -> ()
    %cst_22 = arith.constant 2.500000e-01 : f32
    %82 = vector.broadcast %cst_22 : f32 to vector<16x8x8xf32>
    %83 = arith.mulf %81, %82 : vector<16x8x8xf32>
    %cst_23 = arith.constant dense<0xFF800000> : vector<16x8xf32>
    %84 = vector.multi_reduction <maximumf>, %83, %cst_23 [2] : vector<16x8x8xf32> to vector<16x8xf32>
    %85 = vector.shape_cast %84 : vector<16x8xf32> to vector<16x8x1xf32>
    %86 = vector.broadcast %85 : vector<16x8x1xf32> to vector<16x8x8xf32>
    %87 = arith.subf %83, %86 : vector<16x8x8xf32>
    %88 = math.exp %87 : vector<16x8x8xf32>
    %cst_24 = arith.constant dense<0.000000e+00> : vector<16x8xf32>
    %89 = vector.multi_reduction <add>, %88, %cst_24 [2] : vector<16x8x8xf32> to vector<16x8xf32>
    %90 = vector.shape_cast %89 : vector<16x8xf32> to vector<16x8x1xf32>
    %91 = tpu.reciprocal %90 {approx = true} : vector<16x8x1xf32> -> vector<16x8x1xf32>
    %92 = vector.broadcast %91 : vector<16x8x1xf32> to vector<16x8x8xf32>
    %93 = arith.mulf %88, %92 : vector<16x8x8xf32>
    %94 = arith.truncf %93 : vector<16x8x8xf32> to vector<16x8x8xbf16>
    %95 = vector.extract_strided_slice %13 {offsets = [0, 0, 48], sizes = [16, 8, 16], strides = [1, 1, 1]} : vector<16x8x64xf32> to vector<16x8x16xf32>
    %96 = arith.truncf %95 : vector<16x8x16xf32> to vector<16x8x16xbf16>
    "tpu.trace_start"() <{level = 10 : i32, message = "bqk,bkd->bqd"}> : () -> ()
    %cst_25 = arith.constant dense<0.000000e+00> : vector<16x8x16xf32>
    %97 = tpu.matmul %94, %96, %cst_25 {dimension_numbers = #tpu.dot_dimension_numbers<[2], [1], [1], [2], [0, 0, 0, 1, 1, 2], [0], [0]>} : vector<16x8x8xbf16>, vector<16x8x16xbf16>, vector<16x8x16xf32> -> vector<16x8x16xf32>
    "tpu.trace_stop"() : () -> ()
    %98 = tpu.concatenate %34, %55, %76, %97 in 2 : vector<16x8x16xf32>, vector<16x8x16xf32>, vector<16x8x16xf32>, vector<16x8x16xf32> -> vector<16x8x64xf32>
    %99 = vector.shape_cast %98 : vector<16x8x64xf32> to vector<128x64xf32>
    %100 = arith.truncf %99 : vector<128x64xf32> to vector<128x64xbf16>
    %c0_26 = arith.constant 0 : index
    %c0_27 = arith.constant 0 : index
    %101 = vector.load %arg4[%c0_26, %c0_27] : memref<64x64xbf16, #tpu.memory_space<vmem>>, vector<64x64xbf16>
    %cst_28 = arith.constant dense<0.000000e+00> : vector<128x64xf32>
    %102 = tpu.matmul %100, %101, %cst_28 {dimension_numbers = #tpu.dot_dimension_numbers<[1], [0], [0], [1], [0, 0, 1, 1], [], []>} : vector<128x64xbf16>, vector<64x64xbf16>, vector<128x64xf32> -> vector<128x64xf32>
    %c0_29 = arith.constant 0 : index
    %c0_30 = arith.constant 0 : index
    %103 = vector.load %arg5[%c0_29, %c0_30] : memref<1x64xf32, #tpu.memory_space<vmem>>, vector<1x64xf32>
    %104 = vector.broadcast %103 : vector<1x64xf32> to vector<128x64xf32>
    %105 = arith.addf %102, %104 : vector<128x64xf32>
    %106 = arith.addf %1, %105 : vector<128x64xf32>
    %c0_31 = arith.constant 0 : index
    %c0_32 = arith.constant 0 : index
    %107 = vector.load %arg6[%c0_31, %c0_32] : memref<1x64xf32, #tpu.memory_space<vmem>>, vector<1x64xf32>
    %c0_33 = arith.constant 0 : index
    %c0_34 = arith.constant 0 : index
    %108 = vector.load %arg7[%c0_33, %c0_34] : memref<1x64xf32, #tpu.memory_space<vmem>>, vector<1x64xf32>
    %cst_35 = arith.constant dense<0.000000e+00> : vector<128xf32>
    %109 = vector.multi_reduction <add>, %106, %cst_35 [1] : vector<128x64xf32> to vector<128xf32>
    %110 = vector.shape_cast %109 : vector<128xf32> to vector<128x1xf32>
    %cst_36 = arith.constant 6.400000e+01 : f32
    %111 = vector.broadcast %cst_36 : f32 to vector<128x1xf32>
    %112 = arith.divf %110, %111 : vector<128x1xf32>
    %113 = vector.broadcast %112 : vector<128x1xf32> to vector<128x64xf32>
    %114 = arith.subf %106, %113 : vector<128x64xf32>
    %115 = arith.mulf %114, %114 : vector<128x64xf32>
    %cst_37 = arith.constant dense<0.000000e+00> : vector<128xf32>
    %116 = vector.multi_reduction <add>, %115, %cst_37 [1] : vector<128x64xf32> to vector<128xf32>
    %117 = vector.shape_cast %116 : vector<128xf32> to vector<128x1xf32>
    %cst_38 = arith.constant 6.400000e+01 : f32
    %118 = vector.broadcast %cst_38 : f32 to vector<128x1xf32>
    %119 = arith.divf %117, %118 : vector<128x1xf32>
    %120 = vector.broadcast %112 : vector<128x1xf32> to vector<128x64xf32>
    %121 = arith.subf %106, %120 : vector<128x64xf32>
    %cst_39 = arith.constant 9.99999974E-6 : f32
    %122 = vector.broadcast %cst_39 : f32 to vector<128x1xf32>
    %123 = arith.addf %119, %122 : vector<128x1xf32>
    %124 = math.rsqrt %123 : vector<128x1xf32>
    %125 = vector.broadcast %124 : vector<128x1xf32> to vector<128x64xf32>
    %126 = arith.mulf %121, %125 : vector<128x64xf32>
    %127 = vector.broadcast %107 : vector<1x64xf32> to vector<128x64xf32>
    %128 = arith.mulf %126, %127 : vector<128x64xf32>
    %129 = vector.broadcast %108 : vector<1x64xf32> to vector<128x64xf32>
    %130 = arith.addf %128, %129 : vector<128x64xf32>
    %131 = arith.truncf %130 : vector<128x64xf32> to vector<128x64xbf16>
    %c0_40 = arith.constant 0 : index
    %c0_41 = arith.constant 0 : index
    %132 = vector.load %arg8[%c0_40, %c0_41] : memref<64x512xbf16, #tpu.memory_space<vmem>>, vector<64x512xbf16>
    %cst_42 = arith.constant dense<0.000000e+00> : vector<128x512xf32>
    %133 = tpu.matmul %131, %132, %cst_42 {dimension_numbers = #tpu.dot_dimension_numbers<[1], [0], [0], [1], [0, 0, 1, 1], [], []>} : vector<128x64xbf16>, vector<64x512xbf16>, vector<128x512xf32> -> vector<128x512xf32>
    %c0_43 = arith.constant 0 : index
    %c0_44 = arith.constant 0 : index
    %134 = vector.load %arg9[%c0_43, %c0_44] : memref<1x512xf32, #tpu.memory_space<vmem>>, vector<1x512xf32>
    %135 = vector.broadcast %134 : vector<1x512xf32> to vector<128x512xf32>
    %136 = arith.addf %133, %135 : vector<128x512xf32>
    %cst_45 = arith.constant 0.000000e+00 : f32
    %137 = vector.broadcast %cst_45 : f32 to vector<128x512xf32>
    %138 = arith.maximumf %136, %137 : vector<128x512xf32>
    %139 = arith.truncf %138 : vector<128x512xf32> to vector<128x512xbf16>
    %c0_46 = arith.constant 0 : index
    %c0_47 = arith.constant 0 : index
    %140 = vector.load %arg10[%c0_46, %c0_47] : memref<512x64xbf16, #tpu.memory_space<vmem>>, vector<512x64xbf16>
    %cst_48 = arith.constant dense<0.000000e+00> : vector<128x64xf32>
    %141 = tpu.matmul %139, %140, %cst_48 {dimension_numbers = #tpu.dot_dimension_numbers<[1], [0], [0], [1], [0, 0, 1, 1], [], []>} : vector<128x512xbf16>, vector<512x64xbf16>, vector<128x64xf32> -> vector<128x64xf32>
    %c0_49 = arith.constant 0 : index
    %c0_50 = arith.constant 0 : index
    %142 = vector.load %arg11[%c0_49, %c0_50] : memref<1x64xf32, #tpu.memory_space<vmem>>, vector<1x64xf32>
    %143 = vector.broadcast %142 : vector<1x64xf32> to vector<128x64xf32>
    %144 = arith.addf %141, %143 : vector<128x64xf32>
    %145 = arith.addf %130, %144 : vector<128x64xf32>
    %c0_51 = arith.constant 0 : index
    %c0_52 = arith.constant 0 : index
    %146 = vector.load %arg12[%c0_51, %c0_52] : memref<1x64xf32, #tpu.memory_space<vmem>>, vector<1x64xf32>
    %c0_53 = arith.constant 0 : index
    %c0_54 = arith.constant 0 : index
    %147 = vector.load %arg13[%c0_53, %c0_54] : memref<1x64xf32, #tpu.memory_space<vmem>>, vector<1x64xf32>
    %cst_55 = arith.constant dense<0.000000e+00> : vector<128xf32>
    %148 = vector.multi_reduction <add>, %145, %cst_55 [1] : vector<128x64xf32> to vector<128xf32>
    %149 = vector.shape_cast %148 : vector<128xf32> to vector<128x1xf32>
    %cst_56 = arith.constant 6.400000e+01 : f32
    %150 = vector.broadcast %cst_56 : f32 to vector<128x1xf32>
    %151 = arith.divf %149, %150 : vector<128x1xf32>
    %152 = vector.broadcast %151 : vector<128x1xf32> to vector<128x64xf32>
    %153 = arith.subf %145, %152 : vector<128x64xf32>
    %154 = arith.mulf %153, %153 : vector<128x64xf32>
    %cst_57 = arith.constant dense<0.000000e+00> : vector<128xf32>
    %155 = vector.multi_reduction <add>, %154, %cst_57 [1] : vector<128x64xf32> to vector<128xf32>
    %156 = vector.shape_cast %155 : vector<128xf32> to vector<128x1xf32>
    %cst_58 = arith.constant 6.400000e+01 : f32
    %157 = vector.broadcast %cst_58 : f32 to vector<128x1xf32>
    %158 = arith.divf %156, %157 : vector<128x1xf32>
    %159 = vector.broadcast %151 : vector<128x1xf32> to vector<128x64xf32>
    %160 = arith.subf %145, %159 : vector<128x64xf32>
    %cst_59 = arith.constant 9.99999974E-6 : f32
    %161 = vector.broadcast %cst_59 : f32 to vector<128x1xf32>
    %162 = arith.addf %158, %161 : vector<128x1xf32>
    %163 = math.rsqrt %162 : vector<128x1xf32>
    %164 = vector.broadcast %163 : vector<128x1xf32> to vector<128x64xf32>
    %165 = arith.mulf %160, %164 : vector<128x64xf32>
    %166 = vector.broadcast %146 : vector<1x64xf32> to vector<128x64xf32>
    %167 = arith.mulf %165, %166 : vector<128x64xf32>
    %168 = vector.broadcast %147 : vector<1x64xf32> to vector<128x64xf32>
    %169 = arith.addf %167, %168 : vector<128x64xf32>
    %170 = vector.shape_cast %169 : vector<128x64xf32> to vector<16x8x64xf32>
    %c0_60 = arith.constant 0 : index
    %c0_61 = arith.constant 0 : index
    %c0_62 = arith.constant 0 : index
    %171 = vector.load %arg14[%c0_60, %c0_61, %c0_62] : memref<16x8x64xf32, #tpu.memory_space<vmem>>, vector<16x8x64xf32>
    tpu.vector_store %arg14[%c0_60, %c0_61, %c0_62], %170 {strides = array<i32>} : memref<16x8x64xf32, #tpu.memory_space<vmem>>, vector<16x8x64xf32>,
    return
  }
  func.func @transform_0(%arg0: i32) -> (i32, i32, i32) {
    %c0_i32 = arith.constant 0 : i32
    %c0_i32_0 = arith.constant 0 : i32
    %c0_i32_1 = arith.constant 0 : i32
    return %arg0, %c0_i32, %c0_i32_0 : i32, i32, i32
  }
  func.func @transform_1(%arg0: i32) -> (i32, i32) {
    %c0_i32 = arith.constant 0 : i32
    %c0_i32_0 = arith.constant 0 : i32
    %c0_i32_1 = arith.constant 0 : i32
    return %c0_i32, %c0_i32_0 : i32, i32
  }
  func.func @transform_2(%arg0: i32) -> (i32, i32) {
    %c0_i32 = arith.constant 0 : i32
    %c0_i32_0 = arith.constant 0 : i32
    %c0_i32_1 = arith.constant 0 : i32
    return %c0_i32, %c0_i32_0 : i32, i32
  }
  func.func @transform_3(%arg0: i32) -> (i32, i32) {
    %c0_i32 = arith.constant 0 : i32
    %c0_i32_0 = arith.constant 0 : i32
    %c0_i32_1 = arith.constant 0 : i32
    return %c0_i32, %c0_i32_0 : i32, i32
  }
  func.func @transform_4(%arg0: i32) -> (i32, i32) {
    %c0_i32 = arith.constant 0 : i32
    %c0_i32_0 = arith.constant 0 : i32
    %c0_i32_1 = arith.constant 0 : i32
    return %c0_i32, %c0_i32_0 : i32, i32
  }
  func.func @transform_5(%arg0: i32) -> (i32, i32) {
    %c0_i32 = arith.constant 0 : i32
    %c0_i32_0 = arith.constant 0 : i32
    %c0_i32_1 = arith.constant 0 : i32
    return %c0_i32, %c0_i32_0 : i32, i32
  }
  func.func @transform_6(%arg0: i32) -> (i32, i32) {
    %c0_i32 = arith.constant 0 : i32
    %c0_i32_0 = arith.constant 0 : i32
    %c0_i32_1 = arith.constant 0 : i32
    return %c0_i32, %c0_i32_0 : i32, i32
  }
  func.func @transform_7(%arg0: i32) -> (i32, i32) {
    %c0_i32 = arith.constant 0 : i32
    %c0_i32_0 = arith.constant 0 : i32
    %c0_i32_1 = arith.constant 0 : i32
    return %c0_i32, %c0_i32_0 : i32, i32
  }
  func.func @transform_8(%arg0: i32) -> (i32, i32) {
    %c0_i32 = arith.constant 0 : i32
    %c0_i32_0 = arith.constant 0 : i32
    %c0_i32_1 = arith.constant 0 : i32
    return %c0_i32, %c0_i32_0 : i32, i32
  }
  func.func @transform_9(%arg0: i32) -> (i32, i32) {
    %c0_i32 = arith.constant 0 : i32
    %c0_i32_0 = arith.constant 0 : i32
    %c0_i32_1 = arith.constant 0 : i32
    return %c0_i32, %c0_i32_0 : i32, i32
  }
  func.func @transform_10(%arg0: i32) -> (i32, i32) {
    %c0_i32 = arith.constant 0 : i32
    %c0_i32_0 = arith.constant 0 : i32
    %c0_i32_1 = arith.constant 0 : i32
    return %c0_i32, %c0_i32_0 : i32, i32
  }
  func.func @transform_11(%arg0: i32) -> (i32, i32) {
    %c0_i32 = arith.constant 0 : i32
    %c0_i32_0 = arith.constant 0 : i32
    %c0_i32_1 = arith.constant 0 : i32
    return %c0_i32, %c0_i32_0 : i32, i32
  }
  func.func @transform_12(%arg0: i32) -> (i32, i32) {
    %c0_i32 = arith.constant 0 : i32
    %c0_i32_0 = arith.constant 0 : i32
    %c0_i32_1 = arith.constant 0 : i32
    return %c0_i32, %c0_i32_0 : i32, i32
  }
  func.func @transform_13(%arg0: i32) -> (i32, i32, i32) {
    %c0_i32 = arith.constant 0 : i32
    %c0_i32_0 = arith.constant 0 : i32
    %c0_i32_1 = arith.constant 0 : i32
    return %arg0, %c0_i32, %c0_i32_0 : i32, i32, i32
  }
}

module attributes {stable_mosaic.version = 11 : i64} {
  func.func @_matmul_bias_kernel(%arg0: i32, %arg1: memref<128x64xf32, #tpu.memory_space<vmem>>, %arg2: memref<64x64xbf16, #tpu.memory_space<vmem>>, %arg3: memref<1x64xf32, #tpu.memory_space<vmem>>, %arg4: memref<128x64xf32, #tpu.memory_space<vmem>>) attributes {dimension_semantics = [#tpu.dimension_semantics<parallel>], iteration_bounds = array<i64: 1>, scalar_prefetch = 0 : i64, scratch_operands = 0 : i64, tpu.core_type = #tpu.core_type<tc>, window_params = [{transform_indices = @transform_0, window_bounds = array<i64: 128, 64>}, {pipeline_mode = #tpu.pipeline_mode<synchronous>, transform_indices = @transform_1, window_bounds = array<i64: 64, 64>}, {pipeline_mode = #tpu.pipeline_mode<synchronous>, transform_indices = @transform_2, window_bounds = array<i64: 1, 64>}, {transform_indices = @transform_3, window_bounds = array<i64: 128, 64>}]} {
    %c0 = arith.constant 0 : index
    %c0_0 = arith.constant 0 : index
    %0 = vector.load %arg1[%c0, %c0_0] : memref<128x64xf32, #tpu.memory_space<vmem>>, vector<128x64xf32>
    %1 = arith.truncf %0 : vector<128x64xf32> to vector<128x64xbf16>
    %c0_1 = arith.constant 0 : index
    %c0_2 = arith.constant 0 : index
    %2 = vector.load %arg2[%c0_1, %c0_2] : memref<64x64xbf16, #tpu.memory_space<vmem>>, vector<64x64xbf16>
    %cst = arith.constant dense<0.000000e+00> : vector<128x64xf32>
    %3 = tpu.matmul %1, %2, %cst {dimension_numbers = #tpu.dot_dimension_numbers<[1], [0], [0], [1], [0, 0, 1, 1], [], []>} : vector<128x64xbf16>, vector<64x64xbf16>, vector<128x64xf32> -> vector<128x64xf32>
    %c0_3 = arith.constant 0 : index
    %c0_4 = arith.constant 0 : index
    %4 = vector.load %arg3[%c0_3, %c0_4] : memref<1x64xf32, #tpu.memory_space<vmem>>, vector<1x64xf32>
    %5 = vector.broadcast %4 : vector<1x64xf32> to vector<128x64xf32>
    %6 = arith.addf %3, %5 : vector<128x64xf32>
    %c0_5 = arith.constant 0 : index
    %c0_6 = arith.constant 0 : index
    %7 = vector.load %arg4[%c0_5, %c0_6] : memref<128x64xf32, #tpu.memory_space<vmem>>, vector<128x64xf32>
    tpu.vector_store %arg4[%c0_5, %c0_6], %6 {strides = array<i32>} : memref<128x64xf32, #tpu.memory_space<vmem>>, vector<128x64xf32>,
    return
  }
  func.func @transform_0(%arg0: i32) -> (i32, i32) {
    %c0_i32 = arith.constant 0 : i32
    %c0_i32_0 = arith.constant 0 : i32
    return %arg0, %c0_i32 : i32, i32
  }
  func.func @transform_1(%arg0: i32) -> (i32, i32) {
    %c0_i32 = arith.constant 0 : i32
    %c0_i32_0 = arith.constant 0 : i32
    %c0_i32_1 = arith.constant 0 : i32
    return %c0_i32, %c0_i32_0 : i32, i32
  }
  func.func @transform_2(%arg0: i32) -> (i32, i32) {
    %c0_i32 = arith.constant 0 : i32
    %c0_i32_0 = arith.constant 0 : i32
    %c0_i32_1 = arith.constant 0 : i32
    return %c0_i32, %c0_i32_0 : i32, i32
  }
  func.func @transform_3(%arg0: i32) -> (i32, i32) {
    %c0_i32 = arith.constant 0 : i32
    %c0_i32_0 = arith.constant 0 : i32
    return %arg0, %c0_i32 : i32, i32
  }
}

module attributes {stable_mosaic.version = 11 : i64} {
  func.func @_birnn_scan_kernel(%arg0: i32, %arg1: memref<8x2x16x32xf32, #tpu.memory_space<vmem>>, %arg2: memref<2x32x32xf32, #tpu.memory_space<vmem>>, %arg3: memref<8x2x16x32xf32, #tpu.memory_space<vmem>>) attributes {dimension_semantics = [#tpu.dimension_semantics<parallel>], iteration_bounds = array<i64: 1>, scalar_prefetch = 0 : i64, scratch_operands = 0 : i64, tpu.core_type = #tpu.core_type<tc>, window_params = [{transform_indices = @transform_0, window_bounds = array<i64: 8, 2, 16, 32>}, {pipeline_mode = #tpu.pipeline_mode<synchronous>, transform_indices = @transform_1, window_bounds = array<i64: 2, 32, 32>}, {transform_indices = @transform_2, window_bounds = array<i64: 8, 2, 16, 32>}]} {
    %c0 = arith.constant 0 : index
    %c0_0 = arith.constant 0 : index
    %c0_1 = arith.constant 0 : index
    %0 = vector.load %arg2[%c0, %c0_0, %c0_1] : memref<2x32x32xf32, #tpu.memory_space<vmem>>, vector<2x32x32xf32>
    %1 = vector.extract_strided_slice %0 {offsets = [0, 0, 0], sizes = [1, 32, 32], strides = [1, 1, 1]} : vector<2x32x32xf32> to vector<1x32x32xf32>
    %2 = vector.shape_cast %1 : vector<1x32x32xf32> to vector<32x32xf32>
    %3 = vector.extract_strided_slice %0 {offsets = [1, 0, 0], sizes = [1, 32, 32], strides = [1, 1, 1]} : vector<2x32x32xf32> to vector<1x32x32xf32>
    %4 = vector.shape_cast %3 : vector<1x32x32xf32> to vector<32x32xf32>
    %cst = arith.constant 0.000000e+00 : f32
    %5 = vector.broadcast %cst : f32 to vector<16x32xf32>
    %c0_i32 = arith.constant 0 : i32
    %6 = arith.index_cast %c0_i32 : i32 to index
    %c0_2 = arith.constant 0 : index
    %c0_3 = arith.constant 0 : index
    %c0_4 = arith.constant 0 : index
    %7 = vector.load %arg1[%6, %c0_2, %c0_3, %c0_4] : memref<8x2x16x32xf32, #tpu.memory_space<vmem>>, vector<1x2x16x32xf32>
    %8 = vector.shape_cast %7 : vector<1x2x16x32xf32> to vector<2x16x32xf32>
    %9 = vector.extract_strided_slice %8 {offsets = [0, 0, 0], sizes = [1, 16, 32], strides = [1, 1, 1]} : vector<2x16x32xf32> to vector<1x16x32xf32>
    %10 = vector.shape_cast %9 : vector<1x16x32xf32> to vector<16x32xf32>
    %cst_5 = arith.constant dense<0.000000e+00> : vector<16x32xf32>
    %11 = tpu.matmul %5, %2, %cst_5 {dimension_numbers = #tpu.dot_dimension_numbers<[1], [0], [0], [1], [0, 0, 1, 1], [], []>} : vector<16x32xf32>, vector<32x32xf32>, vector<16x32xf32> -> vector<16x32xf32>
    %12 = arith.addf %10, %11 : vector<16x32xf32>
    %13 = math.tanh %12 : vector<16x32xf32>
    %14 = vector.extract_strided_slice %8 {offsets = [1, 0, 0], sizes = [1, 16, 32], strides = [1, 1, 1]} : vector<2x16x32xf32> to vector<1x16x32xf32>
    %15 = vector.shape_cast %14 : vector<1x16x32xf32> to vector<16x32xf32>
    %cst_6 = arith.constant dense<0.000000e+00> : vector<16x32xf32>
    %16 = tpu.matmul %5, %4, %cst_6 {dimension_numbers = #tpu.dot_dimension_numbers<[1], [0], [0], [1], [0, 0, 1, 1], [], []>} : vector<16x32xf32>, vector<32x32xf32>, vector<16x32xf32> -> vector<16x32xf32>
    %17 = arith.addf %15, %16 : vector<16x32xf32>
    %18 = math.tanh %17 : vector<16x32xf32>
    %19 = vector.shape_cast %13 : vector<16x32xf32> to vector<1x16x32xf32>
    %20 = vector.shape_cast %18 : vector<16x32xf32> to vector<1x16x32xf32>
    %21 = tpu.concatenate %19, %20 in 0 : vector<1x16x32xf32>, vector<1x16x32xf32> -> vector<2x16x32xf32>
    %22 = arith.index_cast %c0_i32 : i32 to index
    %c0_7 = arith.constant 0 : index
    %c0_8 = arith.constant 0 : index
    %c0_9 = arith.constant 0 : index
    %23 = vector.load %arg3[%22, %c0_7, %c0_8, %c0_9] : memref<8x2x16x32xf32, #tpu.memory_space<vmem>>, vector<1x2x16x32xf32>
    %24 = vector.shape_cast %23 : vector<1x2x16x32xf32> to vector<2x16x32xf32>
    %25 = vector.shape_cast %21 : vector<2x16x32xf32> to vector<1x2x16x32xf32>
    tpu.vector_store %arg3[%22, %c0_7, %c0_8, %c0_9], %25 {strides = array<i32>} : memref<8x2x16x32xf32, #tpu.memory_space<vmem>>, vector<1x2x16x32xf32>,
    %c1_i32 = arith.constant 1 : i32
    %26 = arith.index_cast %c1_i32 : i32 to index
    %c0_10 = arith.constant 0 : index
    %c0_11 = arith.constant 0 : index
    %c0_12 = arith.constant 0 : index
    %27 = vector.load %arg1[%26, %c0_10, %c0_11, %c0_12] : memref<8x2x16x32xf32, #tpu.memory_space<vmem>>, vector<1x2x16x32xf32>
    %28 = vector.shape_cast %27 : vector<1x2x16x32xf32> to vector<2x16x32xf32>
    %29 = vector.extract_strided_slice %28 {offsets = [0, 0, 0], sizes = [1, 16, 32], strides = [1, 1, 1]} : vector<2x16x32xf32> to vector<1x16x32xf32>
    %30 = vector.shape_cast %29 : vector<1x16x32xf32> to vector<16x32xf32>
    %cst_13 = arith.constant dense<0.000000e+00> : vector<16x32xf32>
    %31 = tpu.matmul %13, %2, %cst_13 {dimension_numbers = #tpu.dot_dimension_numbers<[1], [0], [0], [1], [0, 0, 1, 1], [], []>} : vector<16x32xf32>, vector<32x32xf32>, vector<16x32xf32> -> vector<16x32xf32>
    %32 = arith.addf %30, %31 : vector<16x32xf32>
    %33 = math.tanh %32 : vector<16x32xf32>
    %34 = vector.extract_strided_slice %28 {offsets = [1, 0, 0], sizes = [1, 16, 32], strides = [1, 1, 1]} : vector<2x16x32xf32> to vector<1x16x32xf32>
    %35 = vector.shape_cast %34 : vector<1x16x32xf32> to vector<16x32xf32>
    %cst_14 = arith.constant dense<0.000000e+00> : vector<16x32xf32>
    %36 = tpu.matmul %18, %4, %cst_14 {dimension_numbers = #tpu.dot_dimension_numbers<[1], [0], [0], [1], [0, 0, 1, 1], [], []>} : vector<16x32xf32>, vector<32x32xf32>, vector<16x32xf32> -> vector<16x32xf32>
    %37 = arith.addf %35, %36 : vector<16x32xf32>
    %38 = math.tanh %37 : vector<16x32xf32>
    %39 = vector.shape_cast %33 : vector<16x32xf32> to vector<1x16x32xf32>
    %40 = vector.shape_cast %38 : vector<16x32xf32> to vector<1x16x32xf32>
    %41 = tpu.concatenate %39, %40 in 0 : vector<1x16x32xf32>, vector<1x16x32xf32> -> vector<2x16x32xf32>
    %42 = arith.index_cast %c1_i32 : i32 to index
    %c0_15 = arith.constant 0 : index
    %c0_16 = arith.constant 0 : index
    %c0_17 = arith.constant 0 : index
    %43 = vector.load %arg3[%42, %c0_15, %c0_16, %c0_17] : memref<8x2x16x32xf32, #tpu.memory_space<vmem>>, vector<1x2x16x32xf32>
    %44 = vector.shape_cast %43 : vector<1x2x16x32xf32> to vector<2x16x32xf32>
    %45 = vector.shape_cast %41 : vector<2x16x32xf32> to vector<1x2x16x32xf32>
    tpu.vector_store %arg3[%42, %c0_15, %c0_16, %c0_17], %45 {strides = array<i32>} : memref<8x2x16x32xf32, #tpu.memory_space<vmem>>, vector<1x2x16x32xf32>,
    %c2_i32 = arith.constant 2 : i32
    %46 = arith.index_cast %c2_i32 : i32 to index
    %c0_18 = arith.constant 0 : index
    %c0_19 = arith.constant 0 : index
    %c0_20 = arith.constant 0 : index
    %47 = vector.load %arg1[%46, %c0_18, %c0_19, %c0_20] : memref<8x2x16x32xf32, #tpu.memory_space<vmem>>, vector<1x2x16x32xf32>
    %48 = vector.shape_cast %47 : vector<1x2x16x32xf32> to vector<2x16x32xf32>
    %49 = vector.extract_strided_slice %48 {offsets = [0, 0, 0], sizes = [1, 16, 32], strides = [1, 1, 1]} : vector<2x16x32xf32> to vector<1x16x32xf32>
    %50 = vector.shape_cast %49 : vector<1x16x32xf32> to vector<16x32xf32>
    %cst_21 = arith.constant dense<0.000000e+00> : vector<16x32xf32>
    %51 = tpu.matmul %33, %2, %cst_21 {dimension_numbers = #tpu.dot_dimension_numbers<[1], [0], [0], [1], [0, 0, 1, 1], [], []>} : vector<16x32xf32>, vector<32x32xf32>, vector<16x32xf32> -> vector<16x32xf32>
    %52 = arith.addf %50, %51 : vector<16x32xf32>
    %53 = math.tanh %52 : vector<16x32xf32>
    %54 = vector.extract_strided_slice %48 {offsets = [1, 0, 0], sizes = [1, 16, 32], strides = [1, 1, 1]} : vector<2x16x32xf32> to vector<1x16x32xf32>
    %55 = vector.shape_cast %54 : vector<1x16x32xf32> to vector<16x32xf32>
    %cst_22 = arith.constant dense<0.000000e+00> : vector<16x32xf32>
    %56 = tpu.matmul %38, %4, %cst_22 {dimension_numbers = #tpu.dot_dimension_numbers<[1], [0], [0], [1], [0, 0, 1, 1], [], []>} : vector<16x32xf32>, vector<32x32xf32>, vector<16x32xf32> -> vector<16x32xf32>
    %57 = arith.addf %55, %56 : vector<16x32xf32>
    %58 = math.tanh %57 : vector<16x32xf32>
    %59 = vector.shape_cast %53 : vector<16x32xf32> to vector<1x16x32xf32>
    %60 = vector.shape_cast %58 : vector<16x32xf32> to vector<1x16x32xf32>
    %61 = tpu.concatenate %59, %60 in 0 : vector<1x16x32xf32>, vector<1x16x32xf32> -> vector<2x16x32xf32>
    %62 = arith.index_cast %c2_i32 : i32 to index
    %c0_23 = arith.constant 0 : index
    %c0_24 = arith.constant 0 : index
    %c0_25 = arith.constant 0 : index
    %63 = vector.load %arg3[%62, %c0_23, %c0_24, %c0_25] : memref<8x2x16x32xf32, #tpu.memory_space<vmem>>, vector<1x2x16x32xf32>
    %64 = vector.shape_cast %63 : vector<1x2x16x32xf32> to vector<2x16x32xf32>
    %65 = vector.shape_cast %61 : vector<2x16x32xf32> to vector<1x2x16x32xf32>
    tpu.vector_store %arg3[%62, %c0_23, %c0_24, %c0_25], %65 {strides = array<i32>} : memref<8x2x16x32xf32, #tpu.memory_space<vmem>>, vector<1x2x16x32xf32>,
    %c3_i32 = arith.constant 3 : i32
    %66 = arith.index_cast %c3_i32 : i32 to index
    %c0_26 = arith.constant 0 : index
    %c0_27 = arith.constant 0 : index
    %c0_28 = arith.constant 0 : index
    %67 = vector.load %arg1[%66, %c0_26, %c0_27, %c0_28] : memref<8x2x16x32xf32, #tpu.memory_space<vmem>>, vector<1x2x16x32xf32>
    %68 = vector.shape_cast %67 : vector<1x2x16x32xf32> to vector<2x16x32xf32>
    %69 = vector.extract_strided_slice %68 {offsets = [0, 0, 0], sizes = [1, 16, 32], strides = [1, 1, 1]} : vector<2x16x32xf32> to vector<1x16x32xf32>
    %70 = vector.shape_cast %69 : vector<1x16x32xf32> to vector<16x32xf32>
    %cst_29 = arith.constant dense<0.000000e+00> : vector<16x32xf32>
    %71 = tpu.matmul %53, %2, %cst_29 {dimension_numbers = #tpu.dot_dimension_numbers<[1], [0], [0], [1], [0, 0, 1, 1], [], []>} : vector<16x32xf32>, vector<32x32xf32>, vector<16x32xf32> -> vector<16x32xf32>
    %72 = arith.addf %70, %71 : vector<16x32xf32>
    %73 = math.tanh %72 : vector<16x32xf32>
    %74 = vector.extract_strided_slice %68 {offsets = [1, 0, 0], sizes = [1, 16, 32], strides = [1, 1, 1]} : vector<2x16x32xf32> to vector<1x16x32xf32>
    %75 = vector.shape_cast %74 : vector<1x16x32xf32> to vector<16x32xf32>
    %cst_30 = arith.constant dense<0.000000e+00> : vector<16x32xf32>
    %76 = tpu.matmul %58, %4, %cst_30 {dimension_numbers = #tpu.dot_dimension_numbers<[1], [0], [0], [1], [0, 0, 1, 1], [], []>} : vector<16x32xf32>, vector<32x32xf32>, vector<16x32xf32> -> vector<16x32xf32>
    %77 = arith.addf %75, %76 : vector<16x32xf32>
    %78 = math.tanh %77 : vector<16x32xf32>
    %79 = vector.shape_cast %73 : vector<16x32xf32> to vector<1x16x32xf32>
    %80 = vector.shape_cast %78 : vector<16x32xf32> to vector<1x16x32xf32>
    %81 = tpu.concatenate %79, %80 in 0 : vector<1x16x32xf32>, vector<1x16x32xf32> -> vector<2x16x32xf32>
    %82 = arith.index_cast %c3_i32 : i32 to index
    %c0_31 = arith.constant 0 : index
    %c0_32 = arith.constant 0 : index
    %c0_33 = arith.constant 0 : index
    %83 = vector.load %arg3[%82, %c0_31, %c0_32, %c0_33] : memref<8x2x16x32xf32, #tpu.memory_space<vmem>>, vector<1x2x16x32xf32>
    %84 = vector.shape_cast %83 : vector<1x2x16x32xf32> to vector<2x16x32xf32>
    %85 = vector.shape_cast %81 : vector<2x16x32xf32> to vector<1x2x16x32xf32>
    tpu.vector_store %arg3[%82, %c0_31, %c0_32, %c0_33], %85 {strides = array<i32>} : memref<8x2x16x32xf32, #tpu.memory_space<vmem>>, vector<1x2x16x32xf32>,
    %c4_i32 = arith.constant 4 : i32
    %86 = arith.index_cast %c4_i32 : i32 to index
    %c0_34 = arith.constant 0 : index
    %c0_35 = arith.constant 0 : index
    %c0_36 = arith.constant 0 : index
    %87 = vector.load %arg1[%86, %c0_34, %c0_35, %c0_36] : memref<8x2x16x32xf32, #tpu.memory_space<vmem>>, vector<1x2x16x32xf32>
    %88 = vector.shape_cast %87 : vector<1x2x16x32xf32> to vector<2x16x32xf32>
    %89 = vector.extract_strided_slice %88 {offsets = [0, 0, 0], sizes = [1, 16, 32], strides = [1, 1, 1]} : vector<2x16x32xf32> to vector<1x16x32xf32>
    %90 = vector.shape_cast %89 : vector<1x16x32xf32> to vector<16x32xf32>
    %cst_37 = arith.constant dense<0.000000e+00> : vector<16x32xf32>
    %91 = tpu.matmul %73, %2, %cst_37 {dimension_numbers = #tpu.dot_dimension_numbers<[1], [0], [0], [1], [0, 0, 1, 1], [], []>} : vector<16x32xf32>, vector<32x32xf32>, vector<16x32xf32> -> vector<16x32xf32>
    %92 = arith.addf %90, %91 : vector<16x32xf32>
    %93 = math.tanh %92 : vector<16x32xf32>
    %94 = vector.extract_strided_slice %88 {offsets = [1, 0, 0], sizes = [1, 16, 32], strides = [1, 1, 1]} : vector<2x16x32xf32> to vector<1x16x32xf32>
    %95 = vector.shape_cast %94 : vector<1x16x32xf32> to vector<16x32xf32>
    %cst_38 = arith.constant dense<0.000000e+00> : vector<16x32xf32>
    %96 = tpu.matmul %78, %4, %cst_38 {dimension_numbers = #tpu.dot_dimension_numbers<[1], [0], [0], [1], [0, 0, 1, 1], [], []>} : vector<16x32xf32>, vector<32x32xf32>, vector<16x32xf32> -> vector<16x32xf32>
    %97 = arith.addf %95, %96 : vector<16x32xf32>
    %98 = math.tanh %97 : vector<16x32xf32>
    %99 = vector.shape_cast %93 : vector<16x32xf32> to vector<1x16x32xf32>
    %100 = vector.shape_cast %98 : vector<16x32xf32> to vector<1x16x32xf32>
    %101 = tpu.concatenate %99, %100 in 0 : vector<1x16x32xf32>, vector<1x16x32xf32> -> vector<2x16x32xf32>
    %102 = arith.index_cast %c4_i32 : i32 to index
    %c0_39 = arith.constant 0 : index
    %c0_40 = arith.constant 0 : index
    %c0_41 = arith.constant 0 : index
    %103 = vector.load %arg3[%102, %c0_39, %c0_40, %c0_41] : memref<8x2x16x32xf32, #tpu.memory_space<vmem>>, vector<1x2x16x32xf32>
    %104 = vector.shape_cast %103 : vector<1x2x16x32xf32> to vector<2x16x32xf32>
    %105 = vector.shape_cast %101 : vector<2x16x32xf32> to vector<1x2x16x32xf32>
    tpu.vector_store %arg3[%102, %c0_39, %c0_40, %c0_41], %105 {strides = array<i32>} : memref<8x2x16x32xf32, #tpu.memory_space<vmem>>, vector<1x2x16x32xf32>,
    %c5_i32 = arith.constant 5 : i32
    %106 = arith.index_cast %c5_i32 : i32 to index
    %c0_42 = arith.constant 0 : index
    %c0_43 = arith.constant 0 : index
    %c0_44 = arith.constant 0 : index
    %107 = vector.load %arg1[%106, %c0_42, %c0_43, %c0_44] : memref<8x2x16x32xf32, #tpu.memory_space<vmem>>, vector<1x2x16x32xf32>
    %108 = vector.shape_cast %107 : vector<1x2x16x32xf32> to vector<2x16x32xf32>
    %109 = vector.extract_strided_slice %108 {offsets = [0, 0, 0], sizes = [1, 16, 32], strides = [1, 1, 1]} : vector<2x16x32xf32> to vector<1x16x32xf32>
    %110 = vector.shape_cast %109 : vector<1x16x32xf32> to vector<16x32xf32>
    %cst_45 = arith.constant dense<0.000000e+00> : vector<16x32xf32>
    %111 = tpu.matmul %93, %2, %cst_45 {dimension_numbers = #tpu.dot_dimension_numbers<[1], [0], [0], [1], [0, 0, 1, 1], [], []>} : vector<16x32xf32>, vector<32x32xf32>, vector<16x32xf32> -> vector<16x32xf32>
    %112 = arith.addf %110, %111 : vector<16x32xf32>
    %113 = math.tanh %112 : vector<16x32xf32>
    %114 = vector.extract_strided_slice %108 {offsets = [1, 0, 0], sizes = [1, 16, 32], strides = [1, 1, 1]} : vector<2x16x32xf32> to vector<1x16x32xf32>
    %115 = vector.shape_cast %114 : vector<1x16x32xf32> to vector<16x32xf32>
    %cst_46 = arith.constant dense<0.000000e+00> : vector<16x32xf32>
    %116 = tpu.matmul %98, %4, %cst_46 {dimension_numbers = #tpu.dot_dimension_numbers<[1], [0], [0], [1], [0, 0, 1, 1], [], []>} : vector<16x32xf32>, vector<32x32xf32>, vector<16x32xf32> -> vector<16x32xf32>
    %117 = arith.addf %115, %116 : vector<16x32xf32>
    %118 = math.tanh %117 : vector<16x32xf32>
    %119 = vector.shape_cast %113 : vector<16x32xf32> to vector<1x16x32xf32>
    %120 = vector.shape_cast %118 : vector<16x32xf32> to vector<1x16x32xf32>
    %121 = tpu.concatenate %119, %120 in 0 : vector<1x16x32xf32>, vector<1x16x32xf32> -> vector<2x16x32xf32>
    %122 = arith.index_cast %c5_i32 : i32 to index
    %c0_47 = arith.constant 0 : index
    %c0_48 = arith.constant 0 : index
    %c0_49 = arith.constant 0 : index
    %123 = vector.load %arg3[%122, %c0_47, %c0_48, %c0_49] : memref<8x2x16x32xf32, #tpu.memory_space<vmem>>, vector<1x2x16x32xf32>
    %124 = vector.shape_cast %123 : vector<1x2x16x32xf32> to vector<2x16x32xf32>
    %125 = vector.shape_cast %121 : vector<2x16x32xf32> to vector<1x2x16x32xf32>
    tpu.vector_store %arg3[%122, %c0_47, %c0_48, %c0_49], %125 {strides = array<i32>} : memref<8x2x16x32xf32, #tpu.memory_space<vmem>>, vector<1x2x16x32xf32>,
    %c6_i32 = arith.constant 6 : i32
    %126 = arith.index_cast %c6_i32 : i32 to index
    %c0_50 = arith.constant 0 : index
    %c0_51 = arith.constant 0 : index
    %c0_52 = arith.constant 0 : index
    %127 = vector.load %arg1[%126, %c0_50, %c0_51, %c0_52] : memref<8x2x16x32xf32, #tpu.memory_space<vmem>>, vector<1x2x16x32xf32>
    %128 = vector.shape_cast %127 : vector<1x2x16x32xf32> to vector<2x16x32xf32>
    %129 = vector.extract_strided_slice %128 {offsets = [0, 0, 0], sizes = [1, 16, 32], strides = [1, 1, 1]} : vector<2x16x32xf32> to vector<1x16x32xf32>
    %130 = vector.shape_cast %129 : vector<1x16x32xf32> to vector<16x32xf32>
    %cst_53 = arith.constant dense<0.000000e+00> : vector<16x32xf32>
    %131 = tpu.matmul %113, %2, %cst_53 {dimension_numbers = #tpu.dot_dimension_numbers<[1], [0], [0], [1], [0, 0, 1, 1], [], []>} : vector<16x32xf32>, vector<32x32xf32>, vector<16x32xf32> -> vector<16x32xf32>
    %132 = arith.addf %130, %131 : vector<16x32xf32>
    %133 = math.tanh %132 : vector<16x32xf32>
    %134 = vector.extract_strided_slice %128 {offsets = [1, 0, 0], sizes = [1, 16, 32], strides = [1, 1, 1]} : vector<2x16x32xf32> to vector<1x16x32xf32>
    %135 = vector.shape_cast %134 : vector<1x16x32xf32> to vector<16x32xf32>
    %cst_54 = arith.constant dense<0.000000e+00> : vector<16x32xf32>
    %136 = tpu.matmul %118, %4, %cst_54 {dimension_numbers = #tpu.dot_dimension_numbers<[1], [0], [0], [1], [0, 0, 1, 1], [], []>} : vector<16x32xf32>, vector<32x32xf32>, vector<16x32xf32> -> vector<16x32xf32>
    %137 = arith.addf %135, %136 : vector<16x32xf32>
    %138 = math.tanh %137 : vector<16x32xf32>
    %139 = vector.shape_cast %133 : vector<16x32xf32> to vector<1x16x32xf32>
    %140 = vector.shape_cast %138 : vector<16x32xf32> to vector<1x16x32xf32>
    %141 = tpu.concatenate %139, %140 in 0 : vector<1x16x32xf32>, vector<1x16x32xf32> -> vector<2x16x32xf32>
    %142 = arith.index_cast %c6_i32 : i32 to index
    %c0_55 = arith.constant 0 : index
    %c0_56 = arith.constant 0 : index
    %c0_57 = arith.constant 0 : index
    %143 = vector.load %arg3[%142, %c0_55, %c0_56, %c0_57] : memref<8x2x16x32xf32, #tpu.memory_space<vmem>>, vector<1x2x16x32xf32>
    %144 = vector.shape_cast %143 : vector<1x2x16x32xf32> to vector<2x16x32xf32>
    %145 = vector.shape_cast %141 : vector<2x16x32xf32> to vector<1x2x16x32xf32>
    tpu.vector_store %arg3[%142, %c0_55, %c0_56, %c0_57], %145 {strides = array<i32>} : memref<8x2x16x32xf32, #tpu.memory_space<vmem>>, vector<1x2x16x32xf32>,
    %c7_i32 = arith.constant 7 : i32
    %146 = arith.index_cast %c7_i32 : i32 to index
    %c0_58 = arith.constant 0 : index
    %c0_59 = arith.constant 0 : index
    %c0_60 = arith.constant 0 : index
    %147 = vector.load %arg1[%146, %c0_58, %c0_59, %c0_60] : memref<8x2x16x32xf32, #tpu.memory_space<vmem>>, vector<1x2x16x32xf32>
    %148 = vector.shape_cast %147 : vector<1x2x16x32xf32> to vector<2x16x32xf32>
    %149 = vector.extract_strided_slice %148 {offsets = [0, 0, 0], sizes = [1, 16, 32], strides = [1, 1, 1]} : vector<2x16x32xf32> to vector<1x16x32xf32>
    %150 = vector.shape_cast %149 : vector<1x16x32xf32> to vector<16x32xf32>
    %cst_61 = arith.constant dense<0.000000e+00> : vector<16x32xf32>
    %151 = tpu.matmul %133, %2, %cst_61 {dimension_numbers = #tpu.dot_dimension_numbers<[1], [0], [0], [1], [0, 0, 1, 1], [], []>} : vector<16x32xf32>, vector<32x32xf32>, vector<16x32xf32> -> vector<16x32xf32>
    %152 = arith.addf %150, %151 : vector<16x32xf32>
    %153 = math.tanh %152 : vector<16x32xf32>
    %154 = vector.extract_strided_slice %148 {offsets = [1, 0, 0], sizes = [1, 16, 32], strides = [1, 1, 1]} : vector<2x16x32xf32> to vector<1x16x32xf32>
    %155 = vector.shape_cast %154 : vector<1x16x32xf32> to vector<16x32xf32>
    %cst_62 = arith.constant dense<0.000000e+00> : vector<16x32xf32>
    %156 = tpu.matmul %138, %4, %cst_62 {dimension_numbers = #tpu.dot_dimension_numbers<[1], [0], [0], [1], [0, 0, 1, 1], [], []>} : vector<16x32xf32>, vector<32x32xf32>, vector<16x32xf32> -> vector<16x32xf32>
    %157 = arith.addf %155, %156 : vector<16x32xf32>
    %158 = math.tanh %157 : vector<16x32xf32>
    %159 = vector.shape_cast %153 : vector<16x32xf32> to vector<1x16x32xf32>
    %160 = vector.shape_cast %158 : vector<16x32xf32> to vector<1x16x32xf32>
    %161 = tpu.concatenate %159, %160 in 0 : vector<1x16x32xf32>, vector<1x16x32xf32> -> vector<2x16x32xf32>
    %162 = arith.index_cast %c7_i32 : i32 to index
    %c0_63 = arith.constant 0 : index
    %c0_64 = arith.constant 0 : index
    %c0_65 = arith.constant 0 : index
    %163 = vector.load %arg3[%162, %c0_63, %c0_64, %c0_65] : memref<8x2x16x32xf32, #tpu.memory_space<vmem>>, vector<1x2x16x32xf32>
    %164 = vector.shape_cast %163 : vector<1x2x16x32xf32> to vector<2x16x32xf32>
    %165 = vector.shape_cast %161 : vector<2x16x32xf32> to vector<1x2x16x32xf32>
    tpu.vector_store %arg3[%162, %c0_63, %c0_64, %c0_65], %165 {strides = array<i32>} : memref<8x2x16x32xf32, #tpu.memory_space<vmem>>, vector<1x2x16x32xf32>,
    %c8_i32 = arith.constant 8 : i32
    return
  }
  func.func @transform_0(%arg0: i32) -> (i32, i32, i32, i32) {
    %c0_i32 = arith.constant 0 : i32
    %c0_i32_0 = arith.constant 0 : i32
    %c0_i32_1 = arith.constant 0 : i32
    %c0_i32_2 = arith.constant 0 : i32
    return %c0_i32, %c0_i32_0, %arg0, %c0_i32_1 : i32, i32, i32, i32
  }
  func.func @transform_1(%arg0: i32) -> (i32, i32, i32) {
    %c0_i32 = arith.constant 0 : i32
    %c0_i32_0 = arith.constant 0 : i32
    %c0_i32_1 = arith.constant 0 : i32
    %c0_i32_2 = arith.constant 0 : i32
    return %c0_i32, %c0_i32_0, %c0_i32_1 : i32, i32, i32
  }
  func.func @transform_2(%arg0: i32) -> (i32, i32, i32, i32) {
    %c0_i32 = arith.constant 0 : i32
    %c0_i32_0 = arith.constant 0 : i32
    %c0_i32_1 = arith.constant 0 : i32
    %c0_i32_2 = arith.constant 0 : i32
    return %c0_i32, %c0_i32_0, %arg0, %c0_i32_1 : i32, i32, i32, i32
  }
}

module attributes {stable_mosaic.version = 11 : i64} {
  func.func @_linear_gln_residual_kernel(%arg0: i32, %arg1: memref<1x64x64xf32, #tpu.memory_space<vmem>>, %arg2: memref<1x64x64xf32, #tpu.memory_space<vmem>>, %arg3: memref<64x64xbf16, #tpu.memory_space<vmem>>, %arg4: memref<1x64xf32, #tpu.memory_space<vmem>>, %arg5: memref<1x64xf32, #tpu.memory_space<vmem>>, %arg6: memref<1x64xf32, #tpu.memory_space<vmem>>, %arg7: memref<1x64x64xf32, #tpu.memory_space<vmem>>) attributes {dimension_semantics = [#tpu.dimension_semantics<parallel>], iteration_bounds = array<i64: 2>, scalar_prefetch = 0 : i64, scratch_operands = 0 : i64, tpu.core_type = #tpu.core_type<tc>, window_params = [{transform_indices = @transform_0, window_bounds = array<i64: 1, 64, 64>}, {transform_indices = @transform_1, window_bounds = array<i64: 1, 64, 64>}, {pipeline_mode = #tpu.pipeline_mode<synchronous>, transform_indices = @transform_2, window_bounds = array<i64: 64, 64>}, {pipeline_mode = #tpu.pipeline_mode<synchronous>, transform_indices = @transform_3, window_bounds = array<i64: 1, 64>}, {pipeline_mode = #tpu.pipeline_mode<synchronous>, transform_indices = @transform_4, window_bounds = array<i64: 1, 64>}, {pipeline_mode = #tpu.pipeline_mode<synchronous>, transform_indices = @transform_5, window_bounds = array<i64: 1, 64>}, {transform_indices = @transform_6, window_bounds = array<i64: 1, 64, 64>}]} {
    %c0 = arith.constant 0 : index
    %c0_0 = arith.constant 0 : index
    %c0_1 = arith.constant 0 : index
    %0 = vector.load %arg1[%c0, %c0_0, %c0_1] : memref<1x64x64xf32, #tpu.memory_space<vmem>>, vector<1x64x64xf32>
    %1 = vector.shape_cast %0 : vector<1x64x64xf32> to vector<64x64xf32>
    %2 = arith.truncf %1 : vector<64x64xf32> to vector<64x64xbf16>
    %c0_2 = arith.constant 0 : index
    %c0_3 = arith.constant 0 : index
    %3 = vector.load %arg3[%c0_2, %c0_3] : memref<64x64xbf16, #tpu.memory_space<vmem>>, vector<64x64xbf16>
    %cst = arith.constant dense<0.000000e+00> : vector<64x64xf32>
    %4 = tpu.matmul %2, %3, %cst {dimension_numbers = #tpu.dot_dimension_numbers<[1], [0], [0], [1], [0, 0, 1, 1], [], []>} : vector<64x64xbf16>, vector<64x64xbf16>, vector<64x64xf32> -> vector<64x64xf32>
    %c0_4 = arith.constant 0 : index
    %c0_5 = arith.constant 0 : index
    %5 = vector.load %arg4[%c0_4, %c0_5] : memref<1x64xf32, #tpu.memory_space<vmem>>, vector<1x64xf32>
    %6 = vector.broadcast %5 : vector<1x64xf32> to vector<64x64xf32>
    %7 = arith.addf %4, %6 : vector<64x64xf32>
    %8 = vector.shape_cast %7 : vector<64x64xf32> to vector<1x64x64xf32>
    %cst_6 = arith.constant dense<0.000000e+00> : vector<1xf32>
    %9 = vector.multi_reduction <add>, %8, %cst_6 [1, 2] : vector<1x64x64xf32> to vector<1xf32>
    %10 = vector.shape_cast %9 : vector<1xf32> to vector<1x1x1xf32>
    %11 = vector.extract %10[0, 0, 0] : f32 from vector<1x1x1xf32>
    %12 = vector.broadcast %11 : f32 to vector<1x1xf32>
    %cst_7 = arith.constant 4.096000e+03 : f32
    %13 = vector.broadcast %cst_7 : f32 to vector<1x1xf32>
    %14 = arith.divf %12, %13 : vector<1x1xf32>
    %15 = vector.broadcast %14 : vector<1x1xf32> to vector<64x64xf32>
    %16 = arith.subf %7, %15 : vector<64x64xf32>
    %17 = arith.mulf %16, %16 : vector<64x64xf32>
    %18 = vector.shape_cast %17 : vector<64x64xf32> to vector<1x64x64xf32>
    %cst_8 = arith.constant dense<0.000000e+00> : vector<1xf32>
    %19 = vector.multi_reduction <add>, %18, %cst_8 [1, 2] : vector<1x64x64xf32> to vector<1xf32>
    %20 = vector.shape_cast %19 : vector<1xf32> to vector<1x1x1xf32>
    %21 = vector.extract %20[0, 0, 0] : f32 from vector<1x1x1xf32>
    %22 = vector.broadcast %21 : f32 to vector<1x1xf32>
    %cst_9 = arith.constant 4.096000e+03 : f32
    %23 = vector.broadcast %cst_9 : f32 to vector<1x1xf32>
    %24 = arith.divf %22, %23 : vector<1x1xf32>
    %25 = vector.broadcast %14 : vector<1x1xf32> to vector<64x64xf32>
    %26 = arith.subf %7, %25 : vector<64x64xf32>
    %cst_10 = arith.constant 9.99999993E-9 : f32
    %27 = vector.broadcast %cst_10 : f32 to vector<1x1xf32>
    %28 = arith.addf %24, %27 : vector<1x1xf32>
    %29 = math.rsqrt %28 : vector<1x1xf32>
    %30 = vector.broadcast %29 : vector<1x1xf32> to vector<64x64xf32>
    %31 = arith.mulf %26, %30 : vector<64x64xf32>
    %c0_11 = arith.constant 0 : index
    %c0_12 = arith.constant 0 : index
    %32 = vector.load %arg5[%c0_11, %c0_12] : memref<1x64xf32, #tpu.memory_space<vmem>>, vector<1x64xf32>
    %33 = vector.broadcast %32 : vector<1x64xf32> to vector<64x64xf32>
    %34 = arith.mulf %33, %31 : vector<64x64xf32>
    %c0_13 = arith.constant 0 : index
    %c0_14 = arith.constant 0 : index
    %35 = vector.load %arg6[%c0_13, %c0_14] : memref<1x64xf32, #tpu.memory_space<vmem>>, vector<1x64xf32>
    %36 = vector.broadcast %35 : vector<1x64xf32> to vector<64x64xf32>
    %37 = arith.addf %34, %36 : vector<64x64xf32>
    %c0_15 = arith.constant 0 : index
    %c0_16 = arith.constant 0 : index
    %c0_17 = arith.constant 0 : index
    %38 = vector.load %arg2[%c0_15, %c0_16, %c0_17] : memref<1x64x64xf32, #tpu.memory_space<vmem>>, vector<1x64x64xf32>
    %39 = vector.shape_cast %38 : vector<1x64x64xf32> to vector<64x64xf32>
    %40 = arith.addf %37, %39 : vector<64x64xf32>
    %c0_18 = arith.constant 0 : index
    %c0_19 = arith.constant 0 : index
    %c0_20 = arith.constant 0 : index
    %41 = vector.load %arg7[%c0_18, %c0_19, %c0_20] : memref<1x64x64xf32, #tpu.memory_space<vmem>>, vector<1x64x64xf32>
    %42 = vector.shape_cast %41 : vector<1x64x64xf32> to vector<64x64xf32>
    %43 = vector.shape_cast %40 : vector<64x64xf32> to vector<1x64x64xf32>
    tpu.vector_store %arg7[%c0_18, %c0_19, %c0_20], %43 {strides = array<i32>} : memref<1x64x64xf32, #tpu.memory_space<vmem>>, vector<1x64x64xf32>,
    return
  }
  func.func @transform_0(%arg0: i32) -> (i32, i32, i32) {
    %c0_i32 = arith.constant 0 : i32
    %c0_i32_0 = arith.constant 0 : i32
    %c0_i32_1 = arith.constant 0 : i32
    return %arg0, %c0_i32, %c0_i32_0 : i32, i32, i32
  }
  func.func @transform_1(%arg0: i32) -> (i32, i32, i32) {
    %c0_i32 = arith.constant 0 : i32
    %c0_i32_0 = arith.constant 0 : i32
    %c0_i32_1 = arith.constant 0 : i32
    return %arg0, %c0_i32, %c0_i32_0 : i32, i32, i32
  }
  func.func @transform_2(%arg0: i32) -> (i32, i32) {
    %c0_i32 = arith.constant 0 : i32
    %c0_i32_0 = arith.constant 0 : i32
    %c0_i32_1 = arith.constant 0 : i32
    return %c0_i32, %c0_i32_0 : i32, i32
  }
  func.func @transform_3(%arg0: i32) -> (i32, i32) {
    %c0_i32 = arith.constant 0 : i32
    %c0_i32_0 = arith.constant 0 : i32
    %c0_i32_1 = arith.constant 0 : i32
    return %c0_i32, %c0_i32_0 : i32, i32
  }
  func.func @transform_4(%arg0: i32) -> (i32, i32) {
    %c0_i32 = arith.constant 0 : i32
    %c0_i32_0 = arith.constant 0 : i32
    %c0_i32_1 = arith.constant 0 : i32
    return %c0_i32, %c0_i32_0 : i32, i32
  }
  func.func @transform_5(%arg0: i32) -> (i32, i32) {
    %c0_i32 = arith.constant 0 : i32
    %c0_i32_0 = arith.constant 0 : i32
    %c0_i32_1 = arith.constant 0 : i32
    return %c0_i32, %c0_i32_0 : i32, i32
  }
  func.func @transform_6(%arg0: i32) -> (i32, i32, i32) {
    %c0_i32 = arith.constant 0 : i32
    %c0_i32_0 = arith.constant 0 : i32
    %c0_i32_1 = arith.constant 0 : i32
    return %arg0, %c0_i32, %c0_i32_0 : i32, i32, i32
  }
}

</mosaic_0001>

<llo_original>
// kernel: dual_rnn_block_forward.8
$region0: #{dual_rnn_block_forward.8}
  #allocation0 [shape = 'u32[]', space=smem, size = 0x4, offset = 0x4, fixed_abs, tag = 'smem constant byte address 0x4 - core index']
  #allocation1 [shape = 'u32[144,128]{1,0:T(1,128)}', space=vmem, size = 0x12000, scoped, tag = 'internal scratch']
  %s0 = inlined_call_operand.vmem [shape: f32[2,64,64], index: 0, kind: input, shape index: {}]
  %s1 = inlined_call_operand.vmem [shape: f32[2,64,64], index: 1, kind: input, shape index: {}]
  %s2 = inlined_call_operand.vmem [shape: f32[1,64], index: 2, kind: input, shape index: {}]
  %s3 = inlined_call_operand.vmem [shape: f32[1,64], index: 3, kind: input, shape index: {}]
  %s4 = inlined_call_operand.vmem [shape: f32[2,64,64], index: 4, kind: output, shape index: {}]
  %s5 = sld [smem:[#allocation0]]
  $region49: #{dual_rnn_block_forward.8} parent=0
    _
  %s7 = ssub.s32 1, %s5
  %s8 = scalar_select 0, %s7, %s5
  loop: start=0, step=1, limit=4
  $region2: #{dual_rnn_block_forward.8} parent=0 // loop_pre_header
    _
  $region3: #{dual_rnn_block_forward.8} parent=0 // loop_header
    %s10 = sphi 0, %s14
    %p11 = scmp.ge.s32.totalorder %s10, 4
    %s20 = sphi 0, %s22
    %s23 = sphi 0, %s20
    %s24 = sphi 0, %s23
    %s40 = sphi 0, %s24
    %s46 = sphi 0, %s48
    %s49 = sphi 0, %s46
    %s50 = sphi 0, %s49
    %s66 = sphi 0, %s50
    %s70 = sphi 0, %s70
    %s72 = sphi 0, %s70
    %s73 = sphi 0, %s72
    %s87 = sphi 0, %s73
    %s91 = sphi 0, %s91
    %s93 = sphi 0, %s91
    %s94 = sphi 0, %s93
    %s108 = sphi 0, %s94
    %s114 = sphi 0, %s116
    %s117 = sphi 0, %s114
    %s118 = sphi 0, %s117
    %s134 = sphi 0, %s118
  $region4: #{dual_rnn_block_forward.8} parent=0 // loop_header_branch
    %13 = sbr.rel (%p11) target = $region8
  $region5: #{dual_rnn_block_forward.8} parent=0 // loop_body
    %s15 = ssub.s32 %s10, 1
    %s16 = ssub.s32 %s10, 2
    %s17 = sadd.s32 %s10, 1
    %s18 = ssub.s32 %s10, %s17
    %p19 = scmp.eq.s32.totalorder %s18, 0
    %s21 = sadd.s32 %s20, 1
    %s22 = scalar_select %p19, %s20, %s21
    %p25 = pneg %p19
    %p26 = scmp.eq.s32.totalorder %s10, 1
    %p27 = por %p25, %p26
    %p28 = scmp.ne.s32.totalorder %s20, %s23
    %p29 = scmp.eq.s32.totalorder %s10, 0
    %p30 = por %p28, %p29
    %p31 = scmp.ne.s32.totalorder %s20, %s23
    %p32 = scmp.eq.s32.totalorder %s15, 1
    %p33 = por %p31, %p32
    %p34 = scmp.ne.s32.totalorder %s23, %s24
    %p35 = scmp.eq.s32.totalorder %s15, 0
    %p36 = por %p34, %p35
    %p37 = scmp.ne.s32.totalorder %s23, %s24
    %p38 = scmp.eq.s32.totalorder %s16, 1
    %p39 = por %p37, %p38
    %p41 = scmp.ne.s32.totalorder %s24, %s40
    %p42 = scmp.eq.s32.totalorder %s16, 0
    %p43 = por %p41, %p42
    %s44 = ssub.s32 %s10, %s17
    %p45 = scmp.eq.s32.totalorder %s44, 0
    %s47 = sadd.s32 %s46, 1
    %s48 = scalar_select %p45, %s46, %s47
    %p51 = pneg %p45
    %p52 = scmp.eq.s32.totalorder %s10, 1
    %p53 = por %p51, %p52
    %p54 = scmp.ne.s32.totalorder %s46, %s49
    %p55 = scmp.eq.s32.totalorder %s10, 0
    %p56 = por %p54, %p55
    %p57 = scmp.ne.s32.totalorder %s46, %s49
    %p58 = scmp.eq.s32.totalorder %s15, 1
    %p59 = por %p57, %p58
    %p60 = scmp.ne.s32.totalorder %s49, %s50
    %p61 = scmp.eq.s32.totalorder %s15, 0
    %p62 = por %p60, %p61
    %p63 = scmp.ne.s32.totalorder %s49, %s50
    %p64 = scmp.eq.s32.totalorder %s16, 1
    %p65 = por %p63, %p64
    %p67 = scmp.ne.s32.totalorder %s50, %s66
    %p68 = scmp.eq.s32.totalorder %s16, 0
    %p69 = por %p67, %p68
    %s71 = sadd.s32 %s70, 1
    %p74 = scmp.eq.s32.totalorder %s10, 1
    %p75 = scmp.ne.s32.totalorder %s70, %s72
    %p76 = scmp.eq.s32.totalorder %s10, 0
    %p77 = por %p75, %p76
    %p78 = scmp.ne.s32.totalorder %s70, %s72
    %p79 = scmp.eq.s32.totalorder %s15, 1
    %p80 = por %p78, %p79
    %p81 = scmp.ne.s32.totalorder %s72, %s73
    %p82 = scmp.eq.s32.totalorder %s15, 0
    %p83 = por %p81, %p82
    %p84 = scmp.ne.s32.totalorder %s72, %s73
    %p85 = scmp.eq.s32.totalorder %s16, 1
    %p86 = por %p84, %p85
    %p88 = scmp.ne.s32.totalorder %s73, %s87
    %p89 = scmp.eq.s32.totalorder %s16, 0
    %p90 = por %p88, %p89
    %s92 = sadd.s32 %s91, 1
    %p95 = scmp.eq.s32.totalorder %s10, 1
    %p96 = scmp.ne.s32.totalorder %s91, %s93
    %p97 = scmp.eq.s32.totalorder %s10, 0
    %p98 = por %p96, %p97
    %p99 = scmp.ne.s32.totalorder %s91, %s93
    %p100 = scmp.eq.s32.totalorder %s15, 1
    %p101 = por %p99, %p100
    %p102 = scmp.ne.s32.totalorder %s93, %s94
    %p103 = scmp.eq.s32.totalorder %s15, 0
    %p104 = por %p102, %p103
    %p105 = scmp.ne.s32.totalorder %s93, %s94
    %p106 = scmp.eq.s32.totalorder %s16, 1
    %p107 = por %p105, %p106
    %p109 = scmp.ne.s32.totalorder %s94, %s108
    %p110 = scmp.eq.s32.totalorder %s16, 0
    %p111 = por %p109, %p110
    %s112 = ssub.s32 %s10, %s17
    %p113 = scmp.eq.s32.totalorder %s112, 0
    %s115 = sadd.s32 %s114, 1
    %s116 = scalar_select %p113, %s114, %s115
    %p119 = pneg %p113
    %p120 = scmp.eq.s32.totalorder %s10, 1
    %p121 = por %p119, %p120
    %p122 = scmp.ne.s32.totalorder %s114, %s117
    %p123 = scmp.eq.s32.totalorder %s10, 0
    %p124 = por %p122, %p123
    %p125 = scmp.ne.s32.totalorder %s114, %s117
    %p126 = scmp.eq.s32.totalorder %s15, 1
    %p127 = por %p125, %p126
    %p128 = scmp.ne.s32.totalorder %s117, %s118
    %p129 = scmp.eq.s32.totalorder %s15, 0
    %p130 = por %p128, %p129
    %p131 = scmp.ne.s32.totalorder %s117, %s118
    %p132 = scmp.eq.s32.totalorder %s16, 1
    %p133 = por %p131, %p132
    %p135 = scmp.ne.s32.totalorder %s118, %s134
    %p136 = scmp.eq.s32.totalorder %s16, 0
    %p137 = por %p135, %p136
    %p138 = scmp.le.s32.totalorder 1, %s10
    %p139 = scmp.lt.s32.totalorder %s10, 3
    %p140 = pnand %p138, %p139
    %p141 = pneg %p140
    // Predicated region
    $region9: #{dual_rnn_block_forward.8} parent=5 // pred_check
      _
    $region10: #{dual_rnn_block_forward.8} parent=5 // pred_check_branch
      %143 = sbr.rel (%p140) target = $region12
    $region11: #{dual_rnn_block_forward.8} parent=5 // pred_region
      %s144 = ssub.s32 %s10, 1
      // Predicated region
      $region13: #{dual_rnn_block_forward.8} parent=11 // pred_check
        %p145 = pneg %p83
      $region14: #{dual_rnn_block_forward.8} parent=11 // pred_check_branch
        %147 = sbr.rel (%p145) target = $region16
      $region15: #{dual_rnn_block_forward.8} parent=11 // pred_region
        _
      $region16: #{dual_rnn_block_forward.8} parent=11 // pred_fallthru
        _
      // Predicated region
      $region17: #{dual_rnn_block_forward.8} parent=11 // pred_check
        %p148 = pneg %p104
      $region18: #{dual_rnn_block_forward.8} parent=11 // pred_check_branch
        %150 = sbr.rel (%p148) target = $region20
      $region19: #{dual_rnn_block_forward.8} parent=11 // pred_region
        _
      $region20: #{dual_rnn_block_forward.8} parent=11 // pred_fallthru
        _
    $region12: #{dual_rnn_block_forward.8} parent=5 // pred_fallthru
      _
    %p151 = scmp.lt.s32.totalorder %s10, 2
    // Predicated region
    $region21: #{dual_rnn_block_forward.8} parent=5 // pred_check
      %p152 = pneg %p151
    $region22: #{dual_rnn_block_forward.8} parent=5 // pred_check_branch
      %154 = sbr.rel (%p152) target = $region24
    $region23: #{dual_rnn_block_forward.8} parent=5 // pred_region
      // Predicated region
      $region25: #{dual_rnn_block_forward.8} parent=23 // pred_check
        %p155 = pneg %p30
      $region26: #{dual_rnn_block_forward.8} parent=23 // pred_check_branch
        %157 = sbr.rel (%p155) target = $region28
      $region27: #{dual_rnn_block_forward.8} parent=23 // pred_region
        %p158 = scmp.lt.s32.totalorder %s10, 1
        %s159 = scalar_select %p158, %s10, 1
        %s160 = smul.addr %s159, 8
        %s161 = smul.addr %s160, 8
        %s162 = scalar_lea.vmem %s0, %s161
      $region28: #{dual_rnn_block_forward.8} parent=23 // pred_fallthru
        _
      // Predicated region
      $region29: #{dual_rnn_block_forward.8} parent=23 // pred_check
        %p163 = pneg %p56
      $region30: #{dual_rnn_block_forward.8} parent=23 // pred_check_branch
        %165 = sbr.rel (%p163) target = $region32
      $region31: #{dual_rnn_block_forward.8} parent=23 // pred_region
        %p166 = scmp.lt.s32.totalorder %s10, 1
        %s167 = scalar_select %p166, %s10, 1
        %s168 = smul.addr %s167, 8
        %s169 = smul.addr %s168, 8
        %s170 = scalar_lea.vmem %s1, %s169
      $region32: #{dual_rnn_block_forward.8} parent=23 // pred_fallthru
        _
    $region24: #{dual_rnn_block_forward.8} parent=5 // pred_fallthru
      _
    %p171 = scmp.le.s32.totalorder 1, %s10
    %p172 = scmp.lt.s32.totalorder %s10, 3
    %p173 = pnand %p171, %p172
    %p174 = pneg %p173
    // Predicated region
    $region33: #{dual_rnn_block_forward.8} parent=5 // pred_check
      _
    $region34: #{dual_rnn_block_forward.8} parent=5 // pred_check_branch
      %176 = sbr.rel (%p173) target = $region36
    $region35: #{dual_rnn_block_forward.8} parent=5 // pred_region
      %s177 = ssub.s32 %s10, 1
      %p178 = scmp.lt.s32.totalorder %s15, 1
      %s179 = scalar_select %p178, %s15, 1
      %s180 = smul.addr %s179, 8
      %s181 = smul.addr %s180, 8
      %s182 = scalar_lea.vmem %s0, %s181
      %p183 = pneg %p36
      %p184 = pneg %p33
      %p185 = scmp.lt.s32.totalorder %s15, 1
      %s186 = scalar_select %p185, %s15, 1
      %s187 = smul.addr %s186, 8
      %s188 = smul.addr %s187, 8
      %s189 = scalar_lea.vmem %s1, %s188
      %p190 = pneg %p62
      %p191 = pneg %p59
      %p192 = pneg %p83
      %p193 = pneg %p80
      %p194 = pneg %p104
      %p195 = pneg %p101
      %p196 = pneg %p130
      %p197 = pneg %p127
      %p198 = scmp.lt.s32.totalorder %s15, 1
      %s199 = scalar_select %p198, %s15, 1
      %s200 = smul.addr %s199, 8
      %s201 = smul.addr %s200, 8
      %s202 = scalar_lea.vmem %s4, %s201
      %p203 = scmp.lt.s32.totalorder %s15, 1
      %s204 = scalar_select %p203, %s15, 1
      %s205 = smul.addr %s204, 8
      %s206 = smul.addr %s205, 8
      %s207 = scalar_lea.vmem %s0, %s206
      %p208 = scmp.lt.s32.totalorder %s15, 1
      %s209 = scalar_select %p208, %s15, 1
      %s210 = smul.addr %s209, 8
      %s211 = smul.addr %s210, 8
      %s212 = scalar_lea.vmem %s1, %s211
      %p213 = scmp.lt.s32.totalorder %s15, 1
      %s214 = scalar_select %p213, %s15, 1
      %s215 = smul.addr %s214, 8
      %s216 = smul.addr %s215, 8
      %s217 = scalar_lea.vmem %s4, %s216
      %v218 = vld [vmem:[%s207] sm:$0xff]
      %v219 = vld [vmem:[%s207 + $0x8] sm:$0xff]
      %v220 = vld [vmem:[%s207 + $0x10] sm:$0xff]
      %v221 = vld [vmem:[%s207 + $0x18] sm:$0xff]
      %v222 = vld [vmem:[%s207 + $0x20] sm:$0xff]
      %v223 = vld [vmem:[%s207 + $0x28] sm:$0xff]
      %v224 = vld [vmem:[%s207 + $0x30] sm:$0xff]
      %v225 = vld [vmem:[%s207 + $0x38] sm:$0xff]
      %vm226 = vcmask 523264
      %v227 = vsel %vm226, %v218, 0.0
      %v228 = vsel %vm226, %v219, 0.0
      %v229 = vadd.f32 %v227, %v228
      %v230 = vsel %vm226, %v220, 0.0
      %v231 = vadd.f32 %v229, %v230
      %v232 = vsel %vm226, %v221, 0.0
      %v233 = vadd.f32 %v231, %v232
      %v234 = vsel %vm226, %v222, 0.0
      %v235 = vadd.f32 %v233, %v234
      %v236 = vsel %vm226, %v223, 0.0
      %v237 = vadd.f32 %v235, %v236
      %v238 = vsel %vm226, %v224, 0.0
      %v239 = vadd.f32 %v237, %v238
      %v240 = vsel %vm226, %v225, 0.0
      %v241 = vadd.f32 %v239, %v240
      %242 = vadd.xlane.f32.xlu0 %v241
      %v243 = vpop.xlane.xlu0 %242
      %v244 = vrot.slane %v243, 4
      %v245 = vadd.f32 %v243, %v244
      %v246 = vrot.slane %v245, 2
      %v247 = vadd.f32 %v245, %v246
      %v248 = vrot.slane %v247, 1
      %v249 = vadd.f32 %v247, %v248
      %s250 = vtos %v249
      %v251 = vstv %s250
      %v252 = vrcp.pop 4096.0
      %v253 = vmul.f32 %v251, %v252
      %v254 = vsub.f32 %v218, %v253
      %v255 = vsub.f32 %v219, %v253
      %v256 = vsub.f32 %v220, %v253
      %v257 = vsub.f32 %v221, %v253
      %v258 = vsub.f32 %v222, %v253
      %v259 = vsub.f32 %v223, %v253
      %v260 = vsub.f32 %v224, %v253
      %v261 = vsub.f32 %v225, %v253
      %v262 = vmul.f32 %v254, %v254
      %v263 = vmul.f32 %v255, %v255
      %v264 = vmul.f32 %v256, %v256
      %v265 = vmul.f32 %v257, %v257
      %v266 = vmul.f32 %v258, %v258
      %v267 = vmul.f32 %v259, %v259
      %v268 = vmul.f32 %v260, %v260
      %v269 = vmul.f32 %v261, %v261
      %v270 = vsel %vm226, %v262, 0.0
      %v271 = vsel %vm226, %v263, 0.0
      %v272 = vadd.f32 %v270, %v271
      %v273 = vsel %vm226, %v264, 0.0
      %v274 = vadd.f32 %v272, %v273
      %v275 = vsel %vm226, %v265, 0.0
      %v276 = vadd.f32 %v274, %v275
      %v277 = vsel %vm226, %v266, 0.0
      %v278 = vadd.f32 %v276, %v277
      %v279 = vsel %vm226, %v267, 0.0
      %v280 = vadd.f32 %v278, %v279
      %v281 = vsel %vm226, %v268, 0.0
      %v282 = vadd.f32 %v280, %v281
      %v283 = vsel %vm226, %v269, 0.0
      %v284 = vadd.f32 %v282, %v283
      %285 = vadd.xlane.f32.xlu0 %v284
      %v286 = vpop.xlane.xlu0 %285
      %v287 = vrot.slane %v286, 4
      %v288 = vadd.f32 %v286, %v287
      %v289 = vrot.slane %v288, 2
      %v290 = vadd.f32 %v288, %v289
      %v291 = vrot.slane %v290, 1
      %v292 = vadd.f32 %v290, %v291
      %s293 = vtos %v292
      %v294 = vstv %s293
      %v295 = vmul.f32 %v294, %v252
      %v296 = vadd.f32 %v295, 1e-08
      %v297 = vrsqrt.pop %v296
      %v298 = vmul.f32 %v254, %v297
      %v299 = vmul.f32 %v255, %v297
      %v300 = vmul.f32 %v256, %v297
      %v301 = vmul.f32 %v257, %v297
      %v302 = vmul.f32 %v258, %v297
      %v303 = vmul.f32 %v259, %v297
      %v304 = vmul.f32 %v260, %v297
      %v305 = vmul.f32 %v261, %v297
      %v306 = vld [vmem:[%s2] sm:$0x1]
      %v308 = vlaneseq
      %v309 = vshrl.u32 %v308, 7
      %v310 = vsub.s32 0, %v309
      %v311 = vrot.slane %v306, %v310
      %v313 = vmul.f32 %v311, %v298
      %v314 = vmul.f32 %v311, %v299
      %v315 = vmul.f32 %v311, %v300
      %v316 = vmul.f32 %v311, %v301
      %v317 = vmul.f32 %v311, %v302
      %v318 = vmul.f32 %v311, %v303
      %v319 = vmul.f32 %v311, %v304
      %v320 = vmul.f32 %v311, %v305
      %v321 = vld [vmem:[%s3] sm:$0x1]
      %v323 = vlaneseq
      %v324 = vshrl.u32 %v323, 7
      %v325 = vsub.s32 0, %v324
      %v326 = vrot.slane %v321, %v325
      %v328 = vadd.f32 %v313, %v326
      %v329 = vadd.f32 %v314, %v326
      %v330 = vadd.f32 %v315, %v326
      %v331 = vadd.f32 %v316, %v326
      %v332 = vadd.f32 %v317, %v326
      %v333 = vadd.f32 %v318, %v326
      %v334 = vadd.f32 %v319, %v326
      %v335 = vadd.f32 %v320, %v326
      %v336 = vld [vmem:[%s212] sm:$0xff]
      %v337 = vld [vmem:[%s212 + $0x8] sm:$0xff]
      %v338 = vld [vmem:[%s212 + $0x10] sm:$0xff]
      %v339 = vld [vmem:[%s212 + $0x18] sm:$0xff]
      %v340 = vld [vmem:[%s212 + $0x20] sm:$0xff]
      %v341 = vld [vmem:[%s212 + $0x28] sm:$0xff]
      %v342 = vld [vmem:[%s212 + $0x30] sm:$0xff]
      %v343 = vld [vmem:[%s212 + $0x38] sm:$0xff]
      %v344 = vadd.f32 %v328, %v336
      %v345 = vadd.f32 %v329, %v337
      %v346 = vadd.f32 %v330, %v338
      %v347 = vadd.f32 %v331, %v339
      %v348 = vadd.f32 %v332, %v340
      %v349 = vadd.f32 %v333, %v341
      %v350 = vadd.f32 %v334, %v342
      %v351 = vadd.f32 %v335, %v343
      %352 = vst.msk [vmem:[%s217] sm:$0xff] %vm226, %v344
      %353 = vst.msk [vmem:[%s217 + $0x8] sm:$0xff] %vm226, %v345
      %354 = vst.msk [vmem:[%s217 + $0x10] sm:$0xff] %vm226, %v346
      %355 = vst.msk [vmem:[%s217 + $0x18] sm:$0xff] %vm226, %v347
      %356 = vst.msk [vmem:[%s217 + $0x20] sm:$0xff] %vm226, %v348
      %357 = vst.msk [vmem:[%s217 + $0x28] sm:$0xff] %vm226, %v349
      %358 = vst.msk [vmem:[%s217 + $0x30] sm:$0xff] %vm226, %v350
      %359 = vst.msk [vmem:[%s217 + $0x38] sm:$0xff] %vm226, %v351
      %p360 = scmp.lt.s32.totalorder %s15, 1
      %s361 = scalar_select %p360, %s15, 1
      %s362 = smul.addr %s361, 8
      %s363 = smul.addr %s362, 8
      %s364 = scalar_lea.vmem %s4, %s363
      // Predicated region
      $region37: #{dual_rnn_block_forward.8} parent=35 // pred_check
        %p365 = pneg %p127
      $region38: #{dual_rnn_block_forward.8} parent=35 // pred_check_branch
        %367 = sbr.rel (%p365) target = $region40
      $region39: #{dual_rnn_block_forward.8} parent=35 // pred_region
        _
      $region40: #{dual_rnn_block_forward.8} parent=35 // pred_fallthru
        _
    $region36: #{dual_rnn_block_forward.8} parent=5 // pred_fallthru
      _
    %p368 = scmp.le.s32.totalorder 2, %s10
    // Predicated region
    $region41: #{dual_rnn_block_forward.8} parent=5 // pred_check
      %p369 = pneg %p368
    $region42: #{dual_rnn_block_forward.8} parent=5 // pred_check_branch
      %371 = sbr.rel (%p369) target = $region44
    $region43: #{dual_rnn_block_forward.8} parent=5 // pred_region
      %s372 = ssub.s32 %s10, 2
      // Predicated region
      $region45: #{dual_rnn_block_forward.8} parent=43 // pred_check
        %p373 = pneg %p133
      $region46: #{dual_rnn_block_forward.8} parent=43 // pred_check_branch
        %375 = sbr.rel (%p373) target = $region48
      $region47: #{dual_rnn_block_forward.8} parent=43 // pred_region
        %p376 = scmp.lt.s32.totalorder %s16, 1
        %s377 = scalar_select %p376, %s16, 1
        %s378 = smul.addr %s377, 8
        %s379 = smul.addr %s378, 8
        %s380 = scalar_lea.vmem %s4, %s379
      $region48: #{dual_rnn_block_forward.8} parent=43 // pred_fallthru
        _
    $region44: #{dual_rnn_block_forward.8} parent=5 // pred_fallthru
      _
  $region6: #{dual_rnn_block_forward.8} parent=0 // loop_footer
    %s14 = sadd.s32 1, %s10
  $region7: #{dual_rnn_block_forward.8} parent=0 // loop_footer_branch
    %9 = sbr.rel target = $region3
  $region8: #{dual_rnn_block_forward.8} parent=0 // loop_exit
    _

// kernel: dual_rnn_block_forward.9
$region0: #{dual_rnn_block_forward.9}
  #allocation0 [shape = 'u32[]', space=smem, size = 0x4, offset = 0x4, fixed_abs, tag = 'smem constant byte address 0x4 - core index']
  #allocation1 [shape = 'u32[144,128]{1,0:T(1,128)}', space=vmem, size = 0x12000, scoped, tag = 'internal scratch']
  %s0 = inlined_call_operand.vmem [shape: f32[128,64], index: 0, kind: input, shape index: {}]
  %s1 = inlined_call_operand.vmem [shape: bf16[64,64], index: 1, kind: input, shape index: {}]
  %s2 = inlined_call_operand.vmem [shape: f32[1,64], index: 2, kind: input, shape index: {}]
  %s3 = inlined_call_operand.vmem [shape: f32[128,64], index: 3, kind: output, shape index: {}]
  %s4 = sld [smem:[#allocation0]]
  $region22: #{dual_rnn_block_forward.9} parent=0
    _
  %s6 = ssub.s32 1, %s4
  %s7 = scalar_select 0, %s6, %s4
  // Predicated region
  $region2: #{dual_rnn_block_forward.9} parent=0 // pred_check
    _
  $region3: #{dual_rnn_block_forward.9} parent=0 // pred_check_branch
    %9 = sbr.rel (0) target = $region5
  $region4: #{dual_rnn_block_forward.9} parent=0 // pred_region
    _
  $region5: #{dual_rnn_block_forward.9} parent=0 // pred_fallthru
    _
  // Predicated region
  $region6: #{dual_rnn_block_forward.9} parent=0 // pred_check
    _
  $region7: #{dual_rnn_block_forward.9} parent=0 // pred_check_branch
    %11 = sbr.rel (0) target = $region9
  $region8: #{dual_rnn_block_forward.9} parent=0 // pred_region
    _
  $region9: #{dual_rnn_block_forward.9} parent=0 // pred_fallthru
    _
  // Predicated region
  $region10: #{dual_rnn_block_forward.9} parent=0 // pred_check
    _
  $region11: #{dual_rnn_block_forward.9} parent=0 // pred_check_branch
    %13 = sbr.rel (0) target = $region13
  $region12: #{dual_rnn_block_forward.9} parent=0 // pred_region
    _
  $region13: #{dual_rnn_block_forward.9} parent=0 // pred_fallthru
    _
  %v15 = vld [vmem:[%s0] sm:$0xff]
  %v16 = vld [vmem:[%s0 + $0x8] sm:$0xff]
  %v17 = vld [vmem:[%s0 + $0x10] sm:$0xff]
  %v18 = vld [vmem:[%s0 + $0x18] sm:$0xff]
  %v19 = vld [vmem:[%s0 + $0x20] sm:$0xff]
  %v20 = vld [vmem:[%s0 + $0x28] sm:$0xff]
  %v21 = vld [vmem:[%s0 + $0x30] sm:$0xff]
  %v22 = vld [vmem:[%s0 + $0x38] sm:$0xff]
  %v23 = vld [vmem:[%s0 + $0x40] sm:$0xff]
  %v24 = vld [vmem:[%s0 + $0x48] sm:$0xff]
  %v25 = vld [vmem:[%s0 + $0x50] sm:$0xff]
  %v26 = vld [vmem:[%s0 + $0x58] sm:$0xff]
  %v27 = vld [vmem:[%s0 + $0x60] sm:$0xff]
  %v28 = vld [vmem:[%s0 + $0x68] sm:$0xff]
  %v29 = vld [vmem:[%s0 + $0x70] sm:$0xff]
  %v30 = vld [vmem:[%s0 + $0x78] sm:$0xff]
  %v31 = vpack.c.bf16 %v16, %v15
  %v32 = vpack.c.bf16 %v18, %v17
  %v33 = vpack.c.bf16 %v20, %v19
  %v34 = vpack.c.bf16 %v22, %v21
  %v35 = vpack.c.bf16 %v24, %v23
  %v36 = vpack.c.bf16 %v26, %v25
  %v37 = vpack.c.bf16 %v28, %v27
  %v38 = vpack.c.bf16 %v30, %v29
  %v39 = vld [vmem:[%s1] sm:$0xf]
  %v40 = vld [vmem:[%s1 + $0x4] sm:$0xf]
  %v41 = vld [vmem:[%s1 + $0x8] sm:$0xf]
  %v42 = vld [vmem:[%s1 + $0xc] sm:$0xf]
  %v43 = vld [vmem:[%s1 + $0x10] sm:$0xf]
  %v44 = vld [vmem:[%s1 + $0x14] sm:$0xf]
  %v45 = vld [vmem:[%s1 + $0x18] sm:$0xf]
  %v46 = vld [vmem:[%s1 + $0x1c] sm:$0xf]
  %v47 = vld [vmem:[%s2] sm:$0x1]
  %v49 = vlaneseq
  %v50 = vshrl.u32 %v49, 7
  %v51 = vsub.s32 0, %v50
  %v52 = vrot.slane %v47, %v51
  %v62 = vunpack.c.l.b16 %v39
  %v63 = vunpack.c.l.b16 %v40
  %v64 = vunpack.c.l.b16 %v41
  %v65 = vunpack.c.l.b16 %v42
  %v66 = vunpack.c.l.b16 %v43
  %v67 = vunpack.c.l.b16 %v44
  %v68 = vunpack.c.l.b16 %v45
  %v69 = vunpack.c.l.b16 %v46
  %v70 = vpack.c.b16 %v63, %v62
  %v71 = vpack.c.b16 %v65, %v64
  %v72 = vpack.c.b16 %v67, %v66
  %v73 = vpack.c.b16 %v69, %v68
  %vm78 = vcmask 523264
  %v80 = vsel %vm78, %v31, 0
  %v83 = vsel %vm78, %v32, 0
  %v86 = vsel %vm78, %v33, 0
  %v89 = vsel %vm78, %v34, 0
  %v92 = vsel %vm78, %v35, 0
  %v95 = vsel %vm78, %v36, 0
  %v98 = vsel %vm78, %v37, 0
  %v101 = vsel %vm78, %v38, 0
  %103 = vmatprep.subr.bf16.mxu0 0
  %104 = vmatpush1.bf16.msra.mxu0 0
  %105 = vmatprep.subr.bf16.mxu0 0
  %106 = vmatpush1.bf16.msra.mxu0 0
  %107 = vmatprep.subr.bf16.mxu0 0
  %108 = vmatpush1.bf16.msra.mxu0 0
  %109 = vmatprep.subr.bf16.mxu0 0
  %110 = vmatpush1.bf16.msra.mxu0 0
  %111 = vmatprep.subr.bf16.mxu0 0
  %112 = vmatpush1.bf16.msra.mxu0 %v73
  %113 = vmatprep.subr.bf16.mxu0 0
  %114 = vmatpush1.bf16.msra.mxu0 %v72
  %115 = vmatprep.subr.bf16.mxu0 0
  %116 = vmatpush1.bf16.msra.mxu0 %v71
  %117 = vmatprep.subr.bf16.mxu0 0
  %118 = vmatpush1.bf16.msra.mxu0 %v70
  %119 = vmatprep.subr.bf16.mxu0 0
  %120 = vmatpush2.bf16.msra.mxu0 0
  %121 = vmatprep.subr.bf16.mxu0 0
  %122 = vmatpush2.bf16.msra.mxu0 0
  %123 = vmatprep.subr.bf16.mxu0 0
  %124 = vmatpush2.bf16.msra.mxu0 0
  %125 = vmatprep.subr.bf16.mxu0 0
  %126 = vmatpush2.bf16.msra.mxu0 0
  %127 = vmatprep.subr.bf16.mxu0 0
  %128 = vmatpush2.bf16.msra.mxu0 0
  %129 = vmatprep.subr.bf16.mxu0 0
  %130 = vmatpush2.bf16.msra.mxu0 0
  %131 = vmatprep.subr.bf16.mxu0 0
  %132 = vmatpush2.bf16.msra.mxu0 0
  %133 = vmatprep.subr.bf16.mxu0 0
  %134 = vmatpush2.bf16.msra.mxu0 0
  %135 = vmatprep.mubr.bf16.mxu0 0
  %136 = vmatmul.mubr.bf16.gmra.mxu0 %v80
  %v137 = vpop.f32.mrf.mxu0
  %v138 = vadd.f32 %v52, %v137
  %v139 = vpop.f32.mrf.mxu0
  %v140 = vpop.f32.mrf.mxu0
  %v141 = vadd.f32 %v52, %v140
  %v142 = vpop.f32.mrf.mxu0
  %143 = vmatprep.mubr.bf16.mxu0 0
  %144 = vmatmul.mubr.bf16.gmra.mxu0 %v83
  %v145 = vpop.f32.mrf.mxu0
  %v146 = vadd.f32 %v52, %v145
  %v147 = vpop.f32.mrf.mxu0
  %v148 = vpop.f32.mrf.mxu0
  %v149 = vadd.f32 %v52, %v148
  %v150 = vpop.f32.mrf.mxu0
  %151 = vmatprep.mubr.bf16.mxu0 0
  %152 = vmatmul.mubr.bf16.gmra.mxu0 %v86
  %v153 = vpop.f32.mrf.mxu0
  %v154 = vadd.f32 %v52, %v153
  %v155 = vpop.f32.mrf.mxu0
  %v156 = vpop.f32.mrf.mxu0
  %v157 = vadd.f32 %v52, %v156
  %v158 = vpop.f32.mrf.mxu0
  %159 = vmatprep.mubr.bf16.mxu0 0
  %160 = vmatmul.mubr.bf16.gmra.mxu0 %v89
  %v161 = vpop.f32.mrf.mxu0
  %v162 = vadd.f32 %v52, %v161
  %v163 = vpop.f32.mrf.mxu0
  %v164 = vpop.f32.mrf.mxu0
  %v165 = vadd.f32 %v52, %v164
  %v166 = vpop.f32.mrf.mxu0
  %167 = vmatprep.mubr.bf16.mxu0 0
  %168 = vmatmul.mubr.bf16.gmra.mxu0 %v92
  %v169 = vpop.f32.mrf.mxu0
  %v170 = vadd.f32 %v52, %v169
  %v171 = vpop.f32.mrf.mxu0
  %v172 = vpop.f32.mrf.mxu0
  %v173 = vadd.f32 %v52, %v172
  %v174 = vpop.f32.mrf.mxu0
  %175 = vmatprep.mubr.bf16.mxu0 0
  %176 = vmatmul.mubr.bf16.gmra.mxu0 %v95
  %v177 = vpop.f32.mrf.mxu0
  %v178 = vadd.f32 %v52, %v177
  %v179 = vpop.f32.mrf.mxu0
  %v180 = vpop.f32.mrf.mxu0
  %v181 = vadd.f32 %v52, %v180
  %v182 = vpop.f32.mrf.mxu0
  %183 = vmatprep.mubr.bf16.mxu0 0
  %184 = vmatmul.mubr.bf16.gmra.mxu0 %v98
  %v185 = vpop.f32.mrf.mxu0
  %v186 = vadd.f32 %v52, %v185
  %v187 = vpop.f32.mrf.mxu0
  %v188 = vpop.f32.mrf.mxu0
  %v189 = vadd.f32 %v52, %v188
  %v190 = vpop.f32.mrf.mxu0
  %191 = vmatprep.mubr.bf16.mxu0 0
  %192 = vmatmul.mubr.bf16.gmra.mxu0 %v101
  %v193 = vpop.f32.mrf.mxu0
  %v194 = vadd.f32 %v52, %v193
  %v195 = vpop.f32.mrf.mxu0
  %v196 = vpop.f32.mrf.mxu0
  %v197 = vadd.f32 %v52, %v196
  %v198 = vpop.f32.mrf.mxu0
  %199 = vdwg.mxu0
  %200 = vst.msk [vmem:[%s3] sm:$0xff] %vm78, %v138
  %201 = vst.msk [vmem:[%s3 + $0x8] sm:$0xff] %vm78, %v141
  %202 = vst.msk [vmem:[%s3 + $0x10] sm:$0xff] %vm78, %v146
  %203 = vst.msk [vmem:[%s3 + $0x18] sm:$0xff] %vm78, %v149
  %204 = vst.msk [vmem:[%s3 + $0x20] sm:$0xff] %vm78, %v154
  %205 = vst.msk [vmem:[%s3 + $0x28] sm:$0xff] %vm78, %v157
  %206 = vst.msk [vmem:[%s3 + $0x30] sm:$0xff] %vm78, %v162
  %207 = vst.msk [vmem:[%s3 + $0x38] sm:$0xff] %vm78, %v165
  %208 = vst.msk [vmem:[%s3 + $0x40] sm:$0xff] %vm78, %v170
  %209 = vst.msk [vmem:[%s3 + $0x48] sm:$0xff] %vm78, %v173
  %210 = vst.msk [vmem:[%s3 + $0x50] sm:$0xff] %vm78, %v178
  %211 = vst.msk [vmem:[%s3 + $0x58] sm:$0xff] %vm78, %v181
  %212 = vst.msk [vmem:[%s3 + $0x60] sm:$0xff] %vm78, %v186
  %213 = vst.msk [vmem:[%s3 + $0x68] sm:$0xff] %vm78, %v189
  %214 = vst.msk [vmem:[%s3 + $0x70] sm:$0xff] %vm78, %v194
  %215 = vst.msk [vmem:[%s3 + $0x78] sm:$0xff] %vm78, %v197
  // Predicated region
  $region14: #{dual_rnn_block_forward.9} parent=0 // pred_check
    _
  $region15: #{dual_rnn_block_forward.9} parent=0 // pred_check_branch
    %217 = sbr.rel (0) target = $region17
  $region16: #{dual_rnn_block_forward.9} parent=0 // pred_region
    _
  $region17: #{dual_rnn_block_forward.9} parent=0 // pred_fallthru
    _
  // Predicated region
  $region18: #{dual_rnn_block_forward.9} parent=0 // pred_check
    _
  $region19: #{dual_rnn_block_forward.9} parent=0 // pred_check_branch
    %219 = sbr.rel (0) target = $region21
  $region20: #{dual_rnn_block_forward.9} parent=0 // pred_region
    _
  $region21: #{dual_rnn_block_forward.9} parent=0 // pred_fallthru
    _

// kernel: dual_rnn_block_forward.11
$region0: #{dual_rnn_block_forward.11}
  #allocation0 [shape = 'u32[]', space=smem, size = 0x4, offset = 0x4, fixed_abs, tag = 'smem constant byte address 0x4 - core index']
  #allocation1 [shape = 'u32[144,128]{1,0:T(1,128)}', space=vmem, size = 0x12000, scoped, tag = 'internal scratch']
  %s0 = inlined_call_operand.vmem [shape: f32[2,64,64], index: 0, kind: input, shape index: {}]
  %s1 = inlined_call_operand.vmem [shape: f32[2,64,64], index: 1, kind: input, shape index: {}]
  %s2 = inlined_call_operand.vmem [shape: bf16[64,64], index: 2, kind: input, shape index: {}]
  %s3 = inlined_call_operand.vmem [shape: f32[1,64], index: 3, kind: input, shape index: {}]
  %s4 = inlined_call_operand.vmem [shape: f32[1,64], index: 4, kind: input, shape index: {}]
  %s5 = inlined_call_operand.vmem [shape: f32[1,64], index: 5, kind: input, shape index: {}]
  %s6 = inlined_call_operand.hbm [shape: f32[2,64,64], index: 6, kind: output, shape index: {}]
  %s7 = sld [smem:[#allocation0]]
  $region57: #{dual_rnn_block_forward.11} parent=0
    _
  %s9 = ssub.s32 1, %s7
  %s10 = scalar_select 0, %s9, %s7
  $region1: #{dual_rnn_block_forward.11} parent=0
    #allocation2 [shape = 'u8[65536]{0}', space=vmem, size = 0x10000, scoped, tag = 'output window, operand 0']
    #allocation3 [shape = 's32[2]{0}', space=sflag, size = 0x8, scoped, tag = 'scoped memory for dual_rnn_block_forward.11']
    %11 = vsyncpa [#allocation3], 0
    %s12 = scalar_lea.sflag [#allocation3], 1
    %13 = vsyncpa %s12, 0
    loop: start=0, step=1, limit=4
    $region2: #{dual_rnn_block_forward.11} parent=1 // loop_pre_header
      _
    $region3: #{dual_rnn_block_forward.11} parent=1 // loop_header
      %s15 = sphi 0, %s19
      %p16 = scmp.ge.s32.totalorder %s15, 4
      %s25 = sphi 0, %s27
      %s28 = sphi 0, %s25
      %s29 = sphi 0, %s28
      %s45 = sphi 0, %s29
      %s51 = sphi 0, %s53
      %s54 = sphi 0, %s51
      %s55 = sphi 0, %s54
      %s71 = sphi 0, %s55
      %s75 = sphi 0, %s75
      %s77 = sphi 0, %s75
      %s78 = sphi 0, %s77
      %s92 = sphi 0, %s78
      %s96 = sphi 0, %s96
      %s98 = sphi 0, %s96
      %s99 = sphi 0, %s98
      %s113 = sphi 0, %s99
      %s117 = sphi 0, %s117
      %s119 = sphi 0, %s117
      %s120 = sphi 0, %s119
      %s134 = sphi 0, %s120
      %s138 = sphi 0, %s138
      %s140 = sphi 0, %s138
      %s141 = sphi 0, %s140
      %s155 = sphi 0, %s141
      %s161 = sphi 0, %s163
      %s164 = sphi 0, %s161
      %s165 = sphi 0, %s164
      %s181 = sphi 0, %s165
    $region4: #{dual_rnn_block_forward.11} parent=1 // loop_header_branch
      %18 = sbr.rel (%p16) target = $region8
    $region5: #{dual_rnn_block_forward.11} parent=1 // loop_body
      %s20 = ssub.s32 %s15, 1
      %s21 = ssub.s32 %s15, 2
      %s22 = sadd.s32 %s15, 1
      %s23 = ssub.s32 %s15, %s22
      %p24 = scmp.eq.s32.totalorder %s23, 0
      %s26 = sadd.s32 %s25, 1
      %s27 = scalar_select %p24, %s25, %s26
      %p30 = pneg %p24
      %p31 = scmp.eq.s32.totalorder %s15, 1
      %p32 = por %p30, %p31
      %p33 = scmp.ne.s32.totalorder %s25, %s28
      %p34 = scmp.eq.s32.totalorder %s15, 0
      %p35 = por %p33, %p34
      %p36 = scmp.ne.s32.totalorder %s25, %s28
      %p37 = scmp.eq.s32.totalorder %s20, 1
      %p38 = por %p36, %p37
      %p39 = scmp.ne.s32.totalorder %s28, %s29
      %p40 = scmp.eq.s32.totalorder %s20, 0
      %p41 = por %p39, %p40
      %p42 = scmp.ne.s32.totalorder %s28, %s29
      %p43 = scmp.eq.s32.totalorder %s21, 1
      %p44 = por %p42, %p43
      %p46 = scmp.ne.s32.totalorder %s29, %s45
      %p47 = scmp.eq.s32.totalorder %s21, 0
      %p48 = por %p46, %p47
      %s49 = ssub.s32 %s15, %s22
      %p50 = scmp.eq.s32.totalorder %s49, 0
      %s52 = sadd.s32 %s51, 1
      %s53 = scalar_select %p50, %s51, %s52
      %p56 = pneg %p50
      %p57 = scmp.eq.s32.totalorder %s15, 1
      %p58 = por %p56, %p57
      %p59 = scmp.ne.s32.totalorder %s51, %s54
      %p60 = scmp.eq.s32.totalorder %s15, 0
      %p61 = por %p59, %p60
      %p62 = scmp.ne.s32.totalorder %s51, %s54
      %p63 = scmp.eq.s32.totalorder %s20, 1
      %p64 = por %p62, %p63
      %p65 = scmp.ne.s32.totalorder %s54, %s55
      %p66 = scmp.eq.s32.totalorder %s20, 0
      %p67 = por %p65, %p66
      %p68 = scmp.ne.s32.totalorder %s54, %s55
      %p69 = scmp.eq.s32.totalorder %s21, 1
      %p70 = por %p68, %p69
      %p72 = scmp.ne.s32.totalorder %s55, %s71
      %p73 = scmp.eq.s32.totalorder %s21, 0
      %p74 = por %p72, %p73
      %s76 = sadd.s32 %s75, 1
      %p79 = scmp.eq.s32.totalorder %s15, 1
      %p80 = scmp.ne.s32.totalorder %s75, %s77
      %p81 = scmp.eq.s32.totalorder %s15, 0
      %p82 = por %p80, %p81
      %p83 = scmp.ne.s32.totalorder %s75, %s77
      %p84 = scmp.eq.s32.totalorder %s20, 1
      %p85 = por %p83, %p84
      %p86 = scmp.ne.s32.totalorder %s77, %s78
      %p87 = scmp.eq.s32.totalorder %s20, 0
      %p88 = por %p86, %p87
      %p89 = scmp.ne.s32.totalorder %s77, %s78
      %p90 = scmp.eq.s32.totalorder %s21, 1
      %p91 = por %p89, %p90
      %p93 = scmp.ne.s32.totalorder %s78, %s92
      %p94 = scmp.eq.s32.totalorder %s21, 0
      %p95 = por %p93, %p94
      %s97 = sadd.s32 %s96, 1
      %p100 = scmp.eq.s32.totalorder %s15, 1
      %p101 = scmp.ne.s32.totalorder %s96, %s98
      %p102 = scmp.eq.s32.totalorder %s15, 0
      %p103 = por %p101, %p102
      %p104 = scmp.ne.s32.totalorder %s96, %s98
      %p105 = scmp.eq.s32.totalorder %s20, 1
      %p106 = por %p104, %p105
      %p107 = scmp.ne.s32.totalorder %s98, %s99
      %p108 = scmp.eq.s32.totalorder %s20, 0
      %p109 = por %p107, %p108
      %p110 = scmp.ne.s32.totalorder %s98, %s99
      %p111 = scmp.eq.s32.totalorder %s21, 1
      %p112 = por %p110, %p111
      %p114 = scmp.ne.s32.totalorder %s99, %s113
      %p115 = scmp.eq.s32.totalorder %s21, 0
      %p116 = por %p114, %p115
      %s118 = sadd.s32 %s117, 1
      %p121 = scmp.eq.s32.totalorder %s15, 1
      %p122 = scmp.ne.s32.totalorder %s117, %s119
      %p123 = scmp.eq.s32.totalorder %s15, 0
      %p124 = por %p122, %p123
      %p125 = scmp.ne.s32.totalorder %s117, %s119
      %p126 = scmp.eq.s32.totalorder %s20, 1
      %p127 = por %p125, %p126
      %p128 = scmp.ne.s32.totalorder %s119, %s120
      %p129 = scmp.eq.s32.totalorder %s20, 0
      %p130 = por %p128, %p129
      %p131 = scmp.ne.s32.totalorder %s119, %s120
      %p132 = scmp.eq.s32.totalorder %s21, 1
      %p133 = por %p131, %p132
      %p135 = scmp.ne.s32.totalorder %s120, %s134
      %p136 = scmp.eq.s32.totalorder %s21, 0
      %p137 = por %p135, %p136
      %s139 = sadd.s32 %s138, 1
      %p142 = scmp.eq.s32.totalorder %s15, 1
      %p143 = scmp.ne.s32.totalorder %s138, %s140
      %p144 = scmp.eq.s32.totalorder %s15, 0
      %p145 = por %p143, %p144
      %p146 = scmp.ne.s32.totalorder %s138, %s140
      %p147 = scmp.eq.s32.totalorder %s20, 1
      %p148 = por %p146, %p147
      %p149 = scmp.ne.s32.totalorder %s140, %s141
      %p150 = scmp.eq.s32.totalorder %s20, 0
      %p151 = por %p149, %p150
      %p152 = scmp.ne.s32.totalorder %s140, %s141
      %p153 = scmp.eq.s32.totalorder %s21, 1
      %p154 = por %p152, %p153
      %p156 = scmp.ne.s32.totalorder %s141, %s155
      %p157 = scmp.eq.s32.totalorder %s21, 0
      %p158 = por %p156, %p157
      %s159 = ssub.s32 %s15, %s22
      %p160 = scmp.eq.s32.totalorder %s159, 0
      %s162 = sadd.s32 %s161, 1
      %s163 = scalar_select %p160, %s161, %s162
      %p166 = pneg %p160
      %p167 = scmp.eq.s32.totalorder %s15, 1
      %p168 = por %p166, %p167
      %p169 = scmp.ne.s32.totalorder %s161, %s164
      %p170 = scmp.eq.s32.totalorder %s15, 0
      %p171 = por %p169, %p170
      %p172 = scmp.ne.s32.totalorder %s161, %s164
      %p173 = scmp.eq.s32.totalorder %s20, 1
      %p174 = por %p172, %p173
      %p175 = scmp.ne.s32.totalorder %s164, %s165
      %p176 = scmp.eq.s32.totalorder %s20, 0
      %p177 = por %p175, %p176
      %p178 = scmp.ne.s32.totalorder %s164, %s165
      %p179 = scmp.eq.s32.totalorder %s21, 1
      %p180 = por %p178, %p179
      %p182 = scmp.ne.s32.totalorder %s165, %s181
      %p183 = scmp.eq.s32.totalorder %s21, 0
      %p184 = por %p182, %p183
      %p185 = scmp.le.s32.totalorder 1, %s15
      %p186 = scmp.lt.s32.totalorder %s15, 3
      %p187 = pnand %p185, %p186
      %p188 = pneg %p187
      // Predicated region
      $region9: #{dual_rnn_block_forward.11} parent=5 // pred_check
        _
      $region10: #{dual_rnn_block_forward.11} parent=5 // pred_check_branch
        %190 = sbr.rel (%p187) target = $region12
      $region11: #{dual_rnn_block_forward.11} parent=5 // pred_region
        %s191 = ssub.s32 %s15, 1
        // Predicated region
        $region13: #{dual_rnn_block_forward.11} parent=11 // pred_check
          %p192 = pneg %p88
        $region14: #{dual_rnn_block_forward.11} parent=11 // pred_check_branch
          %194 = sbr.rel (%p192) target = $region16
        $region15: #{dual_rnn_block_forward.11} parent=11 // pred_region
          _
        $region16: #{dual_rnn_block_forward.11} parent=11 // pred_fallthru
          _
        // Predicated region
        $region17: #{dual_rnn_block_forward.11} parent=11 // pred_check
          %p195 = pneg %p109
        $region18: #{dual_rnn_block_forward.11} parent=11 // pred_check_branch
          %197 = sbr.rel (%p195) target = $region20
        $region19: #{dual_rnn_block_forward.11} parent=11 // pred_region
          _
        $region20: #{dual_rnn_block_forward.11} parent=11 // pred_fallthru
          _
        // Predicated region
        $region21: #{dual_rnn_block_forward.11} parent=11 // pred_check
          %p198 = pneg %p130
        $region22: #{dual_rnn_block_forward.11} parent=11 // pred_check_branch
          %200 = sbr.rel (%p198) target = $region24
        $region23: #{dual_rnn_block_forward.11} parent=11 // pred_region
          _
        $region24: #{dual_rnn_block_forward.11} parent=11 // pred_fallthru
          _
        // Predicated region
        $region25: #{dual_rnn_block_forward.11} parent=11 // pred_check
          %p201 = pneg %p151
        $region26: #{dual_rnn_block_forward.11} parent=11 // pred_check_branch
          %203 = sbr.rel (%p201) target = $region28
        $region27: #{dual_rnn_block_forward.11} parent=11 // pred_region
          _
        $region28: #{dual_rnn_block_forward.11} parent=11 // pred_fallthru
          _
      $region12: #{dual_rnn_block_forward.11} parent=5 // pred_fallthru
        _
      %p204 = scmp.lt.s32.totalorder %s15, 2
      // Predicated region
      $region29: #{dual_rnn_block_forward.11} parent=5 // pred_check
        %p205 = pneg %p204
      $region30: #{dual_rnn_block_forward.11} parent=5 // pred_check_branch
        %207 = sbr.rel (%p205) target = $region32
      $region31: #{dual_rnn_block_forward.11} parent=5 // pred_region
        // Predicated region
        $region33: #{dual_rnn_block_forward.11} parent=31 // pred_check
          %p208 = pneg %p35
        $region34: #{dual_rnn_block_forward.11} parent=31 // pred_check_branch
          %210 = sbr.rel (%p208) target = $region36
        $region35: #{dual_rnn_block_forward.11} parent=31 // pred_region
          %p211 = scmp.lt.s32.totalorder %s15, 1
          %s212 = scalar_select %p211, %s15, 1
          %s213 = smul.addr %s212, 8
          %s214 = smul.addr %s213, 8
          %s215 = scalar_lea.vmem %s0, %s214
        $region36: #{dual_rnn_block_forward.11} parent=31 // pred_fallthru
          _
        // Predicated region
        $region37: #{dual_rnn_block_forward.11} parent=31 // pred_check
          %p216 = pneg %p61
        $region38: #{dual_rnn_block_forward.11} parent=31 // pred_check_branch
          %218 = sbr.rel (%p216) target = $region40
        $region39: #{dual_rnn_block_forward.11} parent=31 // pred_region
          %p219 = scmp.lt.s32.totalorder %s15, 1
          %s220 = scalar_select %p219, %s15, 1
          %s221 = smul.addr %s220, 8
          %s222 = smul.addr %s221, 8
          %s223 = scalar_lea.vmem %s1, %s222
        $region40: #{dual_rnn_block_forward.11} parent=31 // pred_fallthru
          _
      $region32: #{dual_rnn_block_forward.11} parent=5 // pred_fallthru
        _
      %p224 = scmp.le.s32.totalorder 1, %s15
      %p225 = scmp.lt.s32.totalorder %s15, 3
      %p226 = pnand %p224, %p225
      %p227 = pneg %p226
      // Predicated region
      $region41: #{dual_rnn_block_forward.11} parent=5 // pred_check
        _
      $region42: #{dual_rnn_block_forward.11} parent=5 // pred_check_branch
        %229 = sbr.rel (%p226) target = $region44
      $region43: #{dual_rnn_block_forward.11} parent=5 // pred_region
        %s230 = ssub.s32 %s15, 1
        %p231 = scmp.lt.s32.totalorder %s20, 1
        %s232 = scalar_select %p231, %s20, 1
        %s233 = smul.addr %s232, 8
        %s234 = smul.addr %s233, 8
        %s235 = scalar_lea.vmem %s0, %s234
        %p236 = pneg %p41
        %p237 = pneg %p38
        %p238 = scmp.lt.s32.totalorder %s20, 1
        %s239 = scalar_select %p238, %s20, 1
        %s240 = smul.addr %s239, 8
        %s241 = smul.addr %s240, 8
        %s242 = scalar_lea.vmem %s1, %s241
        %p243 = pneg %p67
        %p244 = pneg %p64
        %p245 = pneg %p88
        %p246 = pneg %p85
        %p247 = pneg %p109
        %p248 = pneg %p106
        %p249 = pneg %p130
        %p250 = pneg %p127
        %p251 = pneg %p151
        %p252 = pneg %p148
        %p253 = pneg %p177
        %p254 = pneg %p174
        %s255 = sand.u32 %s164, 1
        %s256 = scalar_lea.sflag [#allocation3], %s255
        %s257 = sand.u32 %s164, 1
        %s258 = smul.addr %s257, 64
        %s259 = scalar_lea.vmem [#allocation2], %s258
        %p260 = scmp.lt.s32.totalorder %s20, 1
        %s261 = scalar_select %p260, %s20, 1
        %s262 = smul.addr %s261, 8
        %s263 = smul.addr %s262, 8
        %s264 = scalar_lea.vmem %s0, %s263
        %p265 = scmp.lt.s32.totalorder %s20, 1
        %s266 = scalar_select %p265, %s20, 1
        %s267 = smul.addr %s266, 8
        %s268 = smul.addr %s267, 8
        %s269 = scalar_lea.vmem %s1, %s268
        %v271 = vld [vmem:[%s264] sm:$0xff]
        %v272 = vld [vmem:[%s264 + $0x8] sm:$0xff]
        %v273 = vld [vmem:[%s264 + $0x10] sm:$0xff]
        %v274 = vld [vmem:[%s264 + $0x18] sm:$0xff]
        %v275 = vld [vmem:[%s264 + $0x20] sm:$0xff]
        %v276 = vld [vmem:[%s264 + $0x28] sm:$0xff]
        %v277 = vld [vmem:[%s264 + $0x30] sm:$0xff]
        %v278 = vld [vmem:[%s264 + $0x38] sm:$0xff]
        %v279 = vpack.c.bf16 %v272, %v271
        %v280 = vpack.c.bf16 %v274, %v273
        %v281 = vpack.c.bf16 %v276, %v275
        %v282 = vpack.c.bf16 %v278, %v277
        %v283 = vld [vmem:[%s2] sm:$0xf]
        %v284 = vld [vmem:[%s2 + $0x4] sm:$0xf]
        %v285 = vld [vmem:[%s2 + $0x8] sm:$0xf]
        %v286 = vld [vmem:[%s2 + $0xc] sm:$0xf]
        %v287 = vld [vmem:[%s2 + $0x10] sm:$0xf]
        %v288 = vld [vmem:[%s2 + $0x14] sm:$0xf]
        %v289 = vld [vmem:[%s2 + $0x18] sm:$0xf]
        %v290 = vld [vmem:[%s2 + $0x1c] sm:$0xf]
        %v291 = vld [vmem:[%s3] sm:$0x1]
        %v293 = vlaneseq
        %v294 = vshrl.u32 %v293, 7
        %v295 = vsub.s32 0, %v294
        %v296 = vrot.slane %v291, %v295
        %v306 = vunpack.c.l.b16 %v283
        %v307 = vunpack.c.l.b16 %v284
        %v308 = vunpack.c.l.b16 %v285
        %v309 = vunpack.c.l.b16 %v286
        %v310 = vunpack.c.l.b16 %v287
        %v311 = vunpack.c.l.b16 %v288
        %v312 = vunpack.c.l.b16 %v289
        %v313 = vunpack.c.l.b16 %v290
        %v314 = vpack.c.b16 %v307, %v306
        %v315 = vpack.c.b16 %v309, %v308
        %v316 = vpack.c.b16 %v311, %v310
        %v317 = vpack.c.b16 %v313, %v312
        %vm322 = vcmask 523264
        %v324 = vsel %vm322, %v279, 0
        %v327 = vsel %vm322, %v280, 0
        %v330 = vsel %vm322, %v281, 0
        %v333 = vsel %vm322, %v282, 0
        %335 = vmatprep.subr.bf16.mxu0 0
        %336 = vmatpush1.bf16.msra.mxu0 0
        %337 = vmatprep.subr.bf16.mxu0 0
        %338 = vmatpush1.bf16.msra.mxu0 0
        %339 = vmatprep.subr.bf16.mxu0 0
        %340 = vmatpush1.bf16.msra.mxu0 0
        %341 = vmatprep.subr.bf16.mxu0 0
        %342 = vmatpush1.bf16.msra.mxu0 0
        %343 = vmatprep.subr.bf16.mxu0 0
        %344 = vmatpush1.bf16.msra.mxu0 %v317
        %345 = vmatprep.subr.bf16.mxu0 0
        %346 = vmatpush1.bf16.msra.mxu0 %v316
        %347 = vmatprep.subr.bf16.mxu0 0
        %348 = vmatpush1.bf16.msra.mxu0 %v315
        %349 = vmatprep.subr.bf16.mxu0 0
        %350 = vmatpush1.bf16.msra.mxu0 %v314
        %351 = vmatprep.subr.bf16.mxu0 0
        %352 = vmatpush2.bf16.msra.mxu0 0
        %353 = vmatprep.subr.bf16.mxu0 0
        %354 = vmatpush2.bf16.msra.mxu0 0
        %355 = vmatprep.subr.bf16.mxu0 0
        %356 = vmatpush2.bf16.msra.mxu0 0
        %357 = vmatprep.subr.bf16.mxu0 0
        %358 = vmatpush2.bf16.msra.mxu0 0
        %359 = vmatprep.subr.bf16.mxu0 0
        %360 = vmatpush2.bf16.msra.mxu0 0
        %361 = vmatprep.subr.bf16.mxu0 0
        %362 = vmatpush2.bf16.msra.mxu0 0
        %363 = vmatprep.subr.bf16.mxu0 0
        %364 = vmatpush2.bf16.msra.mxu0 0
        %365 = vmatprep.subr.bf16.mxu0 0
        %366 = vmatpush2.bf16.msra.mxu0 0
        %367 = vmatprep.mubr.bf16.mxu0 0
        %368 = vmatmul.mubr.bf16.gmra.mxu0 %v324
        %v369 = vpop.f32.mrf.mxu0
        %v370 = vadd.f32 %v296, %v369
        %v371 = vpop.f32.mrf.mxu0
        %v372 = vpop.f32.mrf.mxu0
        %v373 = vadd.f32 %v296, %v372
        %v374 = vpop.f32.mrf.mxu0
        %375 = vmatprep.mubr.bf16.mxu0 0
        %376 = vmatmul.mubr.bf16.gmra.mxu0 %v327
        %v377 = vpop.f32.mrf.mxu0
        %v378 = vadd.f32 %v296, %v377
        %v379 = vpop.f32.mrf.mxu0
        %v380 = vpop.f32.mrf.mxu0
        %v381 = vadd.f32 %v296, %v380
        %v382 = vpop.f32.mrf.mxu0
        %383 = vmatprep.mubr.bf16.mxu0 0
        %384 = vmatmul.mubr.bf16.gmra.mxu0 %v330
        %v385 = vpop.f32.mrf.mxu0
        %v386 = vadd.f32 %v296, %v385
        %v387 = vpop.f32.mrf.mxu0
        %v388 = vpop.f32.mrf.mxu0
        %v389 = vadd.f32 %v296, %v388
        %v390 = vpop.f32.mrf.mxu0
        %391 = vmatprep.mubr.bf16.mxu0 0
        %392 = vmatmul.mubr.bf16.gmra.mxu0 %v333
        %v393 = vpop.f32.mrf.mxu0
        %v394 = vadd.f32 %v296, %v393
        %v395 = vpop.f32.mrf.mxu0
        %v396 = vpop.f32.mrf.mxu0
        %v397 = vadd.f32 %v296, %v396
        %v398 = vpop.f32.mrf.mxu0
        %399 = vdwg.mxu0
        %v400 = vsel %vm322, %v370, 0.0
        %v401 = vsel %vm322, %v373, 0.0
        %v402 = vadd.f32 %v400, %v401
        %v403 = vsel %vm322, %v378, 0.0
        %v404 = vadd.f32 %v402, %v403
        %v405 = vsel %vm322, %v381, 0.0
        %v406 = vadd.f32 %v404, %v405
        %v407 = vsel %vm322, %v386, 0.0
        %v408 = vadd.f32 %v406, %v407
        %v409 = vsel %vm322, %v389, 0.0
        %v410 = vadd.f32 %v408, %v409
        %v411 = vsel %vm322, %v394, 0.0
        %v412 = vadd.f32 %v410, %v411
        %v413 = vsel %vm322, %v397, 0.0
        %v414 = vadd.f32 %v412, %v413
        %415 = vadd.xlane.f32.xlu0 %v414
        %v416 = vpop.xlane.xlu0 %415
        %v417 = vrot.slane %v416, 4
        %v418 = vadd.f32 %v416, %v417
        %v419 = vrot.slane %v418, 2
        %v420 = vadd.f32 %v418, %v419
        %v421 = vrot.slane %v420, 1
        %v422 = vadd.f32 %v420, %v421
        %s423 = vtos %v422
        %v424 = vstv %s423
        %v425 = vrcp.pop 4096.0
        %v426 = vmul.f32 %v424, %v425
        %v427 = vsub.f32 %v370, %v426
        %v428 = vsub.f32 %v373, %v426
        %v429 = vsub.f32 %v378, %v426
        %v430 = vsub.f32 %v381, %v426
        %v431 = vsub.f32 %v386, %v426
        %v432 = vsub.f32 %v389, %v426
        %v433 = vsub.f32 %v394, %v426
        %v434 = vsub.f32 %v397, %v426
        %v435 = vmul.f32 %v427, %v427
        %v436 = vmul.f32 %v428, %v428
        %v437 = vmul.f32 %v429, %v429
        %v438 = vmul.f32 %v430, %v430
        %v439 = vmul.f32 %v431, %v431
        %v440 = vmul.f32 %v432, %v432
        %v441 = vmul.f32 %v433, %v433
        %v442 = vmul.f32 %v434, %v434
        %v443 = vsel %vm322, %v435, 0.0
        %v444 = vsel %vm322, %v436, 0.0
        %v445 = vadd.f32 %v443, %v444
        %v446 = vsel %vm322, %v437, 0.0
        %v447 = vadd.f32 %v445, %v446
        %v448 = vsel %vm322, %v438, 0.0
        %v449 = vadd.f32 %v447, %v448
        %v450 = vsel %vm322, %v439, 0.0
        %v451 = vadd.f32 %v449, %v450
        %v452 = vsel %vm322, %v440, 0.0
        %v453 = vadd.f32 %v451, %v452
        %v454 = vsel %vm322, %v441, 0.0
        %v455 = vadd.f32 %v453, %v454
        %v456 = vsel %vm322, %v442, 0.0
        %v457 = vadd.f32 %v455, %v456
        %458 = vadd.xlane.f32.xlu0 %v457
        %v459 = vpop.xlane.xlu0 %458
        %v460 = vrot.slane %v459, 4
        %v461 = vadd.f32 %v459, %v460
        %v462 = vrot.slane %v461, 2
        %v463 = vadd.f32 %v461, %v462
        %v464 = vrot.slane %v463, 1
        %v465 = vadd.f32 %v463, %v464
        %s466 = vtos %v465
        %v467 = vstv %s466
        %v468 = vmul.f32 %v467, %v425
        %v469 = vadd.f32 %v468, 1e-08
        %v470 = vrsqrt.pop %v469
        %v471 = vmul.f32 %v427, %v470
        %v472 = vmul.f32 %v428, %v470
        %v473 = vmul.f32 %v429, %v470
        %v474 = vmul.f32 %v430, %v470
        %v475 = vmul.f32 %v431, %v470
        %v476 = vmul.f32 %v432, %v470
        %v477 = vmul.f32 %v433, %v470
        %v478 = vmul.f32 %v434, %v470
        %v479 = vld [vmem:[%s4] sm:$0x1]
        %v481 = vlaneseq
        %v482 = vshrl.u32 %v481, 7
        %v483 = vsub.s32 0, %v482
        %v484 = vrot.slane %v479, %v483
        %v486 = vmul.f32 %v484, %v471
        %v487 = vmul.f32 %v484, %v472
        %v488 = vmul.f32 %v484, %v473
        %v489 = vmul.f32 %v484, %v474
        %v490 = vmul.f32 %v484, %v475
        %v491 = vmul.f32 %v484, %v476
        %v492 = vmul.f32 %v484, %v477
        %v493 = vmul.f32 %v484, %v478
        %v494 = vld [vmem:[%s5] sm:$0x1]
        %v496 = vlaneseq
        %v497 = vshrl.u32 %v496, 7
        %v498 = vsub.s32 0, %v497
        %v499 = vrot.slane %v494, %v498
        %v501 = vadd.f32 %v486, %v499
        %v502 = vadd.f32 %v487, %v499
        %v503 = vadd.f32 %v488, %v499
        %v504 = vadd.f32 %v489, %v499
        %v505 = vadd.f32 %v490, %v499
        %v506 = vadd.f32 %v491, %v499
        %v507 = vadd.f32 %v492, %v499
        %v508 = vadd.f32 %v493, %v499
        %v509 = vld [vmem:[%s269] sm:$0xff]
        %v510 = vld [vmem:[%s269 + $0x8] sm:$0xff]
        %v511 = vld [vmem:[%s269 + $0x10] sm:$0xff]
        %v512 = vld [vmem:[%s269 + $0x18] sm:$0xff]
        %v513 = vld [vmem:[%s269 + $0x20] sm:$0xff]
        %v514 = vld [vmem:[%s269 + $0x28] sm:$0xff]
        %v515 = vld [vmem:[%s269 + $0x30] sm:$0xff]
        %v516 = vld [vmem:[%s269 + $0x38] sm:$0xff]
        %v517 = vadd.f32 %v501, %v509
        %v518 = vadd.f32 %v502, %v510
        %v519 = vadd.f32 %v503, %v511
        %v520 = vadd.f32 %v504, %v512
        %v521 = vadd.f32 %v505, %v513
        %v522 = vadd.f32 %v506, %v514
        %v523 = vadd.f32 %v507, %v515
        %v524 = vadd.f32 %v508, %v516
        %525 = vst.msk [vmem:[%s259] sm:$0xff] %vm322, %v517
        %526 = vst.msk [vmem:[%s259 + $0x8] sm:$0xff] %vm322, %v518
        %527 = vst.msk [vmem:[%s259 + $0x10] sm:$0xff] %vm322, %v519
        %528 = vst.msk [vmem:[%s259 + $0x18] sm:$0xff] %vm322, %v520
        %529 = vst.msk [vmem:[%s259 + $0x20] sm:$0xff] %vm322, %v521
        %530 = vst.msk [vmem:[%s259 + $0x28] sm:$0xff] %vm322, %v522
        %531 = vst.msk [vmem:[%s259 + $0x30] sm:$0xff] %vm322, %v523
        %532 = vst.msk [vmem:[%s259 + $0x38] sm:$0xff] %vm322, %v524
        %s533 = sand.u32 %s164, 1
        %s534 = scalar_lea.sflag [#allocation3], %s533
        %s535 = sand.u32 %s164, 1
        %s536 = smul.addr %s535, 64
        %s537 = scalar_lea.vmem [#allocation2], %s536
        // Predicated region
        $region45: #{dual_rnn_block_forward.11} parent=43 // pred_check
          %p538 = pneg %p174
        $region46: #{dual_rnn_block_forward.11} parent=43 // pred_check_branch
          %540 = sbr.rel (%p538) target = $region48
        $region47: #{dual_rnn_block_forward.11} parent=43 // pred_region
          %s542 = ssub.s32 1024, 1024
          %543 = vsyncadd %s534, %s542
          %s544 = smul.addr %s20, 8
          %s545 = smul.addr %s544, 128
          %s546 = scalar_lea.hbm %s6, %s545
          %s547 = sshll.u32 %s537, 4
          %s548 = int_to_ptr.vmem [resolvable:$true] %s547
          %553 = dma.vmem_to_hbm [thread:$0]  %s548, 1024, %s546, %s534, 128, 128, 8
        $region48: #{dual_rnn_block_forward.11} parent=43 // pred_fallthru
          _
      $region44: #{dual_rnn_block_forward.11} parent=5 // pred_fallthru
        _
      %p554 = scmp.le.s32.totalorder 2, %s15
      // Predicated region
      $region49: #{dual_rnn_block_forward.11} parent=5 // pred_check
        %p555 = pneg %p554
      $region50: #{dual_rnn_block_forward.11} parent=5 // pred_check_branch
        %557 = sbr.rel (%p555) target = $region52
      $region51: #{dual_rnn_block_forward.11} parent=5 // pred_region
        %s558 = ssub.s32 %s15, 2
        // Predicated region
        $region53: #{dual_rnn_block_forward.11} parent=51 // pred_check
          %p559 = pneg %p180
        $region54: #{dual_rnn_block_forward.11} parent=51 // pred_check_branch
          %561 = sbr.rel (%p559) target = $region56
        $region55: #{dual_rnn_block_forward.11} parent=51 // pred_region
          %s562 = sand.u32 %s165, 1
          %s563 = scalar_lea.sflag [#allocation3], %s562
          %s564 = sand.u32 %s165, 1
          %s565 = smul.addr %s564, 64
          %s566 = scalar_lea.vmem [#allocation2], %s565
          %567 = dma.done %s563, 1024
        $region56: #{dual_rnn_block_forward.11} parent=51 // pred_fallthru
          _
      $region52: #{dual_rnn_block_forward.11} parent=5 // pred_fallthru
        _
    $region6: #{dual_rnn_block_forward.11} parent=1 // loop_footer
      %s19 = sadd.s32 1, %s15
    $region7: #{dual_rnn_block_forward.11} parent=1 // loop_footer_branch
      %14 = sbr.rel target = $region3
    $region8: #{dual_rnn_block_forward.11} parent=1 // loop_exit
      _
    %568 = vsyncpa [#allocation3], 1
    %s569 = scalar_lea.sflag [#allocation3], 1
    %570 = vsyncpa %s569, 1

// kernel: dual_rnn_block_forward.10
$region0: #{dual_rnn_block_forward.10}
  #allocation0 [shape = 'u32[]', space=smem, size = 0x4, offset = 0x4, fixed_abs, tag = 'smem constant byte address 0x4 - core index']
  #allocation1 [shape = 'u32[144,128]{1,0:T(1,128)}', space=vmem, size = 0x12000, scoped, tag = 'internal scratch']
  %s0 = inlined_call_operand.vmem [shape: f32[8,2,16,32], index: 0, kind: input, shape index: {}]
  %s1 = inlined_call_operand.vmem [shape: f32[2,32,32], index: 1, kind: input, shape index: {}]
  %s2 = inlined_call_operand.vmem [shape: f32[8,2,16,32], index: 2, kind: output, shape index: {}]
  %s3 = sld [smem:[#allocation0]]
  $region18: #{dual_rnn_block_forward.10} parent=0
    _
  %s5 = ssub.s32 1, %s3
  %s6 = scalar_select 0, %s5, %s3
  // Predicated region
  $region2: #{dual_rnn_block_forward.10} parent=0 // pred_check
    _
  $region3: #{dual_rnn_block_forward.10} parent=0 // pred_check_branch
    %8 = sbr.rel (0) target = $region5
  $region4: #{dual_rnn_block_forward.10} parent=0 // pred_region
    _
  $region5: #{dual_rnn_block_forward.10} parent=0 // pred_fallthru
    _
  // Predicated region
  $region6: #{dual_rnn_block_forward.10} parent=0 // pred_check
    _
  $region7: #{dual_rnn_block_forward.10} parent=0 // pred_check_branch
    %10 = sbr.rel (0) target = $region9
  $region8: #{dual_rnn_block_forward.10} parent=0 // pred_region
    _
  $region9: #{dual_rnn_block_forward.10} parent=0 // pred_fallthru
    _
  %v11 = vld [vmem:[%s1] sm:$0xff]
  %v12 = vld [vmem:[%s1 + $0x8] sm:$0xff]
  %v13 = vld [vmem:[%s1 + $0x10] sm:$0xff]
  %v14 = vld [vmem:[%s1 + $0x18] sm:$0xff]
  %v15 = vld [vmem:[%s1 + $0x20] sm:$0xff]
  %v16 = vld [vmem:[%s1 + $0x28] sm:$0xff]
  %v17 = vld [vmem:[%s1 + $0x30] sm:$0xff]
  %v18 = vld [vmem:[%s1 + $0x38] sm:$0xff]
  %v19 = vld [vmem:[%s0] sm:$0xff]
  %v20 = vld [vmem:[%s0 + $0x8] sm:$0xff]
  %v21 = vld [vmem:[%s0 + $0x10] sm:$0xff]
  %v22 = vld [vmem:[%s0 + $0x18] sm:$0xff]
  %vm23 = vcmask 261120
  %v25 = vsel %vm23, 0.0, 0
  %27 = vmatprep.subr.mxu0 0.0
  %28 = vmatpush1.msra.mxu0 0.0
  %29 = vmatprep.subr.mxu0 0.0
  %30 = vmatpush1.msra.mxu0 0.0
  %31 = vmatprep.subr.mxu0 0.0
  %32 = vmatpush1.msra.mxu0 0.0
  %33 = vmatprep.subr.mxu0 0.0
  %34 = vmatpush1.msra.mxu0 0.0
  %35 = vmatprep.subr.mxu0 0.0
  %36 = vmatpush1.msra.mxu0 0.0
  %37 = vmatprep.subr.mxu0 0.0
  %38 = vmatpush1.msra.mxu0 0.0
  %39 = vmatprep.subr.mxu0 0.0
  %40 = vmatpush1.msra.mxu0 0.0
  %41 = vmatprep.subr.mxu0 0.0
  %42 = vmatpush1.msra.mxu0 0.0
  %43 = vmatprep.subr.mxu0 0.0
  %44 = vmatpush1.msra.mxu0 0.0
  %45 = vmatprep.subr.mxu0 0.0
  %46 = vmatpush1.msra.mxu0 0.0
  %47 = vmatprep.subr.mxu0 0.0
  %48 = vmatpush1.msra.mxu0 0.0
  %49 = vmatprep.subr.mxu0 0.0
  %50 = vmatpush1.msra.mxu0 0.0
  %51 = vmatprep.subr.mxu0 0.0
  %52 = vmatpush1.msra.mxu0 %v14
  %53 = vmatprep.subr.mxu0 0.0
  %54 = vmatpush1.msra.mxu0 %v13
  %55 = vmatprep.subr.mxu0 0.0
  %56 = vmatpush1.msra.mxu0 %v12
  %57 = vmatprep.subr.mxu0 0.0
  %58 = vmatpush1.msra.mxu0 %v11
  %59 = vmatprep.subr.mxu0 0.0
  %60 = vmatpush2.msra.mxu0 0.0
  %61 = vmatprep.subr.mxu0 0.0
  %62 = vmatpush2.msra.mxu0 0.0
  %63 = vmatprep.subr.mxu0 0.0
  %64 = vmatpush2.msra.mxu0 0.0
  %65 = vmatprep.subr.mxu0 0.0
  %66 = vmatpush2.msra.mxu0 0.0
  %67 = vmatprep.subr.mxu0 0.0
  %68 = vmatpush2.msra.mxu0 0.0
  %69 = vmatprep.subr.mxu0 0.0
  %70 = vmatpush2.msra.mxu0 0.0
  %71 = vmatprep.subr.mxu0 0.0
  %72 = vmatpush2.msra.mxu0 0.0
  %73 = vmatprep.subr.mxu0 0.0
  %74 = vmatpush2.msra.mxu0 0.0
  %75 = vmatprep.subr.mxu0 0.0
  %76 = vmatpush2.msra.mxu0 0.0
  %77 = vmatprep.subr.mxu0 0.0
  %78 = vmatpush2.msra.mxu0 0.0
  %79 = vmatprep.subr.mxu0 0.0
  %80 = vmatpush2.msra.mxu0 0.0
  %81 = vmatprep.subr.mxu0 0.0
  %82 = vmatpush2.msra.mxu0 0.0
  %83 = vmatprep.subr.mxu0 0.0
  %84 = vmatpush2.msra.mxu0 0.0
  %85 = vmatprep.subr.mxu0 0.0
  %86 = vmatpush2.msra.mxu0 0.0
  %87 = vmatprep.subr.mxu0 0.0
  %88 = vmatpush2.msra.mxu0 0.0
  %89 = vmatprep.subr.mxu0 0.0
  %90 = vmatpush2.msra.mxu0 0.0
  %91 = vmatprep.mubr.f32.mxu0 0.0
  %92 = vmatmul.mubr.f32.gmra.mxu0 %v25
  %v93 = vpop.f32.mrf.mxu0
  %v94 = vadd.f32 0.0, %v93
  %v95 = vpop.f32.mrf.mxu0
  %96 = vmatprep.mubr.f32.mxu0 0.0
  %97 = vmatmul.mubr.f32.gmra.mxu0 %v25
  %v98 = vpop.f32.mrf.mxu0
  %v99 = vadd.f32 0.0, %v98
  %v100 = vpop.f32.mrf.mxu0
  %101 = vdwg.mxu0
  %v102 = vadd.f32 %v19, %v94
  %v103 = vadd.f32 %v20, %v99
  %v104 = vtanh.pop %v102
  %v105 = vtanh.pop %v103
  %106 = vmatprep.subr.mxu0 0.0
  %107 = vmatpush1.msra.mxu0 0.0
  %108 = vmatprep.subr.mxu0 0.0
  %109 = vmatpush1.msra.mxu0 0.0
  %110 = vmatprep.subr.mxu0 0.0
  %111 = vmatpush1.msra.mxu0 0.0
  %112 = vmatprep.subr.mxu0 0.0
  %113 = vmatpush1.msra.mxu0 0.0
  %114 = vmatprep.subr.mxu0 0.0
  %115 = vmatpush1.msra.mxu0 0.0
  %116 = vmatprep.subr.mxu0 0.0
  %117 = vmatpush1.msra.mxu0 0.0
  %118 = vmatprep.subr.mxu0 0.0
  %119 = vmatpush1.msra.mxu0 0.0
  %120 = vmatprep.subr.mxu0 0.0
  %121 = vmatpush1.msra.mxu0 0.0
  %122 = vmatprep.subr.mxu0 0.0
  %123 = vmatpush1.msra.mxu0 0.0
  %124 = vmatprep.subr.mxu0 0.0
  %125 = vmatpush1.msra.mxu0 0.0
  %126 = vmatprep.subr.mxu0 0.0
  %127 = vmatpush1.msra.mxu0 0.0
  %128 = vmatprep.subr.mxu0 0.0
  %129 = vmatpush1.msra.mxu0 0.0
  %130 = vmatprep.subr.mxu0 0.0
  %131 = vmatpush1.msra.mxu0 %v18
  %132 = vmatprep.subr.mxu0 0.0
  %133 = vmatpush1.msra.mxu0 %v17
  %134 = vmatprep.subr.mxu0 0.0
  %135 = vmatpush1.msra.mxu0 %v16
  %136 = vmatprep.subr.mxu0 0.0
  %137 = vmatpush1.msra.mxu0 %v15
  %138 = vmatprep.subr.mxu0 0.0
  %139 = vmatpush2.msra.mxu0 0.0
  %140 = vmatprep.subr.mxu0 0.0
  %141 = vmatpush2.msra.mxu0 0.0
  %142 = vmatprep.subr.mxu0 0.0
  %143 = vmatpush2.msra.mxu0 0.0
  %144 = vmatprep.subr.mxu0 0.0
  %145 = vmatpush2.msra.mxu0 0.0
  %146 = vmatprep.subr.mxu0 0.0
  %147 = vmatpush2.msra.mxu0 0.0
  %148 = vmatprep.subr.mxu0 0.0
  %149 = vmatpush2.msra.mxu0 0.0
  %150 = vmatprep.subr.mxu0 0.0
  %151 = vmatpush2.msra.mxu0 0.0
  %152 = vmatprep.subr.mxu0 0.0
  %153 = vmatpush2.msra.mxu0 0.0
  %154 = vmatprep.subr.mxu0 0.0
  %155 = vmatpush2.msra.mxu0 0.0
  %156 = vmatprep.subr.mxu0 0.0
  %157 = vmatpush2.msra.mxu0 0.0
  %158 = vmatprep.subr.mxu0 0.0
  %159 = vmatpush2.msra.mxu0 0.0
  %160 = vmatprep.subr.mxu0 0.0
  %161 = vmatpush2.msra.mxu0 0.0
  %162 = vmatprep.subr.mxu0 0.0
  %163 = vmatpush2.msra.mxu0 0.0
  %164 = vmatprep.subr.mxu0 0.0
  %165 = vmatpush2.msra.mxu0 0.0
  %166 = vmatprep.subr.mxu0 0.0
  %167 = vmatpush2.msra.mxu0 0.0
  %168 = vmatprep.subr.mxu0 0.0
  %169 = vmatpush2.msra.mxu0 0.0
  %170 = vmatprep.mubr.f32.mxu0 0.0
  %171 = vmatmul.mubr.f32.gmra.mxu0 %v25
  %v172 = vpop.f32.mrf.mxu0
  %v173 = vadd.f32 0.0, %v172
  %v174 = vpop.f32.mrf.mxu0
  %175 = vmatprep.mubr.f32.mxu0 0.0
  %176 = vmatmul.mubr.f32.gmra.mxu0 %v25
  %v177 = vpop.f32.mrf.mxu0
  %v178 = vadd.f32 0.0, %v177
  %v179 = vpop.f32.mrf.mxu0
  %180 = vdwg.mxu0
  %v181 = vadd.f32 %v21, %v173
  %v182 = vadd.f32 %v22, %v178
  %v183 = vtanh.pop %v181
  %v184 = vtanh.pop %v182
  %185 = vst.msk [vmem:[%s2] sm:$0xff] %vm23, %v104
  %186 = vst.msk [vmem:[%s2 + $0x8] sm:$0xff] %vm23, %v105
  %187 = vst.msk [vmem:[%s2 + $0x10] sm:$0xff] %vm23, %v183
  %188 = vst.msk [vmem:[%s2 + $0x18] sm:$0xff] %vm23, %v184
  %s189 = scalar_lea.vmem %s0, 32
  %v190 = vld [vmem:[%s189] sm:$0xff]
  %v191 = vld [vmem:[%s189 + $0x8] sm:$0xff]
  %v192 = vld [vmem:[%s189 + $0x10] sm:$0xff]
  %v193 = vld [vmem:[%s189 + $0x18] sm:$0xff]
  %v195 = vsel %vm23, %v104, 0
  %v198 = vsel %vm23, %v105, 0
  %200 = vmatprep.subr.mxu0 0.0
  %201 = vmatpush1.msra.mxu0 0.0
  %202 = vmatprep.subr.mxu0 0.0
  %203 = vmatpush1.msra.mxu0 0.0
  %204 = vmatprep.subr.mxu0 0.0
  %205 = vmatpush1.msra.mxu0 0.0
  %206 = vmatprep.subr.mxu0 0.0
  %207 = vmatpush1.msra.mxu0 0.0
  %208 = vmatprep.subr.mxu0 0.0
  %209 = vmatpush1.msra.mxu0 0.0
  %210 = vmatprep.subr.mxu0 0.0
  %211 = vmatpush1.msra.mxu0 0.0
  %212 = vmatprep.subr.mxu0 0.0
  %213 = vmatpush1.msra.mxu0 0.0
  %214 = vmatprep.subr.mxu0 0.0
  %215 = vmatpush1.msra.mxu0 0.0
  %216 = vmatprep.subr.mxu0 0.0
  %217 = vmatpush1.msra.mxu0 0.0
  %218 = vmatprep.subr.mxu0 0.0
  %219 = vmatpush1.msra.mxu0 0.0
  %220 = vmatprep.subr.mxu0 0.0
  %221 = vmatpush1.msra.mxu0 0.0
  %222 = vmatprep.subr.mxu0 0.0
  %223 = vmatpush1.msra.mxu0 0.0
  %224 = vmatprep.subr.mxu0 0.0
  %225 = vmatpush1.msra.mxu0 %v14
  %226 = vmatprep.subr.mxu0 0.0
  %227 = vmatpush1.msra.mxu0 %v13
  %228 = vmatprep.subr.mxu0 0.0
  %229 = vmatpush1.msra.mxu0 %v12
  %230 = vmatprep.subr.mxu0 0.0
  %231 = vmatpush1.msra.mxu0 %v11
  %232 = vmatprep.subr.mxu0 0.0
  %233 = vmatpush2.msra.mxu0 0.0
  %234 = vmatprep.subr.mxu0 0.0
  %235 = vmatpush2.msra.mxu0 0.0
  %236 = vmatprep.subr.mxu0 0.0
  %237 = vmatpush2.msra.mxu0 0.0
  %238 = vmatprep.subr.mxu0 0.0
  %239 = vmatpush2.msra.mxu0 0.0
  %240 = vmatprep.subr.mxu0 0.0
  %241 = vmatpush2.msra.mxu0 0.0
  %242 = vmatprep.subr.mxu0 0.0
  %243 = vmatpush2.msra.mxu0 0.0
  %244 = vmatprep.subr.mxu0 0.0
  %245 = vmatpush2.msra.mxu0 0.0
  %246 = vmatprep.subr.mxu0 0.0
  %247 = vmatpush2.msra.mxu0 0.0
  %248 = vmatprep.subr.mxu0 0.0
  %249 = vmatpush2.msra.mxu0 0.0
  %250 = vmatprep.subr.mxu0 0.0
  %251 = vmatpush2.msra.mxu0 0.0
  %252 = vmatprep.subr.mxu0 0.0
  %253 = vmatpush2.msra.mxu0 0.0
  %254 = vmatprep.subr.mxu0 0.0
  %255 = vmatpush2.msra.mxu0 0.0
  %256 = vmatprep.subr.mxu0 0.0
  %257 = vmatpush2.msra.mxu0 0.0
  %258 = vmatprep.subr.mxu0 0.0
  %259 = vmatpush2.msra.mxu0 0.0
  %260 = vmatprep.subr.mxu0 0.0
  %261 = vmatpush2.msra.mxu0 0.0
  %262 = vmatprep.subr.mxu0 0.0
  %263 = vmatpush2.msra.mxu0 0.0
  %264 = vmatprep.mubr.f32.mxu0 0.0
  %265 = vmatmul.mubr.f32.gmra.mxu0 %v195
  %v266 = vpop.f32.mrf.mxu0
  %v267 = vadd.f32 0.0, %v266
  %v268 = vpop.f32.mrf.mxu0
  %269 = vmatprep.mubr.f32.mxu0 0.0
  %270 = vmatmul.mubr.f32.gmra.mxu0 %v198
  %v271 = vpop.f32.mrf.mxu0
  %v272 = vadd.f32 0.0, %v271
  %v273 = vpop.f32.mrf.mxu0
  %274 = vdwg.mxu0
  %v275 = vadd.f32 %v190, %v267
  %v276 = vadd.f32 %v191, %v272
  %v277 = vtanh.pop %v275
  %v278 = vtanh.pop %v276
  %v280 = vsel %vm23, %v183, 0
  %v283 = vsel %vm23, %v184, 0
  %285 = vmatprep.subr.mxu0 0.0
  %286 = vmatpush1.msra.mxu0 0.0
  %287 = vmatprep.subr.mxu0 0.0
  %288 = vmatpush1.msra.mxu0 0.0
  %289 = vmatprep.subr.mxu0 0.0
  %290 = vmatpush1.msra.mxu0 0.0
  %291 = vmatprep.subr.mxu0 0.0
  %292 = vmatpush1.msra.mxu0 0.0
  %293 = vmatprep.subr.mxu0 0.0
  %294 = vmatpush1.msra.mxu0 0.0
  %295 = vmatprep.subr.mxu0 0.0
  %296 = vmatpush1.msra.mxu0 0.0
  %297 = vmatprep.subr.mxu0 0.0
  %298 = vmatpush1.msra.mxu0 0.0
  %299 = vmatprep.subr.mxu0 0.0
  %300 = vmatpush1.msra.mxu0 0.0
  %301 = vmatprep.subr.mxu0 0.0
  %302 = vmatpush1.msra.mxu0 0.0
  %303 = vmatprep.subr.mxu0 0.0
  %304 = vmatpush1.msra.mxu0 0.0
  %305 = vmatprep.subr.mxu0 0.0
  %306 = vmatpush1.msra.mxu0 0.0
  %307 = vmatprep.subr.mxu0 0.0
  %308 = vmatpush1.msra.mxu0 0.0
  %309 = vmatprep.subr.mxu0 0.0
  %310 = vmatpush1.msra.mxu0 %v18
  %311 = vmatprep.subr.mxu0 0.0
  %312 = vmatpush1.msra.mxu0 %v17
  %313 = vmatprep.subr.mxu0 0.0
  %314 = vmatpush1.msra.mxu0 %v16
  %315 = vmatprep.subr.mxu0 0.0
  %316 = vmatpush1.msra.mxu0 %v15
  %317 = vmatprep.subr.mxu0 0.0
  %318 = vmatpush2.msra.mxu0 0.0
  %319 = vmatprep.subr.mxu0 0.0
  %320 = vmatpush2.msra.mxu0 0.0
  %321 = vmatprep.subr.mxu0 0.0
  %322 = vmatpush2.msra.mxu0 0.0
  %323 = vmatprep.subr.mxu0 0.0
  %324 = vmatpush2.msra.mxu0 0.0
  %325 = vmatprep.subr.mxu0 0.0
  %326 = vmatpush2.msra.mxu0 0.0
  %327 = vmatprep.subr.mxu0 0.0
  %328 = vmatpush2.msra.mxu0 0.0
  %329 = vmatprep.subr.mxu0 0.0
  %330 = vmatpush2.msra.mxu0 0.0
  %331 = vmatprep.subr.mxu0 0.0
  %332 = vmatpush2.msra.mxu0 0.0
  %333 = vmatprep.subr.mxu0 0.0
  %334 = vmatpush2.msra.mxu0 0.0
  %335 = vmatprep.subr.mxu0 0.0
  %336 = vmatpush2.msra.mxu0 0.0
  %337 = vmatprep.subr.mxu0 0.0
  %338 = vmatpush2.msra.mxu0 0.0
  %339 = vmatprep.subr.mxu0 0.0
  %340 = vmatpush2.msra.mxu0 0.0
  %341 = vmatprep.subr.mxu0 0.0
  %342 = vmatpush2.msra.mxu0 0.0
  %343 = vmatprep.subr.mxu0 0.0
  %344 = vmatpush2.msra.mxu0 0.0
  %345 = vmatprep.subr.mxu0 0.0
  %346 = vmatpush2.msra.mxu0 0.0
  %347 = vmatprep.subr.mxu0 0.0
  %348 = vmatpush2.msra.mxu0 0.0
  %349 = vmatprep.mubr.f32.mxu0 0.0
  %350 = vmatmul.mubr.f32.gmra.mxu0 %v280
  %v351 = vpop.f32.mrf.mxu0
  %v352 = vadd.f32 0.0, %v351
  %v353 = vpop.f32.mrf.mxu0
  %354 = vmatprep.mubr.f32.mxu0 0.0
  %355 = vmatmul.mubr.f32.gmra.mxu0 %v283
  %v356 = vpop.f32.mrf.mxu0
  %v357 = vadd.f32 0.0, %v356
  %v358 = vpop.f32.mrf.mxu0
  %359 = vdwg.mxu0
  %v360 = vadd.f32 %v192, %v352
  %v361 = vadd.f32 %v193, %v357
  %v362 = vtanh.pop %v360
  %v363 = vtanh.pop %v361
  %s364 = scalar_lea.vmem %s2, 32
  %365 = vst.msk [vmem:[%s364] sm:$0xff] %vm23, %v277
  %366 = vst.msk [vmem:[%s364 + $0x8] sm:$0xff] %vm23, %v278
  %367 = vst.msk [vmem:[%s364 + $0x10] sm:$0xff] %vm23, %v362
  %368 = vst.msk [vmem:[%s364 + $0x18] sm:$0xff] %vm23, %v363
  %s369 = scalar_lea.vmem %s0, 64
  %v370 = vld [vmem:[%s369] sm:$0xff]
  %v371 = vld [vmem:[%s369 + $0x8] sm:$0xff]
  %v372 = vld [vmem:[%s369 + $0x10] sm:$0xff]
  %v373 = vld [vmem:[%s369 + $0x18] sm:$0xff]
  %v375 = vsel %vm23, %v277, 0
  %v378 = vsel %vm23, %v278, 0
  %380 = vmatprep.subr.mxu0 0.0
  %381 = vmatpush1.msra.mxu0 0.0
  %382 = vmatprep.subr.mxu0 0.0
  %383 = vmatpush1.msra.mxu0 0.0
  %384 = vmatprep.subr.mxu0 0.0
  %385 = vmatpush1.msra.mxu0 0.0
  %386 = vmatprep.subr.mxu0 0.0
  %387 = vmatpush1.msra.mxu0 0.0
  %388 = vmatprep.subr.mxu0 0.0
  %389 = vmatpush1.msra.mxu0 0.0
  %390 = vmatprep.subr.mxu0 0.0
  %391 = vmatpush1.msra.mxu0 0.0
  %392 = vmatprep.subr.mxu0 0.0
  %393 = vmatpush1.msra.mxu0 0.0
  %394 = vmatprep.subr.mxu0 0.0
  %395 = vmatpush1.msra.mxu0 0.0
  %396 = vmatprep.subr.mxu0 0.0
  %397 = vmatpush1.msra.mxu0 0.0
  %398 = vmatprep.subr.mxu0 0.0
  %399 = vmatpush1.msra.mxu0 0.0
  %400 = vmatprep.subr.mxu0 0.0
  %401 = vmatpush1.msra.mxu0 0.0
  %402 = vmatprep.subr.mxu0 0.0
  %403 = vmatpush1.msra.mxu0 0.0
  %404 = vmatprep.subr.mxu0 0.0
  %405 = vmatpush1.msra.mxu0 %v14
  %406 = vmatprep.subr.mxu0 0.0
  %407 = vmatpush1.msra.mxu0 %v13
  %408 = vmatprep.subr.mxu0 0.0
  %409 = vmatpush1.msra.mxu0 %v12
  %410 = vmatprep.subr.mxu0 0.0
  %411 = vmatpush1.msra.mxu0 %v11
  %412 = vmatprep.subr.mxu0 0.0
  %413 = vmatpush2.msra.mxu0 0.0
  %414 = vmatprep.subr.mxu0 0.0
  %415 = vmatpush2.msra.mxu0 0.0
  %416 = vmatprep.subr.mxu0 0.0
  %417 = vmatpush2.msra.mxu0 0.0
  %418 = vmatprep.subr.mxu0 0.0
  %419 = vmatpush2.msra.mxu0 0.0
  %420 = vmatprep.subr.mxu0 0.0
  %421 = vmatpush2.msra.mxu0 0.0
  %422 = vmatprep.subr.mxu0 0.0
  %423 = vmatpush2.msra.mxu0 0.0
  %424 = vmatprep.subr.mxu0 0.0
  %425 = vmatpush2.msra.mxu0 0.0
  %426 = vmatprep.subr.mxu0 0.0
  %427 = vmatpush2.msra.mxu0 0.0
  %428 = vmatprep.subr.mxu0 0.0
  %429 = vmatpush2.msra.mxu0 0.0
  %430 = vmatprep.subr.mxu0 0.0
  %431 = vmatpush2.msra.mxu0 0.0
  %432 = vmatprep.subr.mxu0 0.0
  %433 = vmatpush2.msra.mxu0 0.0
  %434 = vmatprep.subr.mxu0 0.0
  %435 = vmatpush2.msra.mxu0 0.0
  %436 = vmatprep.subr.mxu0 0.0
  %437 = vmatpush2.msra.mxu0 0.0
  %438 = vmatprep.subr.mxu0 0.0
  %439 = vmatpush2.msra.mxu0 0.0
  %440 = vmatprep.subr.mxu0 0.0
  %441 = vmatpush2.msra.mxu0 0.0
  %442 = vmatprep.subr.mxu0 0.0
  %443 = vmatpush2.msra.mxu0 0.0
  %444 = vmatprep.mubr.f32.mxu0 0.0
  %445 = vmatmul.mubr.f32.gmra.mxu0 %v375
  %v446 = vpop.f32.mrf.mxu0
  %v447 = vadd.f32 0.0, %v446
  %v448 = vpop.f32.mrf.mxu0
  %449 = vmatprep.mubr.f32.mxu0 0.0
  %450 = vmatmul.mubr.f32.gmra.mxu0 %v378
  %v451 = vpop.f32.mrf.mxu0
  %v452 = vadd.f32 0.0, %v451
  %v453 = vpop.f32.mrf.mxu0
  %454 = vdwg.mxu0
  %v455 = vadd.f32 %v370, %v447
  %v456 = vadd.f32 %v371, %v452
  %v457 = vtanh.pop %v455
  %v458 = vtanh.pop %v456
  %v460 = vsel %vm23, %v362, 0
  %v463 = vsel %vm23, %v363, 0
  %465 = vmatprep.subr.mxu0 0.0
  %466 = vmatpush1.msra.mxu0 0.0
  %467 = vmatprep.subr.mxu0 0.0
  %468 = vmatpush1.msra.mxu0 0.0
  %469 = vmatprep.subr.mxu0 0.0
  %470 = vmatpush1.msra.mxu0 0.0
  %471 = vmatprep.subr.mxu0 0.0
  %472 = vmatpush1.msra.mxu0 0.0
  %473 = vmatprep.subr.mxu0 0.0
  %474 = vmatpush1.msra.mxu0 0.0
  %475 = vmatprep.subr.mxu0 0.0
  %476 = vmatpush1.msra.mxu0 0.0
  %477 = vmatprep.subr.mxu0 0.0
  %478 = vmatpush1.msra.mxu0 0.0
  %479 = vmatprep.subr.mxu0 0.0
  %480 = vmatpush1.msra.mxu0 0.0
  %481 = vmatprep.subr.mxu0 0.0
  %482 = vmatpush1.msra.mxu0 0.0
  %483 = vmatprep.subr.mxu0 0.0
  %484 = vmatpush1.msra.mxu0 0.0
  %485 = vmatprep.subr.mxu0 0.0
  %486 = vmatpush1.msra.mxu0 0.0
  %487 = vmatprep.subr.mxu0 0.0
  %488 = vmatpush1.msra.mxu0 0.0
  %489 = vmatprep.subr.mxu0 0.0
  %490 = vmatpush1.msra.mxu0 %v18
  %491 = vmatprep.subr.mxu0 0.0
  %492 = vmatpush1.msra.mxu0 %v17
  %493 = vmatprep.subr.mxu0 0.0
  %494 = vmatpush1.msra.mxu0 %v16
  %495 = vmatprep.subr.mxu0 0.0
  %496 = vmatpush1.msra.mxu0 %v15
  %497 = vmatprep.subr.mxu0 0.0
  %498 = vmatpush2.msra.mxu0 0.0
  %499 = vmatprep.subr.mxu0 0.0
  %500 = vmatpush2.msra.mxu0 0.0
  %501 = vmatprep.subr.mxu0 0.0
  %502 = vmatpush2.msra.mxu0 0.0
  %503 = vmatprep.subr.mxu0 0.0
  %504 = vmatpush2.msra.mxu0 0.0
  %505 = vmatprep.subr.mxu0 0.0
  %506 = vmatpush2.msra.mxu0 0.0
  %507 = vmatprep.subr.mxu0 0.0
  %508 = vmatpush2.msra.mxu0 0.0
  %509 = vmatprep.subr.mxu0 0.0
  %510 = vmatpush2.msra.mxu0 0.0
  %511 = vmatprep.subr.mxu0 0.0
  %512 = vmatpush2.msra.mxu0 0.0
  %513 = vmatprep.subr.mxu0 0.0
  %514 = vmatpush2.msra.mxu0 0.0
  %515 = vmatprep.subr.mxu0 0.0
  %516 = vmatpush2.msra.mxu0 0.0
  %517 = vmatprep.subr.mxu0 0.0
  %518 = vmatpush2.msra.mxu0 0.0
  %519 = vmatprep.subr.mxu0 0.0
  %520 = vmatpush2.msra.mxu0 0.0
  %521 = vmatprep.subr.mxu0 0.0
  %522 = vmatpush2.msra.mxu0 0.0
  %523 = vmatprep.subr.mxu0 0.0
  %524 = vmatpush2.msra.mxu0 0.0
  %525 = vmatprep.subr.mxu0 0.0
  %526 = vmatpush2.msra.mxu0 0.0
  %527 = vmatprep.subr.mxu0 0.0
  %528 = vmatpush2.msra.mxu0 0.0
  %529 = vmatprep.mubr.f32.mxu0 0.0
  %530 = vmatmul.mubr.f32.gmra.mxu0 %v460
  %v531 = vpop.f32.mrf.mxu0
  %v532 = vadd.f32 0.0, %v531
  %v533 = vpop.f32.mrf.mxu0
  %534 = vmatprep.mubr.f32.mxu0 0.0
  %535 = vmatmul.mubr.f32.gmra.mxu0 %v463
  %v536 = vpop.f32.mrf.mxu0
  %v537 = vadd.f32 0.0, %v536
  %v538 = vpop.f32.mrf.mxu0
  %539 = vdwg.mxu0
  %v540 = vadd.f32 %v372, %v532
  %v541 = vadd.f32 %v373, %v537
  %v542 = vtanh.pop %v540
  %v543 = vtanh.pop %v541
  %s544 = scalar_lea.vmem %s2, 64
  %545 = vst.msk [vmem:[%s544] sm:$0xff] %vm23, %v457
  %546 = vst.msk [vmem:[%s544 + $0x8] sm:$0xff] %vm23, %v458
  %547 = vst.msk [vmem:[%s544 + $0x10] sm:$0xff] %vm23, %v542
  %548 = vst.msk [vmem:[%s544 + $0x18] sm:$0xff] %vm23, %v543
  %s549 = scalar_lea.vmem %s0, 96
  %v550 = vld [vmem:[%s549] sm:$0xff]
  %v551 = vld [vmem:[%s549 + $0x8] sm:$0xff]
  %v552 = vld [vmem:[%s549 + $0x10] sm:$0xff]
  %v553 = vld [vmem:[%s549 + $0x18] sm:$0xff]
  %v555 = vsel %vm23, %v457, 0
  %v558 = vsel %vm23, %v458, 0
  %560 = vmatprep.subr.mxu0 0.0
  %561 = vmatpush1.msra.mxu0 0.0
  %562 = vmatprep.subr.mxu0 0.0
  %563 = vmatpush1.msra.mxu0 0.0
  %564 = vmatprep.subr.mxu0 0.0
  %565 = vmatpush1.msra.mxu0 0.0
  %566 = vmatprep.subr.mxu0 0.0
  %567 = vmatpush1.msra.mxu0 0.0
  %568 = vmatprep.subr.mxu0 0.0
  %569 = vmatpush1.msra.mxu0 0.0
  %570 = vmatprep.subr.mxu0 0.0
  %571 = vmatpush1.msra.mxu0 0.0
  %572 = vmatprep.subr.mxu0 0.0
  %573 = vmatpush1.msra.mxu0 0.0
  %574 = vmatprep.subr.mxu0 0.0
  %575 = vmatpush1.msra.mxu0 0.0
  %576 = vmatprep.subr.mxu0 0.0
  %577 = vmatpush1.msra.mxu0 0.0
  %578 = vmatprep.subr.mxu0 0.0
  %579 = vmatpush1.msra.mxu0 0.0
  %580 = vmatprep.subr.mxu0 0.0
  %581 = vmatpush1.msra.mxu0 0.0
  %582 = vmatprep.subr.mxu0 0.0
  %583 = vmatpush1.msra.mxu0 0.0
  %584 = vmatprep.subr.mxu0 0.0
  %585 = vmatpush1.msra.mxu0 %v14
  %586 = vmatprep.subr.mxu0 0.0
  %587 = vmatpush1.msra.mxu0 %v13
  %588 = vmatprep.subr.mxu0 0.0
  %589 = vmatpush1.msra.mxu0 %v12
  %590 = vmatprep.subr.mxu0 0.0
  %591 = vmatpush1.msra.mxu0 %v11
  %592 = vmatprep.subr.mxu0 0.0
  %593 = vmatpush2.msra.mxu0 0.0
  %594 = vmatprep.subr.mxu0 0.0
  %595 = vmatpush2.msra.mxu0 0.0
  %596 = vmatprep.subr.mxu0 0.0
  %597 = vmatpush2.msra.mxu0 0.0
  %598 = vmatprep.subr.mxu0 0.0
  %599 = vmatpush2.msra.mxu0 0.0
  %600 = vmatprep.subr.mxu0 0.0
  %601 = vmatpush2.msra.mxu0 0.0
  %602 = vmatprep.subr.mxu0 0.0
  %603 = vmatpush2.msra.mxu0 0.0
  %604 = vmatprep.subr.mxu0 0.0
  %605 = vmatpush2.msra.mxu0 0.0
  %606 = vmatprep.subr.mxu0 0.0
  %607 = vmatpush2.msra.mxu0 0.0
  %608 = vmatprep.subr.mxu0 0.0
  %609 = vmatpush2.msra.mxu0 0.0
  %610 = vmatprep.subr.mxu0 0.0
  %611 = vmatpush2.msra.mxu0 0.0
  %612 = vmatprep.subr.mxu0 0.0
  %613 = vmatpush2.msra.mxu0 0.0
  %614 = vmatprep.subr.mxu0 0.0
  %615 = vmatpush2.msra.mxu0 0.0
  %616 = vmatprep.subr.mxu0 0.0
  %617 = vmatpush2.msra.mxu0 0.0
  %618 = vmatprep.subr.mxu0 0.0
  %619 = vmatpush2.msra.mxu0 0.0
  %620 = vmatprep.subr.mxu0 0.0
  %621 = vmatpush2.msra.mxu0 0.0
  %622 = vmatprep.subr.mxu0 0.0
  %623 = vmatpush2.msra.mxu0 0.0
  %624 = vmatprep.mubr.f32.mxu0 0.0
  %625 = vmatmul.mubr.f32.gmra.mxu0 %v555
  %v626 = vpop.f32.mrf.mxu0
  %v627 = vadd.f32 0.0, %v626
  %v628 = vpop.f32.mrf.mxu0
  %629 = vmatprep.mubr.f32.mxu0 0.0
  %630 = vmatmul.mubr.f32.gmra.mxu0 %v558
  %v631 = vpop.f32.mrf.mxu0
  %v632 = vadd.f32 0.0, %v631
  %v633 = vpop.f32.mrf.mxu0
  %634 = vdwg.mxu0
  %v635 = vadd.f32 %v550, %v627
  %v636 = vadd.f32 %v551, %v632
  %v637 = vtanh.pop %v635
  %v638 = vtanh.pop %v636
  %v640 = vsel %vm23, %v542, 0
  %v643 = vsel %vm23, %v543, 0
  %645 = vmatprep.subr.mxu0 0.0
  %646 = vmatpush1.msra.mxu0 0.0
  %647 = vmatprep.subr.mxu0 0.0
  %648 = vmatpush1.msra.mxu0 0.0
  %649 = vmatprep.subr.mxu0 0.0
  %650 = vmatpush1.msra.mxu0 0.0
  %651 = vmatprep.subr.mxu0 0.0
  %652 = vmatpush1.msra.mxu0 0.0
  %653 = vmatprep.subr.mxu0 0.0
  %654 = vmatpush1.msra.mxu0 0.0
  %655 = vmatprep.subr.mxu0 0.0
  %656 = vmatpush1.msra.mxu0 0.0
  %657 = vmatprep.subr.mxu0 0.0
  %658 = vmatpush1.msra.mxu0 0.0
  %659 = vmatprep.subr.mxu0 0.0
  %660 = vmatpush1.msra.mxu0 0.0
  %661 = vmatprep.subr.mxu0 0.0
  %662 = vmatpush1.msra.mxu0 0.0
  %663 = vmatprep.subr.mxu0 0.0
  %664 = vmatpush1.msra.mxu0 0.0
  %665 = vmatprep.subr.mxu0 0.0
  %666 = vmatpush1.msra.mxu0 0.0
  %667 = vmatprep.subr.mxu0 0.0
  %668 = vmatpush1.msra.mxu0 0.0
  %669 = vmatprep.subr.mxu0 0.0
  %670 = vmatpush1.msra.mxu0 %v18
  %671 = vmatprep.subr.mxu0 0.0
  %672 = vmatpush1.msra.mxu0 %v17
  %673 = vmatprep.subr.mxu0 0.0
  %674 = vmatpush1.msra.mxu0 %v16
  %675 = vmatprep.subr.mxu0 0.0
  %676 = vmatpush1.msra.mxu0 %v15
  %677 = vmatprep.subr.mxu0 0.0
  %678 = vmatpush2.msra.mxu0 0.0
  %679 = vmatprep.subr.mxu0 0.0
  %680 = vmatpush2.msra.mxu0 0.0
  %681 = vmatprep.subr.mxu0 0.0
  %682 = vmatpush2.msra.mxu0 0.0
  %683 = vmatprep.subr.mxu0 0.0
  %684 = vmatpush2.msra.mxu0 0.0
  %685 = vmatprep.subr.mxu0 0.0
  %686 = vmatpush2.msra.mxu0 0.0
  %687 = vmatprep.subr.mxu0 0.0
  %688 = vmatpush2.msra.mxu0 0.0
  %689 = vmatprep.subr.mxu0 0.0
  %690 = vmatpush2.msra.mxu0 0.0
  %691 = vmatprep.subr.mxu0 0.0
  %692 = vmatpush2.msra.mxu0 0.0
  %693 = vmatprep.subr.mxu0 0.0
  %694 = vmatpush2.msra.mxu0 0.0
  %695 = vmatprep.subr.mxu0 0.0
  %696 = vmatpush2.msra.mxu0 0.0
  %697 = vmatprep.subr.mxu0 0.0
  %698 = vmatpush2.msra.mxu0 0.0
  %699 = vmatprep.subr.mxu0 0.0
  %700 = vmatpush2.msra.mxu0 0.0
  %701 = vmatprep.subr.mxu0 0.0
  %702 = vmatpush2.msra.mxu0 0.0
  %703 = vmatprep.subr.mxu0 0.0
  %704 = vmatpush2.msra.mxu0 0.0
  %705 = vmatprep.subr.mxu0 0.0
  %706 = vmatpush2.msra.mxu0 0.0
  %707 = vmatprep.subr.mxu0 0.0
  %708 = vmatpush2.msra.mxu0 0.0
  %709 = vmatprep.mubr.f32.mxu0 0.0
  %710 = vmatmul.mubr.f32.gmra.mxu0 %v640
  %v711 = vpop.f32.mrf.mxu0
  %v712 = vadd.f32 0.0, %v711
  %v713 = vpop.f32.mrf.mxu0
  %714 = vmatprep.mubr.f32.mxu0 0.0
  %715 = vmatmul.mubr.f32.gmra.mxu0 %v643
  %v716 = vpop.f32.mrf.mxu0
  %v717 = vadd.f32 0.0, %v716
  %v718 = vpop.f32.mrf.mxu0
  %719 = vdwg.mxu0
  %v720 = vadd.f32 %v552, %v712
  %v721 = vadd.f32 %v553, %v717
  %v722 = vtanh.pop %v720
  %v723 = vtanh.pop %v721
  %s724 = scalar_lea.vmem %s2, 96
  %725 = vst.msk [vmem:[%s724] sm:$0xff] %vm23, %v637
  %726 = vst.msk [vmem:[%s724 + $0x8] sm:$0xff] %vm23, %v638
  %727 = vst.msk [vmem:[%s724 + $0x10] sm:$0xff] %vm23, %v722
  %728 = vst.msk [vmem:[%s724 + $0x18] sm:$0xff] %vm23, %v723
  %s729 = scalar_lea.vmem %s0, 128
  %v730 = vld [vmem:[%s729] sm:$0xff]
  %v731 = vld [vmem:[%s729 + $0x8] sm:$0xff]
  %v732 = vld [vmem:[%s729 + $0x10] sm:$0xff]
  %v733 = vld [vmem:[%s729 + $0x18] sm:$0xff]
  %v735 = vsel %vm23, %v637, 0
  %v738 = vsel %vm23, %v638, 0
  %740 = vmatprep.subr.mxu0 0.0
  %741 = vmatpush1.msra.mxu0 0.0
  %742 = vmatprep.subr.mxu0 0.0
  %743 = vmatpush1.msra.mxu0 0.0
  %744 = vmatprep.subr.mxu0 0.0
  %745 = vmatpush1.msra.mxu0 0.0
  %746 = vmatprep.subr.mxu0 0.0
  %747 = vmatpush1.msra.mxu0 0.0
  %748 = vmatprep.subr.mxu0 0.0
  %749 = vmatpush1.msra.mxu0 0.0
  %750 = vmatprep.subr.mxu0 0.0
  %751 = vmatpush1.msra.mxu0 0.0
  %752 = vmatprep.subr.mxu0 0.0
  %753 = vmatpush1.msra.mxu0 0.0
  %754 = vmatprep.subr.mxu0 0.0
  %755 = vmatpush1.msra.mxu0 0.0
  %756 = vmatprep.subr.mxu0 0.0
  %757 = vmatpush1.msra.mxu0 0.0
  %758 = vmatprep.subr.mxu0 0.0
  %759 = vmatpush1.msra.mxu0 0.0
  %760 = vmatprep.subr.mxu0 0.0
  %761 = vmatpush1.msra.mxu0 0.0
  %762 = vmatprep.subr.mxu0 0.0
  %763 = vmatpush1.msra.mxu0 0.0
  %764 = vmatprep.subr.mxu0 0.0
  %765 = vmatpush1.msra.mxu0 %v14
  %766 = vmatprep.subr.mxu0 0.0
  %767 = vmatpush1.msra.mxu0 %v13
  %768 = vmatprep.subr.mxu0 0.0
  %769 = vmatpush1.msra.mxu0 %v12
  %770 = vmatprep.subr.mxu0 0.0
  %771 = vmatpush1.msra.mxu0 %v11
  %772 = vmatprep.subr.mxu0 0.0
  %773 = vmatpush2.msra.mxu0 0.0
  %774 = vmatprep.subr.mxu0 0.0
  %775 = vmatpush2.msra.mxu0 0.0
  %776 = vmatprep.subr.mxu0 0.0
  %777 = vmatpush2.msra.mxu0 0.0
  %778 = vmatprep.subr.mxu0 0.0
  %779 = vmatpush2.msra.mxu0 0.0
  %780 = vmatprep.subr.mxu0 0.0
  %781 = vmatpush2.msra.mxu0 0.0
  %782 = vmatprep.subr.mxu0 0.0
  %783 = vmatpush2.msra.mxu0 0.0
  %784 = vmatprep.subr.mxu0 0.0
  %785 = vmatpush2.msra.mxu0 0.0
  %786 = vmatprep.subr.mxu0 0.0
  %787 = vmatpush2.msra.mxu0 0.0
  %788 = vmatprep.subr.mxu0 0.0
  %789 = vmatpush2.msra.mxu0 0.0
  %790 = vmatprep.subr.mxu0 0.0
  %791 = vmatpush2.msra.mxu0 0.0
  %792 = vmatprep.subr.mxu0 0.0
  %793 = vmatpush2.msra.mxu0 0.0
  %794 = vmatprep.subr.mxu0 0.0
  %795 = vmatpush2.msra.mxu0 0.0
  %796 = vmatprep.subr.mxu0 0.0
  %797 = vmatpush2.msra.mxu0 0.0
  %798 = vmatprep.subr.mxu0 0.0
  %799 = vmatpush2.msra.mxu0 0.0
  %800 = vmatprep.subr.mxu0 0.0
  %801 = vmatpush2.msra.mxu0 0.0
  %802 = vmatprep.subr.mxu0 0.0
  %803 = vmatpush2.msra.mxu0 0.0
  %804 = vmatprep.mubr.f32.mxu0 0.0
  %805 = vmatmul.mubr.f32.gmra.mxu0 %v735
  %v806 = vpop.f32.mrf.mxu0
  %v807 = vadd.f32 0.0, %v806
  %v808 = vpop.f32.mrf.mxu0
  %809 = vmatprep.mubr.f32.mxu0 0.0
  %810 = vmatmul.mubr.f32.gmra.mxu0 %v738
  %v811 = vpop.f32.mrf.mxu0
  %v812 = vadd.f32 0.0, %v811
  %v813 = vpop.f32.mrf.mxu0
  %814 = vdwg.mxu0
  %v815 = vadd.f32 %v730, %v807
  %v816 = vadd.f32 %v731, %v812
  %v817 = vtanh.pop %v815
  %v818 = vtanh.pop %v816
  %v820 = vsel %vm23, %v722, 0
  %v823 = vsel %vm23, %v723, 0
  %825 = vmatprep.subr.mxu0 0.0
  %826 = vmatpush1.msra.mxu0 0.0
  %827 = vmatprep.subr.mxu0 0.0
  %828 = vmatpush1.msra.mxu0 0.0
  %829 = vmatprep.subr.mxu0 0.0
  %830 = vmatpush1.msra.mxu0 0.0
  %831 = vmatprep.subr.mxu0 0.0
  %832 = vmatpush1.msra.mxu0 0.0
  %833 = vmatprep.subr.mxu0 0.0
  %834 = vmatpush1.msra.mxu0 0.0
  %835 = vmatprep.subr.mxu0 0.0
  %836 = vmatpush1.msra.mxu0 0.0
  %837 = vmatprep.subr.mxu0 0.0
  %838 = vmatpush1.msra.mxu0 0.0
  %839 = vmatprep.subr.mxu0 0.0
  %840 = vmatpush1.msra.mxu0 0.0
  %841 = vmatprep.subr.mxu0 0.0
  %842 = vmatpush1.msra.mxu0 0.0
  %843 = vmatprep.subr.mxu0 0.0
  %844 = vmatpush1.msra.mxu0 0.0
  %845 = vmatprep.subr.mxu0 0.0
  %846 = vmatpush1.msra.mxu0 0.0
  %847 = vmatprep.subr.mxu0 0.0
  %848 = vmatpush1.msra.mxu0 0.0
  %849 = vmatprep.subr.mxu0 0.0
  %850 = vmatpush1.msra.mxu0 %v18
  %851 = vmatprep.subr.mxu0 0.0
  %852 = vmatpush1.msra.mxu0 %v17
  %853 = vmatprep.subr.mxu0 0.0
  %854 = vmatpush1.msra.mxu0 %v16
  %855 = vmatprep.subr.mxu0 0.0
  %856 = vmatpush1.msra.mxu0 %v15
  %857 = vmatprep.subr.mxu0 0.0
  %858 = vmatpush2.msra.mxu0 0.0
  %859 = vmatprep.subr.mxu0 0.0
  %860 = vmatpush2.msra.mxu0 0.0
  %861 = vmatprep.subr.mxu0 0.0
  %862 = vmatpush2.msra.mxu0 0.0
  %863 = vmatprep.subr.mxu0 0.0
  %864 = vmatpush2.msra.mxu0 0.0
  %865 = vmatprep.subr.mxu0 0.0
  %866 = vmatpush2.msra.mxu0 0.0
  %867 = vmatprep.subr.mxu0 0.0
  %868 = vmatpush2.msra.mxu0 0.0
  %869 = vmatprep.subr.mxu0 0.0
  %870 = vmatpush2.msra.mxu0 0.0
  %871 = vmatprep.subr.mxu0 0.0
  %872 = vmatpush2.msra.mxu0 0.0
  %873 = vmatprep.subr.mxu0 0.0
  %874 = vmatpush2.msra.mxu0 0.0
  %875 = vmatprep.subr.mxu0 0.0
  %876 = vmatpush2.msra.mxu0 0.0
  %877 = vmatprep.subr.mxu0 0.0
  %878 = vmatpush2.msra.mxu0 0.0
  %879 = vmatprep.subr.mxu0 0.0
  %880 = vmatpush2.msra.mxu0 0.0
  %881 = vmatprep.subr.mxu0 0.0
  %882 = vmatpush2.msra.mxu0 0.0
  %883 = vmatprep.subr.mxu0 0.0
  %884 = vmatpush2.msra.mxu0 0.0
  %885 = vmatprep.subr.mxu0 0.0
  %886 = vmatpush2.msra.mxu0 0.0
  %887 = vmatprep.subr.mxu0 0.0
  %888 = vmatpush2.msra.mxu0 0.0
  %889 = vmatprep.mubr.f32.mxu0 0.0
  %890 = vmatmul.mubr.f32.gmra.mxu0 %v820
  %v891 = vpop.f32.mrf.mxu0
  %v892 = vadd.f32 0.0, %v891
  %v893 = vpop.f32.mrf.mxu0
  %894 = vmatprep.mubr.f32.mxu0 0.0
  %895 = vmatmul.mubr.f32.gmra.mxu0 %v823
  %v896 = vpop.f32.mrf.mxu0
  %v897 = vadd.f32 0.0, %v896
  %v898 = vpop.f32.mrf.mxu0
  %899 = vdwg.mxu0
  %v900 = vadd.f32 %v732, %v892
  %v901 = vadd.f32 %v733, %v897
  %v902 = vtanh.pop %v900
  %v903 = vtanh.pop %v901
  %s904 = scalar_lea.vmem %s2, 128
  %905 = vst.msk [vmem:[%s904] sm:$0xff] %vm23, %v817
  %906 = vst.msk [vmem:[%s904 + $0x8] sm:$0xff] %vm23, %v818
  %907 = vst.msk [vmem:[%s904 + $0x10] sm:$0xff] %vm23, %v902
  %908 = vst.msk [vmem:[%s904 + $0x18] sm:$0xff] %vm23, %v903
  %s909 = scalar_lea.vmem %s0, 160
  %v910 = vld [vmem:[%s909] sm:$0xff]
  %v911 = vld [vmem:[%s909 + $0x8] sm:$0xff]
  %v912 = vld [vmem:[%s909 + $0x10] sm:$0xff]
  %v913 = vld [vmem:[%s909 + $0x18] sm:$0xff]
  %v915 = vsel %vm23, %v817, 0
  %v918 = vsel %vm23, %v818, 0
  %920 = vmatprep.subr.mxu0 0.0
  %921 = vmatpush1.msra.mxu0 0.0
  %922 = vmatprep.subr.mxu0 0.0
  %923 = vmatpush1.msra.mxu0 0.0
  %924 = vmatprep.subr.mxu0 0.0
  %925 = vmatpush1.msra.mxu0 0.0
  %926 = vmatprep.subr.mxu0 0.0
  %927 = vmatpush1.msra.mxu0 0.0
  %928 = vmatprep.subr.mxu0 0.0
  %929 = vmatpush1.msra.mxu0 0.0
  %930 = vmatprep.subr.mxu0 0.0
  %931 = vmatpush1.msra.mxu0 0.0
  %932 = vmatprep.subr.mxu0 0.0
  %933 = vmatpush1.msra.mxu0 0.0
  %934 = vmatprep.subr.mxu0 0.0
  %935 = vmatpush1.msra.mxu0 0.0
  %936 = vmatprep.subr.mxu0 0.0
  %937 = vmatpush1.msra.mxu0 0.0
  %938 = vmatprep.subr.mxu0 0.0
  %939 = vmatpush1.msra.mxu0 0.0
  %940 = vmatprep.subr.mxu0 0.0
  %941 = vmatpush1.msra.mxu0 0.0
  %942 = vmatprep.subr.mxu0 0.0
  %943 = vmatpush1.msra.mxu0 0.0
  %944 = vmatprep.subr.mxu0 0.0
  %945 = vmatpush1.msra.mxu0 %v14
  %946 = vmatprep.subr.mxu0 0.0
  %947 = vmatpush1.msra.mxu0 %v13
  %948 = vmatprep.subr.mxu0 0.0
  %949 = vmatpush1.msra.mxu0 %v12
  %950 = vmatprep.subr.mxu0 0.0
  %951 = vmatpush1.msra.mxu0 %v11
  %952 = vmatprep.subr.mxu0 0.0
  %953 = vmatpush2.msra.mxu0 0.0
  %954 = vmatprep.subr.mxu0 0.0
  %955 = vmatpush2.msra.mxu0 0.0
  %956 = vmatprep.subr.mxu0 0.0
  %957 = vmatpush2.msra.mxu0 0.0
  %958 = vmatprep.subr.mxu0 0.0
  %959 = vmatpush2.msra.mxu0 0.0
  %960 = vmatprep.subr.mxu0 0.0
  %961 = vmatpush2.msra.mxu0 0.0
  %962 = vmatprep.subr.mxu0 0.0
  %963 = vmatpush2.msra.mxu0 0.0
  %964 = vmatprep.subr.mxu0 0.0
  %965 = vmatpush2.msra.mxu0 0.0
  %966 = vmatprep.subr.mxu0 0.0
  %967 = vmatpush2.msra.mxu0 0.0
  %968 = vmatprep.subr.mxu0 0.0
  %969 = vmatpush2.msra.mxu0 0.0
  %970 = vmatprep.subr.mxu0 0.0
  %971 = vmatpush2.msra.mxu0 0.0
  %972 = vmatprep.subr.mxu0 0.0
  %973 = vmatpush2.msra.mxu0 0.0
  %974 = vmatprep.subr.mxu0 0.0
  %975 = vmatpush2.msra.mxu0 0.0
  %976 = vmatprep.subr.mxu0 0.0
  %977 = vmatpush2.msra.mxu0 0.0
  %978 = vmatprep.subr.mxu0 0.0
  %979 = vmatpush2.msra.mxu0 0.0
  %980 = vmatprep.subr.mxu0 0.0
  %981 = vmatpush2.msra.mxu0 0.0
  %982 = vmatprep.subr.mxu0 0.0
  %983 = vmatpush2.msra.mxu0 0.0
  %984 = vmatprep.mubr.f32.mxu0 0.0
  %985 = vmatmul.mubr.f32.gmra.mxu0 %v915
  %v986 = vpop.f32.mrf.mxu0
  %v987 = vadd.f32 0.0, %v986
  %v988 = vpop.f32.mrf.mxu0
  %989 = vmatprep.mubr.f32.mxu0 0.0
  %990 = vmatmul.mubr.f32.gmra.mxu0 %v918
  %v991 = vpop.f32.mrf.mxu0
  %v992 = vadd.f32 0.0, %v991
  %v993 = vpop.f32.mrf.mxu0
  %994 = vdwg.mxu0
  %v995 = vadd.f32 %v910, %v987
  %v996 = vadd.f32 %v911, %v992
  %v997 = vtanh.pop %v995
  %v998 = vtanh.pop %v996
  %v1000 = vsel %vm23, %v902, 0
  %v1003 = vsel %vm23, %v903, 0
  %1005 = vmatprep.subr.mxu0 0.0
  %1006 = vmatpush1.msra.mxu0 0.0
  %1007 = vmatprep.subr.mxu0 0.0
  %1008 = vmatpush1.msra.mxu0 0.0
  %1009 = vmatprep.subr.mxu0 0.0
  %1010 = vmatpush1.msra.mxu0 0.0
  %1011 = vmatprep.subr.mxu0 0.0
  %1012 = vmatpush1.msra.mxu0 0.0
  %1013 = vmatprep.subr.mxu0 0.0
  %1014 = vmatpush1.msra.mxu0 0.0
  %1015 = vmatprep.subr.mxu0 0.0
  %1016 = vmatpush1.msra.mxu0 0.0
  %1017 = vmatprep.subr.mxu0 0.0
  %1018 = vmatpush1.msra.mxu0 0.0
  %1019 = vmatprep.subr.mxu0 0.0
  %1020 = vmatpush1.msra.mxu0 0.0
  %1021 = vmatprep.subr.mxu0 0.0
  %1022 = vmatpush1.msra.mxu0 0.0
  %1023 = vmatprep.subr.mxu0 0.0
  %1024 = vmatpush1.msra.mxu0 0.0
  %1025 = vmatprep.subr.mxu0 0.0
  %1026 = vmatpush1.msra.mxu0 0.0
  %1027 = vmatprep.subr.mxu0 0.0
  %1028 = vmatpush1.msra.mxu0 0.0
  %1029 = vmatprep.subr.mxu0 0.0
  %1030 = vmatpush1.msra.mxu0 %v18
  %1031 = vmatprep.subr.mxu0 0.0
  %1032 = vmatpush1.msra.mxu0 %v17
  %1033 = vmatprep.subr.mxu0 0.0
  %1034 = vmatpush1.msra.mxu0 %v16
  %1035 = vmatprep.subr.mxu0 0.0
  %1036 = vmatpush1.msra.mxu0 %v15
  %1037 = vmatprep.subr.mxu0 0.0
  %1038 = vmatpush2.msra.mxu0 0.0
  %1039 = vmatprep.subr.mxu0 0.0
  %1040 = vmatpush2.msra.mxu0 0.0
  %1041 = vmatprep.subr.mxu0 0.0
  %1042 = vmatpush2.msra.mxu0 0.0
  %1043 = vmatprep.subr.mxu0 0.0
  %1044 = vmatpush2.msra.mxu0 0.0
  %1045 = vmatprep.subr.mxu0 0.0
  %1046 = vmatpush2.msra.mxu0 0.0
  %1047 = vmatprep.subr.mxu0 0.0
  %1048 = vmatpush2.msra.mxu0 0.0
  %1049 = vmatprep.subr.mxu0 0.0
  %1050 = vmatpush2.msra.mxu0 0.0
  %1051 = vmatprep.subr.mxu0 0.0
  %1052 = vmatpush2.msra.mxu0 0.0
  %1053 = vmatprep.subr.mxu0 0.0
  %1054 = vmatpush2.msra.mxu0 0.0
  %1055 = vmatprep.subr.mxu0 0.0
  %1056 = vmatpush2.msra.mxu0 0.0
  %1057 = vmatprep.subr.mxu0 0.0
  %1058 = vmatpush2.msra.mxu0 0.0
  %1059 = vmatprep.subr.mxu0 0.0
  %1060 = vmatpush2.msra.mxu0 0.0
  %1061 = vmatprep.subr.mxu0 0.0
  %1062 = vmatpush2.msra.mxu0 0.0
  %1063 = vmatprep.subr.mxu0 0.0
  %1064 = vmatpush2.msra.mxu0 0.0
  %1065 = vmatprep.subr.mxu0 0.0
  %1066 = vmatpush2.msra.mxu0 0.0
  %1067 = vmatprep.subr.mxu0 0.0
  %1068 = vmatpush2.msra.mxu0 0.0
  %1069 = vmatprep.mubr.f32.mxu0 0.0
  %1070 = vmatmul.mubr.f32.gmra.mxu0 %v1000
  %v1071 = vpop.f32.mrf.mxu0
  %v1072 = vadd.f32 0.0, %v1071
  %v1073 = vpop.f32.mrf.mxu0
  %1074 = vmatprep.mubr.f32.mxu0 0.0
  %1075 = vmatmul.mubr.f32.gmra.mxu0 %v1003
  %v1076 = vpop.f32.mrf.mxu0
  %v1077 = vadd.f32 0.0, %v1076
  %v1078 = vpop.f32.mrf.mxu0
  %1079 = vdwg.mxu0
  %v1080 = vadd.f32 %v912, %v1072
  %v1081 = vadd.f32 %v913, %v1077
  %v1082 = vtanh.pop %v1080
  %v1083 = vtanh.pop %v1081
  %s1084 = scalar_lea.vmem %s2, 160
  %1085 = vst.msk [vmem:[%s1084] sm:$0xff] %vm23, %v997
  %1086 = vst.msk [vmem:[%s1084 + $0x8] sm:$0xff] %vm23, %v998
  %1087 = vst.msk [vmem:[%s1084 + $0x10] sm:$0xff] %vm23, %v1082
  %1088 = vst.msk [vmem:[%s1084 + $0x18] sm:$0xff] %vm23, %v1083
  %s1089 = scalar_lea.vmem %s0, 192
  %v1090 = vld [vmem:[%s1089] sm:$0xff]
  %v1091 = vld [vmem:[%s1089 + $0x8] sm:$0xff]
  %v1092 = vld [vmem:[%s1089 + $0x10] sm:$0xff]
  %v1093 = vld [vmem:[%s1089 + $0x18] sm:$0xff]
  %v1095 = vsel %vm23, %v997, 0
  %v1098 = vsel %vm23, %v998, 0
  %1100 = vmatprep.subr.mxu0 0.0
  %1101 = vmatpush1.msra.mxu0 0.0
  %1102 = vmatprep.subr.mxu0 0.0
  %1103 = vmatpush1.msra.mxu0 0.0
  %1104 = vmatprep.subr.mxu0 0.0
  %1105 = vmatpush1.msra.mxu0 0.0
  %1106 = vmatprep.subr.mxu0 0.0
  %1107 = vmatpush1.msra.mxu0 0.0
  %1108 = vmatprep.subr.mxu0 0.0
  %1109 = vmatpush1.msra.mxu0 0.0
  %1110 = vmatprep.subr.mxu0 0.0
  %1111 = vmatpush1.msra.mxu0 0.0
  %1112 = vmatprep.subr.mxu0 0.0
  %1113 = vmatpush1.msra.mxu0 0.0
  %1114 = vmatprep.subr.mxu0 0.0
  %1115 = vmatpush1.msra.mxu0 0.0
  %1116 = vmatprep.subr.mxu0 0.0
  %1117 = vmatpush1.msra.mxu0 0.0
  %1118 = vmatprep.subr.mxu0 0.0
  %1119 = vmatpush1.msra.mxu0 0.0
  %1120 = vmatprep.subr.mxu0 0.0
  %1121 = vmatpush1.msra.mxu0 0.0
  %1122 = vmatprep.subr.mxu0 0.0
  %1123 = vmatpush1.msra.mxu0 0.0
  %1124 = vmatprep.subr.mxu0 0.0
  %1125 = vmatpush1.msra.mxu0 %v14
  %1126 = vmatprep.subr.mxu0 0.0
  %1127 = vmatpush1.msra.mxu0 %v13
  %1128 = vmatprep.subr.mxu0 0.0
  %1129 = vmatpush1.msra.mxu0 %v12
  %1130 = vmatprep.subr.mxu0 0.0
  %1131 = vmatpush1.msra.mxu0 %v11
  %1132 = vmatprep.subr.mxu0 0.0
  %1133 = vmatpush2.msra.mxu0 0.0
  %1134 = vmatprep.subr.mxu0 0.0
  %1135 = vmatpush2.msra.mxu0 0.0
  %1136 = vmatprep.subr.mxu0 0.0
  %1137 = vmatpush2.msra.mxu0 0.0
  %1138 = vmatprep.subr.mxu0 0.0
  %1139 = vmatpush2.msra.mxu0 0.0
  %1140 = vmatprep.subr.mxu0 0.0
  %1141 = vmatpush2.msra.mxu0 0.0
  %1142 = vmatprep.subr.mxu0 0.0
  %1143 = vmatpush2.msra.mxu0 0.0
  %1144 = vmatprep.subr.mxu0 0.0
  %1145 = vmatpush2.msra.mxu0 0.0
  %1146 = vmatprep.subr.mxu0 0.0
  %1147 = vmatpush2.msra.mxu0 0.0
  %1148 = vmatprep.subr.mxu0 0.0
  %1149 = vmatpush2.msra.mxu0 0.0
  %1150 = vmatprep.subr.mxu0 0.0
  %1151 = vmatpush2.msra.mxu0 0.0
  %1152 = vmatprep.subr.mxu0 0.0
  %1153 = vmatpush2.msra.mxu0 0.0
  %1154 = vmatprep.subr.mxu0 0.0
  %1155 = vmatpush2.msra.mxu0 0.0
  %1156 = vmatprep.subr.mxu0 0.0
  %1157 = vmatpush2.msra.mxu0 0.0
  %1158 = vmatprep.subr.mxu0 0.0
  %1159 = vmatpush2.msra.mxu0 0.0
  %1160 = vmatprep.subr.mxu0 0.0
  %1161 = vmatpush2.msra.mxu0 0.0
  %1162 = vmatprep.subr.mxu0 0.0
  %1163 = vmatpush2.msra.mxu0 0.0
  %1164 = vmatprep.mubr.f32.mxu0 0.0
  %1165 = vmatmul.mubr.f32.gmra.mxu0 %v1095
  %v1166 = vpop.f32.mrf.mxu0
  %v1167 = vadd.f32 0.0, %v1166
  %v1168 = vpop.f32.mrf.mxu0
  %1169 = vmatprep.mubr.f32.mxu0 0.0
  %1170 = vmatmul.mubr.f32.gmra.mxu0 %v1098
  %v1171 = vpop.f32.mrf.mxu0
  %v1172 = vadd.f32 0.0, %v1171
  %v1173 = vpop.f32.mrf.mxu0
  %1174 = vdwg.mxu0
  %v1175 = vadd.f32 %v1090, %v1167
  %v1176 = vadd.f32 %v1091, %v1172
  %v1177 = vtanh.pop %v1175
  %v1178 = vtanh.pop %v1176
  %v1180 = vsel %vm23, %v1082, 0
  %v1183 = vsel %vm23, %v1083, 0
  %1185 = vmatprep.subr.mxu0 0.0
  %1186 = vmatpush1.msra.mxu0 0.0
  %1187 = vmatprep.subr.mxu0 0.0
  %1188 = vmatpush1.msra.mxu0 0.0
  %1189 = vmatprep.subr.mxu0 0.0
  %1190 = vmatpush1.msra.mxu0 0.0
  %1191 = vmatprep.subr.mxu0 0.0
  %1192 = vmatpush1.msra.mxu0 0.0
  %1193 = vmatprep.subr.mxu0 0.0
  %1194 = vmatpush1.msra.mxu0 0.0
  %1195 = vmatprep.subr.mxu0 0.0
  %1196 = vmatpush1.msra.mxu0 0.0
  %1197 = vmatprep.subr.mxu0 0.0
  %1198 = vmatpush1.msra.mxu0 0.0
  %1199 = vmatprep.subr.mxu0 0.0
  %1200 = vmatpush1.msra.mxu0 0.0
  %1201 = vmatprep.subr.mxu0 0.0
  %1202 = vmatpush1.msra.mxu0 0.0
  %1203 = vmatprep.subr.mxu0 0.0
  %1204 = vmatpush1.msra.mxu0 0.0
  %1205 = vmatprep.subr.mxu0 0.0
  %1206 = vmatpush1.msra.mxu0 0.0
  %1207 = vmatprep.subr.mxu0 0.0
  %1208 = vmatpush1.msra.mxu0 0.0
  %1209 = vmatprep.subr.mxu0 0.0
  %1210 = vmatpush1.msra.mxu0 %v18
  %1211 = vmatprep.subr.mxu0 0.0
  %1212 = vmatpush1.msra.mxu0 %v17
  %1213 = vmatprep.subr.mxu0 0.0
  %1214 = vmatpush1.msra.mxu0 %v16
  %1215 = vmatprep.subr.mxu0 0.0
  %1216 = vmatpush1.msra.mxu0 %v15
  %1217 = vmatprep.subr.mxu0 0.0
  %1218 = vmatpush2.msra.mxu0 0.0
  %1219 = vmatprep.subr.mxu0 0.0
  %1220 = vmatpush2.msra.mxu0 0.0
  %1221 = vmatprep.subr.mxu0 0.0
  %1222 = vmatpush2.msra.mxu0 0.0
  %1223 = vmatprep.subr.mxu0 0.0
  %1224 = vmatpush2.msra.mxu0 0.0
  %1225 = vmatprep.subr.mxu0 0.0
  %1226 = vmatpush2.msra.mxu0 0.0
  %1227 = vmatprep.subr.mxu0 0.0
  %1228 = vmatpush2.msra.mxu0 0.0
  %1229 = vmatprep.subr.mxu0 0.0
  %1230 = vmatpush2.msra.mxu0 0.0
  %1231 = vmatprep.subr.mxu0 0.0
  %1232 = vmatpush2.msra.mxu0 0.0
  %1233 = vmatprep.subr.mxu0 0.0
  %1234 = vmatpush2.msra.mxu0 0.0
  %1235 = vmatprep.subr.mxu0 0.0
  %1236 = vmatpush2.msra.mxu0 0.0
  %1237 = vmatprep.subr.mxu0 0.0
  %1238 = vmatpush2.msra.mxu0 0.0
  %1239 = vmatprep.subr.mxu0 0.0
  %1240 = vmatpush2.msra.mxu0 0.0
  %1241 = vmatprep.subr.mxu0 0.0
  %1242 = vmatpush2.msra.mxu0 0.0
  %1243 = vmatprep.subr.mxu0 0.0
  %1244 = vmatpush2.msra.mxu0 0.0
  %1245 = vmatprep.subr.mxu0 0.0
  %1246 = vmatpush2.msra.mxu0 0.0
  %1247 = vmatprep.subr.mxu0 0.0
  %1248 = vmatpush2.msra.mxu0 0.0
  %1249 = vmatprep.mubr.f32.mxu0 0.0
  %1250 = vmatmul.mubr.f32.gmra.mxu0 %v1180
  %v1251 = vpop.f32.mrf.mxu0
  %v1252 = vadd.f32 0.0, %v1251
  %v1253 = vpop.f32.mrf.mxu0
  %1254 = vmatprep.mubr.f32.mxu0 0.0
  %1255 = vmatmul.mubr.f32.gmra.mxu0 %v1183
  %v1256 = vpop.f32.mrf.mxu0
  %v1257 = vadd.f32 0.0, %v1256
  %v1258 = vpop.f32.mrf.mxu0
  %1259 = vdwg.mxu0
  %v1260 = vadd.f32 %v1092, %v1252
  %v1261 = vadd.f32 %v1093, %v1257
  %v1262 = vtanh.pop %v1260
  %v1263 = vtanh.pop %v1261
  %s1264 = scalar_lea.vmem %s2, 192
  %1265 = vst.msk [vmem:[%s1264] sm:$0xff] %vm23, %v1177
  %1266 = vst.msk [vmem:[%s1264 + $0x8] sm:$0xff] %vm23, %v1178
  %1267 = vst.msk [vmem:[%s1264 + $0x10] sm:$0xff] %vm23, %v1262
  %1268 = vst.msk [vmem:[%s1264 + $0x18] sm:$0xff] %vm23, %v1263
  %s1269 = scalar_lea.vmem %s0, 224
  %v1270 = vld [vmem:[%s1269] sm:$0xff]
  %v1271 = vld [vmem:[%s1269 + $0x8] sm:$0xff]
  %v1272 = vld [vmem:[%s1269 + $0x10] sm:$0xff]
  %v1273 = vld [vmem:[%s1269 + $0x18] sm:$0xff]
  %v1275 = vsel %vm23, %v1177, 0
  %v1278 = vsel %vm23, %v1178, 0
  %1280 = vmatprep.subr.mxu0 0.0
  %1281 = vmatpush1.msra.mxu0 0.0
  %1282 = vmatprep.subr.mxu0 0.0
  %1283 = vmatpush1.msra.mxu0 0.0
  %1284 = vmatprep.subr.mxu0 0.0
  %1285 = vmatpush1.msra.mxu0 0.0
  %1286 = vmatprep.subr.mxu0 0.0
  %1287 = vmatpush1.msra.mxu0 0.0
  %1288 = vmatprep.subr.mxu0 0.0
  %1289 = vmatpush1.msra.mxu0 0.0
  %1290 = vmatprep.subr.mxu0 0.0
  %1291 = vmatpush1.msra.mxu0 0.0
  %1292 = vmatprep.subr.mxu0 0.0
  %1293 = vmatpush1.msra.mxu0 0.0
  %1294 = vmatprep.subr.mxu0 0.0
  %1295 = vmatpush1.msra.mxu0 0.0
  %1296 = vmatprep.subr.mxu0 0.0
  %1297 = vmatpush1.msra.mxu0 0.0
  %1298 = vmatprep.subr.mxu0 0.0
  %1299 = vmatpush1.msra.mxu0 0.0
  %1300 = vmatprep.subr.mxu0 0.0
  %1301 = vmatpush1.msra.mxu0 0.0
  %1302 = vmatprep.subr.mxu0 0.0
  %1303 = vmatpush1.msra.mxu0 0.0
  %1304 = vmatprep.subr.mxu0 0.0
  %1305 = vmatpush1.msra.mxu0 %v14
  %1306 = vmatprep.subr.mxu0 0.0
  %1307 = vmatpush1.msra.mxu0 %v13
  %1308 = vmatprep.subr.mxu0 0.0
  %1309 = vmatpush1.msra.mxu0 %v12
  %1310 = vmatprep.subr.mxu0 0.0
  %1311 = vmatpush1.msra.mxu0 %v11
  %1312 = vmatprep.subr.mxu0 0.0
  %1313 = vmatpush2.msra.mxu0 0.0
  %1314 = vmatprep.subr.mxu0 0.0
  %1315 = vmatpush2.msra.mxu0 0.0
  %1316 = vmatprep.subr.mxu0 0.0
  %1317 = vmatpush2.msra.mxu0 0.0
  %1318 = vmatprep.subr.mxu0 0.0
  %1319 = vmatpush2.msra.mxu0 0.0
  %1320 = vmatprep.subr.mxu0 0.0
  %1321 = vmatpush2.msra.mxu0 0.0
  %1322 = vmatprep.subr.mxu0 0.0
  %1323 = vmatpush2.msra.mxu0 0.0
  %1324 = vmatprep.subr.mxu0 0.0
  %1325 = vmatpush2.msra.mxu0 0.0
  %1326 = vmatprep.subr.mxu0 0.0
  %1327 = vmatpush2.msra.mxu0 0.0
  %1328 = vmatprep.subr.mxu0 0.0
  %1329 = vmatpush2.msra.mxu0 0.0
  %1330 = vmatprep.subr.mxu0 0.0
  %1331 = vmatpush2.msra.mxu0 0.0
  %1332 = vmatprep.subr.mxu0 0.0
  %1333 = vmatpush2.msra.mxu0 0.0
  %1334 = vmatprep.subr.mxu0 0.0
  %1335 = vmatpush2.msra.mxu0 0.0
  %1336 = vmatprep.subr.mxu0 0.0
  %1337 = vmatpush2.msra.mxu0 0.0
  %1338 = vmatprep.subr.mxu0 0.0
  %1339 = vmatpush2.msra.mxu0 0.0
  %1340 = vmatprep.subr.mxu0 0.0
  %1341 = vmatpush2.msra.mxu0 0.0
  %1342 = vmatprep.subr.mxu0 0.0
  %1343 = vmatpush2.msra.mxu0 0.0
  %1344 = vmatprep.mubr.f32.mxu0 0.0
  %1345 = vmatmul.mubr.f32.gmra.mxu0 %v1275
  %v1346 = vpop.f32.mrf.mxu0
  %v1347 = vadd.f32 0.0, %v1346
  %v1348 = vpop.f32.mrf.mxu0
  %1349 = vmatprep.mubr.f32.mxu0 0.0
  %1350 = vmatmul.mubr.f32.gmra.mxu0 %v1278
  %v1351 = vpop.f32.mrf.mxu0
  %v1352 = vadd.f32 0.0, %v1351
  %v1353 = vpop.f32.mrf.mxu0
  %1354 = vdwg.mxu0
  %v1355 = vadd.f32 %v1270, %v1347
  %v1356 = vadd.f32 %v1271, %v1352
  %v1357 = vtanh.pop %v1355
  %v1358 = vtanh.pop %v1356
  %v1360 = vsel %vm23, %v1262, 0
  %v1363 = vsel %vm23, %v1263, 0
  %1365 = vmatprep.subr.mxu0 0.0
  %1366 = vmatpush1.msra.mxu0 0.0
  %1367 = vmatprep.subr.mxu0 0.0
  %1368 = vmatpush1.msra.mxu0 0.0
  %1369 = vmatprep.subr.mxu0 0.0
  %1370 = vmatpush1.msra.mxu0 0.0
  %1371 = vmatprep.subr.mxu0 0.0
  %1372 = vmatpush1.msra.mxu0 0.0
  %1373 = vmatprep.subr.mxu0 0.0
  %1374 = vmatpush1.msra.mxu0 0.0
  %1375 = vmatprep.subr.mxu0 0.0
  %1376 = vmatpush1.msra.mxu0 0.0
  %1377 = vmatprep.subr.mxu0 0.0
  %1378 = vmatpush1.msra.mxu0 0.0
  %1379 = vmatprep.subr.mxu0 0.0
  %1380 = vmatpush1.msra.mxu0 0.0
  %1381 = vmatprep.subr.mxu0 0.0
  %1382 = vmatpush1.msra.mxu0 0.0
  %1383 = vmatprep.subr.mxu0 0.0
  %1384 = vmatpush1.msra.mxu0 0.0
  %1385 = vmatprep.subr.mxu0 0.0
  %1386 = vmatpush1.msra.mxu0 0.0
  %1387 = vmatprep.subr.mxu0 0.0
  %1388 = vmatpush1.msra.mxu0 0.0
  %1389 = vmatprep.subr.mxu0 0.0
  %1390 = vmatpush1.msra.mxu0 %v18
  %1391 = vmatprep.subr.mxu0 0.0
  %1392 = vmatpush1.msra.mxu0 %v17
  %1393 = vmatprep.subr.mxu0 0.0
  %1394 = vmatpush1.msra.mxu0 %v16
  %1395 = vmatprep.subr.mxu0 0.0
  %1396 = vmatpush1.msra.mxu0 %v15
  %1397 = vmatprep.subr.mxu0 0.0
  %1398 = vmatpush2.msra.mxu0 0.0
  %1399 = vmatprep.subr.mxu0 0.0
  %1400 = vmatpush2.msra.mxu0 0.0
  %1401 = vmatprep.subr.mxu0 0.0
  %1402 = vmatpush2.msra.mxu0 0.0
  %1403 = vmatprep.subr.mxu0 0.0
  %1404 = vmatpush2.msra.mxu0 0.0
  %1405 = vmatprep.subr.mxu0 0.0
  %1406 = vmatpush2.msra.mxu0 0.0
  %1407 = vmatprep.subr.mxu0 0.0
  %1408 = vmatpush2.msra.mxu0 0.0
  %1409 = vmatprep.subr.mxu0 0.0
  %1410 = vmatpush2.msra.mxu0 0.0
  %1411 = vmatprep.subr.mxu0 0.0
  %1412 = vmatpush2.msra.mxu0 0.0
  %1413 = vmatprep.subr.mxu0 0.0
  %1414 = vmatpush2.msra.mxu0 0.0
  %1415 = vmatprep.subr.mxu0 0.0
  %1416 = vmatpush2.msra.mxu0 0.0
  %1417 = vmatprep.subr.mxu0 0.0
  %1418 = vmatpush2.msra.mxu0 0.0
  %1419 = vmatprep.subr.mxu0 0.0
  %1420 = vmatpush2.msra.mxu0 0.0
  %1421 = vmatprep.subr.mxu0 0.0
  %1422 = vmatpush2.msra.mxu0 0.0
  %1423 = vmatprep.subr.mxu0 0.0
  %1424 = vmatpush2.msra.mxu0 0.0
  %1425 = vmatprep.subr.mxu0 0.0
  %1426 = vmatpush2.msra.mxu0 0.0
  %1427 = vmatprep.subr.mxu0 0.0
  %1428 = vmatpush2.msra.mxu0 0.0
  %1429 = vmatprep.mubr.f32.mxu0 0.0
  %1430 = vmatmul.mubr.f32.gmra.mxu0 %v1360
  %v1431 = vpop.f32.mrf.mxu0
  %v1432 = vadd.f32 0.0, %v1431
  %v1433 = vpop.f32.mrf.mxu0
  %1434 = vmatprep.mubr.f32.mxu0 0.0
  %1435 = vmatmul.mubr.f32.gmra.mxu0 %v1363
  %v1436 = vpop.f32.mrf.mxu0
  %v1437 = vadd.f32 0.0, %v1436
  %v1438 = vpop.f32.mrf.mxu0
  %1439 = vdwg.mxu0
  %v1440 = vadd.f32 %v1272, %v1432
  %v1441 = vadd.f32 %v1273, %v1437
  %v1442 = vtanh.pop %v1440
  %v1443 = vtanh.pop %v1441
  %s1444 = scalar_lea.vmem %s2, 224
  %1445 = vst.msk [vmem:[%s1444] sm:$0xff] %vm23, %v1357
  %1446 = vst.msk [vmem:[%s1444 + $0x8] sm:$0xff] %vm23, %v1358
  %1447 = vst.msk [vmem:[%s1444 + $0x10] sm:$0xff] %vm23, %v1442
  %1448 = vst.msk [vmem:[%s1444 + $0x18] sm:$0xff] %vm23, %v1443
  // Predicated region
  $region10: #{dual_rnn_block_forward.10} parent=0 // pred_check
    _
  $region11: #{dual_rnn_block_forward.10} parent=0 // pred_check_branch
    %1450 = sbr.rel (0) target = $region13
  $region12: #{dual_rnn_block_forward.10} parent=0 // pred_region
    _
  $region13: #{dual_rnn_block_forward.10} parent=0 // pred_fallthru
    _
  // Predicated region
  $region14: #{dual_rnn_block_forward.10} parent=0 // pred_check
    _
  $region15: #{dual_rnn_block_forward.10} parent=0 // pred_check_branch
    %1452 = sbr.rel (0) target = $region17
  $region16: #{dual_rnn_block_forward.10} parent=0 // pred_region
    _
  $region17: #{dual_rnn_block_forward.10} parent=0 // pred_fallthru
    _

// kernel: dual_rnn_block_forward.6
$region0: #{dual_rnn_block_forward.6}
  #allocation0 [shape = 'u32[]', space=smem, size = 0x4, offset = 0x4, fixed_abs, tag = 'smem constant byte address 0x4 - core index']
  #allocation1 [shape = 'u32[144,128]{1,0:T(1,128)}', space=vmem, size = 0x12000, scoped, tag = 'internal scratch']
  %s0 = inlined_call_operand.vmem [shape: f32[16,8,64], index: 0, kind: input, shape index: {}]
  %s1 = inlined_call_operand.vmem [shape: bf16[64,192], index: 1, kind: input, shape index: {}]
  %s2 = inlined_call_operand.vmem [shape: f32[1,192], index: 2, kind: input, shape index: {}]
  %s3 = inlined_call_operand.vmem [shape: bf16[64,64], index: 3, kind: input, shape index: {}]
  %s4 = inlined_call_operand.vmem [shape: f32[1,64], index: 4, kind: input, shape index: {}]
  %s5 = inlined_call_operand.vmem [shape: f32[1,64], index: 5, kind: input, shape index: {}]
  %s6 = inlined_call_operand.vmem [shape: f32[1,64], index: 6, kind: input, shape index: {}]
  %s7 = inlined_call_operand.vmem [shape: bf16[64,512], index: 7, kind: input, shape index: {}]
  %s8 = inlined_call_operand.vmem [shape: f32[1,512], index: 8, kind: input, shape index: {}]
  %s9 = inlined_call_operand.vmem [shape: bf16[512,64], index: 9, kind: input, shape index: {}]
  %s10 = inlined_call_operand.vmem [shape: f32[1,64], index: 10, kind: input, shape index: {}]
  %s11 = inlined_call_operand.vmem [shape: f32[1,64], index: 11, kind: input, shape index: {}]
  %s12 = inlined_call_operand.vmem [shape: f32[1,64], index: 12, kind: input, shape index: {}]
  %s13 = inlined_call_operand.vmem [shape: f32[16,8,64], index: 13, kind: output, shape index: {}]
  %s14 = sld [smem:[#allocation0]]
  $region62: #{dual_rnn_block_forward.6} parent=0
    _
  %s16 = ssub.s32 1, %s14
  %s17 = scalar_select 0, %s16, %s14
  // Predicated region
  $region2: #{dual_rnn_block_forward.6} parent=0 // pred_check
    _
  $region3: #{dual_rnn_block_forward.6} parent=0 // pred_check_branch
    %19 = sbr.rel (0) target = $region5
  $region4: #{dual_rnn_block_forward.6} parent=0 // pred_region
    _
  $region5: #{dual_rnn_block_forward.6} parent=0 // pred_fallthru
    _
  // Predicated region
  $region6: #{dual_rnn_block_forward.6} parent=0 // pred_check
    _
  $region7: #{dual_rnn_block_forward.6} parent=0 // pred_check_branch
    %21 = sbr.rel (0) target = $region9
  $region8: #{dual_rnn_block_forward.6} parent=0 // pred_region
    _
  $region9: #{dual_rnn_block_forward.6} parent=0 // pred_fallthru
    _
  // Predicated region
  $region10: #{dual_rnn_block_forward.6} parent=0 // pred_check
    _
  $region11: #{dual_rnn_block_forward.6} parent=0 // pred_check_branch
    %23 = sbr.rel (0) target = $region13
  $region12: #{dual_rnn_block_forward.6} parent=0 // pred_region
    _
  $region13: #{dual_rnn_block_forward.6} parent=0 // pred_fallthru
    _
  // Predicated region
  $region14: #{dual_rnn_block_forward.6} parent=0 // pred_check
    _
  $region15: #{dual_rnn_block_forward.6} parent=0 // pred_check_branch
    %25 = sbr.rel (0) target = $region17
  $region16: #{dual_rnn_block_forward.6} parent=0 // pred_region
    _
  $region17: #{dual_rnn_block_forward.6} parent=0 // pred_fallthru
    _
  // Predicated region
  $region18: #{dual_rnn_block_forward.6} parent=0 // pred_check
    _
  $region19: #{dual_rnn_block_forward.6} parent=0 // pred_check_branch
    %27 = sbr.rel (0) target = $region21
  $region20: #{dual_rnn_block_forward.6} parent=0 // pred_region
    _
  $region21: #{dual_rnn_block_forward.6} parent=0 // pred_fallthru
    _
  // Predicated region
  $region22: #{dual_rnn_block_forward.6} parent=0 // pred_check
    _
  $region23: #{dual_rnn_block_forward.6} parent=0 // pred_check_branch
    %29 = sbr.rel (0) target = $region25
  $region24: #{dual_rnn_block_forward.6} parent=0 // pred_region
    _
  $region25: #{dual_rnn_block_forward.6} parent=0 // pred_fallthru
    _
  // Predicated region
  $region26: #{dual_rnn_block_forward.6} parent=0 // pred_check
    _
  $region27: #{dual_rnn_block_forward.6} parent=0 // pred_check_branch
    %31 = sbr.rel (0) target = $region29
  $region28: #{dual_rnn_block_forward.6} parent=0 // pred_region
    _
  $region29: #{dual_rnn_block_forward.6} parent=0 // pred_fallthru
    _
  // Predicated region
  $region30: #{dual_rnn_block_forward.6} parent=0 // pred_check
    _
  $region31: #{dual_rnn_block_forward.6} parent=0 // pred_check_branch
    %33 = sbr.rel (0) target = $region33
  $region32: #{dual_rnn_block_forward.6} parent=0 // pred_region
    _
  $region33: #{dual_rnn_block_forward.6} parent=0 // pred_fallthru
    _
  // Predicated region
  $region34: #{dual_rnn_block_forward.6} parent=0 // pred_check
    _
  $region35: #{dual_rnn_block_forward.6} parent=0 // pred_check_branch
    %35 = sbr.rel (0) target = $region37
  $region36: #{dual_rnn_block_forward.6} parent=0 // pred_region
    _
  $region37: #{dual_rnn_block_forward.6} parent=0 // pred_fallthru
    _
  // Predicated region
  $region38: #{dual_rnn_block_forward.6} parent=0 // pred_check
    _
  $region39: #{dual_rnn_block_forward.6} parent=0 // pred_check_branch
    %37 = sbr.rel (0) target = $region41
  $region40: #{dual_rnn_block_forward.6} parent=0 // pred_region
    _
  $region41: #{dual_rnn_block_forward.6} parent=0 // pred_fallthru
    _
  // Predicated region
  $region42: #{dual_rnn_block_forward.6} parent=0 // pred_check
    _
  $region43: #{dual_rnn_block_forward.6} parent=0 // pred_check_branch
    %39 = sbr.rel (0) target = $region45
  $region44: #{dual_rnn_block_forward.6} parent=0 // pred_region
    _
  $region45: #{dual_rnn_block_forward.6} parent=0 // pred_fallthru
    _
  // Predicated region
  $region46: #{dual_rnn_block_forward.6} parent=0 // pred_check
    _
  $region47: #{dual_rnn_block_forward.6} parent=0 // pred_check_branch
    %41 = sbr.rel (0) target = $region49
  $region48: #{dual_rnn_block_forward.6} parent=0 // pred_region
    _
  $region49: #{dual_rnn_block_forward.6} parent=0 // pred_fallthru
    _
  // Predicated region
  $region50: #{dual_rnn_block_forward.6} parent=0 // pred_check
    _
  $region51: #{dual_rnn_block_forward.6} parent=0 // pred_check_branch
    %43 = sbr.rel (0) target = $region53
  $region52: #{dual_rnn_block_forward.6} parent=0 // pred_region
    _
  $region53: #{dual_rnn_block_forward.6} parent=0 // pred_fallthru
    _
  %v45 = vld [vmem:[%s0] sm:$0xff]
  %v46 = vld [vmem:[%s0 + $0x8] sm:$0xff]
  %v47 = vld [vmem:[%s0 + $0x10] sm:$0xff]
  %v48 = vld [vmem:[%s0 + $0x18] sm:$0xff]
  %v49 = vld [vmem:[%s0 + $0x20] sm:$0xff]
  %v50 = vld [vmem:[%s0 + $0x28] sm:$0xff]
  %v51 = vld [vmem:[%s0 + $0x30] sm:$0xff]
  %v52 = vld [vmem:[%s0 + $0x38] sm:$0xff]
  %v53 = vld [vmem:[%s0 + $0x40] sm:$0xff]
  %v54 = vld [vmem:[%s0 + $0x48] sm:$0xff]
  %v55 = vld [vmem:[%s0 + $0x50] sm:$0xff]
  %v56 = vld [vmem:[%s0 + $0x58] sm:$0xff]
  %v57 = vld [vmem:[%s0 + $0x60] sm:$0xff]
  %v58 = vld [vmem:[%s0 + $0x68] sm:$0xff]
  %v59 = vld [vmem:[%s0 + $0x70] sm:$0xff]
  %v60 = vld [vmem:[%s0 + $0x78] sm:$0xff]
  %v61 = vpack.c.bf16 %v46, %v45
  %v62 = vpack.c.bf16 %v48, %v47
  %v63 = vpack.c.bf16 %v50, %v49
  %v64 = vpack.c.bf16 %v52, %v51
  %v65 = vpack.c.bf16 %v54, %v53
  %v66 = vpack.c.bf16 %v56, %v55
  %v67 = vpack.c.bf16 %v58, %v57
  %v68 = vpack.c.bf16 %v60, %v59
  %v69 = vld [vmem:[%s1] sm:$0xff]
  %v70 = vld [vmem:[%s1 + $0x8] sm:$0xff]
  %v71 = vld [vmem:[%s1 + $0x10] sm:$0xff]
  %v72 = vld [vmem:[%s1 + $0x18] sm:$0xff]
  %v73 = vld [vmem:[%s1 + $0x20] sm:$0xff]
  %v74 = vld [vmem:[%s1 + $0x28] sm:$0xff]
  %v75 = vld [vmem:[%s1 + $0x30] sm:$0xff]
  %v76 = vld [vmem:[%s1 + $0x38] sm:$0xff]
  %v77 = vld [vmem:[%s2] sm:$0x3]
  %v79 = vlaneseq
  %v80 = vshrl.u32 %v79, 7
  %v81 = vsub.s32 0, %v80
  %v82 = vrot.slane %v77, %v81
  %v83 = vlaneseq
  %v84 = vshrl.u32 %v83, 7
  %v85 = vsub.s32 1, %v84
  %v86 = vrot.slane %v77, %v85
  %v97 = vunpack.c.l.b16 %v69
  %v98 = vunpack.c.h.b16 %v69
  %v99 = vunpack.c.l.b16 %v70
  %v100 = vunpack.c.h.b16 %v70
  %v101 = vunpack.c.l.b16 %v71
  %v102 = vunpack.c.h.b16 %v71
  %v103 = vunpack.c.l.b16 %v72
  %v104 = vunpack.c.h.b16 %v72
  %v105 = vunpack.c.l.b16 %v73
  %v106 = vunpack.c.h.b16 %v73
  %v107 = vunpack.c.l.b16 %v74
  %v108 = vunpack.c.h.b16 %v74
  %v109 = vunpack.c.l.b16 %v75
  %v110 = vunpack.c.h.b16 %v75
  %v111 = vunpack.c.l.b16 %v76
  %v112 = vunpack.c.h.b16 %v76
  %v113 = vpack.c.b16 %v99, %v97
  %v114 = vpack.c.b16 %v100, %v98
  %v115 = vpack.c.b16 %v103, %v101
  %v116 = vpack.c.b16 %v104, %v102
  %v117 = vpack.c.b16 %v107, %v105
  %v118 = vpack.c.b16 %v108, %v106
  %v119 = vpack.c.b16 %v111, %v109
  %v120 = vpack.c.b16 %v112, %v110
  %vm129 = vcmask 523264
  %v131 = vsel %vm129, %v61, 0
  %v134 = vsel %vm129, %v62, 0
  %v137 = vsel %vm129, %v63, 0
  %v140 = vsel %vm129, %v64, 0
  %v143 = vsel %vm129, %v65, 0
  %v146 = vsel %vm129, %v66, 0
  %v149 = vsel %vm129, %v67, 0
  %v152 = vsel %vm129, %v68, 0
  %154 = vmatprep.subr.bf16.mxu0 0
  %155 = vmatpush1.bf16.msra.mxu0 0
  %156 = vmatprep.subr.bf16.mxu0 0
  %157 = vmatpush1.bf16.msra.mxu0 0
  %158 = vmatprep.subr.bf16.mxu0 0
  %159 = vmatpush1.bf16.msra.mxu0 0
  %160 = vmatprep.subr.bf16.mxu0 0
  %161 = vmatpush1.bf16.msra.mxu0 0
  %162 = vmatprep.subr.bf16.mxu0 %v120
  %163 = vmatpush1.bf16.msra.mxu0 %v119
  %164 = vmatprep.subr.bf16.mxu0 %v118
  %165 = vmatpush1.bf16.msra.mxu0 %v117
  %166 = vmatprep.subr.bf16.mxu0 %v116
  %167 = vmatpush1.bf16.msra.mxu0 %v115
  %168 = vmatprep.subr.bf16.mxu0 %v114
  %169 = vmatpush1.bf16.msra.mxu0 %v113
  %170 = vmatprep.subr.bf16.mxu0 0
  %171 = vmatpush2.bf16.msra.mxu0 0
  %172 = vmatprep.subr.bf16.mxu0 0
  %173 = vmatpush2.bf16.msra.mxu0 0
  %174 = vmatprep.subr.bf16.mxu0 0
  %175 = vmatpush2.bf16.msra.mxu0 0
  %176 = vmatprep.subr.bf16.mxu0 0
  %177 = vmatpush2.bf16.msra.mxu0 0
  %178 = vmatprep.subr.bf16.mxu0 0
  %179 = vmatpush2.bf16.msra.mxu0 0
  %180 = vmatprep.subr.bf16.mxu0 0
  %181 = vmatpush2.bf16.msra.mxu0 0
  %182 = vmatprep.subr.bf16.mxu0 0
  %183 = vmatpush2.bf16.msra.mxu0 0
  %184 = vmatprep.subr.bf16.mxu0 0
  %185 = vmatpush2.bf16.msra.mxu0 0
  %186 = vmatprep.mubr.bf16.mxu0 0
  %187 = vmatmul.mubr.bf16.gmra.mxu0 %v131
  %v188 = vpop.f32.mrf.mxu0
  %v189 = vadd.f32 %v82, %v188
  %v190 = vpop.f32.mrf.mxu0
  %v191 = vadd.f32 %v86, %v190
  %v192 = vpop.f32.mrf.mxu0
  %v193 = vadd.f32 %v82, %v192
  %v194 = vpop.f32.mrf.mxu0
  %v195 = vadd.f32 %v86, %v194
  %196 = vmatprep.mubr.bf16.mxu0 0
  %197 = vmatmul.mubr.bf16.gmra.mxu0 %v134
  %v198 = vpop.f32.mrf.mxu0
  %v199 = vadd.f32 %v82, %v198
  %v200 = vpop.f32.mrf.mxu0
  %v201 = vadd.f32 %v86, %v200
  %v202 = vpop.f32.mrf.mxu0
  %v203 = vadd.f32 %v82, %v202
  %v204 = vpop.f32.mrf.mxu0
  %v205 = vadd.f32 %v86, %v204
  %206 = vmatprep.mubr.bf16.mxu0 0
  %207 = vmatmul.mubr.bf16.gmra.mxu0 %v137
  %v208 = vpop.f32.mrf.mxu0
  %v209 = vadd.f32 %v82, %v208
  %v210 = vpop.f32.mrf.mxu0
  %v211 = vadd.f32 %v86, %v210
  %v212 = vpop.f32.mrf.mxu0
  %v213 = vadd.f32 %v82, %v212
  %v214 = vpop.f32.mrf.mxu0
  %v215 = vadd.f32 %v86, %v214
  %216 = vmatprep.mubr.bf16.mxu0 0
  %217 = vmatmul.mubr.bf16.gmra.mxu0 %v140
  %v218 = vpop.f32.mrf.mxu0
  %v219 = vadd.f32 %v82, %v218
  %v220 = vpop.f32.mrf.mxu0
  %v221 = vadd.f32 %v86, %v220
  %v222 = vpop.f32.mrf.mxu0
  %v223 = vadd.f32 %v82, %v222
  %v224 = vpop.f32.mrf.mxu0
  %v225 = vadd.f32 %v86, %v224
  %226 = vmatprep.mubr.bf16.mxu0 0
  %227 = vmatmul.mubr.bf16.gmra.mxu0 %v143
  %v228 = vpop.f32.mrf.mxu0
  %v229 = vadd.f32 %v82, %v228
  %v230 = vpop.f32.mrf.mxu0
  %v231 = vadd.f32 %v86, %v230
  %v232 = vpop.f32.mrf.mxu0
  %v233 = vadd.f32 %v82, %v232
  %v234 = vpop.f32.mrf.mxu0
  %v235 = vadd.f32 %v86, %v234
  %236 = vmatprep.mubr.bf16.mxu0 0
  %237 = vmatmul.mubr.bf16.gmra.mxu0 %v146
  %v238 = vpop.f32.mrf.mxu0
  %v239 = vadd.f32 %v82, %v238
  %v240 = vpop.f32.mrf.mxu0
  %v241 = vadd.f32 %v86, %v240
  %v242 = vpop.f32.mrf.mxu0
  %v243 = vadd.f32 %v82, %v242
  %v244 = vpop.f32.mrf.mxu0
  %v245 = vadd.f32 %v86, %v244
  %246 = vmatprep.mubr.bf16.mxu0 0
  %247 = vmatmul.mubr.bf16.gmra.mxu0 %v149
  %v248 = vpop.f32.mrf.mxu0
  %v249 = vadd.f32 %v82, %v248
  %v250 = vpop.f32.mrf.mxu0
  %v251 = vadd.f32 %v86, %v250
  %v252 = vpop.f32.mrf.mxu0
  %v253 = vadd.f32 %v82, %v252
  %v254 = vpop.f32.mrf.mxu0
  %v255 = vadd.f32 %v86, %v254
  %256 = vmatprep.mubr.bf16.mxu0 0
  %257 = vmatmul.mubr.bf16.gmra.mxu0 %v152
  %v258 = vpop.f32.mrf.mxu0
  %v259 = vadd.f32 %v82, %v258
  %v260 = vpop.f32.mrf.mxu0
  %v261 = vadd.f32 %v86, %v260
  %v262 = vpop.f32.mrf.mxu0
  %v263 = vadd.f32 %v82, %v262
  %v264 = vpop.f32.mrf.mxu0
  %v265 = vadd.f32 %v86, %v264
  %266 = vdwg.mxu0
  %v267 = vpack.c.bf16 %v189, %v189
  %v268 = vpack.c.bf16 %v193, %v193
  %v269 = vpack.c.bf16 %v199, %v199
  %v270 = vpack.c.bf16 %v203, %v203
  %v271 = vpack.c.bf16 %v209, %v209
  %v272 = vpack.c.bf16 %v213, %v213
  %v273 = vpack.c.bf16 %v219, %v219
  %v274 = vpack.c.bf16 %v223, %v223
  %v275 = vpack.c.bf16 %v229, %v229
  %v276 = vpack.c.bf16 %v233, %v233
  %v277 = vpack.c.bf16 %v239, %v239
  %v278 = vpack.c.bf16 %v243, %v243
  %v279 = vpack.c.bf16 %v249, %v249
  %v280 = vpack.c.bf16 %v253, %v253
  %v281 = vpack.c.bf16 %v259, %v259
  %v282 = vpack.c.bf16 %v263, %v263
  %284 = vrot.lane.b32.xlu0 %v267, 64
  %v285 = vpop.permute.xlu0 %284
  %vm286 = vcmask 130048
  %v288 = vsel %vm286, %v267, 0
  %v291 = vsel %vm286, %v285, 0
  %293 = vmatprep.subr.bf16.mxu0 0
  %294 = vmatpush1.bf16.xpose.msra.mxu0 0
  %295 = vmatprep.subr.bf16.mxu0 0
  %296 = vmatpush1.bf16.xpose.msra.mxu0 0
  %297 = vmatprep.subr.bf16.mxu0 0
  %298 = vmatpush1.bf16.xpose.msra.mxu0 0
  %299 = vmatprep.subr.bf16.mxu0 0
  %300 = vmatpush1.bf16.xpose.msra.mxu0 0
  %301 = vmatprep.subr.bf16.mxu0 0
  %302 = vmatpush1.bf16.xpose.msra.mxu0 0
  %303 = vmatprep.subr.bf16.mxu0 0
  %304 = vmatpush1.bf16.xpose.msra.mxu0 0
  %305 = vmatprep.subr.bf16.mxu0 0
  %306 = vmatpush1.bf16.xpose.msra.mxu0 0
  %307 = vmatprep.subr.bf16.mxu0 0
  %308 = vmatpush1.bf16.xpose.msra.mxu0 %v291
  %309 = vmatprep.subr.bf16.mxu0 0
  %310 = vmatpush2.bf16.xpose.msra.mxu0 0
  %311 = vmatprep.subr.bf16.mxu0 0
  %312 = vmatpush2.bf16.xpose.msra.mxu0 0
  %313 = vmatprep.subr.bf16.mxu0 0
  %314 = vmatpush2.bf16.xpose.msra.mxu0 0
  %315 = vmatprep.subr.bf16.mxu0 0
  %316 = vmatpush2.bf16.xpose.msra.mxu0 0
  %317 = vmatprep.subr.bf16.mxu0 0
  %318 = vmatpush2.bf16.xpose.msra.mxu0 0
  %319 = vmatprep.subr.bf16.mxu0 0
  %320 = vmatpush2.bf16.xpose.msra.mxu0 0
  %321 = vmatprep.subr.bf16.mxu0 0
  %322 = vmatpush2.bf16.xpose.msra.mxu0 0
  %323 = vmatprep.subr.bf16.mxu0 0
  %324 = vmatpush2.bf16.xpose.msra.mxu0 0
  %325 = vmatprep.mubr.bf16.mxu0 0
  %326 = vmatmul.mubr.bf16.gmra.mxu0 %v288
  %v327 = vpop.f32.mrf.mxu0
  %v328 = vadd.f32 0.0, %v327
  %v329 = vpop.f32.mrf.mxu0
  %v330 = vpop.f32.mrf.mxu0
  %v331 = vpop.f32.mrf.mxu0
  %332 = vdwg.mxu0
  %334 = vrot.lane.b32.xlu0 %v268, 64
  %v335 = vpop.permute.xlu0 %334
  %v337 = vsel %vm286, %v268, 0
  %v340 = vsel %vm286, %v335, 0
  %342 = vmatprep.subr.bf16.mxu0 0
  %343 = vmatpush1.bf16.xpose.msra.mxu0 0
  %344 = vmatprep.subr.bf16.mxu0 0
  %345 = vmatpush1.bf16.xpose.msra.mxu0 0
  %346 = vmatprep.subr.bf16.mxu0 0
  %347 = vmatpush1.bf16.xpose.msra.mxu0 0
  %348 = vmatprep.subr.bf16.mxu0 0
  %349 = vmatpush1.bf16.xpose.msra.mxu0 0
  %350 = vmatprep.subr.bf16.mxu0 0
  %351 = vmatpush1.bf16.xpose.msra.mxu0 0
  %352 = vmatprep.subr.bf16.mxu0 0
  %353 = vmatpush1.bf16.xpose.msra.mxu0 0
  %354 = vmatprep.subr.bf16.mxu0 0
  %355 = vmatpush1.bf16.xpose.msra.mxu0 0
  %356 = vmatprep.subr.bf16.mxu0 0
  %357 = vmatpush1.bf16.xpose.msra.mxu0 %v340
  %358 = vmatprep.subr.bf16.mxu0 0
  %359 = vmatpush2.bf16.xpose.msra.mxu0 0
  %360 = vmatprep.subr.bf16.mxu0 0
  %361 = vmatpush2.bf16.xpose.msra.mxu0 0
  %362 = vmatprep.subr.bf16.mxu0 0
  %363 = vmatpush2.bf16.xpose.msra.mxu0 0
  %364 = vmatprep.subr.bf16.mxu0 0
  %365 = vmatpush2.bf16.xpose.msra.mxu0 0
  %366 = vmatprep.subr.bf16.mxu0 0
  %367 = vmatpush2.bf16.xpose.msra.mxu0 0
  %368 = vmatprep.subr.bf16.mxu0 0
  %369 = vmatpush2.bf16.xpose.msra.mxu0 0
  %370 = vmatprep.subr.bf16.mxu0 0
  %371 = vmatpush2.bf16.xpose.msra.mxu0 0
  %372 = vmatprep.subr.bf16.mxu0 0
  %373 = vmatpush2.bf16.xpose.msra.mxu0 0
  %374 = vmatprep.mubr.bf16.mxu0 0
  %375 = vmatmul.mubr.bf16.gmra.mxu0 %v337
  %v376 = vpop.f32.mrf.mxu0
  %v377 = vadd.f32 0.0, %v376
  %v378 = vpop.f32.mrf.mxu0
  %v379 = vpop.f32.mrf.mxu0
  %v380 = vpop.f32.mrf.mxu0
  %381 = vdwg.mxu0
  %383 = vrot.lane.b32.xlu0 %v269, 64
  %v384 = vpop.permute.xlu0 %383
  %v386 = vsel %vm286, %v269, 0
  %v389 = vsel %vm286, %v384, 0
  %391 = vmatprep.subr.bf16.mxu0 0
  %392 = vmatpush1.bf16.xpose.msra.mxu0 0
  %393 = vmatprep.subr.bf16.mxu0 0
  %394 = vmatpush1.bf16.xpose.msra.mxu0 0
  %395 = vmatprep.subr.bf16.mxu0 0
  %396 = vmatpush1.bf16.xpose.msra.mxu0 0
  %397 = vmatprep.subr.bf16.mxu0 0
  %398 = vmatpush1.bf16.xpose.msra.mxu0 0
  %399 = vmatprep.subr.bf16.mxu0 0
  %400 = vmatpush1.bf16.xpose.msra.mxu0 0
  %401 = vmatprep.subr.bf16.mxu0 0
  %402 = vmatpush1.bf16.xpose.msra.mxu0 0
  %403 = vmatprep.subr.bf16.mxu0 0
  %404 = vmatpush1.bf16.xpose.msra.mxu0 0
  %405 = vmatprep.subr.bf16.mxu0 0
  %406 = vmatpush1.bf16.xpose.msra.mxu0 %v389
  %407 = vmatprep.subr.bf16.mxu0 0
  %408 = vmatpush2.bf16.xpose.msra.mxu0 0
  %409 = vmatprep.subr.bf16.mxu0 0
  %410 = vmatpush2.bf16.xpose.msra.mxu0 0
  %411 = vmatprep.subr.bf16.mxu0 0
  %412 = vmatpush2.bf16.xpose.msra.mxu0 0
  %413 = vmatprep.subr.bf16.mxu0 0
  %414 = vmatpush2.bf16.xpose.msra.mxu0 0
  %415 = vmatprep.subr.bf16.mxu0 0
  %416 = vmatpush2.bf16.xpose.msra.mxu0 0
  %417 = vmatprep.subr.bf16.mxu0 0
  %418 = vmatpush2.bf16.xpose.msra.mxu0 0
  %419 = vmatprep.subr.bf16.mxu0 0
  %420 = vmatpush2.bf16.xpose.msra.mxu0 0
  %421 = vmatprep.subr.bf16.mxu0 0
  %422 = vmatpush2.bf16.xpose.msra.mxu0 0
  %423 = vmatprep.mubr.bf16.mxu0 0
  %424 = vmatmul.mubr.bf16.gmra.mxu0 %v386
  %v425 = vpop.f32.mrf.mxu0
  %v426 = vadd.f32 0.0, %v425
  %v427 = vpop.f32.mrf.mxu0
  %v428 = vpop.f32.mrf.mxu0
  %v429 = vpop.f32.mrf.mxu0
  %430 = vdwg.mxu0
  %432 = vrot.lane.b32.xlu0 %v270, 64
  %v433 = vpop.permute.xlu0 %432
  %v435 = vsel %vm286, %v270, 0
  %v438 = vsel %vm286, %v433, 0
  %440 = vmatprep.subr.bf16.mxu0 0
  %441 = vmatpush1.bf16.xpose.msra.mxu0 0
  %442 = vmatprep.subr.bf16.mxu0 0
  %443 = vmatpush1.bf16.xpose.msra.mxu0 0
  %444 = vmatprep.subr.bf16.mxu0 0
  %445 = vmatpush1.bf16.xpose.msra.mxu0 0
  %446 = vmatprep.subr.bf16.mxu0 0
  %447 = vmatpush1.bf16.xpose.msra.mxu0 0
  %448 = vmatprep.subr.bf16.mxu0 0
  %449 = vmatpush1.bf16.xpose.msra.mxu0 0
  %450 = vmatprep.subr.bf16.mxu0 0
  %451 = vmatpush1.bf16.xpose.msra.mxu0 0
  %452 = vmatprep.subr.bf16.mxu0 0
  %453 = vmatpush1.bf16.xpose.msra.mxu0 0
  %454 = vmatprep.subr.bf16.mxu0 0
  %455 = vmatpush1.bf16.xpose.msra.mxu0 %v438
  %456 = vmatprep.subr.bf16.mxu0 0
  %457 = vmatpush2.bf16.xpose.msra.mxu0 0
  %458 = vmatprep.subr.bf16.mxu0 0
  %459 = vmatpush2.bf16.xpose.msra.mxu0 0
  %460 = vmatprep.subr.bf16.mxu0 0
  %461 = vmatpush2.bf16.xpose.msra.mxu0 0
  %462 = vmatprep.subr.bf16.mxu0 0
  %463 = vmatpush2.bf16.xpose.msra.mxu0 0
  %464 = vmatprep.subr.bf16.mxu0 0
  %465 = vmatpush2.bf16.xpose.msra.mxu0 0
  %466 = vmatprep.subr.bf16.mxu0 0
  %467 = vmatpush2.bf16.xpose.msra.mxu0 0
  %468 = vmatprep.subr.bf16.mxu0 0
  %469 = vmatpush2.bf16.xpose.msra.mxu0 0
  %470 = vmatprep.subr.bf16.mxu0 0
  %471 = vmatpush2.bf16.xpose.msra.mxu0 0
  %472 = vmatprep.mubr.bf16.mxu0 0
  %473 = vmatmul.mubr.bf16.gmra.mxu0 %v435
  %v474 = vpop.f32.mrf.mxu0
  %v475 = vadd.f32 0.0, %v474
  %v476 = vpop.f32.mrf.mxu0
  %v477 = vpop.f32.mrf.mxu0
  %v478 = vpop.f32.mrf.mxu0
  %479 = vdwg.mxu0
  %481 = vrot.lane.b32.xlu0 %v271, 64
  %v482 = vpop.permute.xlu0 %481
  %v484 = vsel %vm286, %v271, 0
  %v487 = vsel %vm286, %v482, 0
  %489 = vmatprep.subr.bf16.mxu0 0
  %490 = vmatpush1.bf16.xpose.msra.mxu0 0
  %491 = vmatprep.subr.bf16.mxu0 0
  %492 = vmatpush1.bf16.xpose.msra.mxu0 0
  %493 = vmatprep.subr.bf16.mxu0 0
  %494 = vmatpush1.bf16.xpose.msra.mxu0 0
  %495 = vmatprep.subr.bf16.mxu0 0
  %496 = vmatpush1.bf16.xpose.msra.mxu0 0
  %497 = vmatprep.subr.bf16.mxu0 0
  %498 = vmatpush1.bf16.xpose.msra.mxu0 0
  %499 = vmatprep.subr.bf16.mxu0 0
  %500 = vmatpush1.bf16.xpose.msra.mxu0 0
  %501 = vmatprep.subr.bf16.mxu0 0
  %502 = vmatpush1.bf16.xpose.msra.mxu0 0
  %503 = vmatprep.subr.bf16.mxu0 0
  %504 = vmatpush1.bf16.xpose.msra.mxu0 %v487
  %505 = vmatprep.subr.bf16.mxu0 0
  %506 = vmatpush2.bf16.xpose.msra.mxu0 0
  %507 = vmatprep.subr.bf16.mxu0 0
  %508 = vmatpush2.bf16.xpose.msra.mxu0 0
  %509 = vmatprep.subr.bf16.mxu0 0
  %510 = vmatpush2.bf16.xpose.msra.mxu0 0
  %511 = vmatprep.subr.bf16.mxu0 0
  %512 = vmatpush2.bf16.xpose.msra.mxu0 0
  %513 = vmatprep.subr.bf16.mxu0 0
  %514 = vmatpush2.bf16.xpose.msra.mxu0 0
  %515 = vmatprep.subr.bf16.mxu0 0
  %516 = vmatpush2.bf16.xpose.msra.mxu0 0
  %517 = vmatprep.subr.bf16.mxu0 0
  %518 = vmatpush2.bf16.xpose.msra.mxu0 0
  %519 = vmatprep.subr.bf16.mxu0 0
  %520 = vmatpush2.bf16.xpose.msra.mxu0 0
  %521 = vmatprep.mubr.bf16.mxu0 0
  %522 = vmatmul.mubr.bf16.gmra.mxu0 %v484
  %v523 = vpop.f32.mrf.mxu0
  %v524 = vadd.f32 0.0, %v523
  %v525 = vpop.f32.mrf.mxu0
  %v526 = vpop.f32.mrf.mxu0
  %v527 = vpop.f32.mrf.mxu0
  %528 = vdwg.mxu0
  %530 = vrot.lane.b32.xlu0 %v272, 64
  %v531 = vpop.permute.xlu0 %530
  %v533 = vsel %vm286, %v272, 0
  %v536 = vsel %vm286, %v531, 0
  %538 = vmatprep.subr.bf16.mxu0 0
  %539 = vmatpush1.bf16.xpose.msra.mxu0 0
  %540 = vmatprep.subr.bf16.mxu0 0
  %541 = vmatpush1.bf16.xpose.msra.mxu0 0
  %542 = vmatprep.subr.bf16.mxu0 0
  %543 = vmatpush1.bf16.xpose.msra.mxu0 0
  %544 = vmatprep.subr.bf16.mxu0 0
  %545 = vmatpush1.bf16.xpose.msra.mxu0 0
  %546 = vmatprep.subr.bf16.mxu0 0
  %547 = vmatpush1.bf16.xpose.msra.mxu0 0
  %548 = vmatprep.subr.bf16.mxu0 0
  %549 = vmatpush1.bf16.xpose.msra.mxu0 0
  %550 = vmatprep.subr.bf16.mxu0 0
  %551 = vmatpush1.bf16.xpose.msra.mxu0 0
  %552 = vmatprep.subr.bf16.mxu0 0
  %553 = vmatpush1.bf16.xpose.msra.mxu0 %v536
  %554 = vmatprep.subr.bf16.mxu0 0
  %555 = vmatpush2.bf16.xpose.msra.mxu0 0
  %556 = vmatprep.subr.bf16.mxu0 0
  %557 = vmatpush2.bf16.xpose.msra.mxu0 0
  %558 = vmatprep.subr.bf16.mxu0 0
  %559 = vmatpush2.bf16.xpose.msra.mxu0 0
  %560 = vmatprep.subr.bf16.mxu0 0
  %561 = vmatpush2.bf16.xpose.msra.mxu0 0
  %562 = vmatprep.subr.bf16.mxu0 0
  %563 = vmatpush2.bf16.xpose.msra.mxu0 0
  %564 = vmatprep.subr.bf16.mxu0 0
  %565 = vmatpush2.bf16.xpose.msra.mxu0 0
  %566 = vmatprep.subr.bf16.mxu0 0
  %567 = vmatpush2.bf16.xpose.msra.mxu0 0
  %568 = vmatprep.subr.bf16.mxu0 0
  %569 = vmatpush2.bf16.xpose.msra.mxu0 0
  %570 = vmatprep.mubr.bf16.mxu0 0
  %571 = vmatmul.mubr.bf16.gmra.mxu0 %v533
  %v572 = vpop.f32.mrf.mxu0
  %v573 = vadd.f32 0.0, %v572
  %v574 = vpop.f32.mrf.mxu0
  %v575 = vpop.f32.mrf.mxu0
  %v576 = vpop.f32.mrf.mxu0
  %577 = vdwg.mxu0
  %579 = vrot.lane.b32.xlu0 %v273, 64
  %v580 = vpop.permute.xlu0 %579
  %v582 = vsel %vm286, %v273, 0
  %v585 = vsel %vm286, %v580, 0
  %587 = vmatprep.subr.bf16.mxu0 0
  %588 = vmatpush1.bf16.xpose.msra.mxu0 0
  %589 = vmatprep.subr.bf16.mxu0 0
  %590 = vmatpush1.bf16.xpose.msra.mxu0 0
  %591 = vmatprep.subr.bf16.mxu0 0
  %592 = vmatpush1.bf16.xpose.msra.mxu0 0
  %593 = vmatprep.subr.bf16.mxu0 0
  %594 = vmatpush1.bf16.xpose.msra.mxu0 0
  %595 = vmatprep.subr.bf16.mxu0 0
  %596 = vmatpush1.bf16.xpose.msra.mxu0 0
  %597 = vmatprep.subr.bf16.mxu0 0
  %598 = vmatpush1.bf16.xpose.msra.mxu0 0
  %599 = vmatprep.subr.bf16.mxu0 0
  %600 = vmatpush1.bf16.xpose.msra.mxu0 0
  %601 = vmatprep.subr.bf16.mxu0 0
  %602 = vmatpush1.bf16.xpose.msra.mxu0 %v585
  %603 = vmatprep.subr.bf16.mxu0 0
  %604 = vmatpush2.bf16.xpose.msra.mxu0 0
  %605 = vmatprep.subr.bf16.mxu0 0
  %606 = vmatpush2.bf16.xpose.msra.mxu0 0
  %607 = vmatprep.subr.bf16.mxu0 0
  %608 = vmatpush2.bf16.xpose.msra.mxu0 0
  %609 = vmatprep.subr.bf16.mxu0 0
  %610 = vmatpush2.bf16.xpose.msra.mxu0 0
  %611 = vmatprep.subr.bf16.mxu0 0
  %612 = vmatpush2.bf16.xpose.msra.mxu0 0
  %613 = vmatprep.subr.bf16.mxu0 0
  %614 = vmatpush2.bf16.xpose.msra.mxu0 0
  %615 = vmatprep.subr.bf16.mxu0 0
  %616 = vmatpush2.bf16.xpose.msra.mxu0 0
  %617 = vmatprep.subr.bf16.mxu0 0
  %618 = vmatpush2.bf16.xpose.msra.mxu0 0
  %619 = vmatprep.mubr.bf16.mxu0 0
  %620 = vmatmul.mubr.bf16.gmra.mxu0 %v582
  %v621 = vpop.f32.mrf.mxu0
  %v622 = vadd.f32 0.0, %v621
  %v623 = vpop.f32.mrf.mxu0
  %v624 = vpop.f32.mrf.mxu0
  %v625 = vpop.f32.mrf.mxu0
  %626 = vdwg.mxu0
  %628 = vrot.lane.b32.xlu0 %v274, 64
  %v629 = vpop.permute.xlu0 %628
  %v631 = vsel %vm286, %v274, 0
  %v634 = vsel %vm286, %v629, 0
  %636 = vmatprep.subr.bf16.mxu0 0
  %637 = vmatpush1.bf16.xpose.msra.mxu0 0
  %638 = vmatprep.subr.bf16.mxu0 0
  %639 = vmatpush1.bf16.xpose.msra.mxu0 0
  %640 = vmatprep.subr.bf16.mxu0 0
  %641 = vmatpush1.bf16.xpose.msra.mxu0 0
  %642 = vmatprep.subr.bf16.mxu0 0
  %643 = vmatpush1.bf16.xpose.msra.mxu0 0
  %644 = vmatprep.subr.bf16.mxu0 0
  %645 = vmatpush1.bf16.xpose.msra.mxu0 0
  %646 = vmatprep.subr.bf16.mxu0 0
  %647 = vmatpush1.bf16.xpose.msra.mxu0 0
  %648 = vmatprep.subr.bf16.mxu0 0
  %649 = vmatpush1.bf16.xpose.msra.mxu0 0
  %650 = vmatprep.subr.bf16.mxu0 0
  %651 = vmatpush1.bf16.xpose.msra.mxu0 %v634
  %652 = vmatprep.subr.bf16.mxu0 0
  %653 = vmatpush2.bf16.xpose.msra.mxu0 0
  %654 = vmatprep.subr.bf16.mxu0 0
  %655 = vmatpush2.bf16.xpose.msra.mxu0 0
  %656 = vmatprep.subr.bf16.mxu0 0
  %657 = vmatpush2.bf16.xpose.msra.mxu0 0
  %658 = vmatprep.subr.bf16.mxu0 0
  %659 = vmatpush2.bf16.xpose.msra.mxu0 0
  %660 = vmatprep.subr.bf16.mxu0 0
  %661 = vmatpush2.bf16.xpose.msra.mxu0 0
  %662 = vmatprep.subr.bf16.mxu0 0
  %663 = vmatpush2.bf16.xpose.msra.mxu0 0
  %664 = vmatprep.subr.bf16.mxu0 0
  %665 = vmatpush2.bf16.xpose.msra.mxu0 0
  %666 = vmatprep.subr.bf16.mxu0 0
  %667 = vmatpush2.bf16.xpose.msra.mxu0 0
  %668 = vmatprep.mubr.bf16.mxu0 0
  %669 = vmatmul.mubr.bf16.gmra.mxu0 %v631
  %v670 = vpop.f32.mrf.mxu0
  %v671 = vadd.f32 0.0, %v670
  %v672 = vpop.f32.mrf.mxu0
  %v673 = vpop.f32.mrf.mxu0
  %v674 = vpop.f32.mrf.mxu0
  %675 = vdwg.mxu0
  %677 = vrot.lane.b32.xlu0 %v275, 64
  %v678 = vpop.permute.xlu0 %677
  %v680 = vsel %vm286, %v275, 0
  %v683 = vsel %vm286, %v678, 0
  %685 = vmatprep.subr.bf16.mxu0 0
  %686 = vmatpush1.bf16.xpose.msra.mxu0 0
  %687 = vmatprep.subr.bf16.mxu0 0
  %688 = vmatpush1.bf16.xpose.msra.mxu0 0
  %689 = vmatprep.subr.bf16.mxu0 0
  %690 = vmatpush1.bf16.xpose.msra.mxu0 0
  %691 = vmatprep.subr.bf16.mxu0 0
  %692 = vmatpush1.bf16.xpose.msra.mxu0 0
  %693 = vmatprep.subr.bf16.mxu0 0
  %694 = vmatpush1.bf16.xpose.msra.mxu0 0
  %695 = vmatprep.subr.bf16.mxu0 0
  %696 = vmatpush1.bf16.xpose.msra.mxu0 0
  %697 = vmatprep.subr.bf16.mxu0 0
  %698 = vmatpush1.bf16.xpose.msra.mxu0 0
  %699 = vmatprep.subr.bf16.mxu0 0
  %700 = vmatpush1.bf16.xpose.msra.mxu0 %v683
  %701 = vmatprep.subr.bf16.mxu0 0
  %702 = vmatpush2.bf16.xpose.msra.mxu0 0
  %703 = vmatprep.subr.bf16.mxu0 0
  %704 = vmatpush2.bf16.xpose.msra.mxu0 0
  %705 = vmatprep.subr.bf16.mxu0 0
  %706 = vmatpush2.bf16.xpose.msra.mxu0 0
  %707 = vmatprep.subr.bf16.mxu0 0
  %708 = vmatpush2.bf16.xpose.msra.mxu0 0
  %709 = vmatprep.subr.bf16.mxu0 0
  %710 = vmatpush2.bf16.xpose.msra.mxu0 0
  %711 = vmatprep.subr.bf16.mxu0 0
  %712 = vmatpush2.bf16.xpose.msra.mxu0 0
  %713 = vmatprep.subr.bf16.mxu0 0
  %714 = vmatpush2.bf16.xpose.msra.mxu0 0
  %715 = vmatprep.subr.bf16.mxu0 0
  %716 = vmatpush2.bf16.xpose.msra.mxu0 0
  %717 = vmatprep.mubr.bf16.mxu0 0
  %718 = vmatmul.mubr.bf16.gmra.mxu0 %v680
  %v719 = vpop.f32.mrf.mxu0
  %v720 = vadd.f32 0.0, %v719
  %v721 = vpop.f32.mrf.mxu0
  %v722 = vpop.f32.mrf.mxu0
  %v723 = vpop.f32.mrf.mxu0
  %724 = vdwg.mxu0
  %726 = vrot.lane.b32.xlu0 %v276, 64
  %v727 = vpop.permute.xlu0 %726
  %v729 = vsel %vm286, %v276, 0
  %v732 = vsel %vm286, %v727, 0
  %734 = vmatprep.subr.bf16.mxu0 0
  %735 = vmatpush1.bf16.xpose.msra.mxu0 0
  %736 = vmatprep.subr.bf16.mxu0 0
  %737 = vmatpush1.bf16.xpose.msra.mxu0 0
  %738 = vmatprep.subr.bf16.mxu0 0
  %739 = vmatpush1.bf16.xpose.msra.mxu0 0
  %740 = vmatprep.subr.bf16.mxu0 0
  %741 = vmatpush1.bf16.xpose.msra.mxu0 0
  %742 = vmatprep.subr.bf16.mxu0 0
  %743 = vmatpush1.bf16.xpose.msra.mxu0 0
  %744 = vmatprep.subr.bf16.mxu0 0
  %745 = vmatpush1.bf16.xpose.msra.mxu0 0
  %746 = vmatprep.subr.bf16.mxu0 0
  %747 = vmatpush1.bf16.xpose.msra.mxu0 0
  %748 = vmatprep.subr.bf16.mxu0 0
  %749 = vmatpush1.bf16.xpose.msra.mxu0 %v732
  %750 = vmatprep.subr.bf16.mxu0 0
  %751 = vmatpush2.bf16.xpose.msra.mxu0 0
  %752 = vmatprep.subr.bf16.mxu0 0
  %753 = vmatpush2.bf16.xpose.msra.mxu0 0
  %754 = vmatprep.subr.bf16.mxu0 0
  %755 = vmatpush2.bf16.xpose.msra.mxu0 0
  %756 = vmatprep.subr.bf16.mxu0 0
  %757 = vmatpush2.bf16.xpose.msra.mxu0 0
  %758 = vmatprep.subr.bf16.mxu0 0
  %759 = vmatpush2.bf16.xpose.msra.mxu0 0
  %760 = vmatprep.subr.bf16.mxu0 0
  %761 = vmatpush2.bf16.xpose.msra.mxu0 0
  %762 = vmatprep.subr.bf16.mxu0 0
  %763 = vmatpush2.bf16.xpose.msra.mxu0 0
  %764 = vmatprep.subr.bf16.mxu0 0
  %765 = vmatpush2.bf16.xpose.msra.mxu0 0
  %766 = vmatprep.mubr.bf16.mxu0 0
  %767 = vmatmul.mubr.bf16.gmra.mxu0 %v729
  %v768 = vpop.f32.mrf.mxu0
  %v769 = vadd.f32 0.0, %v768
  %v770 = vpop.f32.mrf.mxu0
  %v771 = vpop.f32.mrf.mxu0
  %v772 = vpop.f32.mrf.mxu0
  %773 = vdwg.mxu0
  %775 = vrot.lane.b32.xlu0 %v277, 64
  %v776 = vpop.permute.xlu0 %775
  %v778 = vsel %vm286, %v277, 0
  %v781 = vsel %vm286, %v776, 0
  %783 = vmatprep.subr.bf16.mxu0 0
  %784 = vmatpush1.bf16.xpose.msra.mxu0 0
  %785 = vmatprep.subr.bf16.mxu0 0
  %786 = vmatpush1.bf16.xpose.msra.mxu0 0
  %787 = vmatprep.subr.bf16.mxu0 0
  %788 = vmatpush1.bf16.xpose.msra.mxu0 0
  %789 = vmatprep.subr.bf16.mxu0 0
  %790 = vmatpush1.bf16.xpose.msra.mxu0 0
  %791 = vmatprep.subr.bf16.mxu0 0
  %792 = vmatpush1.bf16.xpose.msra.mxu0 0
  %793 = vmatprep.subr.bf16.mxu0 0
  %794 = vmatpush1.bf16.xpose.msra.mxu0 0
  %795 = vmatprep.subr.bf16.mxu0 0
  %796 = vmatpush1.bf16.xpose.msra.mxu0 0
  %797 = vmatprep.subr.bf16.mxu0 0
  %798 = vmatpush1.bf16.xpose.msra.mxu0 %v781
  %799 = vmatprep.subr.bf16.mxu0 0
  %800 = vmatpush2.bf16.xpose.msra.mxu0 0
  %801 = vmatprep.subr.bf16.mxu0 0
  %802 = vmatpush2.bf16.xpose.msra.mxu0 0
  %803 = vmatprep.subr.bf16.mxu0 0
  %804 = vmatpush2.bf16.xpose.msra.mxu0 0
  %805 = vmatprep.subr.bf16.mxu0 0
  %806 = vmatpush2.bf16.xpose.msra.mxu0 0
  %807 = vmatprep.subr.bf16.mxu0 0
  %808 = vmatpush2.bf16.xpose.msra.mxu0 0
  %809 = vmatprep.subr.bf16.mxu0 0
  %810 = vmatpush2.bf16.xpose.msra.mxu0 0
  %811 = vmatprep.subr.bf16.mxu0 0
  %812 = vmatpush2.bf16.xpose.msra.mxu0 0
  %813 = vmatprep.subr.bf16.mxu0 0
  %814 = vmatpush2.bf16.xpose.msra.mxu0 0
  %815 = vmatprep.mubr.bf16.mxu0 0
  %816 = vmatmul.mubr.bf16.gmra.mxu0 %v778
  %v817 = vpop.f32.mrf.mxu0
  %v818 = vadd.f32 0.0, %v817
  %v819 = vpop.f32.mrf.mxu0
  %v820 = vpop.f32.mrf.mxu0
  %v821 = vpop.f32.mrf.mxu0
  %822 = vdwg.mxu0
  %824 = vrot.lane.b32.xlu0 %v278, 64
  %v825 = vpop.permute.xlu0 %824
  %v827 = vsel %vm286, %v278, 0
  %v830 = vsel %vm286, %v825, 0
  %832 = vmatprep.subr.bf16.mxu0 0
  %833 = vmatpush1.bf16.xpose.msra.mxu0 0
  %834 = vmatprep.subr.bf16.mxu0 0
  %835 = vmatpush1.bf16.xpose.msra.mxu0 0
  %836 = vmatprep.subr.bf16.mxu0 0
  %837 = vmatpush1.bf16.xpose.msra.mxu0 0
  %838 = vmatprep.subr.bf16.mxu0 0
  %839 = vmatpush1.bf16.xpose.msra.mxu0 0
  %840 = vmatprep.subr.bf16.mxu0 0
  %841 = vmatpush1.bf16.xpose.msra.mxu0 0
  %842 = vmatprep.subr.bf16.mxu0 0
  %843 = vmatpush1.bf16.xpose.msra.mxu0 0
  %844 = vmatprep.subr.bf16.mxu0 0
  %845 = vmatpush1.bf16.xpose.msra.mxu0 0
  %846 = vmatprep.subr.bf16.mxu0 0
  %847 = vmatpush1.bf16.xpose.msra.mxu0 %v830
  %848 = vmatprep.subr.bf16.mxu0 0
  %849 = vmatpush2.bf16.xpose.msra.mxu0 0
  %850 = vmatprep.subr.bf16.mxu0 0
  %851 = vmatpush2.bf16.xpose.msra.mxu0 0
  %852 = vmatprep.subr.bf16.mxu0 0
  %853 = vmatpush2.bf16.xpose.msra.mxu0 0
  %854 = vmatprep.subr.bf16.mxu0 0
  %855 = vmatpush2.bf16.xpose.msra.mxu0 0
  %856 = vmatprep.subr.bf16.mxu0 0
  %857 = vmatpush2.bf16.xpose.msra.mxu0 0
  %858 = vmatprep.subr.bf16.mxu0 0
  %859 = vmatpush2.bf16.xpose.msra.mxu0 0
  %860 = vmatprep.subr.bf16.mxu0 0
  %861 = vmatpush2.bf16.xpose.msra.mxu0 0
  %862 = vmatprep.subr.bf16.mxu0 0
  %863 = vmatpush2.bf16.xpose.msra.mxu0 0
  %864 = vmatprep.mubr.bf16.mxu0 0
  %865 = vmatmul.mubr.bf16.gmra.mxu0 %v827
  %v866 = vpop.f32.mrf.mxu0
  %v867 = vadd.f32 0.0, %v866
  %v868 = vpop.f32.mrf.mxu0
  %v869 = vpop.f32.mrf.mxu0
  %v870 = vpop.f32.mrf.mxu0
  %871 = vdwg.mxu0
  %873 = vrot.lane.b32.xlu0 %v279, 64
  %v874 = vpop.permute.xlu0 %873
  %v876 = vsel %vm286, %v279, 0
  %v879 = vsel %vm286, %v874, 0
  %881 = vmatprep.subr.bf16.mxu0 0
  %882 = vmatpush1.bf16.xpose.msra.mxu0 0
  %883 = vmatprep.subr.bf16.mxu0 0
  %884 = vmatpush1.bf16.xpose.msra.mxu0 0
  %885 = vmatprep.subr.bf16.mxu0 0
  %886 = vmatpush1.bf16.xpose.msra.mxu0 0
  %887 = vmatprep.subr.bf16.mxu0 0
  %888 = vmatpush1.bf16.xpose.msra.mxu0 0
  %889 = vmatprep.subr.bf16.mxu0 0
  %890 = vmatpush1.bf16.xpose.msra.mxu0 0
  %891 = vmatprep.subr.bf16.mxu0 0
  %892 = vmatpush1.bf16.xpose.msra.mxu0 0
  %893 = vmatprep.subr.bf16.mxu0 0
  %894 = vmatpush1.bf16.xpose.msra.mxu0 0
  %895 = vmatprep.subr.bf16.mxu0 0
  %896 = vmatpush1.bf16.xpose.msra.mxu0 %v879
  %897 = vmatprep.subr.bf16.mxu0 0
  %898 = vmatpush2.bf16.xpose.msra.mxu0 0
  %899 = vmatprep.subr.bf16.mxu0 0
  %900 = vmatpush2.bf16.xpose.msra.mxu0 0
  %901 = vmatprep.subr.bf16.mxu0 0
  %902 = vmatpush2.bf16.xpose.msra.mxu0 0
  %903 = vmatprep.subr.bf16.mxu0 0
  %904 = vmatpush2.bf16.xpose.msra.mxu0 0
  %905 = vmatprep.subr.bf16.mxu0 0
  %906 = vmatpush2.bf16.xpose.msra.mxu0 0
  %907 = vmatprep.subr.bf16.mxu0 0
  %908 = vmatpush2.bf16.xpose.msra.mxu0 0
  %909 = vmatprep.subr.bf16.mxu0 0
  %910 = vmatpush2.bf16.xpose.msra.mxu0 0
  %911 = vmatprep.subr.bf16.mxu0 0
  %912 = vmatpush2.bf16.xpose.msra.mxu0 0
  %913 = vmatprep.mubr.bf16.mxu0 0
  %914 = vmatmul.mubr.bf16.gmra.mxu0 %v876
  %v915 = vpop.f32.mrf.mxu0
  %v916 = vadd.f32 0.0, %v915
  %v917 = vpop.f32.mrf.mxu0
  %v918 = vpop.f32.mrf.mxu0
  %v919 = vpop.f32.mrf.mxu0
  %920 = vdwg.mxu0
  %922 = vrot.lane.b32.xlu0 %v280, 64
  %v923 = vpop.permute.xlu0 %922
  %v925 = vsel %vm286, %v280, 0
  %v928 = vsel %vm286, %v923, 0
  %930 = vmatprep.subr.bf16.mxu0 0
  %931 = vmatpush1.bf16.xpose.msra.mxu0 0
  %932 = vmatprep.subr.bf16.mxu0 0
  %933 = vmatpush1.bf16.xpose.msra.mxu0 0
  %934 = vmatprep.subr.bf16.mxu0 0
  %935 = vmatpush1.bf16.xpose.msra.mxu0 0
  %936 = vmatprep.subr.bf16.mxu0 0
  %937 = vmatpush1.bf16.xpose.msra.mxu0 0
  %938 = vmatprep.subr.bf16.mxu0 0
  %939 = vmatpush1.bf16.xpose.msra.mxu0 0
  %940 = vmatprep.subr.bf16.mxu0 0
  %941 = vmatpush1.bf16.xpose.msra.mxu0 0
  %942 = vmatprep.subr.bf16.mxu0 0
  %943 = vmatpush1.bf16.xpose.msra.mxu0 0
  %944 = vmatprep.subr.bf16.mxu0 0
  %945 = vmatpush1.bf16.xpose.msra.mxu0 %v928
  %946 = vmatprep.subr.bf16.mxu0 0
  %947 = vmatpush2.bf16.xpose.msra.mxu0 0
  %948 = vmatprep.subr.bf16.mxu0 0
  %949 = vmatpush2.bf16.xpose.msra.mxu0 0
  %950 = vmatprep.subr.bf16.mxu0 0
  %951 = vmatpush2.bf16.xpose.msra.mxu0 0
  %952 = vmatprep.subr.bf16.mxu0 0
  %953 = vmatpush2.bf16.xpose.msra.mxu0 0
  %954 = vmatprep.subr.bf16.mxu0 0
  %955 = vmatpush2.bf16.xpose.msra.mxu0 0
  %956 = vmatprep.subr.bf16.mxu0 0
  %957 = vmatpush2.bf16.xpose.msra.mxu0 0
  %958 = vmatprep.subr.bf16.mxu0 0
  %959 = vmatpush2.bf16.xpose.msra.mxu0 0
  %960 = vmatprep.subr.bf16.mxu0 0
  %961 = vmatpush2.bf16.xpose.msra.mxu0 0
  %962 = vmatprep.mubr.bf16.mxu0 0
  %963 = vmatmul.mubr.bf16.gmra.mxu0 %v925
  %v964 = vpop.f32.mrf.mxu0
  %v965 = vadd.f32 0.0, %v964
  %v966 = vpop.f32.mrf.mxu0
  %v967 = vpop.f32.mrf.mxu0
  %v968 = vpop.f32.mrf.mxu0
  %969 = vdwg.mxu0
  %971 = vrot.lane.b32.xlu0 %v281, 64
  %v972 = vpop.permute.xlu0 %971
  %v974 = vsel %vm286, %v281, 0
  %v977 = vsel %vm286, %v972, 0
  %979 = vmatprep.subr.bf16.mxu0 0
  %980 = vmatpush1.bf16.xpose.msra.mxu0 0
  %981 = vmatprep.subr.bf16.mxu0 0
  %982 = vmatpush1.bf16.xpose.msra.mxu0 0
  %983 = vmatprep.subr.bf16.mxu0 0
  %984 = vmatpush1.bf16.xpose.msra.mxu0 0
  %985 = vmatprep.subr.bf16.mxu0 0
  %986 = vmatpush1.bf16.xpose.msra.mxu0 0
  %987 = vmatprep.subr.bf16.mxu0 0
  %988 = vmatpush1.bf16.xpose.msra.mxu0 0
  %989 = vmatprep.subr.bf16.mxu0 0
  %990 = vmatpush1.bf16.xpose.msra.mxu0 0
  %991 = vmatprep.subr.bf16.mxu0 0
  %992 = vmatpush1.bf16.xpose.msra.mxu0 0
  %993 = vmatprep.subr.bf16.mxu0 0
  %994 = vmatpush1.bf16.xpose.msra.mxu0 %v977
  %995 = vmatprep.subr.bf16.mxu0 0
  %996 = vmatpush2.bf16.xpose.msra.mxu0 0
  %997 = vmatprep.subr.bf16.mxu0 0
  %998 = vmatpush2.bf16.xpose.msra.mxu0 0
  %999 = vmatprep.subr.bf16.mxu0 0
  %1000 = vmatpush2.bf16.xpose.msra.mxu0 0
  %1001 = vmatprep.subr.bf16.mxu0 0
  %1002 = vmatpush2.bf16.xpose.msra.mxu0 0
  %1003 = vmatprep.subr.bf16.mxu0 0
  %1004 = vmatpush2.bf16.xpose.msra.mxu0 0
  %1005 = vmatprep.subr.bf16.mxu0 0
  %1006 = vmatpush2.bf16.xpose.msra.mxu0 0
  %1007 = vmatprep.subr.bf16.mxu0 0
  %1008 = vmatpush2.bf16.xpose.msra.mxu0 0
  %1009 = vmatprep.subr.bf16.mxu0 0
  %1010 = vmatpush2.bf16.xpose.msra.mxu0 0
  %1011 = vmatprep.mubr.bf16.mxu0 0
  %1012 = vmatmul.mubr.bf16.gmra.mxu0 %v974
  %v1013 = vpop.f32.mrf.mxu0
  %v1014 = vadd.f32 0.0, %v1013
  %v1015 = vpop.f32.mrf.mxu0
  %v1016 = vpop.f32.mrf.mxu0
  %v1017 = vpop.f32.mrf.mxu0
  %1018 = vdwg.mxu0
  %1020 = vrot.lane.b32.xlu0 %v282, 64
  %v1021 = vpop.permute.xlu0 %1020
  %v1023 = vsel %vm286, %v282, 0
  %v1026 = vsel %vm286, %v1021, 0
  %1028 = vmatprep.subr.bf16.mxu0 0
  %1029 = vmatpush1.bf16.xpose.msra.mxu0 0
  %1030 = vmatprep.subr.bf16.mxu0 0
  %1031 = vmatpush1.bf16.xpose.msra.mxu0 0
  %1032 = vmatprep.subr.bf16.mxu0 0
  %1033 = vmatpush1.bf16.xpose.msra.mxu0 0
  %1034 = vmatprep.subr.bf16.mxu0 0
  %1035 = vmatpush1.bf16.xpose.msra.mxu0 0
  %1036 = vmatprep.subr.bf16.mxu0 0
  %1037 = vmatpush1.bf16.xpose.msra.mxu0 0
  %1038 = vmatprep.subr.bf16.mxu0 0
  %1039 = vmatpush1.bf16.xpose.msra.mxu0 0
  %1040 = vmatprep.subr.bf16.mxu0 0
  %1041 = vmatpush1.bf16.xpose.msra.mxu0 0
  %1042 = vmatprep.subr.bf16.mxu0 0
  %1043 = vmatpush1.bf16.xpose.msra.mxu0 %v1026
  %1044 = vmatprep.subr.bf16.mxu0 0
  %1045 = vmatpush2.bf16.xpose.msra.mxu0 0
  %1046 = vmatprep.subr.bf16.mxu0 0
  %1047 = vmatpush2.bf16.xpose.msra.mxu0 0
  %1048 = vmatprep.subr.bf16.mxu0 0
  %1049 = vmatpush2.bf16.xpose.msra.mxu0 0
  %1050 = vmatprep.subr.bf16.mxu0 0
  %1051 = vmatpush2.bf16.xpose.msra.mxu0 0
  %1052 = vmatprep.subr.bf16.mxu0 0
  %1053 = vmatpush2.bf16.xpose.msra.mxu0 0
  %1054 = vmatprep.subr.bf16.mxu0 0
  %1055 = vmatpush2.bf16.xpose.msra.mxu0 0
  %1056 = vmatprep.subr.bf16.mxu0 0
  %1057 = vmatpush2.bf16.xpose.msra.mxu0 0
  %1058 = vmatprep.subr.bf16.mxu0 0
  %1059 = vmatpush2.bf16.xpose.msra.mxu0 0
  %1060 = vmatprep.mubr.bf16.mxu0 0
  %1061 = vmatmul.mubr.bf16.gmra.mxu0 %v1023
  %v1062 = vpop.f32.mrf.mxu0
  %v1063 = vadd.f32 0.0, %v1062
  %v1064 = vpop.f32.mrf.mxu0
  %v1065 = vpop.f32.mrf.mxu0
  %v1066 = vpop.f32.mrf.mxu0
  %1067 = vdwg.mxu0
  %v1068 = vmul.f32 %v328, 0.25
  %v1069 = vmul.f32 %v377, 0.25
  %v1070 = vmul.f32 %v426, 0.25
  %v1071 = vmul.f32 %v475, 0.25
  %v1072 = vmul.f32 %v524, 0.25
  %v1073 = vmul.f32 %v573, 0.25
  %v1074 = vmul.f32 %v622, 0.25
  %v1075 = vmul.f32 %v671, 0.25
  %v1076 = vmul.f32 %v720, 0.25
  %v1077 = vmul.f32 %v769, 0.25
  %v1078 = vmul.f32 %v818, 0.25
  %v1079 = vmul.f32 %v867, 0.25
  %v1080 = vmul.f32 %v916, 0.25
  %v1081 = vmul.f32 %v965, 0.25
  %v1082 = vmul.f32 %v1014, 0.25
  %v1083 = vmul.f32 %v1063, 0.25
  %vm1084 = vcmask 64512
  %v1085 = vsel %vm1084, %v1068, -inf
  %1086 = vmax.xlane.f32.xlu0 %v1085
  %v1087 = vpop.xlane.xlu0 %1086
  %v1088 = vsel %vm1084, %v1069, -inf
  %1089 = vmax.xlane.f32.xlu0 %v1088
  %v1090 = vpop.xlane.xlu0 %1089
  %v1091 = vsel %vm1084, %v1070, -inf
  %1092 = vmax.xlane.f32.xlu0 %v1091
  %v1093 = vpop.xlane.xlu0 %1092
  %v1094 = vsel %vm1084, %v1071, -inf
  %1095 = vmax.xlane.f32.xlu0 %v1094
  %v1096 = vpop.xlane.xlu0 %1095
  %v1097 = vsel %vm1084, %v1072, -inf
  %1098 = vmax.xlane.f32.xlu0 %v1097
  %v1099 = vpop.xlane.xlu0 %1098
  %v1100 = vsel %vm1084, %v1073, -inf
  %1101 = vmax.xlane.f32.xlu0 %v1100
  %v1102 = vpop.xlane.xlu0 %1101
  %v1103 = vsel %vm1084, %v1074, -inf
  %1104 = vmax.xlane.f32.xlu0 %v1103
  %v1105 = vpop.xlane.xlu0 %1104
  %v1106 = vsel %vm1084, %v1075, -inf
  %1107 = vmax.xlane.f32.xlu0 %v1106
  %v1108 = vpop.xlane.xlu0 %1107
  %v1109 = vsel %vm1084, %v1076, -inf
  %1110 = vmax.xlane.f32.xlu0 %v1109
  %v1111 = vpop.xlane.xlu0 %1110
  %v1112 = vsel %vm1084, %v1077, -inf
  %1113 = vmax.xlane.f32.xlu0 %v1112
  %v1114 = vpop.xlane.xlu0 %1113
  %v1115 = vsel %vm1084, %v1078, -inf
  %1116 = vmax.xlane.f32.xlu0 %v1115
  %v1117 = vpop.xlane.xlu0 %1116
  %v1118 = vsel %vm1084, %v1079, -inf
  %1119 = vmax.xlane.f32.xlu0 %v1118
  %v1120 = vpop.xlane.xlu0 %1119
  %v1121 = vsel %vm1084, %v1080, -inf
  %1122 = vmax.xlane.f32.xlu0 %v1121
  %v1123 = vpop.xlane.xlu0 %1122
  %v1124 = vsel %vm1084, %v1081, -inf
  %1125 = vmax.xlane.f32.xlu0 %v1124
  %v1126 = vpop.xlane.xlu0 %1125
  %v1127 = vsel %vm1084, %v1082, -inf
  %1128 = vmax.xlane.f32.xlu0 %v1127
  %v1129 = vpop.xlane.xlu0 %1128
  %v1130 = vsel %vm1084, %v1083, -inf
  %1131 = vmax.xlane.f32.xlu0 %v1130
  %v1132 = vpop.xlane.xlu0 %1131
  %v1133 = vsub.f32 %v1068, %v1087
  %v1134 = vsub.f32 %v1069, %v1090
  %v1135 = vsub.f32 %v1070, %v1093
  %v1136 = vsub.f32 %v1071, %v1096
  %v1137 = vsub.f32 %v1072, %v1099
  %v1138 = vsub.f32 %v1073, %v1102
  %v1139 = vsub.f32 %v1074, %v1105
  %v1140 = vsub.f32 %v1075, %v1108
  %v1141 = vsub.f32 %v1076, %v1111
  %v1142 = vsub.f32 %v1077, %v1114
  %v1143 = vsub.f32 %v1078, %v1117
  %v1144 = vsub.f32 %v1079, %v1120
  %v1145 = vsub.f32 %v1080, %v1123
  %v1146 = vsub.f32 %v1081, %v1126
  %v1147 = vsub.f32 %v1082, %v1129
  %v1148 = vsub.f32 %v1083, %v1132
  %v1149 = vmul.f32 %v1133, 1.442695
  %v1150 = vpow.pop %v1149
  %v1151 = vmul.f32 %v1134, 1.442695
  %v1152 = vpow.pop %v1151
  %v1153 = vmul.f32 %v1135, 1.442695
  %v1154 = vpow.pop %v1153
  %v1155 = vmul.f32 %v1136, 1.442695
  %v1156 = vpow.pop %v1155
  %v1157 = vmul.f32 %v1137, 1.442695
  %v1158 = vpow.pop %v1157
  %v1159 = vmul.f32 %v1138, 1.442695
  %v1160 = vpow.pop %v1159
  %v1161 = vmul.f32 %v1139, 1.442695
  %v1162 = vpow.pop %v1161
  %v1163 = vmul.f32 %v1140, 1.442695
  %v1164 = vpow.pop %v1163
  %v1165 = vmul.f32 %v1141, 1.442695
  %v1166 = vpow.pop %v1165
  %v1167 = vmul.f32 %v1142, 1.442695
  %v1168 = vpow.pop %v1167
  %v1169 = vmul.f32 %v1143, 1.442695
  %v1170 = vpow.pop %v1169
  %v1171 = vmul.f32 %v1144, 1.442695
  %v1172 = vpow.pop %v1171
  %v1173 = vmul.f32 %v1145, 1.442695
  %v1174 = vpow.pop %v1173
  %v1175 = vmul.f32 %v1146, 1.442695
  %v1176 = vpow.pop %v1175
  %v1177 = vmul.f32 %v1147, 1.442695
  %v1178 = vpow.pop %v1177
  %v1179 = vmul.f32 %v1148, 1.442695
  %v1180 = vpow.pop %v1179
  %v1181 = vsel %vm1084, %v1150, 0.0
  %1182 = vadd.xlane.f32.xlu0 %v1181
  %v1183 = vpop.xlane.xlu0 %1182
  %v1184 = vsel %vm1084, %v1152, 0.0
  %1185 = vadd.xlane.f32.xlu0 %v1184
  %v1186 = vpop.xlane.xlu0 %1185
  %v1187 = vsel %vm1084, %v1154, 0.0
  %1188 = vadd.xlane.f32.xlu0 %v1187
  %v1189 = vpop.xlane.xlu0 %1188
  %v1190 = vsel %vm1084, %v1156, 0.0
  %1191 = vadd.xlane.f32.xlu0 %v1190
  %v1192 = vpop.xlane.xlu0 %1191
  %v1193 = vsel %vm1084, %v1158, 0.0
  %1194 = vadd.xlane.f32.xlu0 %v1193
  %v1195 = vpop.xlane.xlu0 %1194
  %v1196 = vsel %vm1084, %v1160, 0.0
  %1197 = vadd.xlane.f32.xlu0 %v1196
  %v1198 = vpop.xlane.xlu0 %1197
  %v1199 = vsel %vm1084, %v1162, 0.0
  %1200 = vadd.xlane.f32.xlu0 %v1199
  %v1201 = vpop.xlane.xlu0 %1200
  %v1202 = vsel %vm1084, %v1164, 0.0
  %1203 = vadd.xlane.f32.xlu0 %v1202
  %v1204 = vpop.xlane.xlu0 %1203
  %v1205 = vsel %vm1084, %v1166, 0.0
  %1206 = vadd.xlane.f32.xlu0 %v1205
  %v1207 = vpop.xlane.xlu0 %1206
  %v1208 = vsel %vm1084, %v1168, 0.0
  %1209 = vadd.xlane.f32.xlu0 %v1208
  %v1210 = vpop.xlane.xlu0 %1209
  %v1211 = vsel %vm1084, %v1170, 0.0
  %1212 = vadd.xlane.f32.xlu0 %v1211
  %v1213 = vpop.xlane.xlu0 %1212
  %v1214 = vsel %vm1084, %v1172, 0.0
  %1215 = vadd.xlane.f32.xlu0 %v1214
  %v1216 = vpop.xlane.xlu0 %1215
  %v1217 = vsel %vm1084, %v1174, 0.0
  %1218 = vadd.xlane.f32.xlu0 %v1217
  %v1219 = vpop.xlane.xlu0 %1218
  %v1220 = vsel %vm1084, %v1176, 0.0
  %1221 = vadd.xlane.f32.xlu0 %v1220
  %v1222 = vpop.xlane.xlu0 %1221
  %v1223 = vsel %vm1084, %v1178, 0.0
  %1224 = vadd.xlane.f32.xlu0 %v1223
  %v1225 = vpop.xlane.xlu0 %1224
  %v1226 = vsel %vm1084, %v1180, 0.0
  %1227 = vadd.xlane.f32.xlu0 %v1226
  %v1228 = vpop.xlane.xlu0 %1227
  %v1229 = vrcp.pop %v1183
  %v1230 = vrcp.pop %v1186
  %v1231 = vrcp.pop %v1189
  %v1232 = vrcp.pop %v1192
  %v1233 = vrcp.pop %v1195
  %v1234 = vrcp.pop %v1198
  %v1235 = vrcp.pop %v1201
  %v1236 = vrcp.pop %v1204
  %v1237 = vrcp.pop %v1207
  %v1238 = vrcp.pop %v1210
  %v1239 = vrcp.pop %v1213
  %v1240 = vrcp.pop %v1216
  %v1241 = vrcp.pop %v1219
  %v1242 = vrcp.pop %v1222
  %v1243 = vrcp.pop %v1225
  %v1244 = vrcp.pop %v1228
  %v1245 = vmul.f32 %v1150, %v1229
  %v1246 = vmul.f32 %v1152, %v1230
  %v1247 = vmul.f32 %v1154, %v1231
  %v1248 = vmul.f32 %v1156, %v1232
  %v1249 = vmul.f32 %v1158, %v1233
  %v1250 = vmul.f32 %v1160, %v1234
  %v1251 = vmul.f32 %v1162, %v1235
  %v1252 = vmul.f32 %v1164, %v1236
  %v1253 = vmul.f32 %v1166, %v1237
  %v1254 = vmul.f32 %v1168, %v1238
  %v1255 = vmul.f32 %v1170, %v1239
  %v1256 = vmul.f32 %v1172, %v1240
  %v1257 = vmul.f32 %v1174, %v1241
  %v1258 = vmul.f32 %v1176, %v1242
  %v1259 = vmul.f32 %v1178, %v1243
  %v1260 = vmul.f32 %v1180, %v1244
  %v1261 = vpack.c.bf16 %v1245, %v1245
  %v1262 = vpack.c.bf16 %v1246, %v1246
  %v1263 = vpack.c.bf16 %v1247, %v1247
  %v1264 = vpack.c.bf16 %v1248, %v1248
  %v1265 = vpack.c.bf16 %v1249, %v1249
  %v1266 = vpack.c.bf16 %v1250, %v1250
  %v1267 = vpack.c.bf16 %v1251, %v1251
  %v1268 = vpack.c.bf16 %v1252, %v1252
  %v1269 = vpack.c.bf16 %v1253, %v1253
  %v1270 = vpack.c.bf16 %v1254, %v1254
  %v1271 = vpack.c.bf16 %v1255, %v1255
  %v1272 = vpack.c.bf16 %v1256, %v1256
  %v1273 = vpack.c.bf16 %v1257, %v1257
  %v1274 = vpack.c.bf16 %v1258, %v1258
  %v1275 = vpack.c.bf16 %v1259, %v1259
  %v1276 = vpack.c.bf16 %v1260, %v1260
  %v1277 = vpack.c.bf16 %v191, %v191
  %v1278 = vpack.c.bf16 %v195, %v195
  %v1279 = vpack.c.bf16 %v201, %v201
  %v1280 = vpack.c.bf16 %v205, %v205
  %v1281 = vpack.c.bf16 %v211, %v211
  %v1282 = vpack.c.bf16 %v215, %v215
  %v1283 = vpack.c.bf16 %v221, %v221
  %v1284 = vpack.c.bf16 %v225, %v225
  %v1285 = vpack.c.bf16 %v231, %v231
  %v1286 = vpack.c.bf16 %v235, %v235
  %v1287 = vpack.c.bf16 %v241, %v241
  %v1288 = vpack.c.bf16 %v245, %v245
  %v1289 = vpack.c.bf16 %v251, %v251
  %v1290 = vpack.c.bf16 %v255, %v255
  %v1291 = vpack.c.bf16 %v261, %v261
  %v1292 = vpack.c.bf16 %v265, %v265
  %v1294 = vsel %vm1084, %v1261, 0
  %vm1296 = vcmask 1043456
  %v1298 = vsel %vm1296, %v1277, 0
  %1300 = vmatprep.subr.bf16.mxu0 0
  %1301 = vmatpush1.bf16.msra.mxu0 0
  %1302 = vmatprep.subr.bf16.mxu0 0
  %1303 = vmatpush1.bf16.msra.mxu0 0
  %1304 = vmatprep.subr.bf16.mxu0 0
  %1305 = vmatpush1.bf16.msra.mxu0 0
  %1306 = vmatprep.subr.bf16.mxu0 0
  %1307 = vmatpush1.bf16.msra.mxu0 0
  %1308 = vmatprep.subr.bf16.mxu0 0
  %1309 = vmatpush1.bf16.msra.mxu0 0
  %1310 = vmatprep.subr.bf16.mxu0 0
  %1311 = vmatpush1.bf16.msra.mxu0 0
  %1312 = vmatprep.subr.bf16.mxu0 0
  %1313 = vmatpush1.bf16.msra.mxu0 0
  %1314 = vmatprep.subr.bf16.mxu0 0
  %1315 = vmatpush1.bf16.msra.mxu0 %v1298
  %1316 = vmatprep.subr.bf16.mxu0 0
  %1317 = vmatpush2.bf16.msra.mxu0 0
  %1318 = vmatprep.subr.bf16.mxu0 0
  %1319 = vmatpush2.bf16.msra.mxu0 0
  %1320 = vmatprep.subr.bf16.mxu0 0
  %1321 = vmatpush2.bf16.msra.mxu0 0
  %1322 = vmatprep.subr.bf16.mxu0 0
  %1323 = vmatpush2.bf16.msra.mxu0 0
  %1324 = vmatprep.subr.bf16.mxu0 0
  %1325 = vmatpush2.bf16.msra.mxu0 0
  %1326 = vmatprep.subr.bf16.mxu0 0
  %1327 = vmatpush2.bf16.msra.mxu0 0
  %1328 = vmatprep.subr.bf16.mxu0 0
  %1329 = vmatpush2.bf16.msra.mxu0 0
  %1330 = vmatprep.subr.bf16.mxu0 0
  %1331 = vmatpush2.bf16.msra.mxu0 0
  %1332 = vmatprep.mubr.bf16.mxu0 0
  %1333 = vmatmul.mubr.bf16.gmra.mxu0 %v1294
  %v1334 = vpop.f32.mrf.mxu0
  %v1335 = vadd.f32 0.0, %v1334
  %v1336 = vpop.f32.mrf.mxu0
  %v1337 = vpop.f32.mrf.mxu0
  %v1338 = vpop.f32.mrf.mxu0
  %1339 = vdwg.mxu0
  %v1341 = vsel %vm1084, %v1262, 0
  %v1344 = vsel %vm1296, %v1278, 0
  %1346 = vmatprep.subr.bf16.mxu0 0
  %1347 = vmatpush1.bf16.msra.mxu0 0
  %1348 = vmatprep.subr.bf16.mxu0 0
  %1349 = vmatpush1.bf16.msra.mxu0 0
  %1350 = vmatprep.subr.bf16.mxu0 0
  %1351 = vmatpush1.bf16.msra.mxu0 0
  %1352 = vmatprep.subr.bf16.mxu0 0
  %1353 = vmatpush1.bf16.msra.mxu0 0
  %1354 = vmatprep.subr.bf16.mxu0 0
  %1355 = vmatpush1.bf16.msra.mxu0 0
  %1356 = vmatprep.subr.bf16.mxu0 0
  %1357 = vmatpush1.bf16.msra.mxu0 0
  %1358 = vmatprep.subr.bf16.mxu0 0
  %1359 = vmatpush1.bf16.msra.mxu0 0
  %1360 = vmatprep.subr.bf16.mxu0 0
  %1361 = vmatpush1.bf16.msra.mxu0 %v1344
  %1362 = vmatprep.subr.bf16.mxu0 0
  %1363 = vmatpush2.bf16.msra.mxu0 0
  %1364 = vmatprep.subr.bf16.mxu0 0
  %1365 = vmatpush2.bf16.msra.mxu0 0
  %1366 = vmatprep.subr.bf16.mxu0 0
  %1367 = vmatpush2.bf16.msra.mxu0 0
  %1368 = vmatprep.subr.bf16.mxu0 0
  %1369 = vmatpush2.bf16.msra.mxu0 0
  %1370 = vmatprep.subr.bf16.mxu0 0
  %1371 = vmatpush2.bf16.msra.mxu0 0
  %1372 = vmatprep.subr.bf16.mxu0 0
  %1373 = vmatpush2.bf16.msra.mxu0 0
  %1374 = vmatprep.subr.bf16.mxu0 0
  %1375 = vmatpush2.bf16.msra.mxu0 0
  %1376 = vmatprep.subr.bf16.mxu0 0
  %1377 = vmatpush2.bf16.msra.mxu0 0
  %1378 = vmatprep.mubr.bf16.mxu0 0
  %1379 = vmatmul.mubr.bf16.gmra.mxu0 %v1341
  %v1380 = vpop.f32.mrf.mxu0
  %v1381 = vadd.f32 0.0, %v1380
  %v1382 = vpop.f32.mrf.mxu0
  %v1383 = vpop.f32.mrf.mxu0
  %v1384 = vpop.f32.mrf.mxu0
  %1385 = vdwg.mxu0
  %v1387 = vsel %vm1084, %v1263, 0
  %v1390 = vsel %vm1296, %v1279, 0
  %1392 = vmatprep.subr.bf16.mxu0 0
  %1393 = vmatpush1.bf16.msra.mxu0 0
  %1394 = vmatprep.subr.bf16.mxu0 0
  %1395 = vmatpush1.bf16.msra.mxu0 0
  %1396 = vmatprep.subr.bf16.mxu0 0
  %1397 = vmatpush1.bf16.msra.mxu0 0
  %1398 = vmatprep.subr.bf16.mxu0 0
  %1399 = vmatpush1.bf16.msra.mxu0 0
  %1400 = vmatprep.subr.bf16.mxu0 0
  %1401 = vmatpush1.bf16.msra.mxu0 0
  %1402 = vmatprep.subr.bf16.mxu0 0
  %1403 = vmatpush1.bf16.msra.mxu0 0
  %1404 = vmatprep.subr.bf16.mxu0 0
  %1405 = vmatpush1.bf16.msra.mxu0 0
  %1406 = vmatprep.subr.bf16.mxu0 0
  %1407 = vmatpush1.bf16.msra.mxu0 %v1390
  %1408 = vmatprep.subr.bf16.mxu0 0
  %1409 = vmatpush2.bf16.msra.mxu0 0
  %1410 = vmatprep.subr.bf16.mxu0 0
  %1411 = vmatpush2.bf16.msra.mxu0 0
  %1412 = vmatprep.subr.bf16.mxu0 0
  %1413 = vmatpush2.bf16.msra.mxu0 0
  %1414 = vmatprep.subr.bf16.mxu0 0
  %1415 = vmatpush2.bf16.msra.mxu0 0
  %1416 = vmatprep.subr.bf16.mxu0 0
  %1417 = vmatpush2.bf16.msra.mxu0 0
  %1418 = vmatprep.subr.bf16.mxu0 0
  %1419 = vmatpush2.bf16.msra.mxu0 0
  %1420 = vmatprep.subr.bf16.mxu0 0
  %1421 = vmatpush2.bf16.msra.mxu0 0
  %1422 = vmatprep.subr.bf16.mxu0 0
  %1423 = vmatpush2.bf16.msra.mxu0 0
  %1424 = vmatprep.mubr.bf16.mxu0 0
  %1425 = vmatmul.mubr.bf16.gmra.mxu0 %v1387
  %v1426 = vpop.f32.mrf.mxu0
  %v1427 = vadd.f32 0.0, %v1426
  %v1428 = vpop.f32.mrf.mxu0
  %v1429 = vpop.f32.mrf.mxu0
  %v1430 = vpop.f32.mrf.mxu0
  %1431 = vdwg.mxu0
  %v1433 = vsel %vm1084, %v1264, 0
  %v1436 = vsel %vm1296, %v1280, 0
  %1438 = vmatprep.subr.bf16.mxu0 0
  %1439 = vmatpush1.bf16.msra.mxu0 0
  %1440 = vmatprep.subr.bf16.mxu0 0
  %1441 = vmatpush1.bf16.msra.mxu0 0
  %1442 = vmatprep.subr.bf16.mxu0 0
  %1443 = vmatpush1.bf16.msra.mxu0 0
  %1444 = vmatprep.subr.bf16.mxu0 0
  %1445 = vmatpush1.bf16.msra.mxu0 0
  %1446 = vmatprep.subr.bf16.mxu0 0
  %1447 = vmatpush1.bf16.msra.mxu0 0
  %1448 = vmatprep.subr.bf16.mxu0 0
  %1449 = vmatpush1.bf16.msra.mxu0 0
  %1450 = vmatprep.subr.bf16.mxu0 0
  %1451 = vmatpush1.bf16.msra.mxu0 0
  %1452 = vmatprep.subr.bf16.mxu0 0
  %1453 = vmatpush1.bf16.msra.mxu0 %v1436
  %1454 = vmatprep.subr.bf16.mxu0 0
  %1455 = vmatpush2.bf16.msra.mxu0 0
  %1456 = vmatprep.subr.bf16.mxu0 0
  %1457 = vmatpush2.bf16.msra.mxu0 0
  %1458 = vmatprep.subr.bf16.mxu0 0
  %1459 = vmatpush2.bf16.msra.mxu0 0
  %1460 = vmatprep.subr.bf16.mxu0 0
  %1461 = vmatpush2.bf16.msra.mxu0 0
  %1462 = vmatprep.subr.bf16.mxu0 0
  %1463 = vmatpush2.bf16.msra.mxu0 0
  %1464 = vmatprep.subr.bf16.mxu0 0
  %1465 = vmatpush2.bf16.msra.mxu0 0
  %1466 = vmatprep.subr.bf16.mxu0 0
  %1467 = vmatpush2.bf16.msra.mxu0 0
  %1468 = vmatprep.subr.bf16.mxu0 0
  %1469 = vmatpush2.bf16.msra.mxu0 0
  %1470 = vmatprep.mubr.bf16.mxu0 0
  %1471 = vmatmul.mubr.bf16.gmra.mxu0 %v1433
  %v1472 = vpop.f32.mrf.mxu0
  %v1473 = vadd.f32 0.0, %v1472
  %v1474 = vpop.f32.mrf.mxu0
  %v1475 = vpop.f32.mrf.mxu0
  %v1476 = vpop.f32.mrf.mxu0
  %1477 = vdwg.mxu0
  %v1479 = vsel %vm1084, %v1265, 0
  %v1482 = vsel %vm1296, %v1281, 0
  %1484 = vmatprep.subr.bf16.mxu0 0
  %1485 = vmatpush1.bf16.msra.mxu0 0
  %1486 = vmatprep.subr.bf16.mxu0 0
  %1487 = vmatpush1.bf16.msra.mxu0 0
  %1488 = vmatprep.subr.bf16.mxu0 0
  %1489 = vmatpush1.bf16.msra.mxu0 0
  %1490 = vmatprep.subr.bf16.mxu0 0
  %1491 = vmatpush1.bf16.msra.mxu0 0
  %1492 = vmatprep.subr.bf16.mxu0 0
  %1493 = vmatpush1.bf16.msra.mxu0 0
  %1494 = vmatprep.subr.bf16.mxu0 0
  %1495 = vmatpush1.bf16.msra.mxu0 0
  %1496 = vmatprep.subr.bf16.mxu0 0
  %1497 = vmatpush1.bf16.msra.mxu0 0
  %1498 = vmatprep.subr.bf16.mxu0 0
  %1499 = vmatpush1.bf16.msra.mxu0 %v1482
  %1500 = vmatprep.subr.bf16.mxu0 0
  %1501 = vmatpush2.bf16.msra.mxu0 0
  %1502 = vmatprep.subr.bf16.mxu0 0
  %1503 = vmatpush2.bf16.msra.mxu0 0
  %1504 = vmatprep.subr.bf16.mxu0 0
  %1505 = vmatpush2.bf16.msra.mxu0 0
  %1506 = vmatprep.subr.bf16.mxu0 0
  %1507 = vmatpush2.bf16.msra.mxu0 0
  %1508 = vmatprep.subr.bf16.mxu0 0
  %1509 = vmatpush2.bf16.msra.mxu0 0
  %1510 = vmatprep.subr.bf16.mxu0 0
  %1511 = vmatpush2.bf16.msra.mxu0 0
  %1512 = vmatprep.subr.bf16.mxu0 0
  %1513 = vmatpush2.bf16.msra.mxu0 0
  %1514 = vmatprep.subr.bf16.mxu0 0
  %1515 = vmatpush2.bf16.msra.mxu0 0
  %1516 = vmatprep.mubr.bf16.mxu0 0
  %1517 = vmatmul.mubr.bf16.gmra.mxu0 %v1479
  %v1518 = vpop.f32.mrf.mxu0
  %v1519 = vadd.f32 0.0, %v1518
  %v1520 = vpop.f32.mrf.mxu0
  %v1521 = vpop.f32.mrf.mxu0
  %v1522 = vpop.f32.mrf.mxu0
  %1523 = vdwg.mxu0
  %v1525 = vsel %vm1084, %v1266, 0
  %v1528 = vsel %vm1296, %v1282, 0
  %1530 = vmatprep.subr.bf16.mxu0 0
  %1531 = vmatpush1.bf16.msra.mxu0 0
  %1532 = vmatprep.subr.bf16.mxu0 0
  %1533 = vmatpush1.bf16.msra.mxu0 0
  %1534 = vmatprep.subr.bf16.mxu0 0
  %1535 = vmatpush1.bf16.msra.mxu0 0
  %1536 = vmatprep.subr.bf16.mxu0 0
  %1537 = vmatpush1.bf16.msra.mxu0 0
  %1538 = vmatprep.subr.bf16.mxu0 0
  %1539 = vmatpush1.bf16.msra.mxu0 0
  %1540 = vmatprep.subr.bf16.mxu0 0
  %1541 = vmatpush1.bf16.msra.mxu0 0
  %1542 = vmatprep.subr.bf16.mxu0 0
  %1543 = vmatpush1.bf16.msra.mxu0 0
  %1544 = vmatprep.subr.bf16.mxu0 0
  %1545 = vmatpush1.bf16.msra.mxu0 %v1528
  %1546 = vmatprep.subr.bf16.mxu0 0
  %1547 = vmatpush2.bf16.msra.mxu0 0
  %1548 = vmatprep.subr.bf16.mxu0 0
  %1549 = vmatpush2.bf16.msra.mxu0 0
  %1550 = vmatprep.subr.bf16.mxu0 0
  %1551 = vmatpush2.bf16.msra.mxu0 0
  %1552 = vmatprep.subr.bf16.mxu0 0
  %1553 = vmatpush2.bf16.msra.mxu0 0
  %1554 = vmatprep.subr.bf16.mxu0 0
  %1555 = vmatpush2.bf16.msra.mxu0 0
  %1556 = vmatprep.subr.bf16.mxu0 0
  %1557 = vmatpush2.bf16.msra.mxu0 0
  %1558 = vmatprep.subr.bf16.mxu0 0
  %1559 = vmatpush2.bf16.msra.mxu0 0
  %1560 = vmatprep.subr.bf16.mxu0 0
  %1561 = vmatpush2.bf16.msra.mxu0 0
  %1562 = vmatprep.mubr.bf16.mxu0 0
  %1563 = vmatmul.mubr.bf16.gmra.mxu0 %v1525
  %v1564 = vpop.f32.mrf.mxu0
  %v1565 = vadd.f32 0.0, %v1564
  %v1566 = vpop.f32.mrf.mxu0
  %v1567 = vpop.f32.mrf.mxu0
  %v1568 = vpop.f32.mrf.mxu0
  %1569 = vdwg.mxu0
  %v1571 = vsel %vm1084, %v1267, 0
  %v1574 = vsel %vm1296, %v1283, 0
  %1576 = vmatprep.subr.bf16.mxu0 0
  %1577 = vmatpush1.bf16.msra.mxu0 0
  %1578 = vmatprep.subr.bf16.mxu0 0
  %1579 = vmatpush1.bf16.msra.mxu0 0
  %1580 = vmatprep.subr.bf16.mxu0 0
  %1581 = vmatpush1.bf16.msra.mxu0 0
  %1582 = vmatprep.subr.bf16.mxu0 0
  %1583 = vmatpush1.bf16.msra.mxu0 0
  %1584 = vmatprep.subr.bf16.mxu0 0
  %1585 = vmatpush1.bf16.msra.mxu0 0
  %1586 = vmatprep.subr.bf16.mxu0 0
  %1587 = vmatpush1.bf16.msra.mxu0 0
  %1588 = vmatprep.subr.bf16.mxu0 0
  %1589 = vmatpush1.bf16.msra.mxu0 0
  %1590 = vmatprep.subr.bf16.mxu0 0
  %1591 = vmatpush1.bf16.msra.mxu0 %v1574
  %1592 = vmatprep.subr.bf16.mxu0 0
  %1593 = vmatpush2.bf16.msra.mxu0 0
  %1594 = vmatprep.subr.bf16.mxu0 0
  %1595 = vmatpush2.bf16.msra.mxu0 0
  %1596 = vmatprep.subr.bf16.mxu0 0
  %1597 = vmatpush2.bf16.msra.mxu0 0
  %1598 = vmatprep.subr.bf16.mxu0 0
  %1599 = vmatpush2.bf16.msra.mxu0 0
  %1600 = vmatprep.subr.bf16.mxu0 0
  %1601 = vmatpush2.bf16.msra.mxu0 0
  %1602 = vmatprep.subr.bf16.mxu0 0
  %1603 = vmatpush2.bf16.msra.mxu0 0
  %1604 = vmatprep.subr.bf16.mxu0 0
  %1605 = vmatpush2.bf16.msra.mxu0 0
  %1606 = vmatprep.subr.bf16.mxu0 0
  %1607 = vmatpush2.bf16.msra.mxu0 0
  %1608 = vmatprep.mubr.bf16.mxu0 0
  %1609 = vmatmul.mubr.bf16.gmra.mxu0 %v1571
  %v1610 = vpop.f32.mrf.mxu0
  %v1611 = vadd.f32 0.0, %v1610
  %v1612 = vpop.f32.mrf.mxu0
  %v1613 = vpop.f32.mrf.mxu0
  %v1614 = vpop.f32.mrf.mxu0
  %1615 = vdwg.mxu0
  %v1617 = vsel %vm1084, %v1268, 0
  %v1620 = vsel %vm1296, %v1284, 0
  %1622 = vmatprep.subr.bf16.mxu0 0
  %1623 = vmatpush1.bf16.msra.mxu0 0
  %1624 = vmatprep.subr.bf16.mxu0 0
  %1625 = vmatpush1.bf16.msra.mxu0 0
  %1626 = vmatprep.subr.bf16.mxu0 0
  %1627 = vmatpush1.bf16.msra.mxu0 0
  %1628 = vmatprep.subr.bf16.mxu0 0
  %1629 = vmatpush1.bf16.msra.mxu0 0
  %1630 = vmatprep.subr.bf16.mxu0 0
  %1631 = vmatpush1.bf16.msra.mxu0 0
  %1632 = vmatprep.subr.bf16.mxu0 0
  %1633 = vmatpush1.bf16.msra.mxu0 0
  %1634 = vmatprep.subr.bf16.mxu0 0
  %1635 = vmatpush1.bf16.msra.mxu0 0
  %1636 = vmatprep.subr.bf16.mxu0 0
  %1637 = vmatpush1.bf16.msra.mxu0 %v1620
  %1638 = vmatprep.subr.bf16.mxu0 0
  %1639 = vmatpush2.bf16.msra.mxu0 0
  %1640 = vmatprep.subr.bf16.mxu0 0
  %1641 = vmatpush2.bf16.msra.mxu0 0
  %1642 = vmatprep.subr.bf16.mxu0 0
  %1643 = vmatpush2.bf16.msra.mxu0 0
  %1644 = vmatprep.subr.bf16.mxu0 0
  %1645 = vmatpush2.bf16.msra.mxu0 0
  %1646 = vmatprep.subr.bf16.mxu0 0
  %1647 = vmatpush2.bf16.msra.mxu0 0
  %1648 = vmatprep.subr.bf16.mxu0 0
  %1649 = vmatpush2.bf16.msra.mxu0 0
  %1650 = vmatprep.subr.bf16.mxu0 0
  %1651 = vmatpush2.bf16.msra.mxu0 0
  %1652 = vmatprep.subr.bf16.mxu0 0
  %1653 = vmatpush2.bf16.msra.mxu0 0
  %1654 = vmatprep.mubr.bf16.mxu0 0
  %1655 = vmatmul.mubr.bf16.gmra.mxu0 %v1617
  %v1656 = vpop.f32.mrf.mxu0
  %v1657 = vadd.f32 0.0, %v1656
  %v1658 = vpop.f32.mrf.mxu0
  %v1659 = vpop.f32.mrf.mxu0
  %v1660 = vpop.f32.mrf.mxu0
  %1661 = vdwg.mxu0
  %v1663 = vsel %vm1084, %v1269, 0
  %v1666 = vsel %vm1296, %v1285, 0
  %1668 = vmatprep.subr.bf16.mxu0 0
  %1669 = vmatpush1.bf16.msra.mxu0 0
  %1670 = vmatprep.subr.bf16.mxu0 0
  %1671 = vmatpush1.bf16.msra.mxu0 0
  %1672 = vmatprep.subr.bf16.mxu0 0
  %1673 = vmatpush1.bf16.msra.mxu0 0
  %1674 = vmatprep.subr.bf16.mxu0 0
  %1675 = vmatpush1.bf16.msra.mxu0 0
  %1676 = vmatprep.subr.bf16.mxu0 0
  %1677 = vmatpush1.bf16.msra.mxu0 0
  %1678 = vmatprep.subr.bf16.mxu0 0
  %1679 = vmatpush1.bf16.msra.mxu0 0
  %1680 = vmatprep.subr.bf16.mxu0 0
  %1681 = vmatpush1.bf16.msra.mxu0 0
  %1682 = vmatprep.subr.bf16.mxu0 0
  %1683 = vmatpush1.bf16.msra.mxu0 %v1666
  %1684 = vmatprep.subr.bf16.mxu0 0
  %1685 = vmatpush2.bf16.msra.mxu0 0
  %1686 = vmatprep.subr.bf16.mxu0 0
  %1687 = vmatpush2.bf16.msra.mxu0 0
  %1688 = vmatprep.subr.bf16.mxu0 0
  %1689 = vmatpush2.bf16.msra.mxu0 0
  %1690 = vmatprep.subr.bf16.mxu0 0
  %1691 = vmatpush2.bf16.msra.mxu0 0
  %1692 = vmatprep.subr.bf16.mxu0 0
  %1693 = vmatpush2.bf16.msra.mxu0 0
  %1694 = vmatprep.subr.bf16.mxu0 0
  %1695 = vmatpush2.bf16.msra.mxu0 0
  %1696 = vmatprep.subr.bf16.mxu0 0
  %1697 = vmatpush2.bf16.msra.mxu0 0
  %1698 = vmatprep.subr.bf16.mxu0 0
  %1699 = vmatpush2.bf16.msra.mxu0 0
  %1700 = vmatprep.mubr.bf16.mxu0 0
  %1701 = vmatmul.mubr.bf16.gmra.mxu0 %v1663
  %v1702 = vpop.f32.mrf.mxu0
  %v1703 = vadd.f32 0.0, %v1702
  %v1704 = vpop.f32.mrf.mxu0
  %v1705 = vpop.f32.mrf.mxu0
  %v1706 = vpop.f32.mrf.mxu0
  %1707 = vdwg.mxu0
  %v1709 = vsel %vm1084, %v1270, 0
  %v1712 = vsel %vm1296, %v1286, 0
  %1714 = vmatprep.subr.bf16.mxu0 0
  %1715 = vmatpush1.bf16.msra.mxu0 0
  %1716 = vmatprep.subr.bf16.mxu0 0
  %1717 = vmatpush1.bf16.msra.mxu0 0
  %1718 = vmatprep.subr.bf16.mxu0 0
  %1719 = vmatpush1.bf16.msra.mxu0 0
  %1720 = vmatprep.subr.bf16.mxu0 0
  %1721 = vmatpush1.bf16.msra.mxu0 0
  %1722 = vmatprep.subr.bf16.mxu0 0
  %1723 = vmatpush1.bf16.msra.mxu0 0
  %1724 = vmatprep.subr.bf16.mxu0 0
  %1725 = vmatpush1.bf16.msra.mxu0 0
  %1726 = vmatprep.subr.bf16.mxu0 0
  %1727 = vmatpush1.bf16.msra.mxu0 0
  %1728 = vmatprep.subr.bf16.mxu0 0
  %1729 = vmatpush1.bf16.msra.mxu0 %v1712
  %1730 = vmatprep.subr.bf16.mxu0 0
  %1731 = vmatpush2.bf16.msra.mxu0 0
  %1732 = vmatprep.subr.bf16.mxu0 0
  %1733 = vmatpush2.bf16.msra.mxu0 0
  %1734 = vmatprep.subr.bf16.mxu0 0
  %1735 = vmatpush2.bf16.msra.mxu0 0
  %1736 = vmatprep.subr.bf16.mxu0 0
  %1737 = vmatpush2.bf16.msra.mxu0 0
  %1738 = vmatprep.subr.bf16.mxu0 0
  %1739 = vmatpush2.bf16.msra.mxu0 0
  %1740 = vmatprep.subr.bf16.mxu0 0
  %1741 = vmatpush2.bf16.msra.mxu0 0
  %1742 = vmatprep.subr.bf16.mxu0 0
  %1743 = vmatpush2.bf16.msra.mxu0 0
  %1744 = vmatprep.subr.bf16.mxu0 0
  %1745 = vmatpush2.bf16.msra.mxu0 0
  %1746 = vmatprep.mubr.bf16.mxu0 0
  %1747 = vmatmul.mubr.bf16.gmra.mxu0 %v1709
  %v1748 = vpop.f32.mrf.mxu0
  %v1749 = vadd.f32 0.0, %v1748
  %v1750 = vpop.f32.mrf.mxu0
  %v1751 = vpop.f32.mrf.mxu0
  %v1752 = vpop.f32.mrf.mxu0
  %1753 = vdwg.mxu0
  %v1755 = vsel %vm1084, %v1271, 0
  %v1758 = vsel %vm1296, %v1287, 0
  %1760 = vmatprep.subr.bf16.mxu0 0
  %1761 = vmatpush1.bf16.msra.mxu0 0
  %1762 = vmatprep.subr.bf16.mxu0 0
  %1763 = vmatpush1.bf16.msra.mxu0 0
  %1764 = vmatprep.subr.bf16.mxu0 0
  %1765 = vmatpush1.bf16.msra.mxu0 0
  %1766 = vmatprep.subr.bf16.mxu0 0
  %1767 = vmatpush1.bf16.msra.mxu0 0
  %1768 = vmatprep.subr.bf16.mxu0 0
  %1769 = vmatpush1.bf16.msra.mxu0 0
  %1770 = vmatprep.subr.bf16.mxu0 0
  %1771 = vmatpush1.bf16.msra.mxu0 0
  %1772 = vmatprep.subr.bf16.mxu0 0
  %1773 = vmatpush1.bf16.msra.mxu0 0
  %1774 = vmatprep.subr.bf16.mxu0 0
  %1775 = vmatpush1.bf16.msra.mxu0 %v1758
  %1776 = vmatprep.subr.bf16.mxu0 0
  %1777 = vmatpush2.bf16.msra.mxu0 0
  %1778 = vmatprep.subr.bf16.mxu0 0
  %1779 = vmatpush2.bf16.msra.mxu0 0
  %1780 = vmatprep.subr.bf16.mxu0 0
  %1781 = vmatpush2.bf16.msra.mxu0 0
  %1782 = vmatprep.subr.bf16.mxu0 0
  %1783 = vmatpush2.bf16.msra.mxu0 0
  %1784 = vmatprep.subr.bf16.mxu0 0
  %1785 = vmatpush2.bf16.msra.mxu0 0
  %1786 = vmatprep.subr.bf16.mxu0 0
  %1787 = vmatpush2.bf16.msra.mxu0 0
  %1788 = vmatprep.subr.bf16.mxu0 0
  %1789 = vmatpush2.bf16.msra.mxu0 0
  %1790 = vmatprep.subr.bf16.mxu0 0
  %1791 = vmatpush2.bf16.msra.mxu0 0
  %1792 = vmatprep.mubr.bf16.mxu0 0
  %1793 = vmatmul.mubr.bf16.gmra.mxu0 %v1755
  %v1794 = vpop.f32.mrf.mxu0
  %v1795 = vadd.f32 0.0, %v1794
  %v1796 = vpop.f32.mrf.mxu0
  %v1797 = vpop.f32.mrf.mxu0
  %v1798 = vpop.f32.mrf.mxu0
  %1799 = vdwg.mxu0
  %v1801 = vsel %vm1084, %v1272, 0
  %v1804 = vsel %vm1296, %v1288, 0
  %1806 = vmatprep.subr.bf16.mxu0 0
  %1807 = vmatpush1.bf16.msra.mxu0 0
  %1808 = vmatprep.subr.bf16.mxu0 0
  %1809 = vmatpush1.bf16.msra.mxu0 0
  %1810 = vmatprep.subr.bf16.mxu0 0
  %1811 = vmatpush1.bf16.msra.mxu0 0
  %1812 = vmatprep.subr.bf16.mxu0 0
  %1813 = vmatpush1.bf16.msra.mxu0 0
  %1814 = vmatprep.subr.bf16.mxu0 0
  %1815 = vmatpush1.bf16.msra.mxu0 0
  %1816 = vmatprep.subr.bf16.mxu0 0
  %1817 = vmatpush1.bf16.msra.mxu0 0
  %1818 = vmatprep.subr.bf16.mxu0 0
  %1819 = vmatpush1.bf16.msra.mxu0 0
  %1820 = vmatprep.subr.bf16.mxu0 0
  %1821 = vmatpush1.bf16.msra.mxu0 %v1804
  %1822 = vmatprep.subr.bf16.mxu0 0
  %1823 = vmatpush2.bf16.msra.mxu0 0
  %1824 = vmatprep.subr.bf16.mxu0 0
  %1825 = vmatpush2.bf16.msra.mxu0 0
  %1826 = vmatprep.subr.bf16.mxu0 0
  %1827 = vmatpush2.bf16.msra.mxu0 0
  %1828 = vmatprep.subr.bf16.mxu0 0
  %1829 = vmatpush2.bf16.msra.mxu0 0
  %1830 = vmatprep.subr.bf16.mxu0 0
  %1831 = vmatpush2.bf16.msra.mxu0 0
  %1832 = vmatprep.subr.bf16.mxu0 0
  %1833 = vmatpush2.bf16.msra.mxu0 0
  %1834 = vmatprep.subr.bf16.mxu0 0
  %1835 = vmatpush2.bf16.msra.mxu0 0
  %1836 = vmatprep.subr.bf16.mxu0 0
  %1837 = vmatpush2.bf16.msra.mxu0 0
  %1838 = vmatprep.mubr.bf16.mxu0 0
  %1839 = vmatmul.mubr.bf16.gmra.mxu0 %v1801
  %v1840 = vpop.f32.mrf.mxu0
  %v1841 = vadd.f32 0.0, %v1840
  %v1842 = vpop.f32.mrf.mxu0
  %v1843 = vpop.f32.mrf.mxu0
  %v1844 = vpop.f32.mrf.mxu0
  %1845 = vdwg.mxu0
  %v1847 = vsel %vm1084, %v1273, 0
  %v1850 = vsel %vm1296, %v1289, 0
  %1852 = vmatprep.subr.bf16.mxu0 0
  %1853 = vmatpush1.bf16.msra.mxu0 0
  %1854 = vmatprep.subr.bf16.mxu0 0
  %1855 = vmatpush1.bf16.msra.mxu0 0
  %1856 = vmatprep.subr.bf16.mxu0 0
  %1857 = vmatpush1.bf16.msra.mxu0 0
  %1858 = vmatprep.subr.bf16.mxu0 0
  %1859 = vmatpush1.bf16.msra.mxu0 0
  %1860 = vmatprep.subr.bf16.mxu0 0
  %1861 = vmatpush1.bf16.msra.mxu0 0
  %1862 = vmatprep.subr.bf16.mxu0 0
  %1863 = vmatpush1.bf16.msra.mxu0 0
  %1864 = vmatprep.subr.bf16.mxu0 0
  %1865 = vmatpush1.bf16.msra.mxu0 0
  %1866 = vmatprep.subr.bf16.mxu0 0
  %1867 = vmatpush1.bf16.msra.mxu0 %v1850
  %1868 = vmatprep.subr.bf16.mxu0 0
  %1869 = vmatpush2.bf16.msra.mxu0 0
  %1870 = vmatprep.subr.bf16.mxu0 0
  %1871 = vmatpush2.bf16.msra.mxu0 0
  %1872 = vmatprep.subr.bf16.mxu0 0
  %1873 = vmatpush2.bf16.msra.mxu0 0
  %1874 = vmatprep.subr.bf16.mxu0 0
  %1875 = vmatpush2.bf16.msra.mxu0 0
  %1876 = vmatprep.subr.bf16.mxu0 0
  %1877 = vmatpush2.bf16.msra.mxu0 0
  %1878 = vmatprep.subr.bf16.mxu0 0
  %1879 = vmatpush2.bf16.msra.mxu0 0
  %1880 = vmatprep.subr.bf16.mxu0 0
  %1881 = vmatpush2.bf16.msra.mxu0 0
  %1882 = vmatprep.subr.bf16.mxu0 0
  %1883 = vmatpush2.bf16.msra.mxu0 0
  %1884 = vmatprep.mubr.bf16.mxu0 0
  %1885 = vmatmul.mubr.bf16.gmra.mxu0 %v1847
  %v1886 = vpop.f32.mrf.mxu0
  %v1887 = vadd.f32 0.0, %v1886
  %v1888 = vpop.f32.mrf.mxu0
  %v1889 = vpop.f32.mrf.mxu0
  %v1890 = vpop.f32.mrf.mxu0
  %1891 = vdwg.mxu0
  %v1893 = vsel %vm1084, %v1274, 0
  %v1896 = vsel %vm1296, %v1290, 0
  %1898 = vmatprep.subr.bf16.mxu0 0
  %1899 = vmatpush1.bf16.msra.mxu0 0
  %1900 = vmatprep.subr.bf16.mxu0 0
  %1901 = vmatpush1.bf16.msra.mxu0 0
  %1902 = vmatprep.subr.bf16.mxu0 0
  %1903 = vmatpush1.bf16.msra.mxu0 0
  %1904 = vmatprep.subr.bf16.mxu0 0
  %1905 = vmatpush1.bf16.msra.mxu0 0
  %1906 = vmatprep.subr.bf16.mxu0 0
  %1907 = vmatpush1.bf16.msra.mxu0 0
  %1908 = vmatprep.subr.bf16.mxu0 0
  %1909 = vmatpush1.bf16.msra.mxu0 0
  %1910 = vmatprep.subr.bf16.mxu0 0
  %1911 = vmatpush1.bf16.msra.mxu0 0
  %1912 = vmatprep.subr.bf16.mxu0 0
  %1913 = vmatpush1.bf16.msra.mxu0 %v1896
  %1914 = vmatprep.subr.bf16.mxu0 0
  %1915 = vmatpush2.bf16.msra.mxu0 0
  %1916 = vmatprep.subr.bf16.mxu0 0
  %1917 = vmatpush2.bf16.msra.mxu0 0
  %1918 = vmatprep.subr.bf16.mxu0 0
  %1919 = vmatpush2.bf16.msra.mxu0 0
  %1920 = vmatprep.subr.bf16.mxu0 0
  %1921 = vmatpush2.bf16.msra.mxu0 0
  %1922 = vmatprep.subr.bf16.mxu0 0
  %1923 = vmatpush2.bf16.msra.mxu0 0
  %1924 = vmatprep.subr.bf16.mxu0 0
  %1925 = vmatpush2.bf16.msra.mxu0 0
  %1926 = vmatprep.subr.bf16.mxu0 0
  %1927 = vmatpush2.bf16.msra.mxu0 0
  %1928 = vmatprep.subr.bf16.mxu0 0
  %1929 = vmatpush2.bf16.msra.mxu0 0
  %1930 = vmatprep.mubr.bf16.mxu0 0
  %1931 = vmatmul.mubr.bf16.gmra.mxu0 %v1893
  %v1932 = vpop.f32.mrf.mxu0
  %v1933 = vadd.f32 0.0, %v1932
  %v1934 = vpop.f32.mrf.mxu0
  %v1935 = vpop.f32.mrf.mxu0
  %v1936 = vpop.f32.mrf.mxu0
  %1937 = vdwg.mxu0
  %v1939 = vsel %vm1084, %v1275, 0
  %v1942 = vsel %vm1296, %v1291, 0
  %1944 = vmatprep.subr.bf16.mxu0 0
  %1945 = vmatpush1.bf16.msra.mxu0 0
  %1946 = vmatprep.subr.bf16.mxu0 0
  %1947 = vmatpush1.bf16.msra.mxu0 0
  %1948 = vmatprep.subr.bf16.mxu0 0
  %1949 = vmatpush1.bf16.msra.mxu0 0
  %1950 = vmatprep.subr.bf16.mxu0 0
  %1951 = vmatpush1.bf16.msra.mxu0 0
  %1952 = vmatprep.subr.bf16.mxu0 0
  %1953 = vmatpush1.bf16.msra.mxu0 0
  %1954 = vmatprep.subr.bf16.mxu0 0
  %1955 = vmatpush1.bf16.msra.mxu0 0
  %1956 = vmatprep.subr.bf16.mxu0 0
  %1957 = vmatpush1.bf16.msra.mxu0 0
  %1958 = vmatprep.subr.bf16.mxu0 0
  %1959 = vmatpush1.bf16.msra.mxu0 %v1942
  %1960 = vmatprep.subr.bf16.mxu0 0
  %1961 = vmatpush2.bf16.msra.mxu0 0
  %1962 = vmatprep.subr.bf16.mxu0 0
  %1963 = vmatpush2.bf16.msra.mxu0 0
  %1964 = vmatprep.subr.bf16.mxu0 0
  %1965 = vmatpush2.bf16.msra.mxu0 0
  %1966 = vmatprep.subr.bf16.mxu0 0
  %1967 = vmatpush2.bf16.msra.mxu0 0
  %1968 = vmatprep.subr.bf16.mxu0 0
  %1969 = vmatpush2.bf16.msra.mxu0 0
  %1970 = vmatprep.subr.bf16.mxu0 0
  %1971 = vmatpush2.bf16.msra.mxu0 0
  %1972 = vmatprep.subr.bf16.mxu0 0
  %1973 = vmatpush2.bf16.msra.mxu0 0
  %1974 = vmatprep.subr.bf16.mxu0 0
  %1975 = vmatpush2.bf16.msra.mxu0 0
  %1976 = vmatprep.mubr.bf16.mxu0 0
  %1977 = vmatmul.mubr.bf16.gmra.mxu0 %v1939
  %v1978 = vpop.f32.mrf.mxu0
  %v1979 = vadd.f32 0.0, %v1978
  %v1980 = vpop.f32.mrf.mxu0
  %v1981 = vpop.f32.mrf.mxu0
  %v1982 = vpop.f32.mrf.mxu0
  %1983 = vdwg.mxu0
  %v1985 = vsel %vm1084, %v1276, 0
  %v1988 = vsel %vm1296, %v1292, 0
  %1990 = vmatprep.subr.bf16.mxu0 0
  %1991 = vmatpush1.bf16.msra.mxu0 0
  %1992 = vmatprep.subr.bf16.mxu0 0
  %1993 = vmatpush1.bf16.msra.mxu0 0
  %1994 = vmatprep.subr.bf16.mxu0 0
  %1995 = vmatpush1.bf16.msra.mxu0 0
  %1996 = vmatprep.subr.bf16.mxu0 0
  %1997 = vmatpush1.bf16.msra.mxu0 0
  %1998 = vmatprep.subr.bf16.mxu0 0
  %1999 = vmatpush1.bf16.msra.mxu0 0
  %2000 = vmatprep.subr.bf16.mxu0 0
  %2001 = vmatpush1.bf16.msra.mxu0 0
  %2002 = vmatprep.subr.bf16.mxu0 0
  %2003 = vmatpush1.bf16.msra.mxu0 0
  %2004 = vmatprep.subr.bf16.mxu0 0
  %2005 = vmatpush1.bf16.msra.mxu0 %v1988
  %2006 = vmatprep.subr.bf16.mxu0 0
  %2007 = vmatpush2.bf16.msra.mxu0 0
  %2008 = vmatprep.subr.bf16.mxu0 0
  %2009 = vmatpush2.bf16.msra.mxu0 0
  %2010 = vmatprep.subr.bf16.mxu0 0
  %2011 = vmatpush2.bf16.msra.mxu0 0
  %2012 = vmatprep.subr.bf16.mxu0 0
  %2013 = vmatpush2.bf16.msra.mxu0 0
  %2014 = vmatprep.subr.bf16.mxu0 0
  %2015 = vmatpush2.bf16.msra.mxu0 0
  %2016 = vmatprep.subr.bf16.mxu0 0
  %2017 = vmatpush2.bf16.msra.mxu0 0
  %2018 = vmatprep.subr.bf16.mxu0 0
  %2019 = vmatpush2.bf16.msra.mxu0 0
  %2020 = vmatprep.subr.bf16.mxu0 0
  %2021 = vmatpush2.bf16.msra.mxu0 0
  %2022 = vmatprep.mubr.bf16.mxu0 0
  %2023 = vmatmul.mubr.bf16.gmra.mxu0 %v1985
  %v2024 = vpop.f32.mrf.mxu0
  %v2025 = vadd.f32 0.0, %v2024
  %v2026 = vpop.f32.mrf.mxu0
  %v2027 = vpop.f32.mrf.mxu0
  %v2028 = vpop.f32.mrf.mxu0
  %2029 = vdwg.mxu0
  %2030 = vrot.lane.b32.xlu0 %v267, 112
  %v2031 = vpop.permute.xlu0 %2030
  %2032 = vrot.lane.b32.xlu0 %v267, 48
  %v2033 = vpop.permute.xlu0 %2032
  %v2035 = vsel %vm286, %v2031, 0
  %v2038 = vsel %vm286, %v2033, 0
  %2040 = vmatprep.subr.bf16.mxu0 0
  %2041 = vmatpush1.bf16.xpose.msra.mxu0 0
  %2042 = vmatprep.subr.bf16.mxu0 0
  %2043 = vmatpush1.bf16.xpose.msra.mxu0 0
  %2044 = vmatprep.subr.bf16.mxu0 0
  %2045 = vmatpush1.bf16.xpose.msra.mxu0 0
  %2046 = vmatprep.subr.bf16.mxu0 0
  %2047 = vmatpush1.bf16.xpose.msra.mxu0 0
  %2048 = vmatprep.subr.bf16.mxu0 0
  %2049 = vmatpush1.bf16.xpose.msra.mxu0 0
  %2050 = vmatprep.subr.bf16.mxu0 0
  %2051 = vmatpush1.bf16.xpose.msra.mxu0 0
  %2052 = vmatprep.subr.bf16.mxu0 0
  %2053 = vmatpush1.bf16.xpose.msra.mxu0 0
  %2054 = vmatprep.subr.bf16.mxu0 0
  %2055 = vmatpush1.bf16.xpose.msra.mxu0 %v2038
  %2056 = vmatprep.subr.bf16.mxu0 0
  %2057 = vmatpush2.bf16.xpose.msra.mxu0 0
  %2058 = vmatprep.subr.bf16.mxu0 0
  %2059 = vmatpush2.bf16.xpose.msra.mxu0 0
  %2060 = vmatprep.subr.bf16.mxu0 0
  %2061 = vmatpush2.bf16.xpose.msra.mxu0 0
  %2062 = vmatprep.subr.bf16.mxu0 0
  %2063 = vmatpush2.bf16.xpose.msra.mxu0 0
  %2064 = vmatprep.subr.bf16.mxu0 0
  %2065 = vmatpush2.bf16.xpose.msra.mxu0 0
  %2066 = vmatprep.subr.bf16.mxu0 0
  %2067 = vmatpush2.bf16.xpose.msra.mxu0 0
  %2068 = vmatprep.subr.bf16.mxu0 0
  %2069 = vmatpush2.bf16.xpose.msra.mxu0 0
  %2070 = vmatprep.subr.bf16.mxu0 0
  %2071 = vmatpush2.bf16.xpose.msra.mxu0 0
  %2072 = vmatprep.mubr.bf16.mxu0 0
  %2073 = vmatmul.mubr.bf16.gmra.mxu0 %v2035
  %v2074 = vpop.f32.mrf.mxu0
  %v2075 = vadd.f32 0.0, %v2074
  %v2076 = vpop.f32.mrf.mxu0
  %v2077 = vpop.f32.mrf.mxu0
  %v2078 = vpop.f32.mrf.mxu0
  %2079 = vdwg.mxu0
  %2080 = vrot.lane.b32.xlu0 %v268, 112
  %v2081 = vpop.permute.xlu0 %2080
  %2082 = vrot.lane.b32.xlu0 %v268, 48
  %v2083 = vpop.permute.xlu0 %2082
  %v2085 = vsel %vm286, %v2081, 0
  %v2088 = vsel %vm286, %v2083, 0
  %2090 = vmatprep.subr.bf16.mxu0 0
  %2091 = vmatpush1.bf16.xpose.msra.mxu0 0
  %2092 = vmatprep.subr.bf16.mxu0 0
  %2093 = vmatpush1.bf16.xpose.msra.mxu0 0
  %2094 = vmatprep.subr.bf16.mxu0 0
  %2095 = vmatpush1.bf16.xpose.msra.mxu0 0
  %2096 = vmatprep.subr.bf16.mxu0 0
  %2097 = vmatpush1.bf16.xpose.msra.mxu0 0
  %2098 = vmatprep.subr.bf16.mxu0 0
  %2099 = vmatpush1.bf16.xpose.msra.mxu0 0
  %2100 = vmatprep.subr.bf16.mxu0 0
  %2101 = vmatpush1.bf16.xpose.msra.mxu0 0
  %2102 = vmatprep.subr.bf16.mxu0 0
  %2103 = vmatpush1.bf16.xpose.msra.mxu0 0
  %2104 = vmatprep.subr.bf16.mxu0 0
  %2105 = vmatpush1.bf16.xpose.msra.mxu0 %v2088
  %2106 = vmatprep.subr.bf16.mxu0 0
  %2107 = vmatpush2.bf16.xpose.msra.mxu0 0
  %2108 = vmatprep.subr.bf16.mxu0 0
  %2109 = vmatpush2.bf16.xpose.msra.mxu0 0
  %2110 = vmatprep.subr.bf16.mxu0 0
  %2111 = vmatpush2.bf16.xpose.msra.mxu0 0
  %2112 = vmatprep.subr.bf16.mxu0 0
  %2113 = vmatpush2.bf16.xpose.msra.mxu0 0
  %2114 = vmatprep.subr.bf16.mxu0 0
  %2115 = vmatpush2.bf16.xpose.msra.mxu0 0
  %2116 = vmatprep.subr.bf16.mxu0 0
  %2117 = vmatpush2.bf16.xpose.msra.mxu0 0
  %2118 = vmatprep.subr.bf16.mxu0 0
  %2119 = vmatpush2.bf16.xpose.msra.mxu0 0
  %2120 = vmatprep.subr.bf16.mxu0 0
  %2121 = vmatpush2.bf16.xpose.msra.mxu0 0
  %2122 = vmatprep.mubr.bf16.mxu0 0
  %2123 = vmatmul.mubr.bf16.gmra.mxu0 %v2085
  %v2124 = vpop.f32.mrf.mxu0
  %v2125 = vadd.f32 0.0, %v2124
  %v2126 = vpop.f32.mrf.mxu0
  %v2127 = vpop.f32.mrf.mxu0
  %v2128 = vpop.f32.mrf.mxu0
  %2129 = vdwg.mxu0
  %2130 = vrot.lane.b32.xlu0 %v269, 112
  %v2131 = vpop.permute.xlu0 %2130
  %2132 = vrot.lane.b32.xlu0 %v269, 48
  %v2133 = vpop.permute.xlu0 %2132
  %v2135 = vsel %vm286, %v2131, 0
  %v2138 = vsel %vm286, %v2133, 0
  %2140 = vmatprep.subr.bf16.mxu0 0
  %2141 = vmatpush1.bf16.xpose.msra.mxu0 0
  %2142 = vmatprep.subr.bf16.mxu0 0
  %2143 = vmatpush1.bf16.xpose.msra.mxu0 0
  %2144 = vmatprep.subr.bf16.mxu0 0
  %2145 = vmatpush1.bf16.xpose.msra.mxu0 0
  %2146 = vmatprep.subr.bf16.mxu0 0
  %2147 = vmatpush1.bf16.xpose.msra.mxu0 0
  %2148 = vmatprep.subr.bf16.mxu0 0
  %2149 = vmatpush1.bf16.xpose.msra.mxu0 0
  %2150 = vmatprep.subr.bf16.mxu0 0
  %2151 = vmatpush1.bf16.xpose.msra.mxu0 0
  %2152 = vmatprep.subr.bf16.mxu0 0
  %2153 = vmatpush1.bf16.xpose.msra.mxu0 0
  %2154 = vmatprep.subr.bf16.mxu0 0
  %2155 = vmatpush1.bf16.xpose.msra.mxu0 %v2138
  %2156 = vmatprep.subr.bf16.mxu0 0
  %2157 = vmatpush2.bf16.xpose.msra.mxu0 0
  %2158 = vmatprep.subr.bf16.mxu0 0
  %2159 = vmatpush2.bf16.xpose.msra.mxu0 0
  %2160 = vmatprep.subr.bf16.mxu0 0
  %2161 = vmatpush2.bf16.xpose.msra.mxu0 0
  %2162 = vmatprep.subr.bf16.mxu0 0
  %2163 = vmatpush2.bf16.xpose.msra.mxu0 0
  %2164 = vmatprep.subr.bf16.mxu0 0
  %2165 = vmatpush2.bf16.xpose.msra.mxu0 0
  %2166 = vmatprep.subr.bf16.mxu0 0
  %2167 = vmatpush2.bf16.xpose.msra.mxu0 0
  %2168 = vmatprep.subr.bf16.mxu0 0
  %2169 = vmatpush2.bf16.xpose.msra.mxu0 0
  %2170 = vmatprep.subr.bf16.mxu0 0
  %2171 = vmatpush2.bf16.xpose.msra.mxu0 0
  %2172 = vmatprep.mubr.bf16.mxu0 0
  %2173 = vmatmul.mubr.bf16.gmra.mxu0 %v2135
  %v2174 = vpop.f32.mrf.mxu0
  %v2175 = vadd.f32 0.0, %v2174
  %v2176 = vpop.f32.mrf.mxu0
  %v2177 = vpop.f32.mrf.mxu0
  %v2178 = vpop.f32.mrf.mxu0
  %2179 = vdwg.mxu0
  %2180 = vrot.lane.b32.xlu0 %v270, 112
  %v2181 = vpop.permute.xlu0 %2180
  %2182 = vrot.lane.b32.xlu0 %v270, 48
  %v2183 = vpop.permute.xlu0 %2182
  %v2185 = vsel %vm286, %v2181, 0
  %v2188 = vsel %vm286, %v2183, 0
  %2190 = vmatprep.subr.bf16.mxu0 0
  %2191 = vmatpush1.bf16.xpose.msra.mxu0 0
  %2192 = vmatprep.subr.bf16.mxu0 0
  %2193 = vmatpush1.bf16.xpose.msra.mxu0 0
  %2194 = vmatprep.subr.bf16.mxu0 0
  %2195 = vmatpush1.bf16.xpose.msra.mxu0 0
  %2196 = vmatprep.subr.bf16.mxu0 0
  %2197 = vmatpush1.bf16.xpose.msra.mxu0 0
  %2198 = vmatprep.subr.bf16.mxu0 0
  %2199 = vmatpush1.bf16.xpose.msra.mxu0 0
  %2200 = vmatprep.subr.bf16.mxu0 0
  %2201 = vmatpush1.bf16.xpose.msra.mxu0 0
  %2202 = vmatprep.subr.bf16.mxu0 0
  %2203 = vmatpush1.bf16.xpose.msra.mxu0 0
  %2204 = vmatprep.subr.bf16.mxu0 0
  %2205 = vmatpush1.bf16.xpose.msra.mxu0 %v2188
  %2206 = vmatprep.subr.bf16.mxu0 0
  %2207 = vmatpush2.bf16.xpose.msra.mxu0 0
  %2208 = vmatprep.subr.bf16.mxu0 0
  %2209 = vmatpush2.bf16.xpose.msra.mxu0 0
  %2210 = vmatprep.subr.bf16.mxu0 0
  %2211 = vmatpush2.bf16.xpose.msra.mxu0 0
  %2212 = vmatprep.subr.bf16.mxu0 0
  %2213 = vmatpush2.bf16.xpose.msra.mxu0 0
  %2214 = vmatprep.subr.bf16.mxu0 0
  %2215 = vmatpush2.bf16.xpose.msra.mxu0 0
  %2216 = vmatprep.subr.bf16.mxu0 0
  %2217 = vmatpush2.bf16.xpose.msra.mxu0 0
  %2218 = vmatprep.subr.bf16.mxu0 0
  %2219 = vmatpush2.bf16.xpose.msra.mxu0 0
  %2220 = vmatprep.subr.bf16.mxu0 0
  %2221 = vmatpush2.bf16.xpose.msra.mxu0 0
  %2222 = vmatprep.mubr.bf16.mxu0 0
  %2223 = vmatmul.mubr.bf16.gmra.mxu0 %v2185
  %v2224 = vpop.f32.mrf.mxu0
  %v2225 = vadd.f32 0.0, %v2224
  %v2226 = vpop.f32.mrf.mxu0
  %v2227 = vpop.f32.mrf.mxu0
  %v2228 = vpop.f32.mrf.mxu0
  %2229 = vdwg.mxu0
  %2230 = vrot.lane.b32.xlu0 %v271, 112
  %v2231 = vpop.permute.xlu0 %2230
  %2232 = vrot.lane.b32.xlu0 %v271, 48
  %v2233 = vpop.permute.xlu0 %2232
  %v2235 = vsel %vm286, %v2231, 0
  %v2238 = vsel %vm286, %v2233, 0
  %2240 = vmatprep.subr.bf16.mxu0 0
  %2241 = vmatpush1.bf16.xpose.msra.mxu0 0
  %2242 = vmatprep.subr.bf16.mxu0 0
  %2243 = vmatpush1.bf16.xpose.msra.mxu0 0
  %2244 = vmatprep.subr.bf16.mxu0 0
  %2245 = vmatpush1.bf16.xpose.msra.mxu0 0
  %2246 = vmatprep.subr.bf16.mxu0 0
  %2247 = vmatpush1.bf16.xpose.msra.mxu0 0
  %2248 = vmatprep.subr.bf16.mxu0 0
  %2249 = vmatpush1.bf16.xpose.msra.mxu0 0
  %2250 = vmatprep.subr.bf16.mxu0 0
  %2251 = vmatpush1.bf16.xpose.msra.mxu0 0
  %2252 = vmatprep.subr.bf16.mxu0 0
  %2253 = vmatpush1.bf16.xpose.msra.mxu0 0
  %2254 = vmatprep.subr.bf16.mxu0 0
  %2255 = vmatpush1.bf16.xpose.msra.mxu0 %v2238
  %2256 = vmatprep.subr.bf16.mxu0 0
  %2257 = vmatpush2.bf16.xpose.msra.mxu0 0
  %2258 = vmatprep.subr.bf16.mxu0 0
  %2259 = vmatpush2.bf16.xpose.msra.mxu0 0
  %2260 = vmatprep.subr.bf16.mxu0 0
  %2261 = vmatpush2.bf16.xpose.msra.mxu0 0
  %2262 = vmatprep.subr.bf16.mxu0 0
  %2263 = vmatpush2.bf16.xpose.msra.mxu0 0
  %2264 = vmatprep.subr.bf16.mxu0 0
  %2265 = vmatpush2.bf16.xpose.msra.mxu0 0
  %2266 = vmatprep.subr.bf16.mxu0 0
  %2267 = vmatpush2.bf16.xpose.msra.mxu0 0
  %2268 = vmatprep.subr.bf16.mxu0 0
  %2269 = vmatpush2.bf16.xpose.msra.mxu0 0
  %2270 = vmatprep.subr.bf16.mxu0 0
  %2271 = vmatpush2.bf16.xpose.msra.mxu0 0
  %2272 = vmatprep.mubr.bf16.mxu0 0
  %2273 = vmatmul.mubr.bf16.gmra.mxu0 %v2235
  %v2274 = vpop.f32.mrf.mxu0
  %v2275 = vadd.f32 0.0, %v2274
  %v2276 = vpop.f32.mrf.mxu0
  %v2277 = vpop.f32.mrf.mxu0
  %v2278 = vpop.f32.mrf.mxu0
  %2279 = vdwg.mxu0
  %2280 = vrot.lane.b32.xlu0 %v272, 112
  %v2281 = vpop.permute.xlu0 %2280
  %2282 = vrot.lane.b32.xlu0 %v272, 48
  %v2283 = vpop.permute.xlu0 %2282
  %v2285 = vsel %vm286, %v2281, 0
  %v2288 = vsel %vm286, %v2283, 0
  %2290 = vmatprep.subr.bf16.mxu0 0
  %2291 = vmatpush1.bf16.xpose.msra.mxu0 0
  %2292 = vmatprep.subr.bf16.mxu0 0
  %2293 = vmatpush1.bf16.xpose.msra.mxu0 0
  %2294 = vmatprep.subr.bf16.mxu0 0
  %2295 = vmatpush1.bf16.xpose.msra.mxu0 0
  %2296 = vmatprep.subr.bf16.mxu0 0
  %2297 = vmatpush1.bf16.xpose.msra.mxu0 0
  %2298 = vmatprep.subr.bf16.mxu0 0
  %2299 = vmatpush1.bf16.xpose.msra.mxu0 0
  %2300 = vmatprep.subr.bf16.mxu0 0
  %2301 = vmatpush1.bf16.xpose.msra.mxu0 0
  %2302 = vmatprep.subr.bf16.mxu0 0
  %2303 = vmatpush1.bf16.xpose.msra.mxu0 0
  %2304 = vmatprep.subr.bf16.mxu0 0
  %2305 = vmatpush1.bf16.xpose.msra.mxu0 %v2288
  %2306 = vmatprep.subr.bf16.mxu0 0
  %2307 = vmatpush2.bf16.xpose.msra.mxu0 0
  %2308 = vmatprep.subr.bf16.mxu0 0
  %2309 = vmatpush2.bf16.xpose.msra.mxu0 0
  %2310 = vmatprep.subr.bf16.mxu0 0
  %2311 = vmatpush2.bf16.xpose.msra.mxu0 0
  %2312 = vmatprep.subr.bf16.mxu0 0
  %2313 = vmatpush2.bf16.xpose.msra.mxu0 0
  %2314 = vmatprep.subr.bf16.mxu0 0
  %2315 = vmatpush2.bf16.xpose.msra.mxu0 0
  %2316 = vmatprep.subr.bf16.mxu0 0
  %2317 = vmatpush2.bf16.xpose.msra.mxu0 0
  %2318 = vmatprep.subr.bf16.mxu0 0
  %2319 = vmatpush2.bf16.xpose.msra.mxu0 0
  %2320 = vmatprep.subr.bf16.mxu0 0
  %2321 = vmatpush2.bf16.xpose.msra.mxu0 0
  %2322 = vmatprep.mubr.bf16.mxu0 0
  %2323 = vmatmul.mubr.bf16.gmra.mxu0 %v2285
  %v2324 = vpop.f32.mrf.mxu0
  %v2325 = vadd.f32 0.0, %v2324
  %v2326 = vpop.f32.mrf.mxu0
  %v2327 = vpop.f32.mrf.mxu0
  %v2328 = vpop.f32.mrf.mxu0
  %2329 = vdwg.mxu0
  %2330 = vrot.lane.b32.xlu0 %v273, 112
  %v2331 = vpop.permute.xlu0 %2330
  %2332 = vrot.lane.b32.xlu0 %v273, 48
  %v2333 = vpop.permute.xlu0 %2332
  %v2335 = vsel %vm286, %v2331, 0
  %v2338 = vsel %vm286, %v2333, 0
  %2340 = vmatprep.subr.bf16.mxu0 0
  %2341 = vmatpush1.bf16.xpose.msra.mxu0 0
  %2342 = vmatprep.subr.bf16.mxu0 0
  %2343 = vmatpush1.bf16.xpose.msra.mxu0 0
  %2344 = vmatprep.subr.bf16.mxu0 0
  %2345 = vmatpush1.bf16.xpose.msra.mxu0 0
  %2346 = vmatprep.subr.bf16.mxu0 0
  %2347 = vmatpush1.bf16.xpose.msra.mxu0 0
  %2348 = vmatprep.subr.bf16.mxu0 0
  %2349 = vmatpush1.bf16.xpose.msra.mxu0 0
  %2350 = vmatprep.subr.bf16.mxu0 0
  %2351 = vmatpush1.bf16.xpose.msra.mxu0 0
  %2352 = vmatprep.subr.bf16.mxu0 0
  %2353 = vmatpush1.bf16.xpose.msra.mxu0 0
  %2354 = vmatprep.subr.bf16.mxu0 0
  %2355 = vmatpush1.bf16.xpose.msra.mxu0 %v2338
  %2356 = vmatprep.subr.bf16.mxu0 0
  %2357 = vmatpush2.bf16.xpose.msra.mxu0 0
  %2358 = vmatprep.subr.bf16.mxu0 0
  %2359 = vmatpush2.bf16.xpose.msra.mxu0 0
  %2360 = vmatprep.subr.bf16.mxu0 0
  %2361 = vmatpush2.bf16.xpose.msra.mxu0 0
  %2362 = vmatprep.subr.bf16.mxu0 0
  %2363 = vmatpush2.bf16.xpose.msra.mxu0 0
  %2364 = vmatprep.subr.bf16.mxu0 0
  %2365 = vmatpush2.bf16.xpose.msra.mxu0 0
  %2366 = vmatprep.subr.bf16.mxu0 0
  %2367 = vmatpush2.bf16.xpose.msra.mxu0 0
  %2368 = vmatprep.subr.bf16.mxu0 0
  %2369 = vmatpush2.bf16.xpose.msra.mxu0 0
  %2370 = vmatprep.subr.bf16.mxu0 0
  %2371 = vmatpush2.bf16.xpose.msra.mxu0 0
  %2372 = vmatprep.mubr.bf16.mxu0 0
  %2373 = vmatmul.mubr.bf16.gmra.mxu0 %v2335
  %v2374 = vpop.f32.mrf.mxu0
  %v2375 = vadd.f32 0.0, %v2374
  %v2376 = vpop.f32.mrf.mxu0
  %v2377 = vpop.f32.mrf.mxu0
  %v2378 = vpop.f32.mrf.mxu0
  %2379 = vdwg.mxu0
  %2380 = vrot.lane.b32.xlu0 %v274, 112
  %v2381 = vpop.permute.xlu0 %2380
  %2382 = vrot.lane.b32.xlu0 %v274, 48
  %v2383 = vpop.permute.xlu0 %2382
  %v2385 = vsel %vm286, %v2381, 0
  %v2388 = vsel %vm286, %v2383, 0
  %2390 = vmatprep.subr.bf16.mxu0 0
  %2391 = vmatpush1.bf16.xpose.msra.mxu0 0
  %2392 = vmatprep.subr.bf16.mxu0 0
  %2393 = vmatpush1.bf16.xpose.msra.mxu0 0
  %2394 = vmatprep.subr.bf16.mxu0 0
  %2395 = vmatpush1.bf16.xpose.msra.mxu0 0
  %2396 = vmatprep.subr.bf16.mxu0 0
  %2397 = vmatpush1.bf16.xpose.msra.mxu0 0
  %2398 = vmatprep.subr.bf16.mxu0 0
  %2399 = vmatpush1.bf16.xpose.msra.mxu0 0
  %2400 = vmatprep.subr.bf16.mxu0 0
  %2401 = vmatpush1.bf16.xpose.msra.mxu0 0
  %2402 = vmatprep.subr.bf16.mxu0 0
  %2403 = vmatpush1.bf16.xpose.msra.mxu0 0
  %2404 = vmatprep.subr.bf16.mxu0 0
  %2405 = vmatpush1.bf16.xpose.msra.mxu0 %v2388
  %2406 = vmatprep.subr.bf16.mxu0 0
  %2407 = vmatpush2.bf16.xpose.msra.mxu0 0
  %2408 = vmatprep.subr.bf16.mxu0 0
  %2409 = vmatpush2.bf16.xpose.msra.mxu0 0
  %2410 = vmatprep.subr.bf16.mxu0 0
  %2411 = vmatpush2.bf16.xpose.msra.mxu0 0
  %2412 = vmatprep.subr.bf16.mxu0 0
  %2413 = vmatpush2.bf16.xpose.msra.mxu0 0
  %2414 = vmatprep.subr.bf16.mxu0 0
  %2415 = vmatpush2.bf16.xpose.msra.mxu0 0
  %2416 = vmatprep.subr.bf16.mxu0 0
  %2417 = vmatpush2.bf16.xpose.msra.mxu0 0
  %2418 = vmatprep.subr.bf16.mxu0 0
  %2419 = vmatpush2.bf16.xpose.msra.mxu0 0
  %2420 = vmatprep.subr.bf16.mxu0 0
  %2421 = vmatpush2.bf16.xpose.msra.mxu0 0
  %2422 = vmatprep.mubr.bf16.mxu0 0
  %2423 = vmatmul.mubr.bf16.gmra.mxu0 %v2385
  %v2424 = vpop.f32.mrf.mxu0
  %v2425 = vadd.f32 0.0, %v2424
  %v2426 = vpop.f32.mrf.mxu0
  %v2427 = vpop.f32.mrf.mxu0
  %v2428 = vpop.f32.mrf.mxu0
  %2429 = vdwg.mxu0
  %2430 = vrot.lane.b32.xlu0 %v275, 112
  %v2431 = vpop.permute.xlu0 %2430
  %2432 = vrot.lane.b32.xlu0 %v275, 48
  %v2433 = vpop.permute.xlu0 %2432
  %v2435 = vsel %vm286, %v2431, 0
  %v2438 = vsel %vm286, %v2433, 0
  %2440 = vmatprep.subr.bf16.mxu0 0
  %2441 = vmatpush1.bf16.xpose.msra.mxu0 0
  %2442 = vmatprep.subr.bf16.mxu0 0
  %2443 = vmatpush1.bf16.xpose.msra.mxu0 0
  %2444 = vmatprep.subr.bf16.mxu0 0
  %2445 = vmatpush1.bf16.xpose.msra.mxu0 0
  %2446 = vmatprep.subr.bf16.mxu0 0
  %2447 = vmatpush1.bf16.xpose.msra.mxu0 0
  %2448 = vmatprep.subr.bf16.mxu0 0
  %2449 = vmatpush1.bf16.xpose.msra.mxu0 0
  %2450 = vmatprep.subr.bf16.mxu0 0
  %2451 = vmatpush1.bf16.xpose.msra.mxu0 0
  %2452 = vmatprep.subr.bf16.mxu0 0
  %2453 = vmatpush1.bf16.xpose.msra.mxu0 0
  %2454 = vmatprep.subr.bf16.mxu0 0
  %2455 = vmatpush1.bf16.xpose.msra.mxu0 %v2438
  %2456 = vmatprep.subr.bf16.mxu0 0
  %2457 = vmatpush2.bf16.xpose.msra.mxu0 0
  %2458 = vmatprep.subr.bf16.mxu0 0
  %2459 = vmatpush2.bf16.xpose.msra.mxu0 0
  %2460 = vmatprep.subr.bf16.mxu0 0
  %2461 = vmatpush2.bf16.xpose.msra.mxu0 0
  %2462 = vmatprep.subr.bf16.mxu0 0
  %2463 = vmatpush2.bf16.xpose.msra.mxu0 0
  %2464 = vmatprep.subr.bf16.mxu0 0
  %2465 = vmatpush2.bf16.xpose.msra.mxu0 0
  %2466 = vmatprep.subr.bf16.mxu0 0
  %2467 = vmatpush2.bf16.xpose.msra.mxu0 0
  %2468 = vmatprep.subr.bf16.mxu0 0
  %2469 = vmatpush2.bf16.xpose.msra.mxu0 0
  %2470 = vmatprep.subr.bf16.mxu0 0
  %2471 = vmatpush2.bf16.xpose.msra.mxu0 0
  %2472 = vmatprep.mubr.bf16.mxu0 0
  %2473 = vmatmul.mubr.bf16.gmra.mxu0 %v2435
  %v2474 = vpop.f32.mrf.mxu0
  %v2475 = vadd.f32 0.0, %v2474
  %v2476 = vpop.f32.mrf.mxu0
  %v2477 = vpop.f32.mrf.mxu0
  %v2478 = vpop.f32.mrf.mxu0
  %2479 = vdwg.mxu0
  %2480 = vrot.lane.b32.xlu0 %v276, 112
  %v2481 = vpop.permute.xlu0 %2480
  %2482 = vrot.lane.b32.xlu0 %v276, 48
  %v2483 = vpop.permute.xlu0 %2482
  %v2485 = vsel %vm286, %v2481, 0
  %v2488 = vsel %vm286, %v2483, 0
  %2490 = vmatprep.subr.bf16.mxu0 0
  %2491 = vmatpush1.bf16.xpose.msra.mxu0 0
  %2492 = vmatprep.subr.bf16.mxu0 0
  %2493 = vmatpush1.bf16.xpose.msra.mxu0 0
  %2494 = vmatprep.subr.bf16.mxu0 0
  %2495 = vmatpush1.bf16.xpose.msra.mxu0 0
  %2496 = vmatprep.subr.bf16.mxu0 0
  %2497 = vmatpush1.bf16.xpose.msra.mxu0 0
  %2498 = vmatprep.subr.bf16.mxu0 0
  %2499 = vmatpush1.bf16.xpose.msra.mxu0 0
  %2500 = vmatprep.subr.bf16.mxu0 0
  %2501 = vmatpush1.bf16.xpose.msra.mxu0 0
  %2502 = vmatprep.subr.bf16.mxu0 0
  %2503 = vmatpush1.bf16.xpose.msra.mxu0 0
  %2504 = vmatprep.subr.bf16.mxu0 0
  %2505 = vmatpush1.bf16.xpose.msra.mxu0 %v2488
  %2506 = vmatprep.subr.bf16.mxu0 0
  %2507 = vmatpush2.bf16.xpose.msra.mxu0 0
  %2508 = vmatprep.subr.bf16.mxu0 0
  %2509 = vmatpush2.bf16.xpose.msra.mxu0 0
  %2510 = vmatprep.subr.bf16.mxu0 0
  %2511 = vmatpush2.bf16.xpose.msra.mxu0 0
  %2512 = vmatprep.subr.bf16.mxu0 0
  %2513 = vmatpush2.bf16.xpose.msra.mxu0 0
  %2514 = vmatprep.subr.bf16.mxu0 0
  %2515 = vmatpush2.bf16.xpose.msra.mxu0 0
  %2516 = vmatprep.subr.bf16.mxu0 0
  %2517 = vmatpush2.bf16.xpose.msra.mxu0 0
  %2518 = vmatprep.subr.bf16.mxu0 0
  %2519 = vmatpush2.bf16.xpose.msra.mxu0 0
  %2520 = vmatprep.subr.bf16.mxu0 0
  %2521 = vmatpush2.bf16.xpose.msra.mxu0 0
  %2522 = vmatprep.mubr.bf16.mxu0 0
  %2523 = vmatmul.mubr.bf16.gmra.mxu0 %v2485
  %v2524 = vpop.f32.mrf.mxu0
  %v2525 = vadd.f32 0.0, %v2524
  %v2526 = vpop.f32.mrf.mxu0
  %v2527 = vpop.f32.mrf.mxu0
  %v2528 = vpop.f32.mrf.mxu0
  %2529 = vdwg.mxu0
  %2530 = vrot.lane.b32.xlu0 %v277, 112
  %v2531 = vpop.permute.xlu0 %2530
  %2532 = vrot.lane.b32.xlu0 %v277, 48
  %v2533 = vpop.permute.xlu0 %2532
  %v2535 = vsel %vm286, %v2531, 0
  %v2538 = vsel %vm286, %v2533, 0
  %2540 = vmatprep.subr.bf16.mxu0 0
  %2541 = vmatpush1.bf16.xpose.msra.mxu0 0
  %2542 = vmatprep.subr.bf16.mxu0 0
  %2543 = vmatpush1.bf16.xpose.msra.mxu0 0
  %2544 = vmatprep.subr.bf16.mxu0 0
  %2545 = vmatpush1.bf16.xpose.msra.mxu0 0
  %2546 = vmatprep.subr.bf16.mxu0 0
  %2547 = vmatpush1.bf16.xpose.msra.mxu0 0
  %2548 = vmatprep.subr.bf16.mxu0 0
  %2549 = vmatpush1.bf16.xpose.msra.mxu0 0
  %2550 = vmatprep.subr.bf16.mxu0 0
  %2551 = vmatpush1.bf16.xpose.msra.mxu0 0
  %2552 = vmatprep.subr.bf16.mxu0 0
  %2553 = vmatpush1.bf16.xpose.msra.mxu0 0
  %2554 = vmatprep.subr.bf16.mxu0 0
  %2555 = vmatpush1.bf16.xpose.msra.mxu0 %v2538
  %2556 = vmatprep.subr.bf16.mxu0 0
  %2557 = vmatpush2.bf16.xpose.msra.mxu0 0
  %2558 = vmatprep.subr.bf16.mxu0 0
  %2559 = vmatpush2.bf16.xpose.msra.mxu0 0
  %2560 = vmatprep.subr.bf16.mxu0 0
  %2561 = vmatpush2.bf16.xpose.msra.mxu0 0
  %2562 = vmatprep.subr.bf16.mxu0 0
  %2563 = vmatpush2.bf16.xpose.msra.mxu0 0
  %2564 = vmatprep.subr.bf16.mxu0 0
  %2565 = vmatpush2.bf16.xpose.msra.mxu0 0
  %2566 = vmatprep.subr.bf16.mxu0 0
  %2567 = vmatpush2.bf16.xpose.msra.mxu0 0
  %2568 = vmatprep.subr.bf16.mxu0 0
  %2569 = vmatpush2.bf16.xpose.msra.mxu0 0
  %2570 = vmatprep.subr.bf16.mxu0 0
  %2571 = vmatpush2.bf16.xpose.msra.mxu0 0
  %2572 = vmatprep.mubr.bf16.mxu0 0
  %2573 = vmatmul.mubr.bf16.gmra.mxu0 %v2535
  %v2574 = vpop.f32.mrf.mxu0
  %v2575 = vadd.f32 0.0, %v2574
  %v2576 = vpop.f32.mrf.mxu0
  %v2577 = vpop.f32.mrf.mxu0
  %v2578 = vpop.f32.mrf.mxu0
  %2579 = vdwg.mxu0
  %2580 = vrot.lane.b32.xlu0 %v278, 112
  %v2581 = vpop.permute.xlu0 %2580
  %2582 = vrot.lane.b32.xlu0 %v278, 48
  %v2583 = vpop.permute.xlu0 %2582
  %v2585 = vsel %vm286, %v2581, 0
  %v2588 = vsel %vm286, %v2583, 0
  %2590 = vmatprep.subr.bf16.mxu0 0
  %2591 = vmatpush1.bf16.xpose.msra.mxu0 0
  %2592 = vmatprep.subr.bf16.mxu0 0
  %2593 = vmatpush1.bf16.xpose.msra.mxu0 0
  %2594 = vmatprep.subr.bf16.mxu0 0
  %2595 = vmatpush1.bf16.xpose.msra.mxu0 0
  %2596 = vmatprep.subr.bf16.mxu0 0
  %2597 = vmatpush1.bf16.xpose.msra.mxu0 0
  %2598 = vmatprep.subr.bf16.mxu0 0
  %2599 = vmatpush1.bf16.xpose.msra.mxu0 0
  %2600 = vmatprep.subr.bf16.mxu0 0
  %2601 = vmatpush1.bf16.xpose.msra.mxu0 0
  %2602 = vmatprep.subr.bf16.mxu0 0
  %2603 = vmatpush1.bf16.xpose.msra.mxu0 0
  %2604 = vmatprep.subr.bf16.mxu0 0
  %2605 = vmatpush1.bf16.xpose.msra.mxu0 %v2588
  %2606 = vmatprep.subr.bf16.mxu0 0
  %2607 = vmatpush2.bf16.xpose.msra.mxu0 0
  %2608 = vmatprep.subr.bf16.mxu0 0
  %2609 = vmatpush2.bf16.xpose.msra.mxu0 0
  %2610 = vmatprep.subr.bf16.mxu0 0
  %2611 = vmatpush2.bf16.xpose.msra.mxu0 0
  %2612 = vmatprep.subr.bf16.mxu0 0
  %2613 = vmatpush2.bf16.xpose.msra.mxu0 0
  %2614 = vmatprep.subr.bf16.mxu0 0
  %2615 = vmatpush2.bf16.xpose.msra.mxu0 0
  %2616 = vmatprep.subr.bf16.mxu0 0
  %2617 = vmatpush2.bf16.xpose.msra.mxu0 0
  %2618 = vmatprep.subr.bf16.mxu0 0
  %2619 = vmatpush2.bf16.xpose.msra.mxu0 0
  %2620 = vmatprep.subr.bf16.mxu0 0
  %2621 = vmatpush2.bf16.xpose.msra.mxu0 0
  %2622 = vmatprep.mubr.bf16.mxu0 0
  %2623 = vmatmul.mubr.bf16.gmra.mxu0 %v2585
  %v2624 = vpop.f32.mrf.mxu0
  %v2625 = vadd.f32 0.0, %v2624
  %v2626 = vpop.f32.mrf.mxu0
  %v2627 = vpop.f32.mrf.mxu0
  %v2628 = vpop.f32.mrf.mxu0
  %2629 = vdwg.mxu0
  %2630 = vrot.lane.b32.xlu0 %v279, 112
  %v2631 = vpop.permute.xlu0 %2630
  %2632 = vrot.lane.b32.xlu0 %v279, 48
  %v2633 = vpop.permute.xlu0 %2632
  %v2635 = vsel %vm286, %v2631, 0
  %v2638 = vsel %vm286, %v2633, 0
  %2640 = vmatprep.subr.bf16.mxu0 0
  %2641 = vmatpush1.bf16.xpose.msra.mxu0 0
  %2642 = vmatprep.subr.bf16.mxu0 0
  %2643 = vmatpush1.bf16.xpose.msra.mxu0 0
  %2644 = vmatprep.subr.bf16.mxu0 0
  %2645 = vmatpush1.bf16.xpose.msra.mxu0 0
  %2646 = vmatprep.subr.bf16.mxu0 0
  %2647 = vmatpush1.bf16.xpose.msra.mxu0 0
  %2648 = vmatprep.subr.bf16.mxu0 0
  %2649 = vmatpush1.bf16.xpose.msra.mxu0 0
  %2650 = vmatprep.subr.bf16.mxu0 0
  %2651 = vmatpush1.bf16.xpose.msra.mxu0 0
  %2652 = vmatprep.subr.bf16.mxu0 0
  %2653 = vmatpush1.bf16.xpose.msra.mxu0 0
  %2654 = vmatprep.subr.bf16.mxu0 0
  %2655 = vmatpush1.bf16.xpose.msra.mxu0 %v2638
  %2656 = vmatprep.subr.bf16.mxu0 0
  %2657 = vmatpush2.bf16.xpose.msra.mxu0 0
  %2658 = vmatprep.subr.bf16.mxu0 0
  %2659 = vmatpush2.bf16.xpose.msra.mxu0 0
  %2660 = vmatprep.subr.bf16.mxu0 0
  %2661 = vmatpush2.bf16.xpose.msra.mxu0 0
  %2662 = vmatprep.subr.bf16.mxu0 0
  %2663 = vmatpush2.bf16.xpose.msra.mxu0 0
  %2664 = vmatprep.subr.bf16.mxu0 0
  %2665 = vmatpush2.bf16.xpose.msra.mxu0 0
  %2666 = vmatprep.subr.bf16.mxu0 0
  %2667 = vmatpush2.bf16.xpose.msra.mxu0 0
  %2668 = vmatprep.subr.bf16.mxu0 0
  %2669 = vmatpush2.bf16.xpose.msra.mxu0 0
  %2670 = vmatprep.subr.bf16.mxu0 0
  %2671 = vmatpush2.bf16.xpose.msra.mxu0 0
  %2672 = vmatprep.mubr.bf16.mxu0 0
  %2673 = vmatmul.mubr.bf16.gmra.mxu0 %v2635
  %v2674 = vpop.f32.mrf.mxu0
  %v2675 = vadd.f32 0.0, %v2674
  %v2676 = vpop.f32.mrf.mxu0
  %v2677 = vpop.f32.mrf.mxu0
  %v2678 = vpop.f32.mrf.mxu0
  %2679 = vdwg.mxu0
  %2680 = vrot.lane.b32.xlu0 %v280, 112
  %v2681 = vpop.permute.xlu0 %2680
  %2682 = vrot.lane.b32.xlu0 %v280, 48
  %v2683 = vpop.permute.xlu0 %2682
  %v2685 = vsel %vm286, %v2681, 0
  %v2688 = vsel %vm286, %v2683, 0
  %2690 = vmatprep.subr.bf16.mxu0 0
  %2691 = vmatpush1.bf16.xpose.msra.mxu0 0
  %2692 = vmatprep.subr.bf16.mxu0 0
  %2693 = vmatpush1.bf16.xpose.msra.mxu0 0
  %2694 = vmatprep.subr.bf16.mxu0 0
  %2695 = vmatpush1.bf16.xpose.msra.mxu0 0
  %2696 = vmatprep.subr.bf16.mxu0 0
  %2697 = vmatpush1.bf16.xpose.msra.mxu0 0
  %2698 = vmatprep.subr.bf16.mxu0 0
  %2699 = vmatpush1.bf16.xpose.msra.mxu0 0
  %2700 = vmatprep.subr.bf16.mxu0 0
  %2701 = vmatpush1.bf16.xpose.msra.mxu0 0
  %2702 = vmatprep.subr.bf16.mxu0 0
  %2703 = vmatpush1.bf16.xpose.msra.mxu0 0
  %2704 = vmatprep.subr.bf16.mxu0 0
  %2705 = vmatpush1.bf16.xpose.msra.mxu0 %v2688
  %2706 = vmatprep.subr.bf16.mxu0 0
  %2707 = vmatpush2.bf16.xpose.msra.mxu0 0
  %2708 = vmatprep.subr.bf16.mxu0 0
  %2709 = vmatpush2.bf16.xpose.msra.mxu0 0
  %2710 = vmatprep.subr.bf16.mxu0 0
  %2711 = vmatpush2.bf16.xpose.msra.mxu0 0
  %2712 = vmatprep.subr.bf16.mxu0 0
  %2713 = vmatpush2.bf16.xpose.msra.mxu0 0
  %2714 = vmatprep.subr.bf16.mxu0 0
  %2715 = vmatpush2.bf16.xpose.msra.mxu0 0
  %2716 = vmatprep.subr.bf16.mxu0 0
  %2717 = vmatpush2.bf16.xpose.msra.mxu0 0
  %2718 = vmatprep.subr.bf16.mxu0 0
  %2719 = vmatpush2.bf16.xpose.msra.mxu0 0
  %2720 = vmatprep.subr.bf16.mxu0 0
  %2721 = vmatpush2.bf16.xpose.msra.mxu0 0
  %2722 = vmatprep.mubr.bf16.mxu0 0
  %2723 = vmatmul.mubr.bf16.gmra.mxu0 %v2685
  %v2724 = vpop.f32.mrf.mxu0
  %v2725 = vadd.f32 0.0, %v2724
  %v2726 = vpop.f32.mrf.mxu0
  %v2727 = vpop.f32.mrf.mxu0
  %v2728 = vpop.f32.mrf.mxu0
  %2729 = vdwg.mxu0
  %2730 = vrot.lane.b32.xlu0 %v281, 112
  %v2731 = vpop.permute.xlu0 %2730
  %2732 = vrot.lane.b32.xlu0 %v281, 48
  %v2733 = vpop.permute.xlu0 %2732
  %v2735 = vsel %vm286, %v2731, 0
  %v2738 = vsel %vm286, %v2733, 0
  %2740 = vmatprep.subr.bf16.mxu0 0
  %2741 = vmatpush1.bf16.xpose.msra.mxu0 0
  %2742 = vmatprep.subr.bf16.mxu0 0
  %2743 = vmatpush1.bf16.xpose.msra.mxu0 0
  %2744 = vmatprep.subr.bf16.mxu0 0
  %2745 = vmatpush1.bf16.xpose.msra.mxu0 0
  %2746 = vmatprep.subr.bf16.mxu0 0
  %2747 = vmatpush1.bf16.xpose.msra.mxu0 0
  %2748 = vmatprep.subr.bf16.mxu0 0
  %2749 = vmatpush1.bf16.xpose.msra.mxu0 0
  %2750 = vmatprep.subr.bf16.mxu0 0
  %2751 = vmatpush1.bf16.xpose.msra.mxu0 0
  %2752 = vmatprep.subr.bf16.mxu0 0
  %2753 = vmatpush1.bf16.xpose.msra.mxu0 0
  %2754 = vmatprep.subr.bf16.mxu0 0
  %2755 = vmatpush1.bf16.xpose.msra.mxu0 %v2738
  %2756 = vmatprep.subr.bf16.mxu0 0
  %2757 = vmatpush2.bf16.xpose.msra.mxu0 0
  %2758 = vmatprep.subr.bf16.mxu0 0
  %2759 = vmatpush2.bf16.xpose.msra.mxu0 0
  %2760 = vmatprep.subr.bf16.mxu0 0
  %2761 = vmatpush2.bf16.xpose.msra.mxu0 0
  %2762 = vmatprep.subr.bf16.mxu0 0
  %2763 = vmatpush2.bf16.xpose.msra.mxu0 0
  %2764 = vmatprep.subr.bf16.mxu0 0
  %2765 = vmatpush2.bf16.xpose.msra.mxu0 0
  %2766 = vmatprep.subr.bf16.mxu0 0
  %2767 = vmatpush2.bf16.xpose.msra.mxu0 0
  %2768 = vmatprep.subr.bf16.mxu0 0
  %2769 = vmatpush2.bf16.xpose.msra.mxu0 0
  %2770 = vmatprep.subr.bf16.mxu0 0
  %2771 = vmatpush2.bf16.xpose.msra.mxu0 0
  %2772 = vmatprep.mubr.bf16.mxu0 0
  %2773 = vmatmul.mubr.bf16.gmra.mxu0 %v2735
  %v2774 = vpop.f32.mrf.mxu0
  %v2775 = vadd.f32 0.0, %v2774
  %v2776 = vpop.f32.mrf.mxu0
  %v2777 = vpop.f32.mrf.mxu0
  %v2778 = vpop.f32.mrf.mxu0
  %2779 = vdwg.mxu0
  %2780 = vrot.lane.b32.xlu0 %v282, 112
  %v2781 = vpop.permute.xlu0 %2780
  %2782 = vrot.lane.b32.xlu0 %v282, 48
  %v2783 = vpop.permute.xlu0 %2782
  %v2785 = vsel %vm286, %v2781, 0
  %v2788 = vsel %vm286, %v2783, 0
  %2790 = vmatprep.subr.bf16.mxu0 0
  %2791 = vmatpush1.bf16.xpose.msra.mxu0 0
  %2792 = vmatprep.subr.bf16.mxu0 0
  %2793 = vmatpush1.bf16.xpose.msra.mxu0 0
  %2794 = vmatprep.subr.bf16.mxu0 0
  %2795 = vmatpush1.bf16.xpose.msra.mxu0 0
  %2796 = vmatprep.subr.bf16.mxu0 0
  %2797 = vmatpush1.bf16.xpose.msra.mxu0 0
  %2798 = vmatprep.subr.bf16.mxu0 0
  %2799 = vmatpush1.bf16.xpose.msra.mxu0 0
  %2800 = vmatprep.subr.bf16.mxu0 0
  %2801 = vmatpush1.bf16.xpose.msra.mxu0 0
  %2802 = vmatprep.subr.bf16.mxu0 0
  %2803 = vmatpush1.bf16.xpose.msra.mxu0 0
  %2804 = vmatprep.subr.bf16.mxu0 0
  %2805 = vmatpush1.bf16.xpose.msra.mxu0 %v2788
  %2806 = vmatprep.subr.bf16.mxu0 0
  %2807 = vmatpush2.bf16.xpose.msra.mxu0 0
  %2808 = vmatprep.subr.bf16.mxu0 0
  %2809 = vmatpush2.bf16.xpose.msra.mxu0 0
  %2810 = vmatprep.subr.bf16.mxu0 0
  %2811 = vmatpush2.bf16.xpose.msra.mxu0 0
  %2812 = vmatprep.subr.bf16.mxu0 0
  %2813 = vmatpush2.bf16.xpose.msra.mxu0 0
  %2814 = vmatprep.subr.bf16.mxu0 0
  %2815 = vmatpush2.bf16.xpose.msra.mxu0 0
  %2816 = vmatprep.subr.bf16.mxu0 0
  %2817 = vmatpush2.bf16.xpose.msra.mxu0 0
  %2818 = vmatprep.subr.bf16.mxu0 0
  %2819 = vmatpush2.bf16.xpose.msra.mxu0 0
  %2820 = vmatprep.subr.bf16.mxu0 0
  %2821 = vmatpush2.bf16.xpose.msra.mxu0 0
  %2822 = vmatprep.mubr.bf16.mxu0 0
  %2823 = vmatmul.mubr.bf16.gmra.mxu0 %v2785
  %v2824 = vpop.f32.mrf.mxu0
  %v2825 = vadd.f32 0.0, %v2824
  %v2826 = vpop.f32.mrf.mxu0
  %v2827 = vpop.f32.mrf.mxu0
  %v2828 = vpop.f32.mrf.mxu0
  %2829 = vdwg.mxu0
  %v2830 = vmul.f32 %v2075, 0.25
  %v2831 = vmul.f32 %v2125, 0.25
  %v2832 = vmul.f32 %v2175, 0.25
  %v2833 = vmul.f32 %v2225, 0.25
  %v2834 = vmul.f32 %v2275, 0.25
  %v2835 = vmul.f32 %v2325, 0.25
  %v2836 = vmul.f32 %v2375, 0.25
  %v2837 = vmul.f32 %v2425, 0.25
  %v2838 = vmul.f32 %v2475, 0.25
  %v2839 = vmul.f32 %v2525, 0.25
  %v2840 = vmul.f32 %v2575, 0.25
  %v2841 = vmul.f32 %v2625, 0.25
  %v2842 = vmul.f32 %v2675, 0.25
  %v2843 = vmul.f32 %v2725, 0.25
  %v2844 = vmul.f32 %v2775, 0.25
  %v2845 = vmul.f32 %v2825, 0.25
  %v2846 = vsel %vm1084, %v2830, -inf
  %2847 = vmax.xlane.f32.xlu0 %v2846
  %v2848 = vpop.xlane.xlu0 %2847
  %v2849 = vsel %vm1084, %v2831, -inf
  %2850 = vmax.xlane.f32.xlu0 %v2849
  %v2851 = vpop.xlane.xlu0 %2850
  %v2852 = vsel %vm1084, %v2832, -inf
  %2853 = vmax.xlane.f32.xlu0 %v2852
  %v2854 = vpop.xlane.xlu0 %2853
  %v2855 = vsel %vm1084, %v2833, -inf
  %2856 = vmax.xlane.f32.xlu0 %v2855
  %v2857 = vpop.xlane.xlu0 %2856
  %v2858 = vsel %vm1084, %v2834, -inf
  %2859 = vmax.xlane.f32.xlu0 %v2858
  %v2860 = vpop.xlane.xlu0 %2859
  %v2861 = vsel %vm1084, %v2835, -inf
  %2862 = vmax.xlane.f32.xlu0 %v2861
  %v2863 = vpop.xlane.xlu0 %2862
  %v2864 = vsel %vm1084, %v2836, -inf
  %2865 = vmax.xlane.f32.xlu0 %v2864
  %v2866 = vpop.xlane.xlu0 %2865
  %v2867 = vsel %vm1084, %v2837, -inf
  %2868 = vmax.xlane.f32.xlu0 %v2867
  %v2869 = vpop.xlane.xlu0 %2868
  %v2870 = vsel %vm1084, %v2838, -inf
  %2871 = vmax.xlane.f32.xlu0 %v2870
  %v2872 = vpop.xlane.xlu0 %2871
  %v2873 = vsel %vm1084, %v2839, -inf
  %2874 = vmax.xlane.f32.xlu0 %v2873
  %v2875 = vpop.xlane.xlu0 %2874
  %v2876 = vsel %vm1084, %v2840, -inf
  %2877 = vmax.xlane.f32.xlu0 %v2876
  %v2878 = vpop.xlane.xlu0 %2877
  %v2879 = vsel %vm1084, %v2841, -inf
  %2880 = vmax.xlane.f32.xlu0 %v2879
  %v2881 = vpop.xlane.xlu0 %2880
  %v2882 = vsel %vm1084, %v2842, -inf
  %2883 = vmax.xlane.f32.xlu0 %v2882
  %v2884 = vpop.xlane.xlu0 %2883
  %v2885 = vsel %vm1084, %v2843, -inf
  %2886 = vmax.xlane.f32.xlu0 %v2885
  %v2887 = vpop.xlane.xlu0 %2886
  %v2888 = vsel %vm1084, %v2844, -inf
  %2889 = vmax.xlane.f32.xlu0 %v2888
  %v2890 = vpop.xlane.xlu0 %2889
  %v2891 = vsel %vm1084, %v2845, -inf
  %2892 = vmax.xlane.f32.xlu0 %v2891
  %v2893 = vpop.xlane.xlu0 %2892
  %v2894 = vsub.f32 %v2830, %v2848
  %v2895 = vsub.f32 %v2831, %v2851
  %v2896 = vsub.f32 %v2832, %v2854
  %v2897 = vsub.f32 %v2833, %v2857
  %v2898 = vsub.f32 %v2834, %v2860
  %v2899 = vsub.f32 %v2835, %v2863
  %v2900 = vsub.f32 %v2836, %v2866
  %v2901 = vsub.f32 %v2837, %v2869
  %v2902 = vsub.f32 %v2838, %v2872
  %v2903 = vsub.f32 %v2839, %v2875
  %v2904 = vsub.f32 %v2840, %v2878
  %v2905 = vsub.f32 %v2841, %v2881
  %v2906 = vsub.f32 %v2842, %v2884
  %v2907 = vsub.f32 %v2843, %v2887
  %v2908 = vsub.f32 %v2844, %v2890
  %v2909 = vsub.f32 %v2845, %v2893
  %v2910 = vmul.f32 %v2894, 1.442695
  %v2911 = vpow.pop %v2910
  %v2912 = vmul.f32 %v2895, 1.442695
  %v2913 = vpow.pop %v2912
  %v2914 = vmul.f32 %v2896, 1.442695
  %v2915 = vpow.pop %v2914
  %v2916 = vmul.f32 %v2897, 1.442695
  %v2917 = vpow.pop %v2916
  %v2918 = vmul.f32 %v2898, 1.442695
  %v2919 = vpow.pop %v2918
  %v2920 = vmul.f32 %v2899, 1.442695
  %v2921 = vpow.pop %v2920
  %v2922 = vmul.f32 %v2900, 1.442695
  %v2923 = vpow.pop %v2922
  %v2924 = vmul.f32 %v2901, 1.442695
  %v2925 = vpow.pop %v2924
  %v2926 = vmul.f32 %v2902, 1.442695
  %v2927 = vpow.pop %v2926
  %v2928 = vmul.f32 %v2903, 1.442695
  %v2929 = vpow.pop %v2928
  %v2930 = vmul.f32 %v2904, 1.442695
  %v2931 = vpow.pop %v2930
  %v2932 = vmul.f32 %v2905, 1.442695
  %v2933 = vpow.pop %v2932
  %v2934 = vmul.f32 %v2906, 1.442695
  %v2935 = vpow.pop %v2934
  %v2936 = vmul.f32 %v2907, 1.442695
  %v2937 = vpow.pop %v2936
  %v2938 = vmul.f32 %v2908, 1.442695
  %v2939 = vpow.pop %v2938
  %v2940 = vmul.f32 %v2909, 1.442695
  %v2941 = vpow.pop %v2940
  %v2942 = vsel %vm1084, %v2911, 0.0
  %2943 = vadd.xlane.f32.xlu0 %v2942
  %v2944 = vpop.xlane.xlu0 %2943
  %v2945 = vsel %vm1084, %v2913, 0.0
  %2946 = vadd.xlane.f32.xlu0 %v2945
  %v2947 = vpop.xlane.xlu0 %2946
  %v2948 = vsel %vm1084, %v2915, 0.0
  %2949 = vadd.xlane.f32.xlu0 %v2948
  %v2950 = vpop.xlane.xlu0 %2949
  %v2951 = vsel %vm1084, %v2917, 0.0
  %2952 = vadd.xlane.f32.xlu0 %v2951
  %v2953 = vpop.xlane.xlu0 %2952
  %v2954 = vsel %vm1084, %v2919, 0.0
  %2955 = vadd.xlane.f32.xlu0 %v2954
  %v2956 = vpop.xlane.xlu0 %2955
  %v2957 = vsel %vm1084, %v2921, 0.0
  %2958 = vadd.xlane.f32.xlu0 %v2957
  %v2959 = vpop.xlane.xlu0 %2958
  %v2960 = vsel %vm1084, %v2923, 0.0
  %2961 = vadd.xlane.f32.xlu0 %v2960
  %v2962 = vpop.xlane.xlu0 %2961
  %v2963 = vsel %vm1084, %v2925, 0.0
  %2964 = vadd.xlane.f32.xlu0 %v2963
  %v2965 = vpop.xlane.xlu0 %2964
  %v2966 = vsel %vm1084, %v2927, 0.0
  %2967 = vadd.xlane.f32.xlu0 %v2966
  %v2968 = vpop.xlane.xlu0 %2967
  %v2969 = vsel %vm1084, %v2929, 0.0
  %2970 = vadd.xlane.f32.xlu0 %v2969
  %v2971 = vpop.xlane.xlu0 %2970
  %v2972 = vsel %vm1084, %v2931, 0.0
  %2973 = vadd.xlane.f32.xlu0 %v2972
  %v2974 = vpop.xlane.xlu0 %2973
  %v2975 = vsel %vm1084, %v2933, 0.0
  %2976 = vadd.xlane.f32.xlu0 %v2975
  %v2977 = vpop.xlane.xlu0 %2976
  %v2978 = vsel %vm1084, %v2935, 0.0
  %2979 = vadd.xlane.f32.xlu0 %v2978
  %v2980 = vpop.xlane.xlu0 %2979
  %v2981 = vsel %vm1084, %v2937, 0.0
  %2982 = vadd.xlane.f32.xlu0 %v2981
  %v2983 = vpop.xlane.xlu0 %2982
  %v2984 = vsel %vm1084, %v2939, 0.0
  %2985 = vadd.xlane.f32.xlu0 %v2984
  %v2986 = vpop.xlane.xlu0 %2985
  %v2987 = vsel %vm1084, %v2941, 0.0
  %2988 = vadd.xlane.f32.xlu0 %v2987
  %v2989 = vpop.xlane.xlu0 %2988
  %v2990 = vrcp.pop %v2944
  %v2991 = vrcp.pop %v2947
  %v2992 = vrcp.pop %v2950
  %v2993 = vrcp.pop %v2953
  %v2994 = vrcp.pop %v2956
  %v2995 = vrcp.pop %v2959
  %v2996 = vrcp.pop %v2962
  %v2997 = vrcp.pop %v2965
  %v2998 = vrcp.pop %v2968
  %v2999 = vrcp.pop %v2971
  %v3000 = vrcp.pop %v2974
  %v3001 = vrcp.pop %v2977
  %v3002 = vrcp.pop %v2980
  %v3003 = vrcp.pop %v2983
  %v3004 = vrcp.pop %v2986
  %v3005 = vrcp.pop %v2989
  %v3006 = vmul.f32 %v2911, %v2990
  %v3007 = vmul.f32 %v2913, %v2991
  %v3008 = vmul.f32 %v2915, %v2992
  %v3009 = vmul.f32 %v2917, %v2993
  %v3010 = vmul.f32 %v2919, %v2994
  %v3011 = vmul.f32 %v2921, %v2995
  %v3012 = vmul.f32 %v2923, %v2996
  %v3013 = vmul.f32 %v2925, %v2997
  %v3014 = vmul.f32 %v2927, %v2998
  %v3015 = vmul.f32 %v2929, %v2999
  %v3016 = vmul.f32 %v2931, %v3000
  %v3017 = vmul.f32 %v2933, %v3001
  %v3018 = vmul.f32 %v2935, %v3002
  %v3019 = vmul.f32 %v2937, %v3003
  %v3020 = vmul.f32 %v2939, %v3004
  %v3021 = vmul.f32 %v2941, %v3005
  %v3022 = vpack.c.bf16 %v3006, %v3006
  %v3023 = vpack.c.bf16 %v3007, %v3007
  %v3024 = vpack.c.bf16 %v3008, %v3008
  %v3025 = vpack.c.bf16 %v3009, %v3009
  %v3026 = vpack.c.bf16 %v3010, %v3010
  %v3027 = vpack.c.bf16 %v3011, %v3011
  %v3028 = vpack.c.bf16 %v3012, %v3012
  %v3029 = vpack.c.bf16 %v3013, %v3013
  %v3030 = vpack.c.bf16 %v3014, %v3014
  %v3031 = vpack.c.bf16 %v3015, %v3015
  %v3032 = vpack.c.bf16 %v3016, %v3016
  %v3033 = vpack.c.bf16 %v3017, %v3017
  %v3034 = vpack.c.bf16 %v3018, %v3018
  %v3035 = vpack.c.bf16 %v3019, %v3019
  %v3036 = vpack.c.bf16 %v3020, %v3020
  %v3037 = vpack.c.bf16 %v3021, %v3021
  %3039 = vrot.lane.b32.xlu0 %v1277, 112
  %v3040 = vpop.permute.xlu0 %3039
  %v3042 = vsel %vm1084, %v3022, 0
  %v3045 = vsel %vm1296, %v3040, 0
  %3047 = vmatprep.subr.bf16.mxu0 0
  %3048 = vmatpush1.bf16.msra.mxu0 0
  %3049 = vmatprep.subr.bf16.mxu0 0
  %3050 = vmatpush1.bf16.msra.mxu0 0
  %3051 = vmatprep.subr.bf16.mxu0 0
  %3052 = vmatpush1.bf16.msra.mxu0 0
  %3053 = vmatprep.subr.bf16.mxu0 0
  %3054 = vmatpush1.bf16.msra.mxu0 0
  %3055 = vmatprep.subr.bf16.mxu0 0
  %3056 = vmatpush1.bf16.msra.mxu0 0
  %3057 = vmatprep.subr.bf16.mxu0 0
  %3058 = vmatpush1.bf16.msra.mxu0 0
  %3059 = vmatprep.subr.bf16.mxu0 0
  %3060 = vmatpush1.bf16.msra.mxu0 0
  %3061 = vmatprep.subr.bf16.mxu0 0
  %3062 = vmatpush1.bf16.msra.mxu0 %v3045
  %3063 = vmatprep.subr.bf16.mxu0 0
  %3064 = vmatpush2.bf16.msra.mxu0 0
  %3065 = vmatprep.subr.bf16.mxu0 0
  %3066 = vmatpush2.bf16.msra.mxu0 0
  %3067 = vmatprep.subr.bf16.mxu0 0
  %3068 = vmatpush2.bf16.msra.mxu0 0
  %3069 = vmatprep.subr.bf16.mxu0 0
  %3070 = vmatpush2.bf16.msra.mxu0 0
  %3071 = vmatprep.subr.bf16.mxu0 0
  %3072 = vmatpush2.bf16.msra.mxu0 0
  %3073 = vmatprep.subr.bf16.mxu0 0
  %3074 = vmatpush2.bf16.msra.mxu0 0
  %3075 = vmatprep.subr.bf16.mxu0 0
  %3076 = vmatpush2.bf16.msra.mxu0 0
  %3077 = vmatprep.subr.bf16.mxu0 0
  %3078 = vmatpush2.bf16.msra.mxu0 0
  %3079 = vmatprep.mubr.bf16.mxu0 0
  %3080 = vmatmul.mubr.bf16.gmra.mxu0 %v3042
  %v3081 = vpop.f32.mrf.mxu0
  %v3082 = vadd.f32 0.0, %v3081
  %v3083 = vpop.f32.mrf.mxu0
  %v3084 = vpop.f32.mrf.mxu0
  %v3085 = vpop.f32.mrf.mxu0
  %3086 = vdwg.mxu0
  %3088 = vrot.lane.b32.xlu0 %v1278, 112
  %v3089 = vpop.permute.xlu0 %3088
  %v3091 = vsel %vm1084, %v3023, 0
  %v3094 = vsel %vm1296, %v3089, 0
  %3096 = vmatprep.subr.bf16.mxu0 0
  %3097 = vmatpush1.bf16.msra.mxu0 0
  %3098 = vmatprep.subr.bf16.mxu0 0
  %3099 = vmatpush1.bf16.msra.mxu0 0
  %3100 = vmatprep.subr.bf16.mxu0 0
  %3101 = vmatpush1.bf16.msra.mxu0 0
  %3102 = vmatprep.subr.bf16.mxu0 0
  %3103 = vmatpush1.bf16.msra.mxu0 0
  %3104 = vmatprep.subr.bf16.mxu0 0
  %3105 = vmatpush1.bf16.msra.mxu0 0
  %3106 = vmatprep.subr.bf16.mxu0 0
  %3107 = vmatpush1.bf16.msra.mxu0 0
  %3108 = vmatprep.subr.bf16.mxu0 0
  %3109 = vmatpush1.bf16.msra.mxu0 0
  %3110 = vmatprep.subr.bf16.mxu0 0
  %3111 = vmatpush1.bf16.msra.mxu0 %v3094
  %3112 = vmatprep.subr.bf16.mxu0 0
  %3113 = vmatpush2.bf16.msra.mxu0 0
  %3114 = vmatprep.subr.bf16.mxu0 0
  %3115 = vmatpush2.bf16.msra.mxu0 0
  %3116 = vmatprep.subr.bf16.mxu0 0
  %3117 = vmatpush2.bf16.msra.mxu0 0
  %3118 = vmatprep.subr.bf16.mxu0 0
  %3119 = vmatpush2.bf16.msra.mxu0 0
  %3120 = vmatprep.subr.bf16.mxu0 0
  %3121 = vmatpush2.bf16.msra.mxu0 0
  %3122 = vmatprep.subr.bf16.mxu0 0
  %3123 = vmatpush2.bf16.msra.mxu0 0
  %3124 = vmatprep.subr.bf16.mxu0 0
  %3125 = vmatpush2.bf16.msra.mxu0 0
  %3126 = vmatprep.subr.bf16.mxu0 0
  %3127 = vmatpush2.bf16.msra.mxu0 0
  %3128 = vmatprep.mubr.bf16.mxu0 0
  %3129 = vmatmul.mubr.bf16.gmra.mxu0 %v3091
  %v3130 = vpop.f32.mrf.mxu0
  %v3131 = vadd.f32 0.0, %v3130
  %v3132 = vpop.f32.mrf.mxu0
  %v3133 = vpop.f32.mrf.mxu0
  %v3134 = vpop.f32.mrf.mxu0
  %3135 = vdwg.mxu0
  %3137 = vrot.lane.b32.xlu0 %v1279, 112
  %v3138 = vpop.permute.xlu0 %3137
  %v3140 = vsel %vm1084, %v3024, 0
  %v3143 = vsel %vm1296, %v3138, 0
  %3145 = vmatprep.subr.bf16.mxu0 0
  %3146 = vmatpush1.bf16.msra.mxu0 0
  %3147 = vmatprep.subr.bf16.mxu0 0
  %3148 = vmatpush1.bf16.msra.mxu0 0
  %3149 = vmatprep.subr.bf16.mxu0 0
  %3150 = vmatpush1.bf16.msra.mxu0 0
  %3151 = vmatprep.subr.bf16.mxu0 0
  %3152 = vmatpush1.bf16.msra.mxu0 0
  %3153 = vmatprep.subr.bf16.mxu0 0
  %3154 = vmatpush1.bf16.msra.mxu0 0
  %3155 = vmatprep.subr.bf16.mxu0 0
  %3156 = vmatpush1.bf16.msra.mxu0 0
  %3157 = vmatprep.subr.bf16.mxu0 0
  %3158 = vmatpush1.bf16.msra.mxu0 0
  %3159 = vmatprep.subr.bf16.mxu0 0
  %3160 = vmatpush1.bf16.msra.mxu0 %v3143
  %3161 = vmatprep.subr.bf16.mxu0 0
  %3162 = vmatpush2.bf16.msra.mxu0 0
  %3163 = vmatprep.subr.bf16.mxu0 0
  %3164 = vmatpush2.bf16.msra.mxu0 0
  %3165 = vmatprep.subr.bf16.mxu0 0
  %3166 = vmatpush2.bf16.msra.mxu0 0
  %3167 = vmatprep.subr.bf16.mxu0 0
  %3168 = vmatpush2.bf16.msra.mxu0 0
  %3169 = vmatprep.subr.bf16.mxu0 0
  %3170 = vmatpush2.bf16.msra.mxu0 0
  %3171 = vmatprep.subr.bf16.mxu0 0
  %3172 = vmatpush2.bf16.msra.mxu0 0
  %3173 = vmatprep.subr.bf16.mxu0 0
  %3174 = vmatpush2.bf16.msra.mxu0 0
  %3175 = vmatprep.subr.bf16.mxu0 0
  %3176 = vmatpush2.bf16.msra.mxu0 0
  %3177 = vmatprep.mubr.bf16.mxu0 0
  %3178 = vmatmul.mubr.bf16.gmra.mxu0 %v3140
  %v3179 = vpop.f32.mrf.mxu0
  %v3180 = vadd.f32 0.0, %v3179
  %v3181 = vpop.f32.mrf.mxu0
  %v3182 = vpop.f32.mrf.mxu0
  %v3183 = vpop.f32.mrf.mxu0
  %3184 = vdwg.mxu0
  %3186 = vrot.lane.b32.xlu0 %v1280, 112
  %v3187 = vpop.permute.xlu0 %3186
  %v3189 = vsel %vm1084, %v3025, 0
  %v3192 = vsel %vm1296, %v3187, 0
  %3194 = vmatprep.subr.bf16.mxu0 0
  %3195 = vmatpush1.bf16.msra.mxu0 0
  %3196 = vmatprep.subr.bf16.mxu0 0
  %3197 = vmatpush1.bf16.msra.mxu0 0
  %3198 = vmatprep.subr.bf16.mxu0 0
  %3199 = vmatpush1.bf16.msra.mxu0 0
  %3200 = vmatprep.subr.bf16.mxu0 0
  %3201 = vmatpush1.bf16.msra.mxu0 0
  %3202 = vmatprep.subr.bf16.mxu0 0
  %3203 = vmatpush1.bf16.msra.mxu0 0
  %3204 = vmatprep.subr.bf16.mxu0 0
  %3205 = vmatpush1.bf16.msra.mxu0 0
  %3206 = vmatprep.subr.bf16.mxu0 0
  %3207 = vmatpush1.bf16.msra.mxu0 0
  %3208 = vmatprep.subr.bf16.mxu0 0
  %3209 = vmatpush1.bf16.msra.mxu0 %v3192
  %3210 = vmatprep.subr.bf16.mxu0 0
  %3211 = vmatpush2.bf16.msra.mxu0 0
  %3212 = vmatprep.subr.bf16.mxu0 0
  %3213 = vmatpush2.bf16.msra.mxu0 0
  %3214 = vmatprep.subr.bf16.mxu0 0
  %3215 = vmatpush2.bf16.msra.mxu0 0
  %3216 = vmatprep.subr.bf16.mxu0 0
  %3217 = vmatpush2.bf16.msra.mxu0 0
  %3218 = vmatprep.subr.bf16.mxu0 0
  %3219 = vmatpush2.bf16.msra.mxu0 0
  %3220 = vmatprep.subr.bf16.mxu0 0
  %3221 = vmatpush2.bf16.msra.mxu0 0
  %3222 = vmatprep.subr.bf16.mxu0 0
  %3223 = vmatpush2.bf16.msra.mxu0 0
  %3224 = vmatprep.subr.bf16.mxu0 0
  %3225 = vmatpush2.bf16.msra.mxu0 0
  %3226 = vmatprep.mubr.bf16.mxu0 0
  %3227 = vmatmul.mubr.bf16.gmra.mxu0 %v3189
  %v3228 = vpop.f32.mrf.mxu0
  %v3229 = vadd.f32 0.0, %v3228
  %v3230 = vpop.f32.mrf.mxu0
  %v3231 = vpop.f32.mrf.mxu0
  %v3232 = vpop.f32.mrf.mxu0
  %3233 = vdwg.mxu0
  %3235 = vrot.lane.b32.xlu0 %v1281, 112
  %v3236 = vpop.permute.xlu0 %3235
  %v3238 = vsel %vm1084, %v3026, 0
  %v3241 = vsel %vm1296, %v3236, 0
  %3243 = vmatprep.subr.bf16.mxu0 0
  %3244 = vmatpush1.bf16.msra.mxu0 0
  %3245 = vmatprep.subr.bf16.mxu0 0
  %3246 = vmatpush1.bf16.msra.mxu0 0
  %3247 = vmatprep.subr.bf16.mxu0 0
  %3248 = vmatpush1.bf16.msra.mxu0 0
  %3249 = vmatprep.subr.bf16.mxu0 0
  %3250 = vmatpush1.bf16.msra.mxu0 0
  %3251 = vmatprep.subr.bf16.mxu0 0
  %3252 = vmatpush1.bf16.msra.mxu0 0
  %3253 = vmatprep.subr.bf16.mxu0 0
  %3254 = vmatpush1.bf16.msra.mxu0 0
  %3255 = vmatprep.subr.bf16.mxu0 0
  %3256 = vmatpush1.bf16.msra.mxu0 0
  %3257 = vmatprep.subr.bf16.mxu0 0
  %3258 = vmatpush1.bf16.msra.mxu0 %v3241
  %3259 = vmatprep.subr.bf16.mxu0 0
  %3260 = vmatpush2.bf16.msra.mxu0 0
  %3261 = vmatprep.subr.bf16.mxu0 0
  %3262 = vmatpush2.bf16.msra.mxu0 0
  %3263 = vmatprep.subr.bf16.mxu0 0
  %3264 = vmatpush2.bf16.msra.mxu0 0
  %3265 = vmatprep.subr.bf16.mxu0 0
  %3266 = vmatpush2.bf16.msra.mxu0 0
  %3267 = vmatprep.subr.bf16.mxu0 0
  %3268 = vmatpush2.bf16.msra.mxu0 0
  %3269 = vmatprep.subr.bf16.mxu0 0
  %3270 = vmatpush2.bf16.msra.mxu0 0
  %3271 = vmatprep.subr.bf16.mxu0 0
  %3272 = vmatpush2.bf16.msra.mxu0 0
  %3273 = vmatprep.subr.bf16.mxu0 0
  %3274 = vmatpush2.bf16.msra.mxu0 0
  %3275 = vmatprep.mubr.bf16.mxu0 0
  %3276 = vmatmul.mubr.bf16.gmra.mxu0 %v3238
  %v3277 = vpop.f32.mrf.mxu0
  %v3278 = vadd.f32 0.0, %v3277
  %v3279 = vpop.f32.mrf.mxu0
  %v3280 = vpop.f32.mrf.mxu0
  %v3281 = vpop.f32.mrf.mxu0
  %3282 = vdwg.mxu0
  %3284 = vrot.lane.b32.xlu0 %v1282, 112
  %v3285 = vpop.permute.xlu0 %3284
  %v3287 = vsel %vm1084, %v3027, 0
  %v3290 = vsel %vm1296, %v3285, 0
  %3292 = vmatprep.subr.bf16.mxu0 0
  %3293 = vmatpush1.bf16.msra.mxu0 0
  %3294 = vmatprep.subr.bf16.mxu0 0
  %3295 = vmatpush1.bf16.msra.mxu0 0
  %3296 = vmatprep.subr.bf16.mxu0 0
  %3297 = vmatpush1.bf16.msra.mxu0 0
  %3298 = vmatprep.subr.bf16.mxu0 0
  %3299 = vmatpush1.bf16.msra.mxu0 0
  %3300 = vmatprep.subr.bf16.mxu0 0
  %3301 = vmatpush1.bf16.msra.mxu0 0
  %3302 = vmatprep.subr.bf16.mxu0 0
  %3303 = vmatpush1.bf16.msra.mxu0 0
  %3304 = vmatprep.subr.bf16.mxu0 0
  %3305 = vmatpush1.bf16.msra.mxu0 0
  %3306 = vmatprep.subr.bf16.mxu0 0
  %3307 = vmatpush1.bf16.msra.mxu0 %v3290
  %3308 = vmatprep.subr.bf16.mxu0 0
  %3309 = vmatpush2.bf16.msra.mxu0 0
  %3310 = vmatprep.subr.bf16.mxu0 0
  %3311 = vmatpush2.bf16.msra.mxu0 0
  %3312 = vmatprep.subr.bf16.mxu0 0
  %3313 = vmatpush2.bf16.msra.mxu0 0
  %3314 = vmatprep.subr.bf16.mxu0 0
  %3315 = vmatpush2.bf16.msra.mxu0 0
  %3316 = vmatprep.subr.bf16.mxu0 0
  %3317 = vmatpush2.bf16.msra.mxu0 0
  %3318 = vmatprep.subr.bf16.mxu0 0
  %3319 = vmatpush2.bf16.msra.mxu0 0
  %3320 = vmatprep.subr.bf16.mxu0 0
  %3321 = vmatpush2.bf16.msra.mxu0 0
  %3322 = vmatprep.subr.bf16.mxu0 0
  %3323 = vmatpush2.bf16.msra.mxu0 0
  %3324 = vmatprep.mubr.bf16.mxu0 0
  %3325 = vmatmul.mubr.bf16.gmra.mxu0 %v3287
  %v3326 = vpop.f32.mrf.mxu0
  %v3327 = vadd.f32 0.0, %v3326
  %v3328 = vpop.f32.mrf.mxu0
  %v3329 = vpop.f32.mrf.mxu0
  %v3330 = vpop.f32.mrf.mxu0
  %3331 = vdwg.mxu0
  %3333 = vrot.lane.b32.xlu0 %v1283, 112
  %v3334 = vpop.permute.xlu0 %3333
  %v3336 = vsel %vm1084, %v3028, 0
  %v3339 = vsel %vm1296, %v3334, 0
  %3341 = vmatprep.subr.bf16.mxu0 0
  %3342 = vmatpush1.bf16.msra.mxu0 0
  %3343 = vmatprep.subr.bf16.mxu0 0
  %3344 = vmatpush1.bf16.msra.mxu0 0
  %3345 = vmatprep.subr.bf16.mxu0 0
  %3346 = vmatpush1.bf16.msra.mxu0 0
  %3347 = vmatprep.subr.bf16.mxu0 0
  %3348 = vmatpush1.bf16.msra.mxu0 0
  %3349 = vmatprep.subr.bf16.mxu0 0
  %3350 = vmatpush1.bf16.msra.mxu0 0
  %3351 = vmatprep.subr.bf16.mxu0 0
  %3352 = vmatpush1.bf16.msra.mxu0 0
  %3353 = vmatprep.subr.bf16.mxu0 0
  %3354 = vmatpush1.bf16.msra.mxu0 0
  %3355 = vmatprep.subr.bf16.mxu0 0
  %3356 = vmatpush1.bf16.msra.mxu0 %v3339
  %3357 = vmatprep.subr.bf16.mxu0 0
  %3358 = vmatpush2.bf16.msra.mxu0 0
  %3359 = vmatprep.subr.bf16.mxu0 0
  %3360 = vmatpush2.bf16.msra.mxu0 0
  %3361 = vmatprep.subr.bf16.mxu0 0
  %3362 = vmatpush2.bf16.msra.mxu0 0
  %3363 = vmatprep.subr.bf16.mxu0 0
  %3364 = vmatpush2.bf16.msra.mxu0 0
  %3365 = vmatprep.subr.bf16.mxu0 0
  %3366 = vmatpush2.bf16.msra.mxu0 0
  %3367 = vmatprep.subr.bf16.mxu0 0
  %3368 = vmatpush2.bf16.msra.mxu0 0
  %3369 = vmatprep.subr.bf16.mxu0 0
  %3370 = vmatpush2.bf16.msra.mxu0 0
  %3371 = vmatprep.subr.bf16.mxu0 0
  %3372 = vmatpush2.bf16.msra.mxu0 0
  %3373 = vmatprep.mubr.bf16.mxu0 0
  %3374 = vmatmul.mubr.bf16.gmra.mxu0 %v3336
  %v3375 = vpop.f32.mrf.mxu0
  %v3376 = vadd.f32 0.0, %v3375
  %v3377 = vpop.f32.mrf.mxu0
  %v3378 = vpop.f32.mrf.mxu0
  %v3379 = vpop.f32.mrf.mxu0
  %3380 = vdwg.mxu0
  %3382 = vrot.lane.b32.xlu0 %v1284, 112
  %v3383 = vpop.permute.xlu0 %3382
  %v3385 = vsel %vm1084, %v3029, 0
  %v3388 = vsel %vm1296, %v3383, 0
  %3390 = vmatprep.subr.bf16.mxu0 0
  %3391 = vmatpush1.bf16.msra.mxu0 0
  %3392 = vmatprep.subr.bf16.mxu0 0
  %3393 = vmatpush1.bf16.msra.mxu0 0
  %3394 = vmatprep.subr.bf16.mxu0 0
  %3395 = vmatpush1.bf16.msra.mxu0 0
  %3396 = vmatprep.subr.bf16.mxu0 0
  %3397 = vmatpush1.bf16.msra.mxu0 0
  %3398 = vmatprep.subr.bf16.mxu0 0
  %3399 = vmatpush1.bf16.msra.mxu0 0
  %3400 = vmatprep.subr.bf16.mxu0 0
  %3401 = vmatpush1.bf16.msra.mxu0 0
  %3402 = vmatprep.subr.bf16.mxu0 0
  %3403 = vmatpush1.bf16.msra.mxu0 0
  %3404 = vmatprep.subr.bf16.mxu0 0
  %3405 = vmatpush1.bf16.msra.mxu0 %v3388
  %3406 = vmatprep.subr.bf16.mxu0 0
  %3407 = vmatpush2.bf16.msra.mxu0 0
  %3408 = vmatprep.subr.bf16.mxu0 0
  %3409 = vmatpush2.bf16.msra.mxu0 0
  %3410 = vmatprep.subr.bf16.mxu0 0
  %3411 = vmatpush2.bf16.msra.mxu0 0
  %3412 = vmatprep.subr.bf16.mxu0 0
  %3413 = vmatpush2.bf16.msra.mxu0 0
  %3414 = vmatprep.subr.bf16.mxu0 0
  %3415 = vmatpush2.bf16.msra.mxu0 0
  %3416 = vmatprep.subr.bf16.mxu0 0
  %3417 = vmatpush2.bf16.msra.mxu0 0
  %3418 = vmatprep.subr.bf16.mxu0 0
  %3419 = vmatpush2.bf16.msra.mxu0 0
  %3420 = vmatprep.subr.bf16.mxu0 0
  %3421 = vmatpush2.bf16.msra.mxu0 0
  %3422 = vmatprep.mubr.bf16.mxu0 0
  %3423 = vmatmul.mubr.bf16.gmra.mxu0 %v3385
  %v3424 = vpop.f32.mrf.mxu0
  %v3425 = vadd.f32 0.0, %v3424
  %v3426 = vpop.f32.mrf.mxu0
  %v3427 = vpop.f32.mrf.mxu0
  %v3428 = vpop.f32.mrf.mxu0
  %3429 = vdwg.mxu0
  %3431 = vrot.lane.b32.xlu0 %v1285, 112
  %v3432 = vpop.permute.xlu0 %3431
  %v3434 = vsel %vm1084, %v3030, 0
  %v3437 = vsel %vm1296, %v3432, 0
  %3439 = vmatprep.subr.bf16.mxu0 0
  %3440 = vmatpush1.bf16.msra.mxu0 0
  %3441 = vmatprep.subr.bf16.mxu0 0
  %3442 = vmatpush1.bf16.msra.mxu0 0
  %3443 = vmatprep.subr.bf16.mxu0 0
  %3444 = vmatpush1.bf16.msra.mxu0 0
  %3445 = vmatprep.subr.bf16.mxu0 0
  %3446 = vmatpush1.bf16.msra.mxu0 0
  %3447 = vmatprep.subr.bf16.mxu0 0
  %3448 = vmatpush1.bf16.msra.mxu0 0
  %3449 = vmatprep.subr.bf16.mxu0 0
  %3450 = vmatpush1.bf16.msra.mxu0 0
  %3451 = vmatprep.subr.bf16.mxu0 0
  %3452 = vmatpush1.bf16.msra.mxu0 0
  %3453 = vmatprep.subr.bf16.mxu0 0
  %3454 = vmatpush1.bf16.msra.mxu0 %v3437
  %3455 = vmatprep.subr.bf16.mxu0 0
  %3456 = vmatpush2.bf16.msra.mxu0 0
  %3457 = vmatprep.subr.bf16.mxu0 0
  %3458 = vmatpush2.bf16.msra.mxu0 0
  %3459 = vmatprep.subr.bf16.mxu0 0
  %3460 = vmatpush2.bf16.msra.mxu0 0
  %3461 = vmatprep.subr.bf16.mxu0 0
  %3462 = vmatpush2.bf16.msra.mxu0 0
  %3463 = vmatprep.subr.bf16.mxu0 0
  %3464 = vmatpush2.bf16.msra.mxu0 0
  %3465 = vmatprep.subr.bf16.mxu0 0
  %3466 = vmatpush2.bf16.msra.mxu0 0
  %3467 = vmatprep.subr.bf16.mxu0 0
  %3468 = vmatpush2.bf16.msra.mxu0 0
  %3469 = vmatprep.subr.bf16.mxu0 0
  %3470 = vmatpush2.bf16.msra.mxu0 0
  %3471 = vmatprep.mubr.bf16.mxu0 0
  %3472 = vmatmul.mubr.bf16.gmra.mxu0 %v3434
  %v3473 = vpop.f32.mrf.mxu0
  %v3474 = vadd.f32 0.0, %v3473
  %v3475 = vpop.f32.mrf.mxu0
  %v3476 = vpop.f32.mrf.mxu0
  %v3477 = vpop.f32.mrf.mxu0
  %3478 = vdwg.mxu0
  %3480 = vrot.lane.b32.xlu0 %v1286, 112
  %v3481 = vpop.permute.xlu0 %3480
  %v3483 = vsel %vm1084, %v3031, 0
  %v3486 = vsel %vm1296, %v3481, 0
  %3488 = vmatprep.subr.bf16.mxu0 0
  %3489 = vmatpush1.bf16.msra.mxu0 0
  %3490 = vmatprep.subr.bf16.mxu0 0
  %3491 = vmatpush1.bf16.msra.mxu0 0
  %3492 = vmatprep.subr.bf16.mxu0 0
  %3493 = vmatpush1.bf16.msra.mxu0 0
  %3494 = vmatprep.subr.bf16.mxu0 0
  %3495 = vmatpush1.bf16.msra.mxu0 0
  %3496 = vmatprep.subr.bf16.mxu0 0
  %3497 = vmatpush1.bf16.msra.mxu0 0
  %3498 = vmatprep.subr.bf16.mxu0 0
  %3499 = vmatpush1.bf16.msra.mxu0 0
  %3500 = vmatprep.subr.bf16.mxu0 0
  %3501 = vmatpush1.bf16.msra.mxu0 0
  %3502 = vmatprep.subr.bf16.mxu0 0
  %3503 = vmatpush1.bf16.msra.mxu0 %v3486
  %3504 = vmatprep.subr.bf16.mxu0 0
  %3505 = vmatpush2.bf16.msra.mxu0 0
  %3506 = vmatprep.subr.bf16.mxu0 0
  %3507 = vmatpush2.bf16.msra.mxu0 0
  %3508 = vmatprep.subr.bf16.mxu0 0
  %3509 = vmatpush2.bf16.msra.mxu0 0
  %3510 = vmatprep.subr.bf16.mxu0 0
  %3511 = vmatpush2.bf16.msra.mxu0 0
  %3512 = vmatprep.subr.bf16.mxu0 0
  %3513 = vmatpush2.bf16.msra.mxu0 0
  %3514 = vmatprep.subr.bf16.mxu0 0
  %3515 = vmatpush2.bf16.msra.mxu0 0
  %3516 = vmatprep.subr.bf16.mxu0 0
  %3517 = vmatpush2.bf16.msra.mxu0 0
  %3518 = vmatprep.subr.bf16.mxu0 0
  %3519 = vmatpush2.bf16.msra.mxu0 0
  %3520 = vmatprep.mubr.bf16.mxu0 0
  %3521 = vmatmul.mubr.bf16.gmra.mxu0 %v3483
  %v3522 = vpop.f32.mrf.mxu0
  %v3523 = vadd.f32 0.0, %v3522
  %v3524 = vpop.f32.mrf.mxu0
  %v3525 = vpop.f32.mrf.mxu0
  %v3526 = vpop.f32.mrf.mxu0
  %3527 = vdwg.mxu0
  %3529 = vrot.lane.b32.xlu0 %v1287, 112
  %v3530 = vpop.permute.xlu0 %3529
  %v3532 = vsel %vm1084, %v3032, 0
  %v3535 = vsel %vm1296, %v3530, 0
  %3537 = vmatprep.subr.bf16.mxu0 0
  %3538 = vmatpush1.bf16.msra.mxu0 0
  %3539 = vmatprep.subr.bf16.mxu0 0
  %3540 = vmatpush1.bf16.msra.mxu0 0
  %3541 = vmatprep.subr.bf16.mxu0 0
  %3542 = vmatpush1.bf16.msra.mxu0 0
  %3543 = vmatprep.subr.bf16.mxu0 0
  %3544 = vmatpush1.bf16.msra.mxu0 0
  %3545 = vmatprep.subr.bf16.mxu0 0
  %3546 = vmatpush1.bf16.msra.mxu0 0
  %3547 = vmatprep.subr.bf16.mxu0 0
  %3548 = vmatpush1.bf16.msra.mxu0 0
  %3549 = vmatprep.subr.bf16.mxu0 0
  %3550 = vmatpush1.bf16.msra.mxu0 0
  %3551 = vmatprep.subr.bf16.mxu0 0
  %3552 = vmatpush1.bf16.msra.mxu0 %v3535
  %3553 = vmatprep.subr.bf16.mxu0 0
  %3554 = vmatpush2.bf16.msra.mxu0 0
  %3555 = vmatprep.subr.bf16.mxu0 0
  %3556 = vmatpush2.bf16.msra.mxu0 0
  %3557 = vmatprep.subr.bf16.mxu0 0
  %3558 = vmatpush2.bf16.msra.mxu0 0
  %3559 = vmatprep.subr.bf16.mxu0 0
  %3560 = vmatpush2.bf16.msra.mxu0 0
  %3561 = vmatprep.subr.bf16.mxu0 0
  %3562 = vmatpush2.bf16.msra.mxu0 0
  %3563 = vmatprep.subr.bf16.mxu0 0
  %3564 = vmatpush2.bf16.msra.mxu0 0
  %3565 = vmatprep.subr.bf16.mxu0 0
  %3566 = vmatpush2.bf16.msra.mxu0 0
  %3567 = vmatprep.subr.bf16.mxu0 0
  %3568 = vmatpush2.bf16.msra.mxu0 0
  %3569 = vmatprep.mubr.bf16.mxu0 0
  %3570 = vmatmul.mubr.bf16.gmra.mxu0 %v3532
  %v3571 = vpop.f32.mrf.mxu0
  %v3572 = vadd.f32 0.0, %v3571
  %v3573 = vpop.f32.mrf.mxu0
  %v3574 = vpop.f32.mrf.mxu0
  %v3575 = vpop.f32.mrf.mxu0
  %3576 = vdwg.mxu0
  %3578 = vrot.lane.b32.xlu0 %v1288, 112
  %v3579 = vpop.permute.xlu0 %3578
  %v3581 = vsel %vm1084, %v3033, 0
  %v3584 = vsel %vm1296, %v3579, 0
  %3586 = vmatprep.subr.bf16.mxu0 0
  %3587 = vmatpush1.bf16.msra.mxu0 0
  %3588 = vmatprep.subr.bf16.mxu0 0
  %3589 = vmatpush1.bf16.msra.mxu0 0
  %3590 = vmatprep.subr.bf16.mxu0 0
  %3591 = vmatpush1.bf16.msra.mxu0 0
  %3592 = vmatprep.subr.bf16.mxu0 0
  %3593 = vmatpush1.bf16.msra.mxu0 0
  %3594 = vmatprep.subr.bf16.mxu0 0
  %3595 = vmatpush1.bf16.msra.mxu0 0
  %3596 = vmatprep.subr.bf16.mxu0 0
  %3597 = vmatpush1.bf16.msra.mxu0 0
  %3598 = vmatprep.subr.bf16.mxu0 0
  %3599 = vmatpush1.bf16.msra.mxu0 0
  %3600 = vmatprep.subr.bf16.mxu0 0
  %3601 = vmatpush1.bf16.msra.mxu0 %v3584
  %3602 = vmatprep.subr.bf16.mxu0 0
  %3603 = vmatpush2.bf16.msra.mxu0 0
  %3604 = vmatprep.subr.bf16.mxu0 0
  %3605 = vmatpush2.bf16.msra.mxu0 0
  %3606 = vmatprep.subr.bf16.mxu0 0
  %3607 = vmatpush2.bf16.msra.mxu0 0
  %3608 = vmatprep.subr.bf16.mxu0 0
  %3609 = vmatpush2.bf16.msra.mxu0 0
  %3610 = vmatprep.subr.bf16.mxu0 0
  %3611 = vmatpush2.bf16.msra.mxu0 0
  %3612 = vmatprep.subr.bf16.mxu0 0
  %3613 = vmatpush2.bf16.msra.mxu0 0
  %3614 = vmatprep.subr.bf16.mxu0 0
  %3615 = vmatpush2.bf16.msra.mxu0 0
  %3616 = vmatprep.subr.bf16.mxu0 0
  %3617 = vmatpush2.bf16.msra.mxu0 0
  %3618 = vmatprep.mubr.bf16.mxu0 0
  %3619 = vmatmul.mubr.bf16.gmra.mxu0 %v3581
  %v3620 = vpop.f32.mrf.mxu0
  %v3621 = vadd.f32 0.0, %v3620
  %v3622 = vpop.f32.mrf.mxu0
  %v3623 = vpop.f32.mrf.mxu0
  %v3624 = vpop.f32.mrf.mxu0
  %3625 = vdwg.mxu0
  %3627 = vrot.lane.b32.xlu0 %v1289, 112
  %v3628 = vpop.permute.xlu0 %3627
  %v3630 = vsel %vm1084, %v3034, 0
  %v3633 = vsel %vm1296, %v3628, 0
  %3635 = vmatprep.subr.bf16.mxu0 0
  %3636 = vmatpush1.bf16.msra.mxu0 0
  %3637 = vmatprep.subr.bf16.mxu0 0
  %3638 = vmatpush1.bf16.msra.mxu0 0
  %3639 = vmatprep.subr.bf16.mxu0 0
  %3640 = vmatpush1.bf16.msra.mxu0 0
  %3641 = vmatprep.subr.bf16.mxu0 0
  %3642 = vmatpush1.bf16.msra.mxu0 0
  %3643 = vmatprep.subr.bf16.mxu0 0
  %3644 = vmatpush1.bf16.msra.mxu0 0
  %3645 = vmatprep.subr.bf16.mxu0 0
  %3646 = vmatpush1.bf16.msra.mxu0 0
  %3647 = vmatprep.subr.bf16.mxu0 0
  %3648 = vmatpush1.bf16.msra.mxu0 0
  %3649 = vmatprep.subr.bf16.mxu0 0
  %3650 = vmatpush1.bf16.msra.mxu0 %v3633
  %3651 = vmatprep.subr.bf16.mxu0 0
  %3652 = vmatpush2.bf16.msra.mxu0 0
  %3653 = vmatprep.subr.bf16.mxu0 0
  %3654 = vmatpush2.bf16.msra.mxu0 0
  %3655 = vmatprep.subr.bf16.mxu0 0
  %3656 = vmatpush2.bf16.msra.mxu0 0
  %3657 = vmatprep.subr.bf16.mxu0 0
  %3658 = vmatpush2.bf16.msra.mxu0 0
  %3659 = vmatprep.subr.bf16.mxu0 0
  %3660 = vmatpush2.bf16.msra.mxu0 0
  %3661 = vmatprep.subr.bf16.mxu0 0
  %3662 = vmatpush2.bf16.msra.mxu0 0
  %3663 = vmatprep.subr.bf16.mxu0 0
  %3664 = vmatpush2.bf16.msra.mxu0 0
  %3665 = vmatprep.subr.bf16.mxu0 0
  %3666 = vmatpush2.bf16.msra.mxu0 0
  %3667 = vmatprep.mubr.bf16.mxu0 0
  %3668 = vmatmul.mubr.bf16.gmra.mxu0 %v3630
  %v3669 = vpop.f32.mrf.mxu0
  %v3670 = vadd.f32 0.0, %v3669
  %v3671 = vpop.f32.mrf.mxu0
  %v3672 = vpop.f32.mrf.mxu0
  %v3673 = vpop.f32.mrf.mxu0
  %3674 = vdwg.mxu0
  %3676 = vrot.lane.b32.xlu0 %v1290, 112
  %v3677 = vpop.permute.xlu0 %3676
  %v3679 = vsel %vm1084, %v3035, 0
  %v3682 = vsel %vm1296, %v3677, 0
  %3684 = vmatprep.subr.bf16.mxu0 0
  %3685 = vmatpush1.bf16.msra.mxu0 0
  %3686 = vmatprep.subr.bf16.mxu0 0
  %3687 = vmatpush1.bf16.msra.mxu0 0
  %3688 = vmatprep.subr.bf16.mxu0 0
  %3689 = vmatpush1.bf16.msra.mxu0 0
  %3690 = vmatprep.subr.bf16.mxu0 0
  %3691 = vmatpush1.bf16.msra.mxu0 0
  %3692 = vmatprep.subr.bf16.mxu0 0
  %3693 = vmatpush1.bf16.msra.mxu0 0
  %3694 = vmatprep.subr.bf16.mxu0 0
  %3695 = vmatpush1.bf16.msra.mxu0 0
  %3696 = vmatprep.subr.bf16.mxu0 0
  %3697 = vmatpush1.bf16.msra.mxu0 0
  %3698 = vmatprep.subr.bf16.mxu0 0
  %3699 = vmatpush1.bf16.msra.mxu0 %v3682
  %3700 = vmatprep.subr.bf16.mxu0 0
  %3701 = vmatpush2.bf16.msra.mxu0 0
  %3702 = vmatprep.subr.bf16.mxu0 0
  %3703 = vmatpush2.bf16.msra.mxu0 0
  %3704 = vmatprep.subr.bf16.mxu0 0
  %3705 = vmatpush2.bf16.msra.mxu0 0
  %3706 = vmatprep.subr.bf16.mxu0 0
  %3707 = vmatpush2.bf16.msra.mxu0 0
  %3708 = vmatprep.subr.bf16.mxu0 0
  %3709 = vmatpush2.bf16.msra.mxu0 0
  %3710 = vmatprep.subr.bf16.mxu0 0
  %3711 = vmatpush2.bf16.msra.mxu0 0
  %3712 = vmatprep.subr.bf16.mxu0 0
  %3713 = vmatpush2.bf16.msra.mxu0 0
  %3714 = vmatprep.subr.bf16.mxu0 0
  %3715 = vmatpush2.bf16.msra.mxu0 0
  %3716 = vmatprep.mubr.bf16.mxu0 0
  %3717 = vmatmul.mubr.bf16.gmra.mxu0 %v3679
  %v3718 = vpop.f32.mrf.mxu0
  %v3719 = vadd.f32 0.0, %v3718
  %v3720 = vpop.f32.mrf.mxu0
  %v3721 = vpop.f32.mrf.mxu0
  %v3722 = vpop.f32.mrf.mxu0
  %3723 = vdwg.mxu0
  %3725 = vrot.lane.b32.xlu0 %v1291, 112
  %v3726 = vpop.permute.xlu0 %3725
  %v3728 = vsel %vm1084, %v3036, 0
  %v3731 = vsel %vm1296, %v3726, 0
  %3733 = vmatprep.subr.bf16.mxu0 0
  %3734 = vmatpush1.bf16.msra.mxu0 0
  %3735 = vmatprep.subr.bf16.mxu0 0
  %3736 = vmatpush1.bf16.msra.mxu0 0
  %3737 = vmatprep.subr.bf16.mxu0 0
  %3738 = vmatpush1.bf16.msra.mxu0 0
  %3739 = vmatprep.subr.bf16.mxu0 0
  %3740 = vmatpush1.bf16.msra.mxu0 0
  %3741 = vmatprep.subr.bf16.mxu0 0
  %3742 = vmatpush1.bf16.msra.mxu0 0
  %3743 = vmatprep.subr.bf16.mxu0 0
  %3744 = vmatpush1.bf16.msra.mxu0 0
  %3745 = vmatprep.subr.bf16.mxu0 0
  %3746 = vmatpush1.bf16.msra.mxu0 0
  %3747 = vmatprep.subr.bf16.mxu0 0
  %3748 = vmatpush1.bf16.msra.mxu0 %v3731
  %3749 = vmatprep.subr.bf16.mxu0 0
  %3750 = vmatpush2.bf16.msra.mxu0 0
  %3751 = vmatprep.subr.bf16.mxu0 0
  %3752 = vmatpush2.bf16.msra.mxu0 0
  %3753 = vmatprep.subr.bf16.mxu0 0
  %3754 = vmatpush2.bf16.msra.mxu0 0
  %3755 = vmatprep.subr.bf16.mxu0 0
  %3756 = vmatpush2.bf16.msra.mxu0 0
  %3757 = vmatprep.subr.bf16.mxu0 0
  %3758 = vmatpush2.bf16.msra.mxu0 0
  %3759 = vmatprep.subr.bf16.mxu0 0
  %3760 = vmatpush2.bf16.msra.mxu0 0
  %3761 = vmatprep.subr.bf16.mxu0 0
  %3762 = vmatpush2.bf16.msra.mxu0 0
  %3763 = vmatprep.subr.bf16.mxu0 0
  %3764 = vmatpush2.bf16.msra.mxu0 0
  %3765 = vmatprep.mubr.bf16.mxu0 0
  %3766 = vmatmul.mubr.bf16.gmra.mxu0 %v3728
  %v3767 = vpop.f32.mrf.mxu0
  %v3768 = vadd.f32 0.0, %v3767
  %v3769 = vpop.f32.mrf.mxu0
  %v3770 = vpop.f32.mrf.mxu0
  %v3771 = vpop.f32.mrf.mxu0
  %3772 = vdwg.mxu0
  %3774 = vrot.lane.b32.xlu0 %v1292, 112
  %v3775 = vpop.permute.xlu0 %3774
  %v3777 = vsel %vm1084, %v3037, 0
  %v3780 = vsel %vm1296, %v3775, 0
  %3782 = vmatprep.subr.bf16.mxu0 0
  %3783 = vmatpush1.bf16.msra.mxu0 0
  %3784 = vmatprep.subr.bf16.mxu0 0
  %3785 = vmatpush1.bf16.msra.mxu0 0
  %3786 = vmatprep.subr.bf16.mxu0 0
  %3787 = vmatpush1.bf16.msra.mxu0 0
  %3788 = vmatprep.subr.bf16.mxu0 0
  %3789 = vmatpush1.bf16.msra.mxu0 0
  %3790 = vmatprep.subr.bf16.mxu0 0
  %3791 = vmatpush1.bf16.msra.mxu0 0
  %3792 = vmatprep.subr.bf16.mxu0 0
  %3793 = vmatpush1.bf16.msra.mxu0 0
  %3794 = vmatprep.subr.bf16.mxu0 0
  %3795 = vmatpush1.bf16.msra.mxu0 0
  %3796 = vmatprep.subr.bf16.mxu0 0
  %3797 = vmatpush1.bf16.msra.mxu0 %v3780
  %3798 = vmatprep.subr.bf16.mxu0 0
  %3799 = vmatpush2.bf16.msra.mxu0 0
  %3800 = vmatprep.subr.bf16.mxu0 0
  %3801 = vmatpush2.bf16.msra.mxu0 0
  %3802 = vmatprep.subr.bf16.mxu0 0
  %3803 = vmatpush2.bf16.msra.mxu0 0
  %3804 = vmatprep.subr.bf16.mxu0 0
  %3805 = vmatpush2.bf16.msra.mxu0 0
  %3806 = vmatprep.subr.bf16.mxu0 0
  %3807 = vmatpush2.bf16.msra.mxu0 0
  %3808 = vmatprep.subr.bf16.mxu0 0
  %3809 = vmatpush2.bf16.msra.mxu0 0
  %3810 = vmatprep.subr.bf16.mxu0 0
  %3811 = vmatpush2.bf16.msra.mxu0 0
  %3812 = vmatprep.subr.bf16.mxu0 0
  %3813 = vmatpush2.bf16.msra.mxu0 0
  %3814 = vmatprep.mubr.bf16.mxu0 0
  %3815 = vmatmul.mubr.bf16.gmra.mxu0 %v3777
  %v3816 = vpop.f32.mrf.mxu0
  %v3817 = vadd.f32 0.0, %v3816
  %v3818 = vpop.f32.mrf.mxu0
  %v3819 = vpop.f32.mrf.mxu0
  %v3820 = vpop.f32.mrf.mxu0
  %3821 = vdwg.mxu0
  %3822 = vrot.lane.b32.xlu0 %v267, 96
  %v3823 = vpop.permute.xlu0 %3822
  %3824 = vrot.lane.b32.xlu0 %v267, 32
  %v3825 = vpop.permute.xlu0 %3824
  %v3827 = vsel %vm286, %v3823, 0
  %v3830 = vsel %vm286, %v3825, 0
  %3832 = vmatprep.subr.bf16.mxu0 0
  %3833 = vmatpush1.bf16.xpose.msra.mxu0 0
  %3834 = vmatprep.subr.bf16.mxu0 0
  %3835 = vmatpush1.bf16.xpose.msra.mxu0 0
  %3836 = vmatprep.subr.bf16.mxu0 0
  %3837 = vmatpush1.bf16.xpose.msra.mxu0 0
  %3838 = vmatprep.subr.bf16.mxu0 0
  %3839 = vmatpush1.bf16.xpose.msra.mxu0 0
  %3840 = vmatprep.subr.bf16.mxu0 0
  %3841 = vmatpush1.bf16.xpose.msra.mxu0 0
  %3842 = vmatprep.subr.bf16.mxu0 0
  %3843 = vmatpush1.bf16.xpose.msra.mxu0 0
  %3844 = vmatprep.subr.bf16.mxu0 0
  %3845 = vmatpush1.bf16.xpose.msra.mxu0 0
  %3846 = vmatprep.subr.bf16.mxu0 0
  %3847 = vmatpush1.bf16.xpose.msra.mxu0 %v3830
  %3848 = vmatprep.subr.bf16.mxu0 0
  %3849 = vmatpush2.bf16.xpose.msra.mxu0 0
  %3850 = vmatprep.subr.bf16.mxu0 0
  %3851 = vmatpush2.bf16.xpose.msra.mxu0 0
  %3852 = vmatprep.subr.bf16.mxu0 0
  %3853 = vmatpush2.bf16.xpose.msra.mxu0 0
  %3854 = vmatprep.subr.bf16.mxu0 0
  %3855 = vmatpush2.bf16.xpose.msra.mxu0 0
  %3856 = vmatprep.subr.bf16.mxu0 0
  %3857 = vmatpush2.bf16.xpose.msra.mxu0 0
  %3858 = vmatprep.subr.bf16.mxu0 0
  %3859 = vmatpush2.bf16.xpose.msra.mxu0 0
  %3860 = vmatprep.subr.bf16.mxu0 0
  %3861 = vmatpush2.bf16.xpose.msra.mxu0 0
  %3862 = vmatprep.subr.bf16.mxu0 0
  %3863 = vmatpush2.bf16.xpose.msra.mxu0 0
  %3864 = vmatprep.mubr.bf16.mxu0 0
  %3865 = vmatmul.mubr.bf16.gmra.mxu0 %v3827
  %v3866 = vpop.f32.mrf.mxu0
  %v3867 = vadd.f32 0.0, %v3866
  %v3868 = vpop.f32.mrf.mxu0
  %v3869 = vpop.f32.mrf.mxu0
  %v3870 = vpop.f32.mrf.mxu0
  %3871 = vdwg.mxu0
  %3872 = vrot.lane.b32.xlu0 %v268, 96
  %v3873 = vpop.permute.xlu0 %3872
  %3874 = vrot.lane.b32.xlu0 %v268, 32
  %v3875 = vpop.permute.xlu0 %3874
  %v3877 = vsel %vm286, %v3873, 0
  %v3880 = vsel %vm286, %v3875, 0
  %3882 = vmatprep.subr.bf16.mxu0 0
  %3883 = vmatpush1.bf16.xpose.msra.mxu0 0
  %3884 = vmatprep.subr.bf16.mxu0 0
  %3885 = vmatpush1.bf16.xpose.msra.mxu0 0
  %3886 = vmatprep.subr.bf16.mxu0 0
  %3887 = vmatpush1.bf16.xpose.msra.mxu0 0
  %3888 = vmatprep.subr.bf16.mxu0 0
  %3889 = vmatpush1.bf16.xpose.msra.mxu0 0
  %3890 = vmatprep.subr.bf16.mxu0 0
  %3891 = vmatpush1.bf16.xpose.msra.mxu0 0
  %3892 = vmatprep.subr.bf16.mxu0 0
  %3893 = vmatpush1.bf16.xpose.msra.mxu0 0
  %3894 = vmatprep.subr.bf16.mxu0 0
  %3895 = vmatpush1.bf16.xpose.msra.mxu0 0
  %3896 = vmatprep.subr.bf16.mxu0 0
  %3897 = vmatpush1.bf16.xpose.msra.mxu0 %v3880
  %3898 = vmatprep.subr.bf16.mxu0 0
  %3899 = vmatpush2.bf16.xpose.msra.mxu0 0
  %3900 = vmatprep.subr.bf16.mxu0 0
  %3901 = vmatpush2.bf16.xpose.msra.mxu0 0
  %3902 = vmatprep.subr.bf16.mxu0 0
  %3903 = vmatpush2.bf16.xpose.msra.mxu0 0
  %3904 = vmatprep.subr.bf16.mxu0 0
  %3905 = vmatpush2.bf16.xpose.msra.mxu0 0
  %3906 = vmatprep.subr.bf16.mxu0 0
  %3907 = vmatpush2.bf16.xpose.msra.mxu0 0
  %3908 = vmatprep.subr.bf16.mxu0 0
  %3909 = vmatpush2.bf16.xpose.msra.mxu0 0
  %3910 = vmatprep.subr.bf16.mxu0 0
  %3911 = vmatpush2.bf16.xpose.msra.mxu0 0
  %3912 = vmatprep.subr.bf16.mxu0 0
  %3913 = vmatpush2.bf16.xpose.msra.mxu0 0
  %3914 = vmatprep.mubr.bf16.mxu0 0
  %3915 = vmatmul.mubr.bf16.gmra.mxu0 %v3877
  %v3916 = vpop.f32.mrf.mxu0
  %v3917 = vadd.f32 0.0, %v3916
  %v3918 = vpop.f32.mrf.mxu0
  %v3919 = vpop.f32.mrf.mxu0
  %v3920 = vpop.f32.mrf.mxu0
  %3921 = vdwg.mxu0
  %3922 = vrot.lane.b32.xlu0 %v269, 96
  %v3923 = vpop.permute.xlu0 %3922
  %3924 = vrot.lane.b32.xlu0 %v269, 32
  %v3925 = vpop.permute.xlu0 %3924
  %v3927 = vsel %vm286, %v3923, 0
  %v3930 = vsel %vm286, %v3925, 0
  %3932 = vmatprep.subr.bf16.mxu0 0
  %3933 = vmatpush1.bf16.xpose.msra.mxu0 0
  %3934 = vmatprep.subr.bf16.mxu0 0
  %3935 = vmatpush1.bf16.xpose.msra.mxu0 0
  %3936 = vmatprep.subr.bf16.mxu0 0
  %3937 = vmatpush1.bf16.xpose.msra.mxu0 0
  %3938 = vmatprep.subr.bf16.mxu0 0
  %3939 = vmatpush1.bf16.xpose.msra.mxu0 0
  %3940 = vmatprep.subr.bf16.mxu0 0
  %3941 = vmatpush1.bf16.xpose.msra.mxu0 0
  %3942 = vmatprep.subr.bf16.mxu0 0
  %3943 = vmatpush1.bf16.xpose.msra.mxu0 0
  %3944 = vmatprep.subr.bf16.mxu0 0
  %3945 = vmatpush1.bf16.xpose.msra.mxu0 0
  %3946 = vmatprep.subr.bf16.mxu0 0
  %3947 = vmatpush1.bf16.xpose.msra.mxu0 %v3930
  %3948 = vmatprep.subr.bf16.mxu0 0
  %3949 = vmatpush2.bf16.xpose.msra.mxu0 0
  %3950 = vmatprep.subr.bf16.mxu0 0
  %3951 = vmatpush2.bf16.xpose.msra.mxu0 0
  %3952 = vmatprep.subr.bf16.mxu0 0
  %3953 = vmatpush2.bf16.xpose.msra.mxu0 0
  %3954 = vmatprep.subr.bf16.mxu0 0
  %3955 = vmatpush2.bf16.xpose.msra.mxu0 0
  %3956 = vmatprep.subr.bf16.mxu0 0
  %3957 = vmatpush2.bf16.xpose.msra.mxu0 0
  %3958 = vmatprep.subr.bf16.mxu0 0
  %3959 = vmatpush2.bf16.xpose.msra.mxu0 0
  %3960 = vmatprep.subr.bf16.mxu0 0
  %3961 = vmatpush2.bf16.xpose.msra.mxu0 0
  %3962 = vmatprep.subr.bf16.mxu0 0
  %3963 = vmatpush2.bf16.xpose.msra.mxu0 0
  %3964 = vmatprep.mubr.bf16.mxu0 0
  %3965 = vmatmul.mubr.bf16.gmra.mxu0 %v3927
  %v3966 = vpop.f32.mrf.mxu0
  %v3967 = vadd.f32 0.0, %v3966
  %v3968 = vpop.f32.mrf.mxu0
  %v3969 = vpop.f32.mrf.mxu0
  %v3970 = vpop.f32.mrf.mxu0
  %3971 = vdwg.mxu0
  %3972 = vrot.lane.b32.xlu0 %v270, 96
  %v3973 = vpop.permute.xlu0 %3972
  %3974 = vrot.lane.b32.xlu0 %v270, 32
  %v3975 = vpop.permute.xlu0 %3974
  %v3977 = vsel %vm286, %v3973, 0
  %v3980 = vsel %vm286, %v3975, 0
  %3982 = vmatprep.subr.bf16.mxu0 0
  %3983 = vmatpush1.bf16.xpose.msra.mxu0 0
  %3984 = vmatprep.subr.bf16.mxu0 0
  %3985 = vmatpush1.bf16.xpose.msra.mxu0 0
  %3986 = vmatprep.subr.bf16.mxu0 0
  %3987 = vmatpush1.bf16.xpose.msra.mxu0 0
  %3988 = vmatprep.subr.bf16.mxu0 0
  %3989 = vmatpush1.bf16.xpose.msra.mxu0 0
  %3990 = vmatprep.subr.bf16.mxu0 0
  %3991 = vmatpush1.bf16.xpose.msra.mxu0 0
  %3992 = vmatprep.subr.bf16.mxu0 0
  %3993 = vmatpush1.bf16.xpose.msra.mxu0 0
  %3994 = vmatprep.subr.bf16.mxu0 0
  %3995 = vmatpush1.bf16.xpose.msra.mxu0 0
  %3996 = vmatprep.subr.bf16.mxu0 0
  %3997 = vmatpush1.bf16.xpose.msra.mxu0 %v3980
  %3998 = vmatprep.subr.bf16.mxu0 0
  %3999 = vmatpush2.bf16.xpose.msra.mxu0 0
  %4000 = vmatprep.subr.bf16.mxu0 0
  %4001 = vmatpush2.bf16.xpose.msra.mxu0 0
  %4002 = vmatprep.subr.bf16.mxu0 0
  %4003 = vmatpush2.bf16.xpose.msra.mxu0 0
  %4004 = vmatprep.subr.bf16.mxu0 0
  %4005 = vmatpush2.bf16.xpose.msra.mxu0 0
  %4006 = vmatprep.subr.bf16.mxu0 0
  %4007 = vmatpush2.bf16.xpose.msra.mxu0 0
  %4008 = vmatprep.subr.bf16.mxu0 0
  %4009 = vmatpush2.bf16.xpose.msra.mxu0 0
  %4010 = vmatprep.subr.bf16.mxu0 0
  %4011 = vmatpush2.bf16.xpose.msra.mxu0 0
  %4012 = vmatprep.subr.bf16.mxu0 0
  %4013 = vmatpush2.bf16.xpose.msra.mxu0 0
  %4014 = vmatprep.mubr.bf16.mxu0 0
  %4015 = vmatmul.mubr.bf16.gmra.mxu0 %v3977
  %v4016 = vpop.f32.mrf.mxu0
  %v4017 = vadd.f32 0.0, %v4016
  %v4018 = vpop.f32.mrf.mxu0
  %v4019 = vpop.f32.mrf.mxu0
  %v4020 = vpop.f32.mrf.mxu0
  %4021 = vdwg.mxu0
  %4022 = vrot.lane.b32.xlu0 %v271, 96
  %v4023 = vpop.permute.xlu0 %4022
  %4024 = vrot.lane.b32.xlu0 %v271, 32
  %v4025 = vpop.permute.xlu0 %4024
  %v4027 = vsel %vm286, %v4023, 0
  %v4030 = vsel %vm286, %v4025, 0
  %4032 = vmatprep.subr.bf16.mxu0 0
  %4033 = vmatpush1.bf16.xpose.msra.mxu0 0
  %4034 = vmatprep.subr.bf16.mxu0 0
  %4035 = vmatpush1.bf16.xpose.msra.mxu0 0
  %4036 = vmatprep.subr.bf16.mxu0 0
  %4037 = vmatpush1.bf16.xpose.msra.mxu0 0
  %4038 = vmatprep.subr.bf16.mxu0 0
  %4039 = vmatpush1.bf16.xpose.msra.mxu0 0
  %4040 = vmatprep.subr.bf16.mxu0 0
  %4041 = vmatpush1.bf16.xpose.msra.mxu0 0
  %4042 = vmatprep.subr.bf16.mxu0 0
  %4043 = vmatpush1.bf16.xpose.msra.mxu0 0
  %4044 = vmatprep.subr.bf16.mxu0 0
  %4045 = vmatpush1.bf16.xpose.msra.mxu0 0
  %4046 = vmatprep.subr.bf16.mxu0 0
  %4047 = vmatpush1.bf16.xpose.msra.mxu0 %v4030
  %4048 = vmatprep.subr.bf16.mxu0 0
  %4049 = vmatpush2.bf16.xpose.msra.mxu0 0
  %4050 = vmatprep.subr.bf16.mxu0 0
  %4051 = vmatpush2.bf16.xpose.msra.mxu0 0
  %4052 = vmatprep.subr.bf16.mxu0 0
  %4053 = vmatpush2.bf16.xpose.msra.mxu0 0
  %4054 = vmatprep.subr.bf16.mxu0 0
  %4055 = vmatpush2.bf16.xpose.msra.mxu0 0
  %4056 = vmatprep.subr.bf16.mxu0 0
  %4057 = vmatpush2.bf16.xpose.msra.mxu0 0
  %4058 = vmatprep.subr.bf16.mxu0 0
  %4059 = vmatpush2.bf16.xpose.msra.mxu0 0
  %4060 = vmatprep.subr.bf16.mxu0 0
  %4061 = vmatpush2.bf16.xpose.msra.mxu0 0
  %4062 = vmatprep.subr.bf16.mxu0 0
  %4063 = vmatpush2.bf16.xpose.msra.mxu0 0
  %4064 = vmatprep.mubr.bf16.mxu0 0
  %4065 = vmatmul.mubr.bf16.gmra.mxu0 %v4027
  %v4066 = vpop.f32.mrf.mxu0
  %v4067 = vadd.f32 0.0, %v4066
  %v4068 = vpop.f32.mrf.mxu0
  %v4069 = vpop.f32.mrf.mxu0
  %v4070 = vpop.f32.mrf.mxu0
  %4071 = vdwg.mxu0
  %4072 = vrot.lane.b32.xlu0 %v272, 96
  %v4073 = vpop.permute.xlu0 %4072
  %4074 = vrot.lane.b32.xlu0 %v272, 32
  %v4075 = vpop.permute.xlu0 %4074
  %v4077 = vsel %vm286, %v4073, 0
  %v4080 = vsel %vm286, %v4075, 0
  %4082 = vmatprep.subr.bf16.mxu0 0
  %4083 = vmatpush1.bf16.xpose.msra.mxu0 0
  %4084 = vmatprep.subr.bf16.mxu0 0
  %4085 = vmatpush1.bf16.xpose.msra.mxu0 0
  %4086 = vmatprep.subr.bf16.mxu0 0
  %4087 = vmatpush1.bf16.xpose.msra.mxu0 0
  %4088 = vmatprep.subr.bf16.mxu0 0
  %4089 = vmatpush1.bf16.xpose.msra.mxu0 0
  %4090 = vmatprep.subr.bf16.mxu0 0
  %4091 = vmatpush1.bf16.xpose.msra.mxu0 0
  %4092 = vmatprep.subr.bf16.mxu0 0
  %4093 = vmatpush1.bf16.xpose.msra.mxu0 0
  %4094 = vmatprep.subr.bf16.mxu0 0
  %4095 = vmatpush1.bf16.xpose.msra.mxu0 0
  %4096 = vmatprep.subr.bf16.mxu0 0
  %4097 = vmatpush1.bf16.xpose.msra.mxu0 %v4080
  %4098 = vmatprep.subr.bf16.mxu0 0
  %4099 = vmatpush2.bf16.xpose.msra.mxu0 0
  %4100 = vmatprep.subr.bf16.mxu0 0
  %4101 = vmatpush2.bf16.xpose.msra.mxu0 0
  %4102 = vmatprep.subr.bf16.mxu0 0
  %4103 = vmatpush2.bf16.xpose.msra.mxu0 0
  %4104 = vmatprep.subr.bf16.mxu0 0
  %4105 = vmatpush2.bf16.xpose.msra.mxu0 0
  %4106 = vmatprep.subr.bf16.mxu0 0
  %4107 = vmatpush2.bf16.xpose.msra.mxu0 0
  %4108 = vmatprep.subr.bf16.mxu0 0
  %4109 = vmatpush2.bf16.xpose.msra.mxu0 0
  %4110 = vmatprep.subr.bf16.mxu0 0
  %4111 = vmatpush2.bf16.xpose.msra.mxu0 0
  %4112 = vmatprep.subr.bf16.mxu0 0
  %4113 = vmatpush2.bf16.xpose.msra.mxu0 0
  %4114 = vmatprep.mubr.bf16.mxu0 0
  %4115 = vmatmul.mubr.bf16.gmra.mxu0 %v4077
  %v4116 = vpop.f32.mrf.mxu0
  %v4117 = vadd.f32 0.0, %v4116
  %v4118 = vpop.f32.mrf.mxu0
  %v4119 = vpop.f32.mrf.mxu0
  %v4120 = vpop.f32.mrf.mxu0
  %4121 = vdwg.mxu0
  %4122 = vrot.lane.b32.xlu0 %v273, 96
  %v4123 = vpop.permute.xlu0 %4122
  %4124 = vrot.lane.b32.xlu0 %v273, 32
  %v4125 = vpop.permute.xlu0 %4124
  %v4127 = vsel %vm286, %v4123, 0
  %v4130 = vsel %vm286, %v4125, 0
  %4132 = vmatprep.subr.bf16.mxu0 0
  %4133 = vmatpush1.bf16.xpose.msra.mxu0 0
  %4134 = vmatprep.subr.bf16.mxu0 0
  %4135 = vmatpush1.bf16.xpose.msra.mxu0 0
  %4136 = vmatprep.subr.bf16.mxu0 0
  %4137 = vmatpush1.bf16.xpose.msra.mxu0 0
  %4138 = vmatprep.subr.bf16.mxu0 0
  %4139 = vmatpush1.bf16.xpose.msra.mxu0 0
  %4140 = vmatprep.subr.bf16.mxu0 0
  %4141 = vmatpush1.bf16.xpose.msra.mxu0 0
  %4142 = vmatprep.subr.bf16.mxu0 0
  %4143 = vmatpush1.bf16.xpose.msra.mxu0 0
  %4144 = vmatprep.subr.bf16.mxu0 0
  %4145 = vmatpush1.bf16.xpose.msra.mxu0 0
  %4146 = vmatprep.subr.bf16.mxu0 0
  %4147 = vmatpush1.bf16.xpose.msra.mxu0 %v4130
  %4148 = vmatprep.subr.bf16.mxu0 0
  %4149 = vmatpush2.bf16.xpose.msra.mxu0 0
  %4150 = vmatprep.subr.bf16.mxu0 0
  %4151 = vmatpush2.bf16.xpose.msra.mxu0 0
  %4152 = vmatprep.subr.bf16.mxu0 0
  %4153 = vmatpush2.bf16.xpose.msra.mxu0 0
  %4154 = vmatprep.subr.bf16.mxu0 0
  %4155 = vmatpush2.bf16.xpose.msra.mxu0 0
  %4156 = vmatprep.subr.bf16.mxu0 0
  %4157 = vmatpush2.bf16.xpose.msra.mxu0 0
  %4158 = vmatprep.subr.bf16.mxu0 0
  %4159 = vmatpush2.bf16.xpose.msra.mxu0 0
  %4160 = vmatprep.subr.bf16.mxu0 0
  %4161 = vmatpush2.bf16.xpose.msra.mxu0 0
  %4162 = vmatprep.subr.bf16.mxu0 0
  %4163 = vmatpush2.bf16.xpose.msra.mxu0 0
  %4164 = vmatprep.mubr.bf16.mxu0 0
  %4165 = vmatmul.mubr.bf16.gmra.mxu0 %v4127
  %v4166 = vpop.f32.mrf.mxu0
  %v4167 = vadd.f32 0.0, %v4166
  %v4168 = vpop.f32.mrf.mxu0
  %v4169 = vpop.f32.mrf.mxu0
  %v4170 = vpop.f32.mrf.mxu0
  %4171 = vdwg.mxu0
  %4172 = vrot.lane.b32.xlu0 %v274, 96
  %v4173 = vpop.permute.xlu0 %4172
  %4174 = vrot.lane.b32.xlu0 %v274, 32
  %v4175 = vpop.permute.xlu0 %4174
  %v4177 = vsel %vm286, %v4173, 0
  %v4180 = vsel %vm286, %v4175, 0
  %4182 = vmatprep.subr.bf16.mxu0 0
  %4183 = vmatpush1.bf16.xpose.msra.mxu0 0
  %4184 = vmatprep.subr.bf16.mxu0 0
  %4185 = vmatpush1.bf16.xpose.msra.mxu0 0
  %4186 = vmatprep.subr.bf16.mxu0 0
  %4187 = vmatpush1.bf16.xpose.msra.mxu0 0
  %4188 = vmatprep.subr.bf16.mxu0 0
  %4189 = vmatpush1.bf16.xpose.msra.mxu0 0
  %4190 = vmatprep.subr.bf16.mxu0 0
  %4191 = vmatpush1.bf16.xpose.msra.mxu0 0
  %4192 = vmatprep.subr.bf16.mxu0 0
  %4193 = vmatpush1.bf16.xpose.msra.mxu0 0
  %4194 = vmatprep.subr.bf16.mxu0 0
  %4195 = vmatpush1.bf16.xpose.msra.mxu0 0
  %4196 = vmatprep.subr.bf16.mxu0 0
  %4197 = vmatpush1.bf16.xpose.msra.mxu0 %v4180
  %4198 = vmatprep.subr.bf16.mxu0 0
  %4199 = vmatpush2.bf16.xpose.msra.mxu0 0
  %4200 = vmatprep.subr.bf16.mxu0 0
  %4201 = vmatpush2.bf16.xpose.msra.mxu0 0
  %4202 = vmatprep.subr.bf16.mxu0 0
  %4203 = vmatpush2.bf16.xpose.msra.mxu0 0
  %4204 = vmatprep.subr.bf16.mxu0 0
  %4205 = vmatpush2.bf16.xpose.msra.mxu0 0
  %4206 = vmatprep.subr.bf16.mxu0 0
  %4207 = vmatpush2.bf16.xpose.msra.mxu0 0
  %4208 = vmatprep.subr.bf16.mxu0 0
  %4209 = vmatpush2.bf16.xpose.msra.mxu0 0
  %4210 = vmatprep.subr.bf16.mxu0 0
  %4211 = vmatpush2.bf16.xpose.msra.mxu0 0
  %4212 = vmatprep.subr.bf16.mxu0 0
  %4213 = vmatpush2.bf16.xpose.msra.mxu0 0
  %4214 = vmatprep.mubr.bf16.mxu0 0
  %4215 = vmatmul.mubr.bf16.gmra.mxu0 %v4177
  %v4216 = vpop.f32.mrf.mxu0
  %v4217 = vadd.f32 0.0, %v4216
  %v4218 = vpop.f32.mrf.mxu0
  %v4219 = vpop.f32.mrf.mxu0
  %v4220 = vpop.f32.mrf.mxu0
  %4221 = vdwg.mxu0
  %4222 = vrot.lane.b32.xlu0 %v275, 96
  %v4223 = vpop.permute.xlu0 %4222
  %4224 = vrot.lane.b32.xlu0 %v275, 32
  %v4225 = vpop.permute.xlu0 %4224
  %v4227 = vsel %vm286, %v4223, 0
  %v4230 = vsel %vm286, %v4225, 0
  %4232 = vmatprep.subr.bf16.mxu0 0
  %4233 = vmatpush1.bf16.xpose.msra.mxu0 0
  %4234 = vmatprep.subr.bf16.mxu0 0
  %4235 = vmatpush1.bf16.xpose.msra.mxu0 0
  %4236 = vmatprep.subr.bf16.mxu0 0
  %4237 = vmatpush1.bf16.xpose.msra.mxu0 0
  %4238 = vmatprep.subr.bf16.mxu0 0
  %4239 = vmatpush1.bf16.xpose.msra.mxu0 0
  %4240 = vmatprep.subr.bf16.mxu0 0
  %4241 = vmatpush1.bf16.xpose.msra.mxu0 0
  %4242 = vmatprep.subr.bf16.mxu0 0
  %4243 = vmatpush1.bf16.xpose.msra.mxu0 0
  %4244 = vmatprep.subr.bf16.mxu0 0
  %4245 = vmatpush1.bf16.xpose.msra.mxu0 0
  %4246 = vmatprep.subr.bf16.mxu0 0
  %4247 = vmatpush1.bf16.xpose.msra.mxu0 %v4230
  %4248 = vmatprep.subr.bf16.mxu0 0
  %4249 = vmatpush2.bf16.xpose.msra.mxu0 0
  %4250 = vmatprep.subr.bf16.mxu0 0
  %4251 = vmatpush2.bf16.xpose.msra.mxu0 0
  %4252 = vmatprep.subr.bf16.mxu0 0
  %4253 = vmatpush2.bf16.xpose.msra.mxu0 0
  %4254 = vmatprep.subr.bf16.mxu0 0
  %4255 = vmatpush2.bf16.xpose.msra.mxu0 0
  %4256 = vmatprep.subr.bf16.mxu0 0
  %4257 = vmatpush2.bf16.xpose.msra.mxu0 0
  %4258 = vmatprep.subr.bf16.mxu0 0
  %4259 = vmatpush2.bf16.xpose.msra.mxu0 0
  %4260 = vmatprep.subr.bf16.mxu0 0
  %4261 = vmatpush2.bf16.xpose.msra.mxu0 0
  %4262 = vmatprep.subr.bf16.mxu0 0
  %4263 = vmatpush2.bf16.xpose.msra.mxu0 0
  %4264 = vmatprep.mubr.bf16.mxu0 0
  %4265 = vmatmul.mubr.bf16.gmra.mxu0 %v4227
  %v4266 = vpop.f32.mrf.mxu0
  %v4267 = vadd.f32 0.0, %v4266
  %v4268 = vpop.f32.mrf.mxu0
  %v4269 = vpop.f32.mrf.mxu0
  %v4270 = vpop.f32.mrf.mxu0
  %4271 = vdwg.mxu0
  %4272 = vrot.lane.b32.xlu0 %v276, 96
  %v4273 = vpop.permute.xlu0 %4272
  %4274 = vrot.lane.b32.xlu0 %v276, 32
  %v4275 = vpop.permute.xlu0 %4274
  %v4277 = vsel %vm286, %v4273, 0
  %v4280 = vsel %vm286, %v4275, 0
  %4282 = vmatprep.subr.bf16.mxu0 0
  %4283 = vmatpush1.bf16.xpose.msra.mxu0 0
  %4284 = vmatprep.subr.bf16.mxu0 0
  %4285 = vmatpush1.bf16.xpose.msra.mxu0 0
  %4286 = vmatprep.subr.bf16.mxu0 0
  %4287 = vmatpush1.bf16.xpose.msra.mxu0 0
  %4288 = vmatprep.subr.bf16.mxu0 0
  %4289 = vmatpush1.bf16.xpose.msra.mxu0 0
  %4290 = vmatprep.subr.bf16.mxu0 0
  %4291 = vmatpush1.bf16.xpose.msra.mxu0 0
  %4292 = vmatprep.subr.bf16.mxu0 0
  %4293 = vmatpush1.bf16.xpose.msra.mxu0 0
  %4294 = vmatprep.subr.bf16.mxu0 0
  %4295 = vmatpush1.bf16.xpose.msra.mxu0 0
  %4296 = vmatprep.subr.bf16.mxu0 0
  %4297 = vmatpush1.bf16.xpose.msra.mxu0 %v4280
  %4298 = vmatprep.subr.bf16.mxu0 0
  %4299 = vmatpush2.bf16.xpose.msra.mxu0 0
  %4300 = vmatprep.subr.bf16.mxu0 0
  %4301 = vmatpush2.bf16.xpose.msra.mxu0 0
  %4302 = vmatprep.subr.bf16.mxu0 0
  %4303 = vmatpush2.bf16.xpose.msra.mxu0 0
  %4304 = vmatprep.subr.bf16.mxu0 0
  %4305 = vmatpush2.bf16.xpose.msra.mxu0 0
  %4306 = vmatprep.subr.bf16.mxu0 0
  %4307 = vmatpush2.bf16.xpose.msra.mxu0 0
  %4308 = vmatprep.subr.bf16.mxu0 0
  %4309 = vmatpush2.bf16.xpose.msra.mxu0 0
  %4310 = vmatprep.subr.bf16.mxu0 0
  %4311 = vmatpush2.bf16.xpose.msra.mxu0 0
  %4312 = vmatprep.subr.bf16.mxu0 0
  %4313 = vmatpush2.bf16.xpose.msra.mxu0 0
  %4314 = vmatprep.mubr.bf16.mxu0 0
  %4315 = vmatmul.mubr.bf16.gmra.mxu0 %v4277
  %v4316 = vpop.f32.mrf.mxu0
  %v4317 = vadd.f32 0.0, %v4316
  %v4318 = vpop.f32.mrf.mxu0
  %v4319 = vpop.f32.mrf.mxu0
  %v4320 = vpop.f32.mrf.mxu0
  %4321 = vdwg.mxu0
  %4322 = vrot.lane.b32.xlu0 %v277, 96
  %v4323 = vpop.permute.xlu0 %4322
  %4324 = vrot.lane.b32.xlu0 %v277, 32
  %v4325 = vpop.permute.xlu0 %4324
  %v4327 = vsel %vm286, %v4323, 0
  %v4330 = vsel %vm286, %v4325, 0
  %4332 = vmatprep.subr.bf16.mxu0 0
  %4333 = vmatpush1.bf16.xpose.msra.mxu0 0
  %4334 = vmatprep.subr.bf16.mxu0 0
  %4335 = vmatpush1.bf16.xpose.msra.mxu0 0
  %4336 = vmatprep.subr.bf16.mxu0 0
  %4337 = vmatpush1.bf16.xpose.msra.mxu0 0
  %4338 = vmatprep.subr.bf16.mxu0 0
  %4339 = vmatpush1.bf16.xpose.msra.mxu0 0
  %4340 = vmatprep.subr.bf16.mxu0 0
  %4341 = vmatpush1.bf16.xpose.msra.mxu0 0
  %4342 = vmatprep.subr.bf16.mxu0 0
  %4343 = vmatpush1.bf16.xpose.msra.mxu0 0
  %4344 = vmatprep.subr.bf16.mxu0 0
  %4345 = vmatpush1.bf16.xpose.msra.mxu0 0
  %4346 = vmatprep.subr.bf16.mxu0 0
  %4347 = vmatpush1.bf16.xpose.msra.mxu0 %v4330
  %4348 = vmatprep.subr.bf16.mxu0 0
  %4349 = vmatpush2.bf16.xpose.msra.mxu0 0
  %4350 = vmatprep.subr.bf16.mxu0 0
  %4351 = vmatpush2.bf16.xpose.msra.mxu0 0
  %4352 = vmatprep.subr.bf16.mxu0 0
  %4353 = vmatpush2.bf16.xpose.msra.mxu0 0
  %4354 = vmatprep.subr.bf16.mxu0 0
  %4355 = vmatpush2.bf16.xpose.msra.mxu0 0
  %4356 = vmatprep.subr.bf16.mxu0 0
  %4357 = vmatpush2.bf16.xpose.msra.mxu0 0
  %4358 = vmatprep.subr.bf16.mxu0 0
  %4359 = vmatpush2.bf16.xpose.msra.mxu0 0
  %4360 = vmatprep.subr.bf16.mxu0 0
  %4361 = vmatpush2.bf16.xpose.msra.mxu0 0
  %4362 = vmatprep.subr.bf16.mxu0 0
  %4363 = vmatpush2.bf16.xpose.msra.mxu0 0
  %4364 = vmatprep.mubr.bf16.mxu0 0
  %4365 = vmatmul.mubr.bf16.gmra.mxu0 %v4327
  %v4366 = vpop.f32.mrf.mxu0
  %v4367 = vadd.f32 0.0, %v4366
  %v4368 = vpop.f32.mrf.mxu0
  %v4369 = vpop.f32.mrf.mxu0
  %v4370 = vpop.f32.mrf.mxu0
  %4371 = vdwg.mxu0
  %4372 = vrot.lane.b32.xlu0 %v278, 96
  %v4373 = vpop.permute.xlu0 %4372
  %4374 = vrot.lane.b32.xlu0 %v278, 32
  %v4375 = vpop.permute.xlu0 %4374
  %v4377 = vsel %vm286, %v4373, 0
  %v4380 = vsel %vm286, %v4375, 0
  %4382 = vmatprep.subr.bf16.mxu0 0
  %4383 = vmatpush1.bf16.xpose.msra.mxu0 0
  %4384 = vmatprep.subr.bf16.mxu0 0
  %4385 = vmatpush1.bf16.xpose.msra.mxu0 0
  %4386 = vmatprep.subr.bf16.mxu0 0
  %4387 = vmatpush1.bf16.xpose.msra.mxu0 0
  %4388 = vmatprep.subr.bf16.mxu0 0
  %4389 = vmatpush1.bf16.xpose.msra.mxu0 0
  %4390 = vmatprep.subr.bf16.mxu0 0
  %4391 = vmatpush1.bf16.xpose.msra.mxu0 0
  %4392 = vmatprep.subr.bf16.mxu0 0
  %4393 = vmatpush1.bf16.xpose.msra.mxu0 0
  %4394 = vmatprep.subr.bf16.mxu0 0
  %4395 = vmatpush1.bf16.xpose.msra.mxu0 0
  %4396 = vmatprep.subr.bf16.mxu0 0
  %4397 = vmatpush1.bf16.xpose.msra.mxu0 %v4380
  %4398 = vmatprep.subr.bf16.mxu0 0
  %4399 = vmatpush2.bf16.xpose.msra.mxu0 0
  %4400 = vmatprep.subr.bf16.mxu0 0
  %4401 = vmatpush2.bf16.xpose.msra.mxu0 0
  %4402 = vmatprep.subr.bf16.mxu0 0
  %4403 = vmatpush2.bf16.xpose.msra.mxu0 0
  %4404 = vmatprep.subr.bf16.mxu0 0
  %4405 = vmatpush2.bf16.xpose.msra.mxu0 0
  %4406 = vmatprep.subr.bf16.mxu0 0
  %4407 = vmatpush2.bf16.xpose.msra.mxu0 0
  %4408 = vmatprep.subr.bf16.mxu0 0
  %4409 = vmatpush2.bf16.xpose.msra.mxu0 0
  %4410 = vmatprep.subr.bf16.mxu0 0
  %4411 = vmatpush2.bf16.xpose.msra.mxu0 0
  %4412 = vmatprep.subr.bf16.mxu0 0
  %4413 = vmatpush2.bf16.xpose.msra.mxu0 0
  %4414 = vmatprep.mubr.bf16.mxu0 0
  %4415 = vmatmul.mubr.bf16.gmra.mxu0 %v4377
  %v4416 = vpop.f32.mrf.mxu0
  %v4417 = vadd.f32 0.0, %v4416
  %v4418 = vpop.f32.mrf.mxu0
  %v4419 = vpop.f32.mrf.mxu0
  %v4420 = vpop.f32.mrf.mxu0
  %4421 = vdwg.mxu0
  %4422 = vrot.lane.b32.xlu0 %v279, 96
  %v4423 = vpop.permute.xlu0 %4422
  %4424 = vrot.lane.b32.xlu0 %v279, 32
  %v4425 = vpop.permute.xlu0 %4424
  %v4427 = vsel %vm286, %v4423, 0
  %v4430 = vsel %vm286, %v4425, 0
  %4432 = vmatprep.subr.bf16.mxu0 0
  %4433 = vmatpush1.bf16.xpose.msra.mxu0 0
  %4434 = vmatprep.subr.bf16.mxu0 0
  %4435 = vmatpush1.bf16.xpose.msra.mxu0 0
  %4436 = vmatprep.subr.bf16.mxu0 0
  %4437 = vmatpush1.bf16.xpose.msra.mxu0 0
  %4438 = vmatprep.subr.bf16.mxu0 0
  %4439 = vmatpush1.bf16.xpose.msra.mxu0 0
  %4440 = vmatprep.subr.bf16.mxu0 0
  %4441 = vmatpush1.bf16.xpose.msra.mxu0 0
  %4442 = vmatprep.subr.bf16.mxu0 0
  %4443 = vmatpush1.bf16.xpose.msra.mxu0 0
  %4444 = vmatprep.subr.bf16.mxu0 0
  %4445 = vmatpush1.bf16.xpose.msra.mxu0 0
  %4446 = vmatprep.subr.bf16.mxu0 0
  %4447 = vmatpush1.bf16.xpose.msra.mxu0 %v4430
  %4448 = vmatprep.subr.bf16.mxu0 0
  %4449 = vmatpush2.bf16.xpose.msra.mxu0 0
  %4450 = vmatprep.subr.bf16.mxu0 0
  %4451 = vmatpush2.bf16.xpose.msra.mxu0 0
  %4452 = vmatprep.subr.bf16.mxu0 0
  %4453 = vmatpush2.bf16.xpose.msra.mxu0 0
  %4454 = vmatprep.subr.bf16.mxu0 0
  %4455 = vmatpush2.bf16.xpose.msra.mxu0 0
  %4456 = vmatprep.subr.bf16.mxu0 0
  %4457 = vmatpush2.bf16.xpose.msra.mxu0 0
  %4458 = vmatprep.subr.bf16.mxu0 0
  %4459 = vmatpush2.bf16.xpose.msra.mxu0 0
  %4460 = vmatprep.subr.bf16.mxu0 0
  %4461 = vmatpush2.bf16.xpose.msra.mxu0 0
  %4462 = vmatprep.subr.bf16.mxu0 0
  %4463 = vmatpush2.bf16.xpose.msra.mxu0 0
  %4464 = vmatprep.mubr.bf16.mxu0 0
  %4465 = vmatmul.mubr.bf16.gmra.mxu0 %v4427
  %v4466 = vpop.f32.mrf.mxu0
  %v4467 = vadd.f32 0.0, %v4466
  %v4468 = vpop.f32.mrf.mxu0
  %v4469 = vpop.f32.mrf.mxu0
  %v4470 = vpop.f32.mrf.mxu0
  %4471 = vdwg.mxu0
  %4472 = vrot.lane.b32.xlu0 %v280, 96
  %v4473 = vpop.permute.xlu0 %4472
  %4474 = vrot.lane.b32.xlu0 %v280, 32
  %v4475 = vpop.permute.xlu0 %4474
  %v4477 = vsel %vm286, %v4473, 0
  %v4480 = vsel %vm286, %v4475, 0
  %4482 = vmatprep.subr.bf16.mxu0 0
  %4483 = vmatpush1.bf16.xpose.msra.mxu0 0
  %4484 = vmatprep.subr.bf16.mxu0 0
  %4485 = vmatpush1.bf16.xpose.msra.mxu0 0
  %4486 = vmatprep.subr.bf16.mxu0 0
  %4487 = vmatpush1.bf16.xpose.msra.mxu0 0
  %4488 = vmatprep.subr.bf16.mxu0 0
  %4489 = vmatpush1.bf16.xpose.msra.mxu0 0
  %4490 = vmatprep.subr.bf16.mxu0 0
  %4491 = vmatpush1.bf16.xpose.msra.mxu0 0
  %4492 = vmatprep.subr.bf16.mxu0 0
  %4493 = vmatpush1.bf16.xpose.msra.mxu0 0
  %4494 = vmatprep.subr.bf16.mxu0 0
  %4495 = vmatpush1.bf16.xpose.msra.mxu0 0
  %4496 = vmatprep.subr.bf16.mxu0 0
  %4497 = vmatpush1.bf16.xpose.msra.mxu0 %v4480
  %4498 = vmatprep.subr.bf16.mxu0 0
  %4499 = vmatpush2.bf16.xpose.msra.mxu0 0
  %4500 = vmatprep.subr.bf16.mxu0 0
  %4501 = vmatpush2.bf16.xpose.msra.mxu0 0
  %4502 = vmatprep.subr.bf16.mxu0 0
  %4503 = vmatpush2.bf16.xpose.msra.mxu0 0
  %4504 = vmatprep.subr.bf16.mxu0 0
  %4505 = vmatpush2.bf16.xpose.msra.mxu0 0
  %4506 = vmatprep.subr.bf16.mxu0 0
  %4507 = vmatpush2.bf16.xpose.msra.mxu0 0
  %4508 = vmatprep.subr.bf16.mxu0 0
  %4509 = vmatpush2.bf16.xpose.msra.mxu0 0
  %4510 = vmatprep.subr.bf16.mxu0 0
  %4511 = vmatpush2.bf16.xpose.msra.mxu0 0
  %4512 = vmatprep.subr.bf16.mxu0 0
  %4513 = vmatpush2.bf16.xpose.msra.mxu0 0
  %4514 = vmatprep.mubr.bf16.mxu0 0
  %4515 = vmatmul.mubr.bf16.gmra.mxu0 %v4477
  %v4516 = vpop.f32.mrf.mxu0
  %v4517 = vadd.f32 0.0, %v4516
  %v4518 = vpop.f32.mrf.mxu0
  %v4519 = vpop.f32.mrf.mxu0
  %v4520 = vpop.f32.mrf.mxu0
  %4521 = vdwg.mxu0
  %4522 = vrot.lane.b32.xlu0 %v281, 96
  %v4523 = vpop.permute.xlu0 %4522
  %4524 = vrot.lane.b32.xlu0 %v281, 32
  %v4525 = vpop.permute.xlu0 %4524
  %v4527 = vsel %vm286, %v4523, 0
  %v4530 = vsel %vm286, %v4525, 0
  %4532 = vmatprep.subr.bf16.mxu0 0
  %4533 = vmatpush1.bf16.xpose.msra.mxu0 0
  %4534 = vmatprep.subr.bf16.mxu0 0
  %4535 = vmatpush1.bf16.xpose.msra.mxu0 0
  %4536 = vmatprep.subr.bf16.mxu0 0
  %4537 = vmatpush1.bf16.xpose.msra.mxu0 0
  %4538 = vmatprep.subr.bf16.mxu0 0
  %4539 = vmatpush1.bf16.xpose.msra.mxu0 0
  %4540 = vmatprep.subr.bf16.mxu0 0
  %4541 = vmatpush1.bf16.xpose.msra.mxu0 0
  %4542 = vmatprep.subr.bf16.mxu0 0
  %4543 = vmatpush1.bf16.xpose.msra.mxu0 0
  %4544 = vmatprep.subr.bf16.mxu0 0
  %4545 = vmatpush1.bf16.xpose.msra.mxu0 0
  %4546 = vmatprep.subr.bf16.mxu0 0
  %4547 = vmatpush1.bf16.xpose.msra.mxu0 %v4530
  %4548 = vmatprep.subr.bf16.mxu0 0
  %4549 = vmatpush2.bf16.xpose.msra.mxu0 0
  %4550 = vmatprep.subr.bf16.mxu0 0
  %4551 = vmatpush2.bf16.xpose.msra.mxu0 0
  %4552 = vmatprep.subr.bf16.mxu0 0
  %4553 = vmatpush2.bf16.xpose.msra.mxu0 0
  %4554 = vmatprep.subr.bf16.mxu0 0
  %4555 = vmatpush2.bf16.xpose.msra.mxu0 0
  %4556 = vmatprep.subr.bf16.mxu0 0
  %4557 = vmatpush2.bf16.xpose.msra.mxu0 0
  %4558 = vmatprep.subr.bf16.mxu0 0
  %4559 = vmatpush2.bf16.xpose.msra.mxu0 0
  %4560 = vmatprep.subr.bf16.mxu0 0
  %4561 = vmatpush2.bf16.xpose.msra.mxu0 0
  %4562 = vmatprep.subr.bf16.mxu0 0
  %4563 = vmatpush2.bf16.xpose.msra.mxu0 0
  %4564 = vmatprep.mubr.bf16.mxu0 0
  %4565 = vmatmul.mubr.bf16.gmra.mxu0 %v4527
  %v4566 = vpop.f32.mrf.mxu0
  %v4567 = vadd.f32 0.0, %v4566
  %v4568 = vpop.f32.mrf.mxu0
  %v4569 = vpop.f32.mrf.mxu0
  %v4570 = vpop.f32.mrf.mxu0
  %4571 = vdwg.mxu0
  %4572 = vrot.lane.b32.xlu0 %v282, 96
  %v4573 = vpop.permute.xlu0 %4572
  %4574 = vrot.lane.b32.xlu0 %v282, 32
  %v4575 = vpop.permute.xlu0 %4574
  %v4577 = vsel %vm286, %v4573, 0
  %v4580 = vsel %vm286, %v4575, 0
  %4582 = vmatprep.subr.bf16.mxu0 0
  %4583 = vmatpush1.bf16.xpose.msra.mxu0 0
  %4584 = vmatprep.subr.bf16.mxu0 0
  %4585 = vmatpush1.bf16.xpose.msra.mxu0 0
  %4586 = vmatprep.subr.bf16.mxu0 0
  %4587 = vmatpush1.bf16.xpose.msra.mxu0 0
  %4588 = vmatprep.subr.bf16.mxu0 0
  %4589 = vmatpush1.bf16.xpose.msra.mxu0 0
  %4590 = vmatprep.subr.bf16.mxu0 0
  %4591 = vmatpush1.bf16.xpose.msra.mxu0 0
  %4592 = vmatprep.subr.bf16.mxu0 0
  %4593 = vmatpush1.bf16.xpose.msra.mxu0 0
  %4594 = vmatprep.subr.bf16.mxu0 0
  %4595 = vmatpush1.bf16.xpose.msra.mxu0 0
  %4596 = vmatprep.subr.bf16.mxu0 0
  %4597 = vmatpush1.bf16.xpose.msra.mxu0 %v4580
  %4598 = vmatprep.subr.bf16.mxu0 0
  %4599 = vmatpush2.bf16.xpose.msra.mxu0 0
  %4600 = vmatprep.subr.bf16.mxu0 0
  %4601 = vmatpush2.bf16.xpose.msra.mxu0 0
  %4602 = vmatprep.subr.bf16.mxu0 0
  %4603 = vmatpush2.bf16.xpose.msra.mxu0 0
  %4604 = vmatprep.subr.bf16.mxu0 0
  %4605 = vmatpush2.bf16.xpose.msra.mxu0 0
  %4606 = vmatprep.subr.bf16.mxu0 0
  %4607 = vmatpush2.bf16.xpose.msra.mxu0 0
  %4608 = vmatprep.subr.bf16.mxu0 0
  %4609 = vmatpush2.bf16.xpose.msra.mxu0 0
  %4610 = vmatprep.subr.bf16.mxu0 0
  %4611 = vmatpush2.bf16.xpose.msra.mxu0 0
  %4612 = vmatprep.subr.bf16.mxu0 0
  %4613 = vmatpush2.bf16.xpose.msra.mxu0 0
  %4614 = vmatprep.mubr.bf16.mxu0 0
  %4615 = vmatmul.mubr.bf16.gmra.mxu0 %v4577
  %v4616 = vpop.f32.mrf.mxu0
  %v4617 = vadd.f32 0.0, %v4616
  %v4618 = vpop.f32.mrf.mxu0
  %v4619 = vpop.f32.mrf.mxu0
  %v4620 = vpop.f32.mrf.mxu0
  %4621 = vdwg.mxu0
  %v4622 = vmul.f32 %v3867, 0.25
  %v4623 = vmul.f32 %v3917, 0.25
  %v4624 = vmul.f32 %v3967, 0.25
  %v4625 = vmul.f32 %v4017, 0.25
  %v4626 = vmul.f32 %v4067, 0.25
  %v4627 = vmul.f32 %v4117, 0.25
  %v4628 = vmul.f32 %v4167, 0.25
  %v4629 = vmul.f32 %v4217, 0.25
  %v4630 = vmul.f32 %v4267, 0.25
  %v4631 = vmul.f32 %v4317, 0.25
  %v4632 = vmul.f32 %v4367, 0.25
  %v4633 = vmul.f32 %v4417, 0.25
  %v4634 = vmul.f32 %v4467, 0.25
  %v4635 = vmul.f32 %v4517, 0.25
  %v4636 = vmul.f32 %v4567, 0.25
  %v4637 = vmul.f32 %v4617, 0.25
  %v4638 = vsel %vm1084, %v4622, -inf
  %4639 = vmax.xlane.f32.xlu0 %v4638
  %v4640 = vpop.xlane.xlu0 %4639
  %v4641 = vsel %vm1084, %v4623, -inf
  %4642 = vmax.xlane.f32.xlu0 %v4641
  %v4643 = vpop.xlane.xlu0 %4642
  %v4644 = vsel %vm1084, %v4624, -inf
  %4645 = vmax.xlane.f32.xlu0 %v4644
  %v4646 = vpop.xlane.xlu0 %4645
  %v4647 = vsel %vm1084, %v4625, -inf
  %4648 = vmax.xlane.f32.xlu0 %v4647
  %v4649 = vpop.xlane.xlu0 %4648
  %v4650 = vsel %vm1084, %v4626, -inf
  %4651 = vmax.xlane.f32.xlu0 %v4650
  %v4652 = vpop.xlane.xlu0 %4651
  %v4653 = vsel %vm1084, %v4627, -inf
  %4654 = vmax.xlane.f32.xlu0 %v4653
  %v4655 = vpop.xlane.xlu0 %4654
  %v4656 = vsel %vm1084, %v4628, -inf
  %4657 = vmax.xlane.f32.xlu0 %v4656
  %v4658 = vpop.xlane.xlu0 %4657
  %v4659 = vsel %vm1084, %v4629, -inf
  %4660 = vmax.xlane.f32.xlu0 %v4659
  %v4661 = vpop.xlane.xlu0 %4660
  %v4662 = vsel %vm1084, %v4630, -inf
  %4663 = vmax.xlane.f32.xlu0 %v4662
  %v4664 = vpop.xlane.xlu0 %4663
  %v4665 = vsel %vm1084, %v4631, -inf
  %4666 = vmax.xlane.f32.xlu0 %v4665
  %v4667 = vpop.xlane.xlu0 %4666
  %v4668 = vsel %vm1084, %v4632, -inf
  %4669 = vmax.xlane.f32.xlu0 %v4668
  %v4670 = vpop.xlane.xlu0 %4669
  %v4671 = vsel %vm1084, %v4633, -inf
  %4672 = vmax.xlane.f32.xlu0 %v4671
  %v4673 = vpop.xlane.xlu0 %4672
  %v4674 = vsel %vm1084, %v4634, -inf
  %4675 = vmax.xlane.f32.xlu0 %v4674
  %v4676 = vpop.xlane.xlu0 %4675
  %v4677 = vsel %vm1084, %v4635, -inf
  %4678 = vmax.xlane.f32.xlu0 %v4677
  %v4679 = vpop.xlane.xlu0 %4678
  %v4680 = vsel %vm1084, %v4636, -inf
  %4681 = vmax.xlane.f32.xlu0 %v4680
  %v4682 = vpop.xlane.xlu0 %4681
  %v4683 = vsel %vm1084, %v4637, -inf
  %4684 = vmax.xlane.f32.xlu0 %v4683
  %v4685 = vpop.xlane.xlu0 %4684
  %v4686 = vsub.f32 %v4622, %v4640
  %v4687 = vsub.f32 %v4623, %v4643
  %v4688 = vsub.f32 %v4624, %v4646
  %v4689 = vsub.f32 %v4625, %v4649
  %v4690 = vsub.f32 %v4626, %v4652
  %v4691 = vsub.f32 %v4627, %v4655
  %v4692 = vsub.f32 %v4628, %v4658
  %v4693 = vsub.f32 %v4629, %v4661
  %v4694 = vsub.f32 %v4630, %v4664
  %v4695 = vsub.f32 %v4631, %v4667
  %v4696 = vsub.f32 %v4632, %v4670
  %v4697 = vsub.f32 %v4633, %v4673
  %v4698 = vsub.f32 %v4634, %v4676
  %v4699 = vsub.f32 %v4635, %v4679
  %v4700 = vsub.f32 %v4636, %v4682
  %v4701 = vsub.f32 %v4637, %v4685
  %v4702 = vmul.f32 %v4686, 1.442695
  %v4703 = vpow.pop %v4702
  %v4704 = vmul.f32 %v4687, 1.442695
  %v4705 = vpow.pop %v4704
  %v4706 = vmul.f32 %v4688, 1.442695
  %v4707 = vpow.pop %v4706
  %v4708 = vmul.f32 %v4689, 1.442695
  %v4709 = vpow.pop %v4708
  %v4710 = vmul.f32 %v4690, 1.442695
  %v4711 = vpow.pop %v4710
  %v4712 = vmul.f32 %v4691, 1.442695
  %v4713 = vpow.pop %v4712
  %v4714 = vmul.f32 %v4692, 1.442695
  %v4715 = vpow.pop %v4714
  %v4716 = vmul.f32 %v4693, 1.442695
  %v4717 = vpow.pop %v4716
  %v4718 = vmul.f32 %v4694, 1.442695
  %v4719 = vpow.pop %v4718
  %v4720 = vmul.f32 %v4695, 1.442695
  %v4721 = vpow.pop %v4720
  %v4722 = vmul.f32 %v4696, 1.442695
  %v4723 = vpow.pop %v4722
  %v4724 = vmul.f32 %v4697, 1.442695
  %v4725 = vpow.pop %v4724
  %v4726 = vmul.f32 %v4698, 1.442695
  %v4727 = vpow.pop %v4726
  %v4728 = vmul.f32 %v4699, 1.442695
  %v4729 = vpow.pop %v4728
  %v4730 = vmul.f32 %v4700, 1.442695
  %v4731 = vpow.pop %v4730
  %v4732 = vmul.f32 %v4701, 1.442695
  %v4733 = vpow.pop %v4732
  %v4734 = vsel %vm1084, %v4703, 0.0
  %4735 = vadd.xlane.f32.xlu0 %v4734
  %v4736 = vpop.xlane.xlu0 %4735
  %v4737 = vsel %vm1084, %v4705, 0.0
  %4738 = vadd.xlane.f32.xlu0 %v4737
  %v4739 = vpop.xlane.xlu0 %4738
  %v4740 = vsel %vm1084, %v4707, 0.0
  %4741 = vadd.xlane.f32.xlu0 %v4740
  %v4742 = vpop.xlane.xlu0 %4741
  %v4743 = vsel %vm1084, %v4709, 0.0
  %4744 = vadd.xlane.f32.xlu0 %v4743
  %v4745 = vpop.xlane.xlu0 %4744
  %v4746 = vsel %vm1084, %v4711, 0.0
  %4747 = vadd.xlane.f32.xlu0 %v4746
  %v4748 = vpop.xlane.xlu0 %4747
  %v4749 = vsel %vm1084, %v4713, 0.0
  %4750 = vadd.xlane.f32.xlu0 %v4749
  %v4751 = vpop.xlane.xlu0 %4750
  %v4752 = vsel %vm1084, %v4715, 0.0
  %4753 = vadd.xlane.f32.xlu0 %v4752
  %v4754 = vpop.xlane.xlu0 %4753
  %v4755 = vsel %vm1084, %v4717, 0.0
  %4756 = vadd.xlane.f32.xlu0 %v4755
  %v4757 = vpop.xlane.xlu0 %4756
  %v4758 = vsel %vm1084, %v4719, 0.0
  %4759 = vadd.xlane.f32.xlu0 %v4758
  %v4760 = vpop.xlane.xlu0 %4759
  %v4761 = vsel %vm1084, %v4721, 0.0
  %4762 = vadd.xlane.f32.xlu0 %v4761
  %v4763 = vpop.xlane.xlu0 %4762
  %v4764 = vsel %vm1084, %v4723, 0.0
  %4765 = vadd.xlane.f32.xlu0 %v4764
  %v4766 = vpop.xlane.xlu0 %4765
  %v4767 = vsel %vm1084, %v4725, 0.0
  %4768 = vadd.xlane.f32.xlu0 %v4767
  %v4769 = vpop.xlane.xlu0 %4768
  %v4770 = vsel %vm1084, %v4727, 0.0
  %4771 = vadd.xlane.f32.xlu0 %v4770
  %v4772 = vpop.xlane.xlu0 %4771
  %v4773 = vsel %vm1084, %v4729, 0.0
  %4774 = vadd.xlane.f32.xlu0 %v4773
  %v4775 = vpop.xlane.xlu0 %4774
  %v4776 = vsel %vm1084, %v4731, 0.0
  %4777 = vadd.xlane.f32.xlu0 %v4776
  %v4778 = vpop.xlane.xlu0 %4777
  %v4779 = vsel %vm1084, %v4733, 0.0
  %4780 = vadd.xlane.f32.xlu0 %v4779
  %v4781 = vpop.xlane.xlu0 %4780
  %v4782 = vrcp.pop %v4736
  %v4783 = vrcp.pop %v4739
  %v4784 = vrcp.pop %v4742
  %v4785 = vrcp.pop %v4745
  %v4786 = vrcp.pop %v4748
  %v4787 = vrcp.pop %v4751
  %v4788 = vrcp.pop %v4754
  %v4789 = vrcp.pop %v4757
  %v4790 = vrcp.pop %v4760
  %v4791 = vrcp.pop %v4763
  %v4792 = vrcp.pop %v4766
  %v4793 = vrcp.pop %v4769
  %v4794 = vrcp.pop %v4772
  %v4795 = vrcp.pop %v4775
  %v4796 = vrcp.pop %v4778
  %v4797 = vrcp.pop %v4781
  %v4798 = vmul.f32 %v4703, %v4782
  %v4799 = vmul.f32 %v4705, %v4783
  %v4800 = vmul.f32 %v4707, %v4784
  %v4801 = vmul.f32 %v4709, %v4785
  %v4802 = vmul.f32 %v4711, %v4786
  %v4803 = vmul.f32 %v4713, %v4787
  %v4804 = vmul.f32 %v4715, %v4788
  %v4805 = vmul.f32 %v4717, %v4789
  %v4806 = vmul.f32 %v4719, %v4790
  %v4807 = vmul.f32 %v4721, %v4791
  %v4808 = vmul.f32 %v4723, %v4792
  %v4809 = vmul.f32 %v4725, %v4793
  %v4810 = vmul.f32 %v4727, %v4794
  %v4811 = vmul.f32 %v4729, %v4795
  %v4812 = vmul.f32 %v4731, %v4796
  %v4813 = vmul.f32 %v4733, %v4797
  %v4814 = vpack.c.bf16 %v4798, %v4798
  %v4815 = vpack.c.bf16 %v4799, %v4799
  %v4816 = vpack.c.bf16 %v4800, %v4800
  %v4817 = vpack.c.bf16 %v4801, %v4801
  %v4818 = vpack.c.bf16 %v4802, %v4802
  %v4819 = vpack.c.bf16 %v4803, %v4803
  %v4820 = vpack.c.bf16 %v4804, %v4804
  %v4821 = vpack.c.bf16 %v4805, %v4805
  %v4822 = vpack.c.bf16 %v4806, %v4806
  %v4823 = vpack.c.bf16 %v4807, %v4807
  %v4824 = vpack.c.bf16 %v4808, %v4808
  %v4825 = vpack.c.bf16 %v4809, %v4809
  %v4826 = vpack.c.bf16 %v4810, %v4810
  %v4827 = vpack.c.bf16 %v4811, %v4811
  %v4828 = vpack.c.bf16 %v4812, %v4812
  %v4829 = vpack.c.bf16 %v4813, %v4813
  %4830 = vrot.lane.b32.xlu0 %v1277, 96
  %v4831 = vpop.permute.xlu0 %4830
  %v4833 = vsel %vm1084, %v4814, 0
  %v4836 = vsel %vm1296, %v4831, 0
  %4838 = vmatprep.subr.bf16.mxu0 0
  %4839 = vmatpush1.bf16.msra.mxu0 0
  %4840 = vmatprep.subr.bf16.mxu0 0
  %4841 = vmatpush1.bf16.msra.mxu0 0
  %4842 = vmatprep.subr.bf16.mxu0 0
  %4843 = vmatpush1.bf16.msra.mxu0 0
  %4844 = vmatprep.subr.bf16.mxu0 0
  %4845 = vmatpush1.bf16.msra.mxu0 0
  %4846 = vmatprep.subr.bf16.mxu0 0
  %4847 = vmatpush1.bf16.msra.mxu0 0
  %4848 = vmatprep.subr.bf16.mxu0 0
  %4849 = vmatpush1.bf16.msra.mxu0 0
  %4850 = vmatprep.subr.bf16.mxu0 0
  %4851 = vmatpush1.bf16.msra.mxu0 0
  %4852 = vmatprep.subr.bf16.mxu0 0
  %4853 = vmatpush1.bf16.msra.mxu0 %v4836
  %4854 = vmatprep.subr.bf16.mxu0 0
  %4855 = vmatpush2.bf16.msra.mxu0 0
  %4856 = vmatprep.subr.bf16.mxu0 0
  %4857 = vmatpush2.bf16.msra.mxu0 0
  %4858 = vmatprep.subr.bf16.mxu0 0
  %4859 = vmatpush2.bf16.msra.mxu0 0
  %4860 = vmatprep.subr.bf16.mxu0 0
  %4861 = vmatpush2.bf16.msra.mxu0 0
  %4862 = vmatprep.subr.bf16.mxu0 0
  %4863 = vmatpush2.bf16.msra.mxu0 0
  %4864 = vmatprep.subr.bf16.mxu0 0
  %4865 = vmatpush2.bf16.msra.mxu0 0
  %4866 = vmatprep.subr.bf16.mxu0 0
  %4867 = vmatpush2.bf16.msra.mxu0 0
  %4868 = vmatprep.subr.bf16.mxu0 0
  %4869 = vmatpush2.bf16.msra.mxu0 0
  %4870 = vmatprep.mubr.bf16.mxu0 0
  %4871 = vmatmul.mubr.bf16.gmra.mxu0 %v4833
  %v4872 = vpop.f32.mrf.mxu0
  %v4873 = vadd.f32 0.0, %v4872
  %v4874 = vpop.f32.mrf.mxu0
  %v4875 = vpop.f32.mrf.mxu0
  %v4876 = vpop.f32.mrf.mxu0
  %4877 = vdwg.mxu0
  %4878 = vrot.lane.b32.xlu0 %v1278, 96
  %v4879 = vpop.permute.xlu0 %4878
  %v4881 = vsel %vm1084, %v4815, 0
  %v4884 = vsel %vm1296, %v4879, 0
  %4886 = vmatprep.subr.bf16.mxu0 0
  %4887 = vmatpush1.bf16.msra.mxu0 0
  %4888 = vmatprep.subr.bf16.mxu0 0
  %4889 = vmatpush1.bf16.msra.mxu0 0
  %4890 = vmatprep.subr.bf16.mxu0 0
  %4891 = vmatpush1.bf16.msra.mxu0 0
  %4892 = vmatprep.subr.bf16.mxu0 0
  %4893 = vmatpush1.bf16.msra.mxu0 0
  %4894 = vmatprep.subr.bf16.mxu0 0
  %4895 = vmatpush1.bf16.msra.mxu0 0
  %4896 = vmatprep.subr.bf16.mxu0 0
  %4897 = vmatpush1.bf16.msra.mxu0 0
  %4898 = vmatprep.subr.bf16.mxu0 0
  %4899 = vmatpush1.bf16.msra.mxu0 0
  %4900 = vmatprep.subr.bf16.mxu0 0
  %4901 = vmatpush1.bf16.msra.mxu0 %v4884
  %4902 = vmatprep.subr.bf16.mxu0 0
  %4903 = vmatpush2.bf16.msra.mxu0 0
  %4904 = vmatprep.subr.bf16.mxu0 0
  %4905 = vmatpush2.bf16.msra.mxu0 0
  %4906 = vmatprep.subr.bf16.mxu0 0
  %4907 = vmatpush2.bf16.msra.mxu0 0
  %4908 = vmatprep.subr.bf16.mxu0 0
  %4909 = vmatpush2.bf16.msra.mxu0 0
  %4910 = vmatprep.subr.bf16.mxu0 0
  %4911 = vmatpush2.bf16.msra.mxu0 0
  %4912 = vmatprep.subr.bf16.mxu0 0
  %4913 = vmatpush2.bf16.msra.mxu0 0
  %4914 = vmatprep.subr.bf16.mxu0 0
  %4915 = vmatpush2.bf16.msra.mxu0 0
  %4916 = vmatprep.subr.bf16.mxu0 0
  %4917 = vmatpush2.bf16.msra.mxu0 0
  %4918 = vmatprep.mubr.bf16.mxu0 0
  %4919 = vmatmul.mubr.bf16.gmra.mxu0 %v4881
  %v4920 = vpop.f32.mrf.mxu0
  %v4921 = vadd.f32 0.0, %v4920
  %v4922 = vpop.f32.mrf.mxu0
  %v4923 = vpop.f32.mrf.mxu0
  %v4924 = vpop.f32.mrf.mxu0
  %4925 = vdwg.mxu0
  %4926 = vrot.lane.b32.xlu0 %v1279, 96
  %v4927 = vpop.permute.xlu0 %4926
  %v4929 = vsel %vm1084, %v4816, 0
  %v4932 = vsel %vm1296, %v4927, 0
  %4934 = vmatprep.subr.bf16.mxu0 0
  %4935 = vmatpush1.bf16.msra.mxu0 0
  %4936 = vmatprep.subr.bf16.mxu0 0
  %4937 = vmatpush1.bf16.msra.mxu0 0
  %4938 = vmatprep.subr.bf16.mxu0 0
  %4939 = vmatpush1.bf16.msra.mxu0 0
  %4940 = vmatprep.subr.bf16.mxu0 0
  %4941 = vmatpush1.bf16.msra.mxu0 0
  %4942 = vmatprep.subr.bf16.mxu0 0
  %4943 = vmatpush1.bf16.msra.mxu0 0
  %4944 = vmatprep.subr.bf16.mxu0 0
  %4945 = vmatpush1.bf16.msra.mxu0 0
  %4946 = vmatprep.subr.bf16.mxu0 0
  %4947 = vmatpush1.bf16.msra.mxu0 0
  %4948 = vmatprep.subr.bf16.mxu0 0
  %4949 = vmatpush1.bf16.msra.mxu0 %v4932
  %4950 = vmatprep.subr.bf16.mxu0 0
  %4951 = vmatpush2.bf16.msra.mxu0 0
  %4952 = vmatprep.subr.bf16.mxu0 0
  %4953 = vmatpush2.bf16.msra.mxu0 0
  %4954 = vmatprep.subr.bf16.mxu0 0
  %4955 = vmatpush2.bf16.msra.mxu0 0
  %4956 = vmatprep.subr.bf16.mxu0 0
  %4957 = vmatpush2.bf16.msra.mxu0 0
  %4958 = vmatprep.subr.bf16.mxu0 0
  %4959 = vmatpush2.bf16.msra.mxu0 0
  %4960 = vmatprep.subr.bf16.mxu0 0
  %4961 = vmatpush2.bf16.msra.mxu0 0
  %4962 = vmatprep.subr.bf16.mxu0 0
  %4963 = vmatpush2.bf16.msra.mxu0 0
  %4964 = vmatprep.subr.bf16.mxu0 0
  %4965 = vmatpush2.bf16.msra.mxu0 0
  %4966 = vmatprep.mubr.bf16.mxu0 0
  %4967 = vmatmul.mubr.bf16.gmra.mxu0 %v4929
  %v4968 = vpop.f32.mrf.mxu0
  %v4969 = vadd.f32 0.0, %v4968
  %v4970 = vpop.f32.mrf.mxu0
  %v4971 = vpop.f32.mrf.mxu0
  %v4972 = vpop.f32.mrf.mxu0
  %4973 = vdwg.mxu0
  %4974 = vrot.lane.b32.xlu0 %v1280, 96
  %v4975 = vpop.permute.xlu0 %4974
  %v4977 = vsel %vm1084, %v4817, 0
  %v4980 = vsel %vm1296, %v4975, 0
  %4982 = vmatprep.subr.bf16.mxu0 0
  %4983 = vmatpush1.bf16.msra.mxu0 0
  %4984 = vmatprep.subr.bf16.mxu0 0
  %4985 = vmatpush1.bf16.msra.mxu0 0
  %4986 = vmatprep.subr.bf16.mxu0 0
  %4987 = vmatpush1.bf16.msra.mxu0 0
  %4988 = vmatprep.subr.bf16.mxu0 0
  %4989 = vmatpush1.bf16.msra.mxu0 0
  %4990 = vmatprep.subr.bf16.mxu0 0
  %4991 = vmatpush1.bf16.msra.mxu0 0
  %4992 = vmatprep.subr.bf16.mxu0 0
  %4993 = vmatpush1.bf16.msra.mxu0 0
  %4994 = vmatprep.subr.bf16.mxu0 0
  %4995 = vmatpush1.bf16.msra.mxu0 0
  %4996 = vmatprep.subr.bf16.mxu0 0
  %4997 = vmatpush1.bf16.msra.mxu0 %v4980
  %4998 = vmatprep.subr.bf16.mxu0 0
  %4999 = vmatpush2.bf16.msra.mxu0 0
  %5000 = vmatprep.subr.bf16.mxu0 0
  %5001 = vmatpush2.bf16.msra.mxu0 0
  %5002 = vmatprep.subr.bf16.mxu0 0
  %5003 = vmatpush2.bf16.msra.mxu0 0
  %5004 = vmatprep.subr.bf16.mxu0 0
  %5005 = vmatpush2.bf16.msra.mxu0 0
  %5006 = vmatprep.subr.bf16.mxu0 0
  %5007 = vmatpush2.bf16.msra.mxu0 0
  %5008 = vmatprep.subr.bf16.mxu0 0
  %5009 = vmatpush2.bf16.msra.mxu0 0
  %5010 = vmatprep.subr.bf16.mxu0 0
  %5011 = vmatpush2.bf16.msra.mxu0 0
  %5012 = vmatprep.subr.bf16.mxu0 0
  %5013 = vmatpush2.bf16.msra.mxu0 0
  %5014 = vmatprep.mubr.bf16.mxu0 0
  %5015 = vmatmul.mubr.bf16.gmra.mxu0 %v4977
  %v5016 = vpop.f32.mrf.mxu0
  %v5017 = vadd.f32 0.0, %v5016
  %v5018 = vpop.f32.mrf.mxu0
  %v5019 = vpop.f32.mrf.mxu0
  %v5020 = vpop.f32.mrf.mxu0
  %5021 = vdwg.mxu0
  %5022 = vrot.lane.b32.xlu0 %v1281, 96
  %v5023 = vpop.permute.xlu0 %5022
  %v5025 = vsel %vm1084, %v4818, 0
  %v5028 = vsel %vm1296, %v5023, 0
  %5030 = vmatprep.subr.bf16.mxu0 0
  %5031 = vmatpush1.bf16.msra.mxu0 0
  %5032 = vmatprep.subr.bf16.mxu0 0
  %5033 = vmatpush1.bf16.msra.mxu0 0
  %5034 = vmatprep.subr.bf16.mxu0 0
  %5035 = vmatpush1.bf16.msra.mxu0 0
  %5036 = vmatprep.subr.bf16.mxu0 0
  %5037 = vmatpush1.bf16.msra.mxu0 0
  %5038 = vmatprep.subr.bf16.mxu0 0
  %5039 = vmatpush1.bf16.msra.mxu0 0
  %5040 = vmatprep.subr.bf16.mxu0 0
  %5041 = vmatpush1.bf16.msra.mxu0 0
  %5042 = vmatprep.subr.bf16.mxu0 0
  %5043 = vmatpush1.bf16.msra.mxu0 0
  %5044 = vmatprep.subr.bf16.mxu0 0
  %5045 = vmatpush1.bf16.msra.mxu0 %v5028
  %5046 = vmatprep.subr.bf16.mxu0 0
  %5047 = vmatpush2.bf16.msra.mxu0 0
  %5048 = vmatprep.subr.bf16.mxu0 0
  %5049 = vmatpush2.bf16.msra.mxu0 0
  %5050 = vmatprep.subr.bf16.mxu0 0
  %5051 = vmatpush2.bf16.msra.mxu0 0
  %5052 = vmatprep.subr.bf16.mxu0 0
  %5053 = vmatpush2.bf16.msra.mxu0 0
  %5054 = vmatprep.subr.bf16.mxu0 0
  %5055 = vmatpush2.bf16.msra.mxu0 0
  %5056 = vmatprep.subr.bf16.mxu0 0
  %5057 = vmatpush2.bf16.msra.mxu0 0
  %5058 = vmatprep.subr.bf16.mxu0 0
  %5059 = vmatpush2.bf16.msra.mxu0 0
  %5060 = vmatprep.subr.bf16.mxu0 0
  %5061 = vmatpush2.bf16.msra.mxu0 0
  %5062 = vmatprep.mubr.bf16.mxu0 0
  %5063 = vmatmul.mubr.bf16.gmra.mxu0 %v5025
  %v5064 = vpop.f32.mrf.mxu0
  %v5065 = vadd.f32 0.0, %v5064
  %v5066 = vpop.f32.mrf.mxu0
  %v5067 = vpop.f32.mrf.mxu0
  %v5068 = vpop.f32.mrf.mxu0
  %5069 = vdwg.mxu0
  %5070 = vrot.lane.b32.xlu0 %v1282, 96
  %v5071 = vpop.permute.xlu0 %5070
  %v5073 = vsel %vm1084, %v4819, 0
  %v5076 = vsel %vm1296, %v5071, 0
  %5078 = vmatprep.subr.bf16.mxu0 0
  %5079 = vmatpush1.bf16.msra.mxu0 0
  %5080 = vmatprep.subr.bf16.mxu0 0
  %5081 = vmatpush1.bf16.msra.mxu0 0
  %5082 = vmatprep.subr.bf16.mxu0 0
  %5083 = vmatpush1.bf16.msra.mxu0 0
  %5084 = vmatprep.subr.bf16.mxu0 0
  %5085 = vmatpush1.bf16.msra.mxu0 0
  %5086 = vmatprep.subr.bf16.mxu0 0
  %5087 = vmatpush1.bf16.msra.mxu0 0
  %5088 = vmatprep.subr.bf16.mxu0 0
  %5089 = vmatpush1.bf16.msra.mxu0 0
  %5090 = vmatprep.subr.bf16.mxu0 0
  %5091 = vmatpush1.bf16.msra.mxu0 0
  %5092 = vmatprep.subr.bf16.mxu0 0
  %5093 = vmatpush1.bf16.msra.mxu0 %v5076
  %5094 = vmatprep.subr.bf16.mxu0 0
  %5095 = vmatpush2.bf16.msra.mxu0 0
  %5096 = vmatprep.subr.bf16.mxu0 0
  %5097 = vmatpush2.bf16.msra.mxu0 0
  %5098 = vmatprep.subr.bf16.mxu0 0
  %5099 = vmatpush2.bf16.msra.mxu0 0
  %5100 = vmatprep.subr.bf16.mxu0 0
  %5101 = vmatpush2.bf16.msra.mxu0 0
  %5102 = vmatprep.subr.bf16.mxu0 0
  %5103 = vmatpush2.bf16.msra.mxu0 0
  %5104 = vmatprep.subr.bf16.mxu0 0
  %5105 = vmatpush2.bf16.msra.mxu0 0
  %5106 = vmatprep.subr.bf16.mxu0 0
  %5107 = vmatpush2.bf16.msra.mxu0 0
  %5108 = vmatprep.subr.bf16.mxu0 0
  %5109 = vmatpush2.bf16.msra.mxu0 0
  %5110 = vmatprep.mubr.bf16.mxu0 0
  %5111 = vmatmul.mubr.bf16.gmra.mxu0 %v5073
  %v5112 = vpop.f32.mrf.mxu0
  %v5113 = vadd.f32 0.0, %v5112
  %v5114 = vpop.f32.mrf.mxu0
  %v5115 = vpop.f32.mrf.mxu0
  %v5116 = vpop.f32.mrf.mxu0
  %5117 = vdwg.mxu0
  %5118 = vrot.lane.b32.xlu0 %v1283, 96
  %v5119 = vpop.permute.xlu0 %5118
  %v5121 = vsel %vm1084, %v4820, 0
  %v5124 = vsel %vm1296, %v5119, 0
  %5126 = vmatprep.subr.bf16.mxu0 0
  %5127 = vmatpush1.bf16.msra.mxu0 0
  %5128 = vmatprep.subr.bf16.mxu0 0
  %5129 = vmatpush1.bf16.msra.mxu0 0
  %5130 = vmatprep.subr.bf16.mxu0 0
  %5131 = vmatpush1.bf16.msra.mxu0 0
  %5132 = vmatprep.subr.bf16.mxu0 0
  %5133 = vmatpush1.bf16.msra.mxu0 0
  %5134 = vmatprep.subr.bf16.mxu0 0
  %5135 = vmatpush1.bf16.msra.mxu0 0
  %5136 = vmatprep.subr.bf16.mxu0 0
  %5137 = vmatpush1.bf16.msra.mxu0 0
  %5138 = vmatprep.subr.bf16.mxu0 0
  %5139 = vmatpush1.bf16.msra.mxu0 0
  %5140 = vmatprep.subr.bf16.mxu0 0
  %5141 = vmatpush1.bf16.msra.mxu0 %v5124
  %5142 = vmatprep.subr.bf16.mxu0 0
  %5143 = vmatpush2.bf16.msra.mxu0 0
  %5144 = vmatprep.subr.bf16.mxu0 0
  %5145 = vmatpush2.bf16.msra.mxu0 0
  %5146 = vmatprep.subr.bf16.mxu0 0
  %5147 = vmatpush2.bf16.msra.mxu0 0
  %5148 = vmatprep.subr.bf16.mxu0 0
  %5149 = vmatpush2.bf16.msra.mxu0 0
  %5150 = vmatprep.subr.bf16.mxu0 0
  %5151 = vmatpush2.bf16.msra.mxu0 0
  %5152 = vmatprep.subr.bf16.mxu0 0
  %5153 = vmatpush2.bf16.msra.mxu0 0
  %5154 = vmatprep.subr.bf16.mxu0 0
  %5155 = vmatpush2.bf16.msra.mxu0 0
  %5156 = vmatprep.subr.bf16.mxu0 0
  %5157 = vmatpush2.bf16.msra.mxu0 0
  %5158 = vmatprep.mubr.bf16.mxu0 0
  %5159 = vmatmul.mubr.bf16.gmra.mxu0 %v5121
  %v5160 = vpop.f32.mrf.mxu0
  %v5161 = vadd.f32 0.0, %v5160
  %v5162 = vpop.f32.mrf.mxu0
  %v5163 = vpop.f32.mrf.mxu0
  %v5164 = vpop.f32.mrf.mxu0
  %5165 = vdwg.mxu0
  %5166 = vrot.lane.b32.xlu0 %v1284, 96
  %v5167 = vpop.permute.xlu0 %5166
  %v5169 = vsel %vm1084, %v4821, 0
  %v5172 = vsel %vm1296, %v5167, 0
  %5174 = vmatprep.subr.bf16.mxu0 0
  %5175 = vmatpush1.bf16.msra.mxu0 0
  %5176 = vmatprep.subr.bf16.mxu0 0
  %5177 = vmatpush1.bf16.msra.mxu0 0
  %5178 = vmatprep.subr.bf16.mxu0 0
  %5179 = vmatpush1.bf16.msra.mxu0 0
  %5180 = vmatprep.subr.bf16.mxu0 0
  %5181 = vmatpush1.bf16.msra.mxu0 0
  %5182 = vmatprep.subr.bf16.mxu0 0
  %5183 = vmatpush1.bf16.msra.mxu0 0
  %5184 = vmatprep.subr.bf16.mxu0 0
  %5185 = vmatpush1.bf16.msra.mxu0 0
  %5186 = vmatprep.subr.bf16.mxu0 0
  %5187 = vmatpush1.bf16.msra.mxu0 0
  %5188 = vmatprep.subr.bf16.mxu0 0
  %5189 = vmatpush1.bf16.msra.mxu0 %v5172
  %5190 = vmatprep.subr.bf16.mxu0 0
  %5191 = vmatpush2.bf16.msra.mxu0 0
  %5192 = vmatprep.subr.bf16.mxu0 0
  %5193 = vmatpush2.bf16.msra.mxu0 0
  %5194 = vmatprep.subr.bf16.mxu0 0
  %5195 = vmatpush2.bf16.msra.mxu0 0
  %5196 = vmatprep.subr.bf16.mxu0 0
  %5197 = vmatpush2.bf16.msra.mxu0 0
  %5198 = vmatprep.subr.bf16.mxu0 0
  %5199 = vmatpush2.bf16.msra.mxu0 0
  %5200 = vmatprep.subr.bf16.mxu0 0
  %5201 = vmatpush2.bf16.msra.mxu0 0
  %5202 = vmatprep.subr.bf16.mxu0 0
  %5203 = vmatpush2.bf16.msra.mxu0 0
  %5204 = vmatprep.subr.bf16.mxu0 0
  %5205 = vmatpush2.bf16.msra.mxu0 0
  %5206 = vmatprep.mubr.bf16.mxu0 0
  %5207 = vmatmul.mubr.bf16.gmra.mxu0 %v5169
  %v5208 = vpop.f32.mrf.mxu0
  %v5209 = vadd.f32 0.0, %v5208
  %v5210 = vpop.f32.mrf.mxu0
  %v5211 = vpop.f32.mrf.mxu0
  %v5212 = vpop.f32.mrf.mxu0
  %5213 = vdwg.mxu0
  %5214 = vrot.lane.b32.xlu0 %v1285, 96
  %v5215 = vpop.permute.xlu0 %5214
  %v5217 = vsel %vm1084, %v4822, 0
  %v5220 = vsel %vm1296, %v5215, 0
  %5222 = vmatprep.subr.bf16.mxu0 0
  %5223 = vmatpush1.bf16.msra.mxu0 0
  %5224 = vmatprep.subr.bf16.mxu0 0
  %5225 = vmatpush1.bf16.msra.mxu0 0
  %5226 = vmatprep.subr.bf16.mxu0 0
  %5227 = vmatpush1.bf16.msra.mxu0 0
  %5228 = vmatprep.subr.bf16.mxu0 0
  %5229 = vmatpush1.bf16.msra.mxu0 0
  %5230 = vmatprep.subr.bf16.mxu0 0
  %5231 = vmatpush1.bf16.msra.mxu0 0
  %5232 = vmatprep.subr.bf16.mxu0 0
  %5233 = vmatpush1.bf16.msra.mxu0 0
  %5234 = vmatprep.subr.bf16.mxu0 0
  %5235 = vmatpush1.bf16.msra.mxu0 0
  %5236 = vmatprep.subr.bf16.mxu0 0
  %5237 = vmatpush1.bf16.msra.mxu0 %v5220
  %5238 = vmatprep.subr.bf16.mxu0 0
  %5239 = vmatpush2.bf16.msra.mxu0 0
  %5240 = vmatprep.subr.bf16.mxu0 0
  %5241 = vmatpush2.bf16.msra.mxu0 0
  %5242 = vmatprep.subr.bf16.mxu0 0
  %5243 = vmatpush2.bf16.msra.mxu0 0
  %5244 = vmatprep.subr.bf16.mxu0 0
  %5245 = vmatpush2.bf16.msra.mxu0 0
  %5246 = vmatprep.subr.bf16.mxu0 0
  %5247 = vmatpush2.bf16.msra.mxu0 0
  %5248 = vmatprep.subr.bf16.mxu0 0
  %5249 = vmatpush2.bf16.msra.mxu0 0
  %5250 = vmatprep.subr.bf16.mxu0 0
  %5251 = vmatpush2.bf16.msra.mxu0 0
  %5252 = vmatprep.subr.bf16.mxu0 0
  %5253 = vmatpush2.bf16.msra.mxu0 0
  %5254 = vmatprep.mubr.bf16.mxu0 0
  %5255 = vmatmul.mubr.bf16.gmra.mxu0 %v5217
  %v5256 = vpop.f32.mrf.mxu0
  %v5257 = vadd.f32 0.0, %v5256
  %v5258 = vpop.f32.mrf.mxu0
  %v5259 = vpop.f32.mrf.mxu0
  %v5260 = vpop.f32.mrf.mxu0
  %5261 = vdwg.mxu0
  %5262 = vrot.lane.b32.xlu0 %v1286, 96
  %v5263 = vpop.permute.xlu0 %5262
  %v5265 = vsel %vm1084, %v4823, 0
  %v5268 = vsel %vm1296, %v5263, 0
  %5270 = vmatprep.subr.bf16.mxu0 0
  %5271 = vmatpush1.bf16.msra.mxu0 0
  %5272 = vmatprep.subr.bf16.mxu0 0
  %5273 = vmatpush1.bf16.msra.mxu0 0
  %5274 = vmatprep.subr.bf16.mxu0 0
  %5275 = vmatpush1.bf16.msra.mxu0 0
  %5276 = vmatprep.subr.bf16.mxu0 0
  %5277 = vmatpush1.bf16.msra.mxu0 0
  %5278 = vmatprep.subr.bf16.mxu0 0
  %5279 = vmatpush1.bf16.msra.mxu0 0
  %5280 = vmatprep.subr.bf16.mxu0 0
  %5281 = vmatpush1.bf16.msra.mxu0 0
  %5282 = vmatprep.subr.bf16.mxu0 0
  %5283 = vmatpush1.bf16.msra.mxu0 0
  %5284 = vmatprep.subr.bf16.mxu0 0
  %5285 = vmatpush1.bf16.msra.mxu0 %v5268
  %5286 = vmatprep.subr.bf16.mxu0 0
  %5287 = vmatpush2.bf16.msra.mxu0 0
  %5288 = vmatprep.subr.bf16.mxu0 0
  %5289 = vmatpush2.bf16.msra.mxu0 0
  %5290 = vmatprep.subr.bf16.mxu0 0
  %5291 = vmatpush2.bf16.msra.mxu0 0
  %5292 = vmatprep.subr.bf16.mxu0 0
  %5293 = vmatpush2.bf16.msra.mxu0 0
  %5294 = vmatprep.subr.bf16.mxu0 0
  %5295 = vmatpush2.bf16.msra.mxu0 0
  %5296 = vmatprep.subr.bf16.mxu0 0
  %5297 = vmatpush2.bf16.msra.mxu0 0
  %5298 = vmatprep.subr.bf16.mxu0 0
  %5299 = vmatpush2.bf16.msra.mxu0 0
  %5300 = vmatprep.subr.bf16.mxu0 0
  %5301 = vmatpush2.bf16.msra.mxu0 0
  %5302 = vmatprep.mubr.bf16.mxu0 0
  %5303 = vmatmul.mubr.bf16.gmra.mxu0 %v5265
  %v5304 = vpop.f32.mrf.mxu0
  %v5305 = vadd.f32 0.0, %v5304
  %v5306 = vpop.f32.mrf.mxu0
  %v5307 = vpop.f32.mrf.mxu0
  %v5308 = vpop.f32.mrf.mxu0
  %5309 = vdwg.mxu0
  %5310 = vrot.lane.b32.xlu0 %v1287, 96
  %v5311 = vpop.permute.xlu0 %5310
  %v5313 = vsel %vm1084, %v4824, 0
  %v5316 = vsel %vm1296, %v5311, 0
  %5318 = vmatprep.subr.bf16.mxu0 0
  %5319 = vmatpush1.bf16.msra.mxu0 0
  %5320 = vmatprep.subr.bf16.mxu0 0
  %5321 = vmatpush1.bf16.msra.mxu0 0
  %5322 = vmatprep.subr.bf16.mxu0 0
  %5323 = vmatpush1.bf16.msra.mxu0 0
  %5324 = vmatprep.subr.bf16.mxu0 0
  %5325 = vmatpush1.bf16.msra.mxu0 0
  %5326 = vmatprep.subr.bf16.mxu0 0
  %5327 = vmatpush1.bf16.msra.mxu0 0
  %5328 = vmatprep.subr.bf16.mxu0 0
  %5329 = vmatpush1.bf16.msra.mxu0 0
  %5330 = vmatprep.subr.bf16.mxu0 0
  %5331 = vmatpush1.bf16.msra.mxu0 0
  %5332 = vmatprep.subr.bf16.mxu0 0
  %5333 = vmatpush1.bf16.msra.mxu0 %v5316
  %5334 = vmatprep.subr.bf16.mxu0 0
  %5335 = vmatpush2.bf16.msra.mxu0 0
  %5336 = vmatprep.subr.bf16.mxu0 0
  %5337 = vmatpush2.bf16.msra.mxu0 0
  %5338 = vmatprep.subr.bf16.mxu0 0
  %5339 = vmatpush2.bf16.msra.mxu0 0
  %5340 = vmatprep.subr.bf16.mxu0 0
  %5341 = vmatpush2.bf16.msra.mxu0 0
  %5342 = vmatprep.subr.bf16.mxu0 0
  %5343 = vmatpush2.bf16.msra.mxu0 0
  %5344 = vmatprep.subr.bf16.mxu0 0
  %5345 = vmatpush2.bf16.msra.mxu0 0
  %5346 = vmatprep.subr.bf16.mxu0 0
  %5347 = vmatpush2.bf16.msra.mxu0 0
  %5348 = vmatprep.subr.bf16.mxu0 0
  %5349 = vmatpush2.bf16.msra.mxu0 0
  %5350 = vmatprep.mubr.bf16.mxu0 0
  %5351 = vmatmul.mubr.bf16.gmra.mxu0 %v5313
  %v5352 = vpop.f32.mrf.mxu0
  %v5353 = vadd.f32 0.0, %v5352
  %v5354 = vpop.f32.mrf.mxu0
  %v5355 = vpop.f32.mrf.mxu0
  %v5356 = vpop.f32.mrf.mxu0
  %5357 = vdwg.mxu0
  %5358 = vrot.lane.b32.xlu0 %v1288, 96
  %v5359 = vpop.permute.xlu0 %5358
  %v5361 = vsel %vm1084, %v4825, 0
  %v5364 = vsel %vm1296, %v5359, 0
  %5366 = vmatprep.subr.bf16.mxu0 0
  %5367 = vmatpush1.bf16.msra.mxu0 0
  %5368 = vmatprep.subr.bf16.mxu0 0
  %5369 = vmatpush1.bf16.msra.mxu0 0
  %5370 = vmatprep.subr.bf16.mxu0 0
  %5371 = vmatpush1.bf16.msra.mxu0 0
  %5372 = vmatprep.subr.bf16.mxu0 0
  %5373 = vmatpush1.bf16.msra.mxu0 0
  %5374 = vmatprep.subr.bf16.mxu0 0
  %5375 = vmatpush1.bf16.msra.mxu0 0
  %5376 = vmatprep.subr.bf16.mxu0 0
  %5377 = vmatpush1.bf16.msra.mxu0 0
  %5378 = vmatprep.subr.bf16.mxu0 0
  %5379 = vmatpush1.bf16.msra.mxu0 0
  %5380 = vmatprep.subr.bf16.mxu0 0
  %5381 = vmatpush1.bf16.msra.mxu0 %v5364
  %5382 = vmatprep.subr.bf16.mxu0 0
  %5383 = vmatpush2.bf16.msra.mxu0 0
  %5384 = vmatprep.subr.bf16.mxu0 0
  %5385 = vmatpush2.bf16.msra.mxu0 0
  %5386 = vmatprep.subr.bf16.mxu0 0
  %5387 = vmatpush2.bf16.msra.mxu0 0
  %5388 = vmatprep.subr.bf16.mxu0 0
  %5389 = vmatpush2.bf16.msra.mxu0 0
  %5390 = vmatprep.subr.bf16.mxu0 0
  %5391 = vmatpush2.bf16.msra.mxu0 0
  %5392 = vmatprep.subr.bf16.mxu0 0
  %5393 = vmatpush2.bf16.msra.mxu0 0
  %5394 = vmatprep.subr.bf16.mxu0 0
  %5395 = vmatpush2.bf16.msra.mxu0 0
  %5396 = vmatprep.subr.bf16.mxu0 0
  %5397 = vmatpush2.bf16.msra.mxu0 0
  %5398 = vmatprep.mubr.bf16.mxu0 0
  %5399 = vmatmul.mubr.bf16.gmra.mxu0 %v5361
  %v5400 = vpop.f32.mrf.mxu0
  %v5401 = vadd.f32 0.0, %v5400
  %v5402 = vpop.f32.mrf.mxu0
  %v5403 = vpop.f32.mrf.mxu0
  %v5404 = vpop.f32.mrf.mxu0
  %5405 = vdwg.mxu0
  %5406 = vrot.lane.b32.xlu0 %v1289, 96
  %v5407 = vpop.permute.xlu0 %5406
  %v5409 = vsel %vm1084, %v4826, 0
  %v5412 = vsel %vm1296, %v5407, 0
  %5414 = vmatprep.subr.bf16.mxu0 0
  %5415 = vmatpush1.bf16.msra.mxu0 0
  %5416 = vmatprep.subr.bf16.mxu0 0
  %5417 = vmatpush1.bf16.msra.mxu0 0
  %5418 = vmatprep.subr.bf16.mxu0 0
  %5419 = vmatpush1.bf16.msra.mxu0 0
  %5420 = vmatprep.subr.bf16.mxu0 0
  %5421 = vmatpush1.bf16.msra.mxu0 0
  %5422 = vmatprep.subr.bf16.mxu0 0
  %5423 = vmatpush1.bf16.msra.mxu0 0
  %5424 = vmatprep.subr.bf16.mxu0 0
  %5425 = vmatpush1.bf16.msra.mxu0 0
  %5426 = vmatprep.subr.bf16.mxu0 0
  %5427 = vmatpush1.bf16.msra.mxu0 0
  %5428 = vmatprep.subr.bf16.mxu0 0
  %5429 = vmatpush1.bf16.msra.mxu0 %v5412
  %5430 = vmatprep.subr.bf16.mxu0 0
  %5431 = vmatpush2.bf16.msra.mxu0 0
  %5432 = vmatprep.subr.bf16.mxu0 0
  %5433 = vmatpush2.bf16.msra.mxu0 0
  %5434 = vmatprep.subr.bf16.mxu0 0
  %5435 = vmatpush2.bf16.msra.mxu0 0
  %5436 = vmatprep.subr.bf16.mxu0 0
  %5437 = vmatpush2.bf16.msra.mxu0 0
  %5438 = vmatprep.subr.bf16.mxu0 0
  %5439 = vmatpush2.bf16.msra.mxu0 0
  %5440 = vmatprep.subr.bf16.mxu0 0
  %5441 = vmatpush2.bf16.msra.mxu0 0
  %5442 = vmatprep.subr.bf16.mxu0 0
  %5443 = vmatpush2.bf16.msra.mxu0 0
  %5444 = vmatprep.subr.bf16.mxu0 0
  %5445 = vmatpush2.bf16.msra.mxu0 0
  %5446 = vmatprep.mubr.bf16.mxu0 0
  %5447 = vmatmul.mubr.bf16.gmra.mxu0 %v5409
  %v5448 = vpop.f32.mrf.mxu0
  %v5449 = vadd.f32 0.0, %v5448
  %v5450 = vpop.f32.mrf.mxu0
  %v5451 = vpop.f32.mrf.mxu0
  %v5452 = vpop.f32.mrf.mxu0
  %5453 = vdwg.mxu0
  %5454 = vrot.lane.b32.xlu0 %v1290, 96
  %v5455 = vpop.permute.xlu0 %5454
  %v5457 = vsel %vm1084, %v4827, 0
  %v5460 = vsel %vm1296, %v5455, 0
  %5462 = vmatprep.subr.bf16.mxu0 0
  %5463 = vmatpush1.bf16.msra.mxu0 0
  %5464 = vmatprep.subr.bf16.mxu0 0
  %5465 = vmatpush1.bf16.msra.mxu0 0
  %5466 = vmatprep.subr.bf16.mxu0 0
  %5467 = vmatpush1.bf16.msra.mxu0 0
  %5468 = vmatprep.subr.bf16.mxu0 0
  %5469 = vmatpush1.bf16.msra.mxu0 0
  %5470 = vmatprep.subr.bf16.mxu0 0
  %5471 = vmatpush1.bf16.msra.mxu0 0
  %5472 = vmatprep.subr.bf16.mxu0 0
  %5473 = vmatpush1.bf16.msra.mxu0 0
  %5474 = vmatprep.subr.bf16.mxu0 0
  %5475 = vmatpush1.bf16.msra.mxu0 0
  %5476 = vmatprep.subr.bf16.mxu0 0
  %5477 = vmatpush1.bf16.msra.mxu0 %v5460
  %5478 = vmatprep.subr.bf16.mxu0 0
  %5479 = vmatpush2.bf16.msra.mxu0 0
  %5480 = vmatprep.subr.bf16.mxu0 0
  %5481 = vmatpush2.bf16.msra.mxu0 0
  %5482 = vmatprep.subr.bf16.mxu0 0
  %5483 = vmatpush2.bf16.msra.mxu0 0
  %5484 = vmatprep.subr.bf16.mxu0 0
  %5485 = vmatpush2.bf16.msra.mxu0 0
  %5486 = vmatprep.subr.bf16.mxu0 0
  %5487 = vmatpush2.bf16.msra.mxu0 0
  %5488 = vmatprep.subr.bf16.mxu0 0
  %5489 = vmatpush2.bf16.msra.mxu0 0
  %5490 = vmatprep.subr.bf16.mxu0 0
  %5491 = vmatpush2.bf16.msra.mxu0 0
  %5492 = vmatprep.subr.bf16.mxu0 0
  %5493 = vmatpush2.bf16.msra.mxu0 0
  %5494 = vmatprep.mubr.bf16.mxu0 0
  %5495 = vmatmul.mubr.bf16.gmra.mxu0 %v5457
  %v5496 = vpop.f32.mrf.mxu0
  %v5497 = vadd.f32 0.0, %v5496
  %v5498 = vpop.f32.mrf.mxu0
  %v5499 = vpop.f32.mrf.mxu0
  %v5500 = vpop.f32.mrf.mxu0
  %5501 = vdwg.mxu0
  %5502 = vrot.lane.b32.xlu0 %v1291, 96
  %v5503 = vpop.permute.xlu0 %5502
  %v5505 = vsel %vm1084, %v4828, 0
  %v5508 = vsel %vm1296, %v5503, 0
  %5510 = vmatprep.subr.bf16.mxu0 0
  %5511 = vmatpush1.bf16.msra.mxu0 0
  %5512 = vmatprep.subr.bf16.mxu0 0
  %5513 = vmatpush1.bf16.msra.mxu0 0
  %5514 = vmatprep.subr.bf16.mxu0 0
  %5515 = vmatpush1.bf16.msra.mxu0 0
  %5516 = vmatprep.subr.bf16.mxu0 0
  %5517 = vmatpush1.bf16.msra.mxu0 0
  %5518 = vmatprep.subr.bf16.mxu0 0
  %5519 = vmatpush1.bf16.msra.mxu0 0
  %5520 = vmatprep.subr.bf16.mxu0 0
  %5521 = vmatpush1.bf16.msra.mxu0 0
  %5522 = vmatprep.subr.bf16.mxu0 0
  %5523 = vmatpush1.bf16.msra.mxu0 0
  %5524 = vmatprep.subr.bf16.mxu0 0
  %5525 = vmatpush1.bf16.msra.mxu0 %v5508
  %5526 = vmatprep.subr.bf16.mxu0 0
  %5527 = vmatpush2.bf16.msra.mxu0 0
  %5528 = vmatprep.subr.bf16.mxu0 0
  %5529 = vmatpush2.bf16.msra.mxu0 0
  %5530 = vmatprep.subr.bf16.mxu0 0
  %5531 = vmatpush2.bf16.msra.mxu0 0
  %5532 = vmatprep.subr.bf16.mxu0 0
  %5533 = vmatpush2.bf16.msra.mxu0 0
  %5534 = vmatprep.subr.bf16.mxu0 0
  %5535 = vmatpush2.bf16.msra.mxu0 0
  %5536 = vmatprep.subr.bf16.mxu0 0
  %5537 = vmatpush2.bf16.msra.mxu0 0
  %5538 = vmatprep.subr.bf16.mxu0 0
  %5539 = vmatpush2.bf16.msra.mxu0 0
  %5540 = vmatprep.subr.bf16.mxu0 0
  %5541 = vmatpush2.bf16.msra.mxu0 0
  %5542 = vmatprep.mubr.bf16.mxu0 0
  %5543 = vmatmul.mubr.bf16.gmra.mxu0 %v5505
  %v5544 = vpop.f32.mrf.mxu0
  %v5545 = vadd.f32 0.0, %v5544
  %v5546 = vpop.f32.mrf.mxu0
  %v5547 = vpop.f32.mrf.mxu0
  %v5548 = vpop.f32.mrf.mxu0
  %5549 = vdwg.mxu0
  %5550 = vrot.lane.b32.xlu0 %v1292, 96
  %v5551 = vpop.permute.xlu0 %5550
  %v5553 = vsel %vm1084, %v4829, 0
  %v5556 = vsel %vm1296, %v5551, 0
  %5558 = vmatprep.subr.bf16.mxu0 0
  %5559 = vmatpush1.bf16.msra.mxu0 0
  %5560 = vmatprep.subr.bf16.mxu0 0
  %5561 = vmatpush1.bf16.msra.mxu0 0
  %5562 = vmatprep.subr.bf16.mxu0 0
  %5563 = vmatpush1.bf16.msra.mxu0 0
  %5564 = vmatprep.subr.bf16.mxu0 0
  %5565 = vmatpush1.bf16.msra.mxu0 0
  %5566 = vmatprep.subr.bf16.mxu0 0
  %5567 = vmatpush1.bf16.msra.mxu0 0
  %5568 = vmatprep.subr.bf16.mxu0 0
  %5569 = vmatpush1.bf16.msra.mxu0 0
  %5570 = vmatprep.subr.bf16.mxu0 0
  %5571 = vmatpush1.bf16.msra.mxu0 0
  %5572 = vmatprep.subr.bf16.mxu0 0
  %5573 = vmatpush1.bf16.msra.mxu0 %v5556
  %5574 = vmatprep.subr.bf16.mxu0 0
  %5575 = vmatpush2.bf16.msra.mxu0 0
  %5576 = vmatprep.subr.bf16.mxu0 0
  %5577 = vmatpush2.bf16.msra.mxu0 0
  %5578 = vmatprep.subr.bf16.mxu0 0
  %5579 = vmatpush2.bf16.msra.mxu0 0
  %5580 = vmatprep.subr.bf16.mxu0 0
  %5581 = vmatpush2.bf16.msra.mxu0 0
  %5582 = vmatprep.subr.bf16.mxu0 0
  %5583 = vmatpush2.bf16.msra.mxu0 0
  %5584 = vmatprep.subr.bf16.mxu0 0
  %5585 = vmatpush2.bf16.msra.mxu0 0
  %5586 = vmatprep.subr.bf16.mxu0 0
  %5587 = vmatpush2.bf16.msra.mxu0 0
  %5588 = vmatprep.subr.bf16.mxu0 0
  %5589 = vmatpush2.bf16.msra.mxu0 0
  %5590 = vmatprep.mubr.bf16.mxu0 0
  %5591 = vmatmul.mubr.bf16.gmra.mxu0 %v5553
  %v5592 = vpop.f32.mrf.mxu0
  %v5593 = vadd.f32 0.0, %v5592
  %v5594 = vpop.f32.mrf.mxu0
  %v5595 = vpop.f32.mrf.mxu0
  %v5596 = vpop.f32.mrf.mxu0
  %5597 = vdwg.mxu0
  %5598 = vrot.lane.b32.xlu0 %v267, 80
  %v5599 = vpop.permute.xlu0 %5598
  %5600 = vrot.lane.b32.xlu0 %v267, 16
  %v5601 = vpop.permute.xlu0 %5600
  %v5603 = vsel %vm286, %v5599, 0
  %v5606 = vsel %vm286, %v5601, 0
  %5608 = vmatprep.subr.bf16.mxu0 0
  %5609 = vmatpush1.bf16.xpose.msra.mxu0 0
  %5610 = vmatprep.subr.bf16.mxu0 0
  %5611 = vmatpush1.bf16.xpose.msra.mxu0 0
  %5612 = vmatprep.subr.bf16.mxu0 0
  %5613 = vmatpush1.bf16.xpose.msra.mxu0 0
  %5614 = vmatprep.subr.bf16.mxu0 0
  %5615 = vmatpush1.bf16.xpose.msra.mxu0 0
  %5616 = vmatprep.subr.bf16.mxu0 0
  %5617 = vmatpush1.bf16.xpose.msra.mxu0 0
  %5618 = vmatprep.subr.bf16.mxu0 0
  %5619 = vmatpush1.bf16.xpose.msra.mxu0 0
  %5620 = vmatprep.subr.bf16.mxu0 0
  %5621 = vmatpush1.bf16.xpose.msra.mxu0 0
  %5622 = vmatprep.subr.bf16.mxu0 0
  %5623 = vmatpush1.bf16.xpose.msra.mxu0 %v5606
  %5624 = vmatprep.subr.bf16.mxu0 0
  %5625 = vmatpush2.bf16.xpose.msra.mxu0 0
  %5626 = vmatprep.subr.bf16.mxu0 0
  %5627 = vmatpush2.bf16.xpose.msra.mxu0 0
  %5628 = vmatprep.subr.bf16.mxu0 0
  %5629 = vmatpush2.bf16.xpose.msra.mxu0 0
  %5630 = vmatprep.subr.bf16.mxu0 0
  %5631 = vmatpush2.bf16.xpose.msra.mxu0 0
  %5632 = vmatprep.subr.bf16.mxu0 0
  %5633 = vmatpush2.bf16.xpose.msra.mxu0 0
  %5634 = vmatprep.subr.bf16.mxu0 0
  %5635 = vmatpush2.bf16.xpose.msra.mxu0 0
  %5636 = vmatprep.subr.bf16.mxu0 0
  %5637 = vmatpush2.bf16.xpose.msra.mxu0 0
  %5638 = vmatprep.subr.bf16.mxu0 0
  %5639 = vmatpush2.bf16.xpose.msra.mxu0 0
  %5640 = vmatprep.mubr.bf16.mxu0 0
  %5641 = vmatmul.mubr.bf16.gmra.mxu0 %v5603
  %v5642 = vpop.f32.mrf.mxu0
  %v5643 = vadd.f32 0.0, %v5642
  %v5644 = vpop.f32.mrf.mxu0
  %v5645 = vpop.f32.mrf.mxu0
  %v5646 = vpop.f32.mrf.mxu0
  %5647 = vdwg.mxu0
  %5648 = vrot.lane.b32.xlu0 %v268, 80
  %v5649 = vpop.permute.xlu0 %5648
  %5650 = vrot.lane.b32.xlu0 %v268, 16
  %v5651 = vpop.permute.xlu0 %5650
  %v5653 = vsel %vm286, %v5649, 0
  %v5656 = vsel %vm286, %v5651, 0
  %5658 = vmatprep.subr.bf16.mxu0 0
  %5659 = vmatpush1.bf16.xpose.msra.mxu0 0
  %5660 = vmatprep.subr.bf16.mxu0 0
  %5661 = vmatpush1.bf16.xpose.msra.mxu0 0
  %5662 = vmatprep.subr.bf16.mxu0 0
  %5663 = vmatpush1.bf16.xpose.msra.mxu0 0
  %5664 = vmatprep.subr.bf16.mxu0 0
  %5665 = vmatpush1.bf16.xpose.msra.mxu0 0
  %5666 = vmatprep.subr.bf16.mxu0 0
  %5667 = vmatpush1.bf16.xpose.msra.mxu0 0
  %5668 = vmatprep.subr.bf16.mxu0 0
  %5669 = vmatpush1.bf16.xpose.msra.mxu0 0
  %5670 = vmatprep.subr.bf16.mxu0 0
  %5671 = vmatpush1.bf16.xpose.msra.mxu0 0
  %5672 = vmatprep.subr.bf16.mxu0 0
  %5673 = vmatpush1.bf16.xpose.msra.mxu0 %v5656
  %5674 = vmatprep.subr.bf16.mxu0 0
  %5675 = vmatpush2.bf16.xpose.msra.mxu0 0
  %5676 = vmatprep.subr.bf16.mxu0 0
  %5677 = vmatpush2.bf16.xpose.msra.mxu0 0
  %5678 = vmatprep.subr.bf16.mxu0 0
  %5679 = vmatpush2.bf16.xpose.msra.mxu0 0
  %5680 = vmatprep.subr.bf16.mxu0 0
  %5681 = vmatpush2.bf16.xpose.msra.mxu0 0
  %5682 = vmatprep.subr.bf16.mxu0 0
  %5683 = vmatpush2.bf16.xpose.msra.mxu0 0
  %5684 = vmatprep.subr.bf16.mxu0 0
  %5685 = vmatpush2.bf16.xpose.msra.mxu0 0
  %5686 = vmatprep.subr.bf16.mxu0 0
  %5687 = vmatpush2.bf16.xpose.msra.mxu0 0
  %5688 = vmatprep.subr.bf16.mxu0 0
  %5689 = vmatpush2.bf16.xpose.msra.mxu0 0
  %5690 = vmatprep.mubr.bf16.mxu0 0
  %5691 = vmatmul.mubr.bf16.gmra.mxu0 %v5653
  %v5692 = vpop.f32.mrf.mxu0
  %v5693 = vadd.f32 0.0, %v5692
  %v5694 = vpop.f32.mrf.mxu0
  %v5695 = vpop.f32.mrf.mxu0
  %v5696 = vpop.f32.mrf.mxu0
  %5697 = vdwg.mxu0
  %5698 = vrot.lane.b32.xlu0 %v269, 80
  %v5699 = vpop.permute.xlu0 %5698
  %5700 = vrot.lane.b32.xlu0 %v269, 16
  %v5701 = vpop.permute.xlu0 %5700
  %v5703 = vsel %vm286, %v5699, 0
  %v5706 = vsel %vm286, %v5701, 0
  %5708 = vmatprep.subr.bf16.mxu0 0
  %5709 = vmatpush1.bf16.xpose.msra.mxu0 0
  %5710 = vmatprep.subr.bf16.mxu0 0
  %5711 = vmatpush1.bf16.xpose.msra.mxu0 0
  %5712 = vmatprep.subr.bf16.mxu0 0
  %5713 = vmatpush1.bf16.xpose.msra.mxu0 0
  %5714 = vmatprep.subr.bf16.mxu0 0
  %5715 = vmatpush1.bf16.xpose.msra.mxu0 0
  %5716 = vmatprep.subr.bf16.mxu0 0
  %5717 = vmatpush1.bf16.xpose.msra.mxu0 0
  %5718 = vmatprep.subr.bf16.mxu0 0
  %5719 = vmatpush1.bf16.xpose.msra.mxu0 0
  %5720 = vmatprep.subr.bf16.mxu0 0
  %5721 = vmatpush1.bf16.xpose.msra.mxu0 0
  %5722 = vmatprep.subr.bf16.mxu0 0
  %5723 = vmatpush1.bf16.xpose.msra.mxu0 %v5706
  %5724 = vmatprep.subr.bf16.mxu0 0
  %5725 = vmatpush2.bf16.xpose.msra.mxu0 0
  %5726 = vmatprep.subr.bf16.mxu0 0
  %5727 = vmatpush2.bf16.xpose.msra.mxu0 0
  %5728 = vmatprep.subr.bf16.mxu0 0
  %5729 = vmatpush2.bf16.xpose.msra.mxu0 0
  %5730 = vmatprep.subr.bf16.mxu0 0
  %5731 = vmatpush2.bf16.xpose.msra.mxu0 0
  %5732 = vmatprep.subr.bf16.mxu0 0
  %5733 = vmatpush2.bf16.xpose.msra.mxu0 0
  %5734 = vmatprep.subr.bf16.mxu0 0
  %5735 = vmatpush2.bf16.xpose.msra.mxu0 0
  %5736 = vmatprep.subr.bf16.mxu0 0
  %5737 = vmatpush2.bf16.xpose.msra.mxu0 0
  %5738 = vmatprep.subr.bf16.mxu0 0
  %5739 = vmatpush2.bf16.xpose.msra.mxu0 0
  %5740 = vmatprep.mubr.bf16.mxu0 0
  %5741 = vmatmul.mubr.bf16.gmra.mxu0 %v5703
  %v5742 = vpop.f32.mrf.mxu0
  %v5743 = vadd.f32 0.0, %v5742
  %v5744 = vpop.f32.mrf.mxu0
  %v5745 = vpop.f32.mrf.mxu0
  %v5746 = vpop.f32.mrf.mxu0
  %5747 = vdwg.mxu0
  %5748 = vrot.lane.b32.xlu0 %v270, 80
  %v5749 = vpop.permute.xlu0 %5748
  %5750 = vrot.lane.b32.xlu0 %v270, 16
  %v5751 = vpop.permute.xlu0 %5750
  %v5753 = vsel %vm286, %v5749, 0
  %v5756 = vsel %vm286, %v5751, 0
  %5758 = vmatprep.subr.bf16.mxu0 0
  %5759 = vmatpush1.bf16.xpose.msra.mxu0 0
  %5760 = vmatprep.subr.bf16.mxu0 0
  %5761 = vmatpush1.bf16.xpose.msra.mxu0 0
  %5762 = vmatprep.subr.bf16.mxu0 0
  %5763 = vmatpush1.bf16.xpose.msra.mxu0 0
  %5764 = vmatprep.subr.bf16.mxu0 0
  %5765 = vmatpush1.bf16.xpose.msra.mxu0 0
  %5766 = vmatprep.subr.bf16.mxu0 0
  %5767 = vmatpush1.bf16.xpose.msra.mxu0 0
  %5768 = vmatprep.subr.bf16.mxu0 0
  %5769 = vmatpush1.bf16.xpose.msra.mxu0 0
  %5770 = vmatprep.subr.bf16.mxu0 0
  %5771 = vmatpush1.bf16.xpose.msra.mxu0 0
  %5772 = vmatprep.subr.bf16.mxu0 0
  %5773 = vmatpush1.bf16.xpose.msra.mxu0 %v5756
  %5774 = vmatprep.subr.bf16.mxu0 0
  %5775 = vmatpush2.bf16.xpose.msra.mxu0 0
  %5776 = vmatprep.subr.bf16.mxu0 0
  %5777 = vmatpush2.bf16.xpose.msra.mxu0 0
  %5778 = vmatprep.subr.bf16.mxu0 0
  %5779 = vmatpush2.bf16.xpose.msra.mxu0 0
  %5780 = vmatprep.subr.bf16.mxu0 0
  %5781 = vmatpush2.bf16.xpose.msra.mxu0 0
  %5782 = vmatprep.subr.bf16.mxu0 0
  %5783 = vmatpush2.bf16.xpose.msra.mxu0 0
  %5784 = vmatprep.subr.bf16.mxu0 0
  %5785 = vmatpush2.bf16.xpose.msra.mxu0 0
  %5786 = vmatprep.subr.bf16.mxu0 0
  %5787 = vmatpush2.bf16.xpose.msra.mxu0 0
  %5788 = vmatprep.subr.bf16.mxu0 0
  %5789 = vmatpush2.bf16.xpose.msra.mxu0 0
  %5790 = vmatprep.mubr.bf16.mxu0 0
  %5791 = vmatmul.mubr.bf16.gmra.mxu0 %v5753
  %v5792 = vpop.f32.mrf.mxu0
  %v5793 = vadd.f32 0.0, %v5792
  %v5794 = vpop.f32.mrf.mxu0
  %v5795 = vpop.f32.mrf.mxu0
  %v5796 = vpop.f32.mrf.mxu0
  %5797 = vdwg.mxu0
  %5798 = vrot.lane.b32.xlu0 %v271, 80
  %v5799 = vpop.permute.xlu0 %5798
  %5800 = vrot.lane.b32.xlu0 %v271, 16
  %v5801 = vpop.permute.xlu0 %5800
  %v5803 = vsel %vm286, %v5799, 0
  %v5806 = vsel %vm286, %v5801, 0
  %5808 = vmatprep.subr.bf16.mxu0 0
  %5809 = vmatpush1.bf16.xpose.msra.mxu0 0
  %5810 = vmatprep.subr.bf16.mxu0 0
  %5811 = vmatpush1.bf16.xpose.msra.mxu0 0
  %5812 = vmatprep.subr.bf16.mxu0 0
  %5813 = vmatpush1.bf16.xpose.msra.mxu0 0
  %5814 = vmatprep.subr.bf16.mxu0 0
  %5815 = vmatpush1.bf16.xpose.msra.mxu0 0
  %5816 = vmatprep.subr.bf16.mxu0 0
  %5817 = vmatpush1.bf16.xpose.msra.mxu0 0
  %5818 = vmatprep.subr.bf16.mxu0 0
  %5819 = vmatpush1.bf16.xpose.msra.mxu0 0
  %5820 = vmatprep.subr.bf16.mxu0 0
  %5821 = vmatpush1.bf16.xpose.msra.mxu0 0
  %5822 = vmatprep.subr.bf16.mxu0 0
  %5823 = vmatpush1.bf16.xpose.msra.mxu0 %v5806
  %5824 = vmatprep.subr.bf16.mxu0 0
  %5825 = vmatpush2.bf16.xpose.msra.mxu0 0
  %5826 = vmatprep.subr.bf16.mxu0 0
  %5827 = vmatpush2.bf16.xpose.msra.mxu0 0
  %5828 = vmatprep.subr.bf16.mxu0 0
  %5829 = vmatpush2.bf16.xpose.msra.mxu0 0
  %5830 = vmatprep.subr.bf16.mxu0 0
  %5831 = vmatpush2.bf16.xpose.msra.mxu0 0
  %5832 = vmatprep.subr.bf16.mxu0 0
  %5833 = vmatpush2.bf16.xpose.msra.mxu0 0
  %5834 = vmatprep.subr.bf16.mxu0 0
  %5835 = vmatpush2.bf16.xpose.msra.mxu0 0
  %5836 = vmatprep.subr.bf16.mxu0 0
  %5837 = vmatpush2.bf16.xpose.msra.mxu0 0
  %5838 = vmatprep.subr.bf16.mxu0 0
  %5839 = vmatpush2.bf16.xpose.msra.mxu0 0
  %5840 = vmatprep.mubr.bf16.mxu0 0
  %5841 = vmatmul.mubr.bf16.gmra.mxu0 %v5803
  %v5842 = vpop.f32.mrf.mxu0
  %v5843 = vadd.f32 0.0, %v5842
  %v5844 = vpop.f32.mrf.mxu0
  %v5845 = vpop.f32.mrf.mxu0
  %v5846 = vpop.f32.mrf.mxu0
  %5847 = vdwg.mxu0
  %5848 = vrot.lane.b32.xlu0 %v272, 80
  %v5849 = vpop.permute.xlu0 %5848
  %5850 = vrot.lane.b32.xlu0 %v272, 16
  %v5851 = vpop.permute.xlu0 %5850
  %v5853 = vsel %vm286, %v5849, 0
  %v5856 = vsel %vm286, %v5851, 0
  %5858 = vmatprep.subr.bf16.mxu0 0
  %5859 = vmatpush1.bf16.xpose.msra.mxu0 0
  %5860 = vmatprep.subr.bf16.mxu0 0
  %5861 = vmatpush1.bf16.xpose.msra.mxu0 0
  %5862 = vmatprep.subr.bf16.mxu0 0
  %5863 = vmatpush1.bf16.xpose.msra.mxu0 0
  %5864 = vmatprep.subr.bf16.mxu0 0
  %5865 = vmatpush1.bf16.xpose.msra.mxu0 0
  %5866 = vmatprep.subr.bf16.mxu0 0
  %5867 = vmatpush1.bf16.xpose.msra.mxu0 0
  %5868 = vmatprep.subr.bf16.mxu0 0
  %5869 = vmatpush1.bf16.xpose.msra.mxu0 0
  %5870 = vmatprep.subr.bf16.mxu0 0
  %5871 = vmatpush1.bf16.xpose.msra.mxu0 0
  %5872 = vmatprep.subr.bf16.mxu0 0
  %5873 = vmatpush1.bf16.xpose.msra.mxu0 %v5856
  %5874 = vmatprep.subr.bf16.mxu0 0
  %5875 = vmatpush2.bf16.xpose.msra.mxu0 0
  %5876 = vmatprep.subr.bf16.mxu0 0
  %5877 = vmatpush2.bf16.xpose.msra.mxu0 0
  %5878 = vmatprep.subr.bf16.mxu0 0
  %5879 = vmatpush2.bf16.xpose.msra.mxu0 0
  %5880 = vmatprep.subr.bf16.mxu0 0
  %5881 = vmatpush2.bf16.xpose.msra.mxu0 0
  %5882 = vmatprep.subr.bf16.mxu0 0
  %5883 = vmatpush2.bf16.xpose.msra.mxu0 0
  %5884 = vmatprep.subr.bf16.mxu0 0
  %5885 = vmatpush2.bf16.xpose.msra.mxu0 0
  %5886 = vmatprep.subr.bf16.mxu0 0
  %5887 = vmatpush2.bf16.xpose.msra.mxu0 0
  %5888 = vmatprep.subr.bf16.mxu0 0
  %5889 = vmatpush2.bf16.xpose.msra.mxu0 0
  %5890 = vmatprep.mubr.bf16.mxu0 0
  %5891 = vmatmul.mubr.bf16.gmra.mxu0 %v5853
  %v5892 = vpop.f32.mrf.mxu0
  %v5893 = vadd.f32 0.0, %v5892
  %v5894 = vpop.f32.mrf.mxu0
  %v5895 = vpop.f32.mrf.mxu0
  %v5896 = vpop.f32.mrf.mxu0
  %5897 = vdwg.mxu0
  %5898 = vrot.lane.b32.xlu0 %v273, 80
  %v5899 = vpop.permute.xlu0 %5898
  %5900 = vrot.lane.b32.xlu0 %v273, 16
  %v5901 = vpop.permute.xlu0 %5900
  %v5903 = vsel %vm286, %v5899, 0
  %v5906 = vsel %vm286, %v5901, 0
  %5908 = vmatprep.subr.bf16.mxu0 0
  %5909 = vmatpush1.bf16.xpose.msra.mxu0 0
  %5910 = vmatprep.subr.bf16.mxu0 0
  %5911 = vmatpush1.bf16.xpose.msra.mxu0 0
  %5912 = vmatprep.subr.bf16.mxu0 0
  %5913 = vmatpush1.bf16.xpose.msra.mxu0 0
  %5914 = vmatprep.subr.bf16.mxu0 0
  %5915 = vmatpush1.bf16.xpose.msra.mxu0 0
  %5916 = vmatprep.subr.bf16.mxu0 0
  %5917 = vmatpush1.bf16.xpose.msra.mxu0 0
  %5918 = vmatprep.subr.bf16.mxu0 0
  %5919 = vmatpush1.bf16.xpose.msra.mxu0 0
  %5920 = vmatprep.subr.bf16.mxu0 0
  %5921 = vmatpush1.bf16.xpose.msra.mxu0 0
  %5922 = vmatprep.subr.bf16.mxu0 0
  %5923 = vmatpush1.bf16.xpose.msra.mxu0 %v5906
  %5924 = vmatprep.subr.bf16.mxu0 0
  %5925 = vmatpush2.bf16.xpose.msra.mxu0 0
  %5926 = vmatprep.subr.bf16.mxu0 0
  %5927 = vmatpush2.bf16.xpose.msra.mxu0 0
  %5928 = vmatprep.subr.bf16.mxu0 0
  %5929 = vmatpush2.bf16.xpose.msra.mxu0 0
  %5930 = vmatprep.subr.bf16.mxu0 0
  %5931 = vmatpush2.bf16.xpose.msra.mxu0 0
  %5932 = vmatprep.subr.bf16.mxu0 0
  %5933 = vmatpush2.bf16.xpose.msra.mxu0 0
  %5934 = vmatprep.subr.bf16.mxu0 0
  %5935 = vmatpush2.bf16.xpose.msra.mxu0 0
  %5936 = vmatprep.subr.bf16.mxu0 0
  %5937 = vmatpush2.bf16.xpose.msra.mxu0 0
  %5938 = vmatprep.subr.bf16.mxu0 0
  %5939 = vmatpush2.bf16.xpose.msra.mxu0 0
  %5940 = vmatprep.mubr.bf16.mxu0 0
  %5941 = vmatmul.mubr.bf16.gmra.mxu0 %v5903
  %v5942 = vpop.f32.mrf.mxu0
  %v5943 = vadd.f32 0.0, %v5942
  %v5944 = vpop.f32.mrf.mxu0
  %v5945 = vpop.f32.mrf.mxu0
  %v5946 = vpop.f32.mrf.mxu0
  %5947 = vdwg.mxu0
  %5948 = vrot.lane.b32.xlu0 %v274, 80
  %v5949 = vpop.permute.xlu0 %5948
  %5950 = vrot.lane.b32.xlu0 %v274, 16
  %v5951 = vpop.permute.xlu0 %5950
  %v5953 = vsel %vm286, %v5949, 0
  %v5956 = vsel %vm286, %v5951, 0
  %5958 = vmatprep.subr.bf16.mxu0 0
  %5959 = vmatpush1.bf16.xpose.msra.mxu0 0
  %5960 = vmatprep.subr.bf16.mxu0 0
  %5961 = vmatpush1.bf16.xpose.msra.mxu0 0
  %5962 = vmatprep.subr.bf16.mxu0 0
  %5963 = vmatpush1.bf16.xpose.msra.mxu0 0
  %5964 = vmatprep.subr.bf16.mxu0 0
  %5965 = vmatpush1.bf16.xpose.msra.mxu0 0
  %5966 = vmatprep.subr.bf16.mxu0 0
  %5967 = vmatpush1.bf16.xpose.msra.mxu0 0
  %5968 = vmatprep.subr.bf16.mxu0 0
  %5969 = vmatpush1.bf16.xpose.msra.mxu0 0
  %5970 = vmatprep.subr.bf16.mxu0 0
  %5971 = vmatpush1.bf16.xpose.msra.mxu0 0
  %5972 = vmatprep.subr.bf16.mxu0 0
  %5973 = vmatpush1.bf16.xpose.msra.mxu0 %v5956
  %5974 = vmatprep.subr.bf16.mxu0 0
  %5975 = vmatpush2.bf16.xpose.msra.mxu0 0
  %5976 = vmatprep.subr.bf16.mxu0 0
  %5977 = vmatpush2.bf16.xpose.msra.mxu0 0
  %5978 = vmatprep.subr.bf16.mxu0 0
  %5979 = vmatpush2.bf16.xpose.msra.mxu0 0
  %5980 = vmatprep.subr.bf16.mxu0 0
  %5981 = vmatpush2.bf16.xpose.msra.mxu0 0
  %5982 = vmatprep.subr.bf16.mxu0 0
  %5983 = vmatpush2.bf16.xpose.msra.mxu0 0
  %5984 = vmatprep.subr.bf16.mxu0 0
  %5985 = vmatpush2.bf16.xpose.msra.mxu0 0
  %5986 = vmatprep.subr.bf16.mxu0 0
  %5987 = vmatpush2.bf16.xpose.msra.mxu0 0
  %5988 = vmatprep.subr.bf16.mxu0 0
  %5989 = vmatpush2.bf16.xpose.msra.mxu0 0
  %5990 = vmatprep.mubr.bf16.mxu0 0
  %5991 = vmatmul.mubr.bf16.gmra.mxu0 %v5953
  %v5992 = vpop.f32.mrf.mxu0
  %v5993 = vadd.f32 0.0, %v5992
  %v5994 = vpop.f32.mrf.mxu0
  %v5995 = vpop.f32.mrf.mxu0
  %v5996 = vpop.f32.mrf.mxu0
  %5997 = vdwg.mxu0
  %5998 = vrot.lane.b32.xlu0 %v275, 80
  %v5999 = vpop.permute.xlu0 %5998
  %6000 = vrot.lane.b32.xlu0 %v275, 16
  %v6001 = vpop.permute.xlu0 %6000
  %v6003 = vsel %vm286, %v5999, 0
  %v6006 = vsel %vm286, %v6001, 0
  %6008 = vmatprep.subr.bf16.mxu0 0
  %6009 = vmatpush1.bf16.xpose.msra.mxu0 0
  %6010 = vmatprep.subr.bf16.mxu0 0
  %6011 = vmatpush1.bf16.xpose.msra.mxu0 0
  %6012 = vmatprep.subr.bf16.mxu0 0
  %6013 = vmatpush1.bf16.xpose.msra.mxu0 0
  %6014 = vmatprep.subr.bf16.mxu0 0
  %6015 = vmatpush1.bf16.xpose.msra.mxu0 0
  %6016 = vmatprep.subr.bf16.mxu0 0
  %6017 = vmatpush1.bf16.xpose.msra.mxu0 0
  %6018 = vmatprep.subr.bf16.mxu0 0
  %6019 = vmatpush1.bf16.xpose.msra.mxu0 0
  %6020 = vmatprep.subr.bf16.mxu0 0
  %6021 = vmatpush1.bf16.xpose.msra.mxu0 0
  %6022 = vmatprep.subr.bf16.mxu0 0
  %6023 = vmatpush1.bf16.xpose.msra.mxu0 %v6006
  %6024 = vmatprep.subr.bf16.mxu0 0
  %6025 = vmatpush2.bf16.xpose.msra.mxu0 0
  %6026 = vmatprep.subr.bf16.mxu0 0
  %6027 = vmatpush2.bf16.xpose.msra.mxu0 0
  %6028 = vmatprep.subr.bf16.mxu0 0
  %6029 = vmatpush2.bf16.xpose.msra.mxu0 0
  %6030 = vmatprep.subr.bf16.mxu0 0
  %6031 = vmatpush2.bf16.xpose.msra.mxu0 0
  %6032 = vmatprep.subr.bf16.mxu0 0
  %6033 = vmatpush2.bf16.xpose.msra.mxu0 0
  %6034 = vmatprep.subr.bf16.mxu0 0
  %6035 = vmatpush2.bf16.xpose.msra.mxu0 0
  %6036 = vmatprep.subr.bf16.mxu0 0
  %6037 = vmatpush2.bf16.xpose.msra.mxu0 0
  %6038 = vmatprep.subr.bf16.mxu0 0
  %6039 = vmatpush2.bf16.xpose.msra.mxu0 0
  %6040 = vmatprep.mubr.bf16.mxu0 0
  %6041 = vmatmul.mubr.bf16.gmra.mxu0 %v6003
  %v6042 = vpop.f32.mrf.mxu0
  %v6043 = vadd.f32 0.0, %v6042
  %v6044 = vpop.f32.mrf.mxu0
  %v6045 = vpop.f32.mrf.mxu0
  %v6046 = vpop.f32.mrf.mxu0
  %6047 = vdwg.mxu0
  %6048 = vrot.lane.b32.xlu0 %v276, 80
  %v6049 = vpop.permute.xlu0 %6048
  %6050 = vrot.lane.b32.xlu0 %v276, 16
  %v6051 = vpop.permute.xlu0 %6050
  %v6053 = vsel %vm286, %v6049, 0
  %v6056 = vsel %vm286, %v6051, 0
  %6058 = vmatprep.subr.bf16.mxu0 0
  %6059 = vmatpush1.bf16.xpose.msra.mxu0 0
  %6060 = vmatprep.subr.bf16.mxu0 0
  %6061 = vmatpush1.bf16.xpose.msra.mxu0 0
  %6062 = vmatprep.subr.bf16.mxu0 0
  %6063 = vmatpush1.bf16.xpose.msra.mxu0 0
  %6064 = vmatprep.subr.bf16.mxu0 0
  %6065 = vmatpush1.bf16.xpose.msra.mxu0 0
  %6066 = vmatprep.subr.bf16.mxu0 0
  %6067 = vmatpush1.bf16.xpose.msra.mxu0 0
  %6068 = vmatprep.subr.bf16.mxu0 0
  %6069 = vmatpush1.bf16.xpose.msra.mxu0 0
  %6070 = vmatprep.subr.bf16.mxu0 0
  %6071 = vmatpush1.bf16.xpose.msra.mxu0 0
  %6072 = vmatprep.subr.bf16.mxu0 0
  %6073 = vmatpush1.bf16.xpose.msra.mxu0 %v6056
  %6074 = vmatprep.subr.bf16.mxu0 0
  %6075 = vmatpush2.bf16.xpose.msra.mxu0 0
  %6076 = vmatprep.subr.bf16.mxu0 0
  %6077 = vmatpush2.bf16.xpose.msra.mxu0 0
  %6078 = vmatprep.subr.bf16.mxu0 0
  %6079 = vmatpush2.bf16.xpose.msra.mxu0 0
  %6080 = vmatprep.subr.bf16.mxu0 0
  %6081 = vmatpush2.bf16.xpose.msra.mxu0 0
  %6082 = vmatprep.subr.bf16.mxu0 0
  %6083 = vmatpush2.bf16.xpose.msra.mxu0 0
  %6084 = vmatprep.subr.bf16.mxu0 0
  %6085 = vmatpush2.bf16.xpose.msra.mxu0 0
  %6086 = vmatprep.subr.bf16.mxu0 0
  %6087 = vmatpush2.bf16.xpose.msra.mxu0 0
  %6088 = vmatprep.subr.bf16.mxu0 0
  %6089 = vmatpush2.bf16.xpose.msra.mxu0 0
  %6090 = vmatprep.mubr.bf16.mxu0 0
  %6091 = vmatmul.mubr.bf16.gmra.mxu0 %v6053
  %v6092 = vpop.f32.mrf.mxu0
  %v6093 = vadd.f32 0.0, %v6092
  %v6094 = vpop.f32.mrf.mxu0
  %v6095 = vpop.f32.mrf.mxu0
  %v6096 = vpop.f32.mrf.mxu0
  %6097 = vdwg.mxu0
  %6098 = vrot.lane.b32.xlu0 %v277, 80
  %v6099 = vpop.permute.xlu0 %6098
  %6100 = vrot.lane.b32.xlu0 %v277, 16
  %v6101 = vpop.permute.xlu0 %6100
  %v6103 = vsel %vm286, %v6099, 0
  %v6106 = vsel %vm286, %v6101, 0
  %6108 = vmatprep.subr.bf16.mxu0 0
  %6109 = vmatpush1.bf16.xpose.msra.mxu0 0
  %6110 = vmatprep.subr.bf16.mxu0 0
  %6111 = vmatpush1.bf16.xpose.msra.mxu0 0
  %6112 = vmatprep.subr.bf16.mxu0 0
  %6113 = vmatpush1.bf16.xpose.msra.mxu0 0
  %6114 = vmatprep.subr.bf16.mxu0 0
  %6115 = vmatpush1.bf16.xpose.msra.mxu0 0
  %6116 = vmatprep.subr.bf16.mxu0 0
  %6117 = vmatpush1.bf16.xpose.msra.mxu0 0
  %6118 = vmatprep.subr.bf16.mxu0 0
  %6119 = vmatpush1.bf16.xpose.msra.mxu0 0
  %6120 = vmatprep.subr.bf16.mxu0 0
  %6121 = vmatpush1.bf16.xpose.msra.mxu0 0
  %6122 = vmatprep.subr.bf16.mxu0 0
  %6123 = vmatpush1.bf16.xpose.msra.mxu0 %v6106
  %6124 = vmatprep.subr.bf16.mxu0 0
  %6125 = vmatpush2.bf16.xpose.msra.mxu0 0
  %6126 = vmatprep.subr.bf16.mxu0 0
  %6127 = vmatpush2.bf16.xpose.msra.mxu0 0
  %6128 = vmatprep.subr.bf16.mxu0 0
  %6129 = vmatpush2.bf16.xpose.msra.mxu0 0
  %6130 = vmatprep.subr.bf16.mxu0 0
  %6131 = vmatpush2.bf16.xpose.msra.mxu0 0
  %6132 = vmatprep.subr.bf16.mxu0 0
  %6133 = vmatpush2.bf16.xpose.msra.mxu0 0
  %6134 = vmatprep.subr.bf16.mxu0 0
  %6135 = vmatpush2.bf16.xpose.msra.mxu0 0
  %6136 = vmatprep.subr.bf16.mxu0 0
  %6137 = vmatpush2.bf16.xpose.msra.mxu0 0
  %6138 = vmatprep.subr.bf16.mxu0 0
  %6139 = vmatpush2.bf16.xpose.msra.mxu0 0
  %6140 = vmatprep.mubr.bf16.mxu0 0
  %6141 = vmatmul.mubr.bf16.gmra.mxu0 %v6103
  %v6142 = vpop.f32.mrf.mxu0
  %v6143 = vadd.f32 0.0, %v6142
  %v6144 = vpop.f32.mrf.mxu0
  %v6145 = vpop.f32.mrf.mxu0
  %v6146 = vpop.f32.mrf.mxu0
  %6147 = vdwg.mxu0
  %6148 = vrot.lane.b32.xlu0 %v278, 80
  %v6149 = vpop.permute.xlu0 %6148
  %6150 = vrot.lane.b32.xlu0 %v278, 16
  %v6151 = vpop.permute.xlu0 %6150
  %v6153 = vsel %vm286, %v6149, 0
  %v6156 = vsel %vm286, %v6151, 0
  %6158 = vmatprep.subr.bf16.mxu0 0
  %6159 = vmatpush1.bf16.xpose.msra.mxu0 0
  %6160 = vmatprep.subr.bf16.mxu0 0
  %6161 = vmatpush1.bf16.xpose.msra.mxu0 0
  %6162 = vmatprep.subr.bf16.mxu0 0
  %6163 = vmatpush1.bf16.xpose.msra.mxu0 0
  %6164 = vmatprep.subr.bf16.mxu0 0
  %6165 = vmatpush1.bf16.xpose.msra.mxu0 0
  %6166 = vmatprep.subr.bf16.mxu0 0
  %6167 = vmatpush1.bf16.xpose.msra.mxu0 0
  %6168 = vmatprep.subr.bf16.mxu0 0
  %6169 = vmatpush1.bf16.xpose.msra.mxu0 0
  %6170 = vmatprep.subr.bf16.mxu0 0
  %6171 = vmatpush1.bf16.xpose.msra.mxu0 0
  %6172 = vmatprep.subr.bf16.mxu0 0
  %6173 = vmatpush1.bf16.xpose.msra.mxu0 %v6156
  %6174 = vmatprep.subr.bf16.mxu0 0
  %6175 = vmatpush2.bf16.xpose.msra.mxu0 0
  %6176 = vmatprep.subr.bf16.mxu0 0
  %6177 = vmatpush2.bf16.xpose.msra.mxu0 0
  %6178 = vmatprep.subr.bf16.mxu0 0
  %6179 = vmatpush2.bf16.xpose.msra.mxu0 0
  %6180 = vmatprep.subr.bf16.mxu0 0
  %6181 = vmatpush2.bf16.xpose.msra.mxu0 0
  %6182 = vmatprep.subr.bf16.mxu0 0
  %6183 = vmatpush2.bf16.xpose.msra.mxu0 0
  %6184 = vmatprep.subr.bf16.mxu0 0
  %6185 = vmatpush2.bf16.xpose.msra.mxu0 0
  %6186 = vmatprep.subr.bf16.mxu0 0
  %6187 = vmatpush2.bf16.xpose.msra.mxu0 0
  %6188 = vmatprep.subr.bf16.mxu0 0
  %6189 = vmatpush2.bf16.xpose.msra.mxu0 0
  %6190 = vmatprep.mubr.bf16.mxu0 0
  %6191 = vmatmul.mubr.bf16.gmra.mxu0 %v6153
  %v6192 = vpop.f32.mrf.mxu0
  %v6193 = vadd.f32 0.0, %v6192
  %v6194 = vpop.f32.mrf.mxu0
  %v6195 = vpop.f32.mrf.mxu0
  %v6196 = vpop.f32.mrf.mxu0
  %6197 = vdwg.mxu0
  %6198 = vrot.lane.b32.xlu0 %v279, 80
  %v6199 = vpop.permute.xlu0 %6198
  %6200 = vrot.lane.b32.xlu0 %v279, 16
  %v6201 = vpop.permute.xlu0 %6200
  %v6203 = vsel %vm286, %v6199, 0
  %v6206 = vsel %vm286, %v6201, 0
  %6208 = vmatprep.subr.bf16.mxu0 0
  %6209 = vmatpush1.bf16.xpose.msra.mxu0 0
  %6210 = vmatprep.subr.bf16.mxu0 0
  %6211 = vmatpush1.bf16.xpose.msra.mxu0 0
  %6212 = vmatprep.subr.bf16.mxu0 0
  %6213 = vmatpush1.bf16.xpose.msra.mxu0 0
  %6214 = vmatprep.subr.bf16.mxu0 0
  %6215 = vmatpush1.bf16.xpose.msra.mxu0 0
  %6216 = vmatprep.subr.bf16.mxu0 0
  %6217 = vmatpush1.bf16.xpose.msra.mxu0 0
  %6218 = vmatprep.subr.bf16.mxu0 0
  %6219 = vmatpush1.bf16.xpose.msra.mxu0 0
  %6220 = vmatprep.subr.bf16.mxu0 0
  %6221 = vmatpush1.bf16.xpose.msra.mxu0 0
  %6222 = vmatprep.subr.bf16.mxu0 0
  %6223 = vmatpush1.bf16.xpose.msra.mxu0 %v6206
  %6224 = vmatprep.subr.bf16.mxu0 0
  %6225 = vmatpush2.bf16.xpose.msra.mxu0 0
  %6226 = vmatprep.subr.bf16.mxu0 0
  %6227 = vmatpush2.bf16.xpose.msra.mxu0 0
  %6228 = vmatprep.subr.bf16.mxu0 0
  %6229 = vmatpush2.bf16.xpose.msra.mxu0 0
  %6230 = vmatprep.subr.bf16.mxu0 0
  %6231 = vmatpush2.bf16.xpose.msra.mxu0 0
  %6232 = vmatprep.subr.bf16.mxu0 0
  %6233 = vmatpush2.bf16.xpose.msra.mxu0 0
  %6234 = vmatprep.subr.bf16.mxu0 0
  %6235 = vmatpush2.bf16.xpose.msra.mxu0 0
  %6236 = vmatprep.subr.bf16.mxu0 0
  %6237 = vmatpush2.bf16.xpose.msra.mxu0 0
  %6238 = vmatprep.subr.bf16.mxu0 0
  %6239 = vmatpush2.bf16.xpose.msra.mxu0 0
  %6240 = vmatprep.mubr.bf16.mxu0 0
  %6241 = vmatmul.mubr.bf16.gmra.mxu0 %v6203
  %v6242 = vpop.f32.mrf.mxu0
  %v6243 = vadd.f32 0.0, %v6242
  %v6244 = vpop.f32.mrf.mxu0
  %v6245 = vpop.f32.mrf.mxu0
  %v6246 = vpop.f32.mrf.mxu0
  %6247 = vdwg.mxu0
  %6248 = vrot.lane.b32.xlu0 %v280, 80
  %v6249 = vpop.permute.xlu0 %6248
  %6250 = vrot.lane.b32.xlu0 %v280, 16
  %v6251 = vpop.permute.xlu0 %6250
  %v6253 = vsel %vm286, %v6249, 0
  %v6256 = vsel %vm286, %v6251, 0
  %6258 = vmatprep.subr.bf16.mxu0 0
  %6259 = vmatpush1.bf16.xpose.msra.mxu0 0
  %6260 = vmatprep.subr.bf16.mxu0 0
  %6261 = vmatpush1.bf16.xpose.msra.mxu0 0
  %6262 = vmatprep.subr.bf16.mxu0 0
  %6263 = vmatpush1.bf16.xpose.msra.mxu0 0
  %6264 = vmatprep.subr.bf16.mxu0 0
  %6265 = vmatpush1.bf16.xpose.msra.mxu0 0
  %6266 = vmatprep.subr.bf16.mxu0 0
  %6267 = vmatpush1.bf16.xpose.msra.mxu0 0
  %6268 = vmatprep.subr.bf16.mxu0 0
  %6269 = vmatpush1.bf16.xpose.msra.mxu0 0
  %6270 = vmatprep.subr.bf16.mxu0 0
  %6271 = vmatpush1.bf16.xpose.msra.mxu0 0
  %6272 = vmatprep.subr.bf16.mxu0 0
  %6273 = vmatpush1.bf16.xpose.msra.mxu0 %v6256
  %6274 = vmatprep.subr.bf16.mxu0 0
  %6275 = vmatpush2.bf16.xpose.msra.mxu0 0
  %6276 = vmatprep.subr.bf16.mxu0 0
  %6277 = vmatpush2.bf16.xpose.msra.mxu0 0
  %6278 = vmatprep.subr.bf16.mxu0 0
  %6279 = vmatpush2.bf16.xpose.msra.mxu0 0
  %6280 = vmatprep.subr.bf16.mxu0 0
  %6281 = vmatpush2.bf16.xpose.msra.mxu0 0
  %6282 = vmatprep.subr.bf16.mxu0 0
  %6283 = vmatpush2.bf16.xpose.msra.mxu0 0
  %6284 = vmatprep.subr.bf16.mxu0 0
  %6285 = vmatpush2.bf16.xpose.msra.mxu0 0
  %6286 = vmatprep.subr.bf16.mxu0 0
  %6287 = vmatpush2.bf16.xpose.msra.mxu0 0
  %6288 = vmatprep.subr.bf16.mxu0 0
  %6289 = vmatpush2.bf16.xpose.msra.mxu0 0
  %6290 = vmatprep.mubr.bf16.mxu0 0
  %6291 = vmatmul.mubr.bf16.gmra.mxu0 %v6253
  %v6292 = vpop.f32.mrf.mxu0
  %v6293 = vadd.f32 0.0, %v6292
  %v6294 = vpop.f32.mrf.mxu0
  %v6295 = vpop.f32.mrf.mxu0
  %v6296 = vpop.f32.mrf.mxu0
  %6297 = vdwg.mxu0
  %6298 = vrot.lane.b32.xlu0 %v281, 80
  %v6299 = vpop.permute.xlu0 %6298
  %6300 = vrot.lane.b32.xlu0 %v281, 16
  %v6301 = vpop.permute.xlu0 %6300
  %v6303 = vsel %vm286, %v6299, 0
  %v6306 = vsel %vm286, %v6301, 0
  %6308 = vmatprep.subr.bf16.mxu0 0
  %6309 = vmatpush1.bf16.xpose.msra.mxu0 0
  %6310 = vmatprep.subr.bf16.mxu0 0
  %6311 = vmatpush1.bf16.xpose.msra.mxu0 0
  %6312 = vmatprep.subr.bf16.mxu0 0
  %6313 = vmatpush1.bf16.xpose.msra.mxu0 0
  %6314 = vmatprep.subr.bf16.mxu0 0
  %6315 = vmatpush1.bf16.xpose.msra.mxu0 0
  %6316 = vmatprep.subr.bf16.mxu0 0
  %6317 = vmatpush1.bf16.xpose.msra.mxu0 0
  %6318 = vmatprep.subr.bf16.mxu0 0
  %6319 = vmatpush1.bf16.xpose.msra.mxu0 0
  %6320 = vmatprep.subr.bf16.mxu0 0
  %6321 = vmatpush1.bf16.xpose.msra.mxu0 0
  %6322 = vmatprep.subr.bf16.mxu0 0
  %6323 = vmatpush1.bf16.xpose.msra.mxu0 %v6306
  %6324 = vmatprep.subr.bf16.mxu0 0
  %6325 = vmatpush2.bf16.xpose.msra.mxu0 0
  %6326 = vmatprep.subr.bf16.mxu0 0
  %6327 = vmatpush2.bf16.xpose.msra.mxu0 0
  %6328 = vmatprep.subr.bf16.mxu0 0
  %6329 = vmatpush2.bf16.xpose.msra.mxu0 0
  %6330 = vmatprep.subr.bf16.mxu0 0
  %6331 = vmatpush2.bf16.xpose.msra.mxu0 0
  %6332 = vmatprep.subr.bf16.mxu0 0
  %6333 = vmatpush2.bf16.xpose.msra.mxu0 0
  %6334 = vmatprep.subr.bf16.mxu0 0
  %6335 = vmatpush2.bf16.xpose.msra.mxu0 0
  %6336 = vmatprep.subr.bf16.mxu0 0
  %6337 = vmatpush2.bf16.xpose.msra.mxu0 0
  %6338 = vmatprep.subr.bf16.mxu0 0
  %6339 = vmatpush2.bf16.xpose.msra.mxu0 0
  %6340 = vmatprep.mubr.bf16.mxu0 0
  %6341 = vmatmul.mubr.bf16.gmra.mxu0 %v6303
  %v6342 = vpop.f32.mrf.mxu0
  %v6343 = vadd.f32 0.0, %v6342
  %v6344 = vpop.f32.mrf.mxu0
  %v6345 = vpop.f32.mrf.mxu0
  %v6346 = vpop.f32.mrf.mxu0
  %6347 = vdwg.mxu0
  %6348 = vrot.lane.b32.xlu0 %v282, 80
  %v6349 = vpop.permute.xlu0 %6348
  %6350 = vrot.lane.b32.xlu0 %v282, 16
  %v6351 = vpop.permute.xlu0 %6350
  %v6353 = vsel %vm286, %v6349, 0
  %v6356 = vsel %vm286, %v6351, 0
  %6358 = vmatprep.subr.bf16.mxu0 0
  %6359 = vmatpush1.bf16.xpose.msra.mxu0 0
  %6360 = vmatprep.subr.bf16.mxu0 0
  %6361 = vmatpush1.bf16.xpose.msra.mxu0 0
  %6362 = vmatprep.subr.bf16.mxu0 0
  %6363 = vmatpush1.bf16.xpose.msra.mxu0 0
  %6364 = vmatprep.subr.bf16.mxu0 0
  %6365 = vmatpush1.bf16.xpose.msra.mxu0 0
  %6366 = vmatprep.subr.bf16.mxu0 0
  %6367 = vmatpush1.bf16.xpose.msra.mxu0 0
  %6368 = vmatprep.subr.bf16.mxu0 0
  %6369 = vmatpush1.bf16.xpose.msra.mxu0 0
  %6370 = vmatprep.subr.bf16.mxu0 0
  %6371 = vmatpush1.bf16.xpose.msra.mxu0 0
  %6372 = vmatprep.subr.bf16.mxu0 0
  %6373 = vmatpush1.bf16.xpose.msra.mxu0 %v6356
  %6374 = vmatprep.subr.bf16.mxu0 0
  %6375 = vmatpush2.bf16.xpose.msra.mxu0 0
  %6376 = vmatprep.subr.bf16.mxu0 0
  %6377 = vmatpush2.bf16.xpose.msra.mxu0 0
  %6378 = vmatprep.subr.bf16.mxu0 0
  %6379 = vmatpush2.bf16.xpose.msra.mxu0 0
  %6380 = vmatprep.subr.bf16.mxu0 0
  %6381 = vmatpush2.bf16.xpose.msra.mxu0 0
  %6382 = vmatprep.subr.bf16.mxu0 0
  %6383 = vmatpush2.bf16.xpose.msra.mxu0 0
  %6384 = vmatprep.subr.bf16.mxu0 0
  %6385 = vmatpush2.bf16.xpose.msra.mxu0 0
  %6386 = vmatprep.subr.bf16.mxu0 0
  %6387 = vmatpush2.bf16.xpose.msra.mxu0 0
  %6388 = vmatprep.subr.bf16.mxu0 0
  %6389 = vmatpush2.bf16.xpose.msra.mxu0 0
  %6390 = vmatprep.mubr.bf16.mxu0 0
  %6391 = vmatmul.mubr.bf16.gmra.mxu0 %v6353
  %v6392 = vpop.f32.mrf.mxu0
  %v6393 = vadd.f32 0.0, %v6392
  %v6394 = vpop.f32.mrf.mxu0
  %v6395 = vpop.f32.mrf.mxu0
  %v6396 = vpop.f32.mrf.mxu0
  %6397 = vdwg.mxu0
  %v6398 = vmul.f32 %v5643, 0.25
  %v6399 = vmul.f32 %v5693, 0.25
  %v6400 = vmul.f32 %v5743, 0.25
  %v6401 = vmul.f32 %v5793, 0.25
  %v6402 = vmul.f32 %v5843, 0.25
  %v6403 = vmul.f32 %v5893, 0.25
  %v6404 = vmul.f32 %v5943, 0.25
  %v6405 = vmul.f32 %v5993, 0.25
  %v6406 = vmul.f32 %v6043, 0.25
  %v6407 = vmul.f32 %v6093, 0.25
  %v6408 = vmul.f32 %v6143, 0.25
  %v6409 = vmul.f32 %v6193, 0.25
  %v6410 = vmul.f32 %v6243, 0.25
  %v6411 = vmul.f32 %v6293, 0.25
  %v6412 = vmul.f32 %v6343, 0.25
  %v6413 = vmul.f32 %v6393, 0.25
  %v6414 = vsel %vm1084, %v6398, -inf
  %6415 = vmax.xlane.f32.xlu0 %v6414
  %v6416 = vpop.xlane.xlu0 %6415
  %v6417 = vsel %vm1084, %v6399, -inf
  %6418 = vmax.xlane.f32.xlu0 %v6417
  %v6419 = vpop.xlane.xlu0 %6418
  %v6420 = vsel %vm1084, %v6400, -inf
  %6421 = vmax.xlane.f32.xlu0 %v6420
  %v6422 = vpop.xlane.xlu0 %6421
  %v6423 = vsel %vm1084, %v6401, -inf
  %6424 = vmax.xlane.f32.xlu0 %v6423
  %v6425 = vpop.xlane.xlu0 %6424
  %v6426 = vsel %vm1084, %v6402, -inf
  %6427 = vmax.xlane.f32.xlu0 %v6426
  %v6428 = vpop.xlane.xlu0 %6427
  %v6429 = vsel %vm1084, %v6403, -inf
  %6430 = vmax.xlane.f32.xlu0 %v6429
  %v6431 = vpop.xlane.xlu0 %6430
  %v6432 = vsel %vm1084, %v6404, -inf
  %6433 = vmax.xlane.f32.xlu0 %v6432
  %v6434 = vpop.xlane.xlu0 %6433
  %v6435 = vsel %vm1084, %v6405, -inf
  %6436 = vmax.xlane.f32.xlu0 %v6435
  %v6437 = vpop.xlane.xlu0 %6436
  %v6438 = vsel %vm1084, %v6406, -inf
  %6439 = vmax.xlane.f32.xlu0 %v6438
  %v6440 = vpop.xlane.xlu0 %6439
  %v6441 = vsel %vm1084, %v6407, -inf
  %6442 = vmax.xlane.f32.xlu0 %v6441
  %v6443 = vpop.xlane.xlu0 %6442
  %v6444 = vsel %vm1084, %v6408, -inf
  %6445 = vmax.xlane.f32.xlu0 %v6444
  %v6446 = vpop.xlane.xlu0 %6445
  %v6447 = vsel %vm1084, %v6409, -inf
  %6448 = vmax.xlane.f32.xlu0 %v6447
  %v6449 = vpop.xlane.xlu0 %6448
  %v6450 = vsel %vm1084, %v6410, -inf
  %6451 = vmax.xlane.f32.xlu0 %v6450
  %v6452 = vpop.xlane.xlu0 %6451
  %v6453 = vsel %vm1084, %v6411, -inf
  %6454 = vmax.xlane.f32.xlu0 %v6453
  %v6455 = vpop.xlane.xlu0 %6454
  %v6456 = vsel %vm1084, %v6412, -inf
  %6457 = vmax.xlane.f32.xlu0 %v6456
  %v6458 = vpop.xlane.xlu0 %6457
  %v6459 = vsel %vm1084, %v6413, -inf
  %6460 = vmax.xlane.f32.xlu0 %v6459
  %v6461 = vpop.xlane.xlu0 %6460
  %v6462 = vsub.f32 %v6398, %v6416
  %v6463 = vsub.f32 %v6399, %v6419
  %v6464 = vsub.f32 %v6400, %v6422
  %v6465 = vsub.f32 %v6401, %v6425
  %v6466 = vsub.f32 %v6402, %v6428
  %v6467 = vsub.f32 %v6403, %v6431
  %v6468 = vsub.f32 %v6404, %v6434
  %v6469 = vsub.f32 %v6405, %v6437
  %v6470 = vsub.f32 %v6406, %v6440
  %v6471 = vsub.f32 %v6407, %v6443
  %v6472 = vsub.f32 %v6408, %v6446
  %v6473 = vsub.f32 %v6409, %v6449
  %v6474 = vsub.f32 %v6410, %v6452
  %v6475 = vsub.f32 %v6411, %v6455
  %v6476 = vsub.f32 %v6412, %v6458
  %v6477 = vsub.f32 %v6413, %v6461
  %v6478 = vmul.f32 %v6462, 1.442695
  %v6479 = vpow.pop %v6478
  %v6480 = vmul.f32 %v6463, 1.442695
  %v6481 = vpow.pop %v6480
  %v6482 = vmul.f32 %v6464, 1.442695
  %v6483 = vpow.pop %v6482
  %v6484 = vmul.f32 %v6465, 1.442695
  %v6485 = vpow.pop %v6484
  %v6486 = vmul.f32 %v6466, 1.442695
  %v6487 = vpow.pop %v6486
  %v6488 = vmul.f32 %v6467, 1.442695
  %v6489 = vpow.pop %v6488
  %v6490 = vmul.f32 %v6468, 1.442695
  %v6491 = vpow.pop %v6490
  %v6492 = vmul.f32 %v6469, 1.442695
  %v6493 = vpow.pop %v6492
  %v6494 = vmul.f32 %v6470, 1.442695
  %v6495 = vpow.pop %v6494
  %v6496 = vmul.f32 %v6471, 1.442695
  %v6497 = vpow.pop %v6496
  %v6498 = vmul.f32 %v6472, 1.442695
  %v6499 = vpow.pop %v6498
  %v6500 = vmul.f32 %v6473, 1.442695
  %v6501 = vpow.pop %v6500
  %v6502 = vmul.f32 %v6474, 1.442695
  %v6503 = vpow.pop %v6502
  %v6504 = vmul.f32 %v6475, 1.442695
  %v6505 = vpow.pop %v6504
  %v6506 = vmul.f32 %v6476, 1.442695
  %v6507 = vpow.pop %v6506
  %v6508 = vmul.f32 %v6477, 1.442695
  %v6509 = vpow.pop %v6508
  %v6510 = vsel %vm1084, %v6479, 0.0
  %6511 = vadd.xlane.f32.xlu0 %v6510
  %v6512 = vpop.xlane.xlu0 %6511
  %v6513 = vsel %vm1084, %v6481, 0.0
  %6514 = vadd.xlane.f32.xlu0 %v6513
  %v6515 = vpop.xlane.xlu0 %6514
  %v6516 = vsel %vm1084, %v6483, 0.0
  %6517 = vadd.xlane.f32.xlu0 %v6516
  %v6518 = vpop.xlane.xlu0 %6517
  %v6519 = vsel %vm1084, %v6485, 0.0
  %6520 = vadd.xlane.f32.xlu0 %v6519
  %v6521 = vpop.xlane.xlu0 %6520
  %v6522 = vsel %vm1084, %v6487, 0.0
  %6523 = vadd.xlane.f32.xlu0 %v6522
  %v6524 = vpop.xlane.xlu0 %6523
  %v6525 = vsel %vm1084, %v6489, 0.0
  %6526 = vadd.xlane.f32.xlu0 %v6525
  %v6527 = vpop.xlane.xlu0 %6526
  %v6528 = vsel %vm1084, %v6491, 0.0
  %6529 = vadd.xlane.f32.xlu0 %v6528
  %v6530 = vpop.xlane.xlu0 %6529
  %v6531 = vsel %vm1084, %v6493, 0.0
  %6532 = vadd.xlane.f32.xlu0 %v6531
  %v6533 = vpop.xlane.xlu0 %6532
  %v6534 = vsel %vm1084, %v6495, 0.0
  %6535 = vadd.xlane.f32.xlu0 %v6534
  %v6536 = vpop.xlane.xlu0 %6535
  %v6537 = vsel %vm1084, %v6497, 0.0
  %6538 = vadd.xlane.f32.xlu0 %v6537
  %v6539 = vpop.xlane.xlu0 %6538
  %v6540 = vsel %vm1084, %v6499, 0.0
  %6541 = vadd.xlane.f32.xlu0 %v6540
  %v6542 = vpop.xlane.xlu0 %6541
  %v6543 = vsel %vm1084, %v6501, 0.0
  %6544 = vadd.xlane.f32.xlu0 %v6543
  %v6545 = vpop.xlane.xlu0 %6544
  %v6546 = vsel %vm1084, %v6503, 0.0
  %6547 = vadd.xlane.f32.xlu0 %v6546
  %v6548 = vpop.xlane.xlu0 %6547
  %v6549 = vsel %vm1084, %v6505, 0.0
  %6550 = vadd.xlane.f32.xlu0 %v6549
  %v6551 = vpop.xlane.xlu0 %6550
  %v6552 = vsel %vm1084, %v6507, 0.0
  %6553 = vadd.xlane.f32.xlu0 %v6552
  %v6554 = vpop.xlane.xlu0 %6553
  %v6555 = vsel %vm1084, %v6509, 0.0
  %6556 = vadd.xlane.f32.xlu0 %v6555
  %v6557 = vpop.xlane.xlu0 %6556
  %v6558 = vrcp.pop %v6512
  %v6559 = vrcp.pop %v6515
  %v6560 = vrcp.pop %v6518
  %v6561 = vrcp.pop %v6521
  %v6562 = vrcp.pop %v6524
  %v6563 = vrcp.pop %v6527
  %v6564 = vrcp.pop %v6530
  %v6565 = vrcp.pop %v6533
  %v6566 = vrcp.pop %v6536
  %v6567 = vrcp.pop %v6539
  %v6568 = vrcp.pop %v6542
  %v6569 = vrcp.pop %v6545
  %v6570 = vrcp.pop %v6548
  %v6571 = vrcp.pop %v6551
  %v6572 = vrcp.pop %v6554
  %v6573 = vrcp.pop %v6557
  %v6574 = vmul.f32 %v6479, %v6558
  %v6575 = vmul.f32 %v6481, %v6559
  %v6576 = vmul.f32 %v6483, %v6560
  %v6577 = vmul.f32 %v6485, %v6561
  %v6578 = vmul.f32 %v6487, %v6562
  %v6579 = vmul.f32 %v6489, %v6563
  %v6580 = vmul.f32 %v6491, %v6564
  %v6581 = vmul.f32 %v6493, %v6565
  %v6582 = vmul.f32 %v6495, %v6566
  %v6583 = vmul.f32 %v6497, %v6567
  %v6584 = vmul.f32 %v6499, %v6568
  %v6585 = vmul.f32 %v6501, %v6569
  %v6586 = vmul.f32 %v6503, %v6570
  %v6587 = vmul.f32 %v6505, %v6571
  %v6588 = vmul.f32 %v6507, %v6572
  %v6589 = vmul.f32 %v6509, %v6573
  %v6590 = vpack.c.bf16 %v6574, %v6574
  %v6591 = vpack.c.bf16 %v6575, %v6575
  %v6592 = vpack.c.bf16 %v6576, %v6576
  %v6593 = vpack.c.bf16 %v6577, %v6577
  %v6594 = vpack.c.bf16 %v6578, %v6578
  %v6595 = vpack.c.bf16 %v6579, %v6579
  %v6596 = vpack.c.bf16 %v6580, %v6580
  %v6597 = vpack.c.bf16 %v6581, %v6581
  %v6598 = vpack.c.bf16 %v6582, %v6582
  %v6599 = vpack.c.bf16 %v6583, %v6583
  %v6600 = vpack.c.bf16 %v6584, %v6584
  %v6601 = vpack.c.bf16 %v6585, %v6585
  %v6602 = vpack.c.bf16 %v6586, %v6586
  %v6603 = vpack.c.bf16 %v6587, %v6587
  %v6604 = vpack.c.bf16 %v6588, %v6588
  %v6605 = vpack.c.bf16 %v6589, %v6589
  %6606 = vrot.lane.b32.xlu0 %v1277, 80
  %v6607 = vpop.permute.xlu0 %6606
  %v6609 = vsel %vm1084, %v6590, 0
  %v6612 = vsel %vm1296, %v6607, 0
  %6614 = vmatprep.subr.bf16.mxu0 0
  %6615 = vmatpush1.bf16.msra.mxu0 0
  %6616 = vmatprep.subr.bf16.mxu0 0
  %6617 = vmatpush1.bf16.msra.mxu0 0
  %6618 = vmatprep.subr.bf16.mxu0 0
  %6619 = vmatpush1.bf16.msra.mxu0 0
  %6620 = vmatprep.subr.bf16.mxu0 0
  %6621 = vmatpush1.bf16.msra.mxu0 0
  %6622 = vmatprep.subr.bf16.mxu0 0
  %6623 = vmatpush1.bf16.msra.mxu0 0
  %6624 = vmatprep.subr.bf16.mxu0 0
  %6625 = vmatpush1.bf16.msra.mxu0 0
  %6626 = vmatprep.subr.bf16.mxu0 0
  %6627 = vmatpush1.bf16.msra.mxu0 0
  %6628 = vmatprep.subr.bf16.mxu0 0
  %6629 = vmatpush1.bf16.msra.mxu0 %v6612
  %6630 = vmatprep.subr.bf16.mxu0 0
  %6631 = vmatpush2.bf16.msra.mxu0 0
  %6632 = vmatprep.subr.bf16.mxu0 0
  %6633 = vmatpush2.bf16.msra.mxu0 0
  %6634 = vmatprep.subr.bf16.mxu0 0
  %6635 = vmatpush2.bf16.msra.mxu0 0
  %6636 = vmatprep.subr.bf16.mxu0 0
  %6637 = vmatpush2.bf16.msra.mxu0 0
  %6638 = vmatprep.subr.bf16.mxu0 0
  %6639 = vmatpush2.bf16.msra.mxu0 0
  %6640 = vmatprep.subr.bf16.mxu0 0
  %6641 = vmatpush2.bf16.msra.mxu0 0
  %6642 = vmatprep.subr.bf16.mxu0 0
  %6643 = vmatpush2.bf16.msra.mxu0 0
  %6644 = vmatprep.subr.bf16.mxu0 0
  %6645 = vmatpush2.bf16.msra.mxu0 0
  %6646 = vmatprep.mubr.bf16.mxu0 0
  %6647 = vmatmul.mubr.bf16.gmra.mxu0 %v6609
  %v6648 = vpop.f32.mrf.mxu0
  %v6649 = vadd.f32 0.0, %v6648
  %v6650 = vpop.f32.mrf.mxu0
  %v6651 = vpop.f32.mrf.mxu0
  %v6652 = vpop.f32.mrf.mxu0
  %6653 = vdwg.mxu0
  %6654 = vrot.lane.b32.xlu0 %v1278, 80
  %v6655 = vpop.permute.xlu0 %6654
  %v6657 = vsel %vm1084, %v6591, 0
  %v6660 = vsel %vm1296, %v6655, 0
  %6662 = vmatprep.subr.bf16.mxu0 0
  %6663 = vmatpush1.bf16.msra.mxu0 0
  %6664 = vmatprep.subr.bf16.mxu0 0
  %6665 = vmatpush1.bf16.msra.mxu0 0
  %6666 = vmatprep.subr.bf16.mxu0 0
  %6667 = vmatpush1.bf16.msra.mxu0 0
  %6668 = vmatprep.subr.bf16.mxu0 0
  %6669 = vmatpush1.bf16.msra.mxu0 0
  %6670 = vmatprep.subr.bf16.mxu0 0
  %6671 = vmatpush1.bf16.msra.mxu0 0
  %6672 = vmatprep.subr.bf16.mxu0 0
  %6673 = vmatpush1.bf16.msra.mxu0 0
  %6674 = vmatprep.subr.bf16.mxu0 0
  %6675 = vmatpush1.bf16.msra.mxu0 0
  %6676 = vmatprep.subr.bf16.mxu0 0
  %6677 = vmatpush1.bf16.msra.mxu0 %v6660
  %6678 = vmatprep.subr.bf16.mxu0 0
  %6679 = vmatpush2.bf16.msra.mxu0 0
  %6680 = vmatprep.subr.bf16.mxu0 0
  %6681 = vmatpush2.bf16.msra.mxu0 0
  %6682 = vmatprep.subr.bf16.mxu0 0
  %6683 = vmatpush2.bf16.msra.mxu0 0
  %6684 = vmatprep.subr.bf16.mxu0 0
  %6685 = vmatpush2.bf16.msra.mxu0 0
  %6686 = vmatprep.subr.bf16.mxu0 0
  %6687 = vmatpush2.bf16.msra.mxu0 0
  %6688 = vmatprep.subr.bf16.mxu0 0
  %6689 = vmatpush2.bf16.msra.mxu0 0
  %6690 = vmatprep.subr.bf16.mxu0 0
  %6691 = vmatpush2.bf16.msra.mxu0 0
  %6692 = vmatprep.subr.bf16.mxu0 0
  %6693 = vmatpush2.bf16.msra.mxu0 0
  %6694 = vmatprep.mubr.bf16.mxu0 0
  %6695 = vmatmul.mubr.bf16.gmra.mxu0 %v6657
  %v6696 = vpop.f32.mrf.mxu0
  %v6697 = vadd.f32 0.0, %v6696
  %v6698 = vpop.f32.mrf.mxu0
  %v6699 = vpop.f32.mrf.mxu0
  %v6700 = vpop.f32.mrf.mxu0
  %6701 = vdwg.mxu0
  %6702 = vrot.lane.b32.xlu0 %v1279, 80
  %v6703 = vpop.permute.xlu0 %6702
  %v6705 = vsel %vm1084, %v6592, 0
  %v6708 = vsel %vm1296, %v6703, 0
  %6710 = vmatprep.subr.bf16.mxu0 0
  %6711 = vmatpush1.bf16.msra.mxu0 0
  %6712 = vmatprep.subr.bf16.mxu0 0
  %6713 = vmatpush1.bf16.msra.mxu0 0
  %6714 = vmatprep.subr.bf16.mxu0 0
  %6715 = vmatpush1.bf16.msra.mxu0 0
  %6716 = vmatprep.subr.bf16.mxu0 0
  %6717 = vmatpush1.bf16.msra.mxu0 0
  %6718 = vmatprep.subr.bf16.mxu0 0
  %6719 = vmatpush1.bf16.msra.mxu0 0
  %6720 = vmatprep.subr.bf16.mxu0 0
  %6721 = vmatpush1.bf16.msra.mxu0 0
  %6722 = vmatprep.subr.bf16.mxu0 0
  %6723 = vmatpush1.bf16.msra.mxu0 0
  %6724 = vmatprep.subr.bf16.mxu0 0
  %6725 = vmatpush1.bf16.msra.mxu0 %v6708
  %6726 = vmatprep.subr.bf16.mxu0 0
  %6727 = vmatpush2.bf16.msra.mxu0 0
  %6728 = vmatprep.subr.bf16.mxu0 0
  %6729 = vmatpush2.bf16.msra.mxu0 0
  %6730 = vmatprep.subr.bf16.mxu0 0
  %6731 = vmatpush2.bf16.msra.mxu0 0
  %6732 = vmatprep.subr.bf16.mxu0 0
  %6733 = vmatpush2.bf16.msra.mxu0 0
  %6734 = vmatprep.subr.bf16.mxu0 0
  %6735 = vmatpush2.bf16.msra.mxu0 0
  %6736 = vmatprep.subr.bf16.mxu0 0
  %6737 = vmatpush2.bf16.msra.mxu0 0
  %6738 = vmatprep.subr.bf16.mxu0 0
  %6739 = vmatpush2.bf16.msra.mxu0 0
  %6740 = vmatprep.subr.bf16.mxu0 0
  %6741 = vmatpush2.bf16.msra.mxu0 0
  %6742 = vmatprep.mubr.bf16.mxu0 0
  %6743 = vmatmul.mubr.bf16.gmra.mxu0 %v6705
  %v6744 = vpop.f32.mrf.mxu0
  %v6745 = vadd.f32 0.0, %v6744
  %v6746 = vpop.f32.mrf.mxu0
  %v6747 = vpop.f32.mrf.mxu0
  %v6748 = vpop.f32.mrf.mxu0
  %6749 = vdwg.mxu0
  %6750 = vrot.lane.b32.xlu0 %v1280, 80
  %v6751 = vpop.permute.xlu0 %6750
  %v6753 = vsel %vm1084, %v6593, 0
  %v6756 = vsel %vm1296, %v6751, 0
  %6758 = vmatprep.subr.bf16.mxu0 0
  %6759 = vmatpush1.bf16.msra.mxu0 0
  %6760 = vmatprep.subr.bf16.mxu0 0
  %6761 = vmatpush1.bf16.msra.mxu0 0
  %6762 = vmatprep.subr.bf16.mxu0 0
  %6763 = vmatpush1.bf16.msra.mxu0 0
  %6764 = vmatprep.subr.bf16.mxu0 0
  %6765 = vmatpush1.bf16.msra.mxu0 0
  %6766 = vmatprep.subr.bf16.mxu0 0
  %6767 = vmatpush1.bf16.msra.mxu0 0
  %6768 = vmatprep.subr.bf16.mxu0 0
  %6769 = vmatpush1.bf16.msra.mxu0 0
  %6770 = vmatprep.subr.bf16.mxu0 0
  %6771 = vmatpush1.bf16.msra.mxu0 0
  %6772 = vmatprep.subr.bf16.mxu0 0
  %6773 = vmatpush1.bf16.msra.mxu0 %v6756
  %6774 = vmatprep.subr.bf16.mxu0 0
  %6775 = vmatpush2.bf16.msra.mxu0 0
  %6776 = vmatprep.subr.bf16.mxu0 0
  %6777 = vmatpush2.bf16.msra.mxu0 0
  %6778 = vmatprep.subr.bf16.mxu0 0
  %6779 = vmatpush2.bf16.msra.mxu0 0
  %6780 = vmatprep.subr.bf16.mxu0 0
  %6781 = vmatpush2.bf16.msra.mxu0 0
  %6782 = vmatprep.subr.bf16.mxu0 0
  %6783 = vmatpush2.bf16.msra.mxu0 0
  %6784 = vmatprep.subr.bf16.mxu0 0
  %6785 = vmatpush2.bf16.msra.mxu0 0
  %6786 = vmatprep.subr.bf16.mxu0 0
  %6787 = vmatpush2.bf16.msra.mxu0 0
  %6788 = vmatprep.subr.bf16.mxu0 0
  %6789 = vmatpush2.bf16.msra.mxu0 0
  %6790 = vmatprep.mubr.bf16.mxu0 0
  %6791 = vmatmul.mubr.bf16.gmra.mxu0 %v6753
  %v6792 = vpop.f32.mrf.mxu0
  %v6793 = vadd.f32 0.0, %v6792
  %v6794 = vpop.f32.mrf.mxu0
  %v6795 = vpop.f32.mrf.mxu0
  %v6796 = vpop.f32.mrf.mxu0
  %6797 = vdwg.mxu0
  %6798 = vrot.lane.b32.xlu0 %v1281, 80
  %v6799 = vpop.permute.xlu0 %6798
  %v6801 = vsel %vm1084, %v6594, 0
  %v6804 = vsel %vm1296, %v6799, 0
  %6806 = vmatprep.subr.bf16.mxu0 0
  %6807 = vmatpush1.bf16.msra.mxu0 0
  %6808 = vmatprep.subr.bf16.mxu0 0
  %6809 = vmatpush1.bf16.msra.mxu0 0
  %6810 = vmatprep.subr.bf16.mxu0 0
  %6811 = vmatpush1.bf16.msra.mxu0 0
  %6812 = vmatprep.subr.bf16.mxu0 0
  %6813 = vmatpush1.bf16.msra.mxu0 0
  %6814 = vmatprep.subr.bf16.mxu0 0
  %6815 = vmatpush1.bf16.msra.mxu0 0
  %6816 = vmatprep.subr.bf16.mxu0 0
  %6817 = vmatpush1.bf16.msra.mxu0 0
  %6818 = vmatprep.subr.bf16.mxu0 0
  %6819 = vmatpush1.bf16.msra.mxu0 0
  %6820 = vmatprep.subr.bf16.mxu0 0
  %6821 = vmatpush1.bf16.msra.mxu0 %v6804
  %6822 = vmatprep.subr.bf16.mxu0 0
  %6823 = vmatpush2.bf16.msra.mxu0 0
  %6824 = vmatprep.subr.bf16.mxu0 0
  %6825 = vmatpush2.bf16.msra.mxu0 0
  %6826 = vmatprep.subr.bf16.mxu0 0
  %6827 = vmatpush2.bf16.msra.mxu0 0
  %6828 = vmatprep.subr.bf16.mxu0 0
  %6829 = vmatpush2.bf16.msra.mxu0 0
  %6830 = vmatprep.subr.bf16.mxu0 0
  %6831 = vmatpush2.bf16.msra.mxu0 0
  %6832 = vmatprep.subr.bf16.mxu0 0
  %6833 = vmatpush2.bf16.msra.mxu0 0
  %6834 = vmatprep.subr.bf16.mxu0 0
  %6835 = vmatpush2.bf16.msra.mxu0 0
  %6836 = vmatprep.subr.bf16.mxu0 0
  %6837 = vmatpush2.bf16.msra.mxu0 0
  %6838 = vmatprep.mubr.bf16.mxu0 0
  %6839 = vmatmul.mubr.bf16.gmra.mxu0 %v6801
  %v6840 = vpop.f32.mrf.mxu0
  %v6841 = vadd.f32 0.0, %v6840
  %v6842 = vpop.f32.mrf.mxu0
  %v6843 = vpop.f32.mrf.mxu0
  %v6844 = vpop.f32.mrf.mxu0
  %6845 = vdwg.mxu0
  %6846 = vrot.lane.b32.xlu0 %v1282, 80
  %v6847 = vpop.permute.xlu0 %6846
  %v6849 = vsel %vm1084, %v6595, 0
  %v6852 = vsel %vm1296, %v6847, 0
  %6854 = vmatprep.subr.bf16.mxu0 0
  %6855 = vmatpush1.bf16.msra.mxu0 0
  %6856 = vmatprep.subr.bf16.mxu0 0
  %6857 = vmatpush1.bf16.msra.mxu0 0
  %6858 = vmatprep.subr.bf16.mxu0 0
  %6859 = vmatpush1.bf16.msra.mxu0 0
  %6860 = vmatprep.subr.bf16.mxu0 0
  %6861 = vmatpush1.bf16.msra.mxu0 0
  %6862 = vmatprep.subr.bf16.mxu0 0
  %6863 = vmatpush1.bf16.msra.mxu0 0
  %6864 = vmatprep.subr.bf16.mxu0 0
  %6865 = vmatpush1.bf16.msra.mxu0 0
  %6866 = vmatprep.subr.bf16.mxu0 0
  %6867 = vmatpush1.bf16.msra.mxu0 0
  %6868 = vmatprep.subr.bf16.mxu0 0
  %6869 = vmatpush1.bf16.msra.mxu0 %v6852
  %6870 = vmatprep.subr.bf16.mxu0 0
  %6871 = vmatpush2.bf16.msra.mxu0 0
  %6872 = vmatprep.subr.bf16.mxu0 0
  %6873 = vmatpush2.bf16.msra.mxu0 0
  %6874 = vmatprep.subr.bf16.mxu0 0
  %6875 = vmatpush2.bf16.msra.mxu0 0
  %6876 = vmatprep.subr.bf16.mxu0 0
  %6877 = vmatpush2.bf16.msra.mxu0 0
  %6878 = vmatprep.subr.bf16.mxu0 0
  %6879 = vmatpush2.bf16.msra.mxu0 0
  %6880 = vmatprep.subr.bf16.mxu0 0
  %6881 = vmatpush2.bf16.msra.mxu0 0
  %6882 = vmatprep.subr.bf16.mxu0 0
  %6883 = vmatpush2.bf16.msra.mxu0 0
  %6884 = vmatprep.subr.bf16.mxu0 0
  %6885 = vmatpush2.bf16.msra.mxu0 0
  %6886 = vmatprep.mubr.bf16.mxu0 0
  %6887 = vmatmul.mubr.bf16.gmra.mxu0 %v6849
  %v6888 = vpop.f32.mrf.mxu0
  %v6889 = vadd.f32 0.0, %v6888
  %v6890 = vpop.f32.mrf.mxu0
  %v6891 = vpop.f32.mrf.mxu0
  %v6892 = vpop.f32.mrf.mxu0
  %6893 = vdwg.mxu0
  %6894 = vrot.lane.b32.xlu0 %v1283, 80
  %v6895 = vpop.permute.xlu0 %6894
  %v6897 = vsel %vm1084, %v6596, 0
  %v6900 = vsel %vm1296, %v6895, 0
  %6902 = vmatprep.subr.bf16.mxu0 0
  %6903 = vmatpush1.bf16.msra.mxu0 0
  %6904 = vmatprep.subr.bf16.mxu0 0
  %6905 = vmatpush1.bf16.msra.mxu0 0
  %6906 = vmatprep.subr.bf16.mxu0 0
  %6907 = vmatpush1.bf16.msra.mxu0 0
  %6908 = vmatprep.subr.bf16.mxu0 0
  %6909 = vmatpush1.bf16.msra.mxu0 0
  %6910 = vmatprep.subr.bf16.mxu0 0
  %6911 = vmatpush1.bf16.msra.mxu0 0
  %6912 = vmatprep.subr.bf16.mxu0 0
  %6913 = vmatpush1.bf16.msra.mxu0 0
  %6914 = vmatprep.subr.bf16.mxu0 0
  %6915 = vmatpush1.bf16.msra.mxu0 0
  %6916 = vmatprep.subr.bf16.mxu0 0
  %6917 = vmatpush1.bf16.msra.mxu0 %v6900
  %6918 = vmatprep.subr.bf16.mxu0 0
  %6919 = vmatpush2.bf16.msra.mxu0 0
  %6920 = vmatprep.subr.bf16.mxu0 0
  %6921 = vmatpush2.bf16.msra.mxu0 0
  %6922 = vmatprep.subr.bf16.mxu0 0
  %6923 = vmatpush2.bf16.msra.mxu0 0
  %6924 = vmatprep.subr.bf16.mxu0 0
  %6925 = vmatpush2.bf16.msra.mxu0 0
  %6926 = vmatprep.subr.bf16.mxu0 0
  %6927 = vmatpush2.bf16.msra.mxu0 0
  %6928 = vmatprep.subr.bf16.mxu0 0
  %6929 = vmatpush2.bf16.msra.mxu0 0
  %6930 = vmatprep.subr.bf16.mxu0 0
  %6931 = vmatpush2.bf16.msra.mxu0 0
  %6932 = vmatprep.subr.bf16.mxu0 0
  %6933 = vmatpush2.bf16.msra.mxu0 0
  %6934 = vmatprep.mubr.bf16.mxu0 0
  %6935 = vmatmul.mubr.bf16.gmra.mxu0 %v6897
  %v6936 = vpop.f32.mrf.mxu0
  %v6937 = vadd.f32 0.0, %v6936
  %v6938 = vpop.f32.mrf.mxu0
  %v6939 = vpop.f32.mrf.mxu0
  %v6940 = vpop.f32.mrf.mxu0
  %6941 = vdwg.mxu0
  %6942 = vrot.lane.b32.xlu0 %v1284, 80
  %v6943 = vpop.permute.xlu0 %6942
  %v6945 = vsel %vm1084, %v6597, 0
  %v6948 = vsel %vm1296, %v6943, 0
  %6950 = vmatprep.subr.bf16.mxu0 0
  %6951 = vmatpush1.bf16.msra.mxu0 0
  %6952 = vmatprep.subr.bf16.mxu0 0
  %6953 = vmatpush1.bf16.msra.mxu0 0
  %6954 = vmatprep.subr.bf16.mxu0 0
  %6955 = vmatpush1.bf16.msra.mxu0 0
  %6956 = vmatprep.subr.bf16.mxu0 0
  %6957 = vmatpush1.bf16.msra.mxu0 0
  %6958 = vmatprep.subr.bf16.mxu0 0
  %6959 = vmatpush1.bf16.msra.mxu0 0
  %6960 = vmatprep.subr.bf16.mxu0 0
  %6961 = vmatpush1.bf16.msra.mxu0 0
  %6962 = vmatprep.subr.bf16.mxu0 0
  %6963 = vmatpush1.bf16.msra.mxu0 0
  %6964 = vmatprep.subr.bf16.mxu0 0
  %6965 = vmatpush1.bf16.msra.mxu0 %v6948
  %6966 = vmatprep.subr.bf16.mxu0 0
  %6967 = vmatpush2.bf16.msra.mxu0 0
  %6968 = vmatprep.subr.bf16.mxu0 0
  %6969 = vmatpush2.bf16.msra.mxu0 0
  %6970 = vmatprep.subr.bf16.mxu0 0
  %6971 = vmatpush2.bf16.msra.mxu0 0
  %6972 = vmatprep.subr.bf16.mxu0 0
  %6973 = vmatpush2.bf16.msra.mxu0 0
  %6974 = vmatprep.subr.bf16.mxu0 0
  %6975 = vmatpush2.bf16.msra.mxu0 0
  %6976 = vmatprep.subr.bf16.mxu0 0
  %6977 = vmatpush2.bf16.msra.mxu0 0
  %6978 = vmatprep.subr.bf16.mxu0 0
  %6979 = vmatpush2.bf16.msra.mxu0 0
  %6980 = vmatprep.subr.bf16.mxu0 0
  %6981 = vmatpush2.bf16.msra.mxu0 0
  %6982 = vmatprep.mubr.bf16.mxu0 0
  %6983 = vmatmul.mubr.bf16.gmra.mxu0 %v6945
  %v6984 = vpop.f32.mrf.mxu0
  %v6985 = vadd.f32 0.0, %v6984
  %v6986 = vpop.f32.mrf.mxu0
  %v6987 = vpop.f32.mrf.mxu0
  %v6988 = vpop.f32.mrf.mxu0
  %6989 = vdwg.mxu0
  %6990 = vrot.lane.b32.xlu0 %v1285, 80
  %v6991 = vpop.permute.xlu0 %6990
  %v6993 = vsel %vm1084, %v6598, 0
  %v6996 = vsel %vm1296, %v6991, 0
  %6998 = vmatprep.subr.bf16.mxu0 0
  %6999 = vmatpush1.bf16.msra.mxu0 0
  %7000 = vmatprep.subr.bf16.mxu0 0
  %7001 = vmatpush1.bf16.msra.mxu0 0
  %7002 = vmatprep.subr.bf16.mxu0 0
  %7003 = vmatpush1.bf16.msra.mxu0 0
  %7004 = vmatprep.subr.bf16.mxu0 0
  %7005 = vmatpush1.bf16.msra.mxu0 0
  %7006 = vmatprep.subr.bf16.mxu0 0
  %7007 = vmatpush1.bf16.msra.mxu0 0
  %7008 = vmatprep.subr.bf16.mxu0 0
  %7009 = vmatpush1.bf16.msra.mxu0 0
  %7010 = vmatprep.subr.bf16.mxu0 0
  %7011 = vmatpush1.bf16.msra.mxu0 0
  %7012 = vmatprep.subr.bf16.mxu0 0
  %7013 = vmatpush1.bf16.msra.mxu0 %v6996
  %7014 = vmatprep.subr.bf16.mxu0 0
  %7015 = vmatpush2.bf16.msra.mxu0 0
  %7016 = vmatprep.subr.bf16.mxu0 0
  %7017 = vmatpush2.bf16.msra.mxu0 0
  %7018 = vmatprep.subr.bf16.mxu0 0
  %7019 = vmatpush2.bf16.msra.mxu0 0
  %7020 = vmatprep.subr.bf16.mxu0 0
  %7021 = vmatpush2.bf16.msra.mxu0 0
  %7022 = vmatprep.subr.bf16.mxu0 0
  %7023 = vmatpush2.bf16.msra.mxu0 0
  %7024 = vmatprep.subr.bf16.mxu0 0
  %7025 = vmatpush2.bf16.msra.mxu0 0
  %7026 = vmatprep.subr.bf16.mxu0 0
  %7027 = vmatpush2.bf16.msra.mxu0 0
  %7028 = vmatprep.subr.bf16.mxu0 0
  %7029 = vmatpush2.bf16.msra.mxu0 0
  %7030 = vmatprep.mubr.bf16.mxu0 0
  %7031 = vmatmul.mubr.bf16.gmra.mxu0 %v6993
  %v7032 = vpop.f32.mrf.mxu0
  %v7033 = vadd.f32 0.0, %v7032
  %v7034 = vpop.f32.mrf.mxu0
  %v7035 = vpop.f32.mrf.mxu0
  %v7036 = vpop.f32.mrf.mxu0
  %7037 = vdwg.mxu0
  %7038 = vrot.lane.b32.xlu0 %v1286, 80
  %v7039 = vpop.permute.xlu0 %7038
  %v7041 = vsel %vm1084, %v6599, 0
  %v7044 = vsel %vm1296, %v7039, 0
  %7046 = vmatprep.subr.bf16.mxu0 0
  %7047 = vmatpush1.bf16.msra.mxu0 0
  %7048 = vmatprep.subr.bf16.mxu0 0
  %7049 = vmatpush1.bf16.msra.mxu0 0
  %7050 = vmatprep.subr.bf16.mxu0 0
  %7051 = vmatpush1.bf16.msra.mxu0 0
  %7052 = vmatprep.subr.bf16.mxu0 0
  %7053 = vmatpush1.bf16.msra.mxu0 0
  %7054 = vmatprep.subr.bf16.mxu0 0
  %7055 = vmatpush1.bf16.msra.mxu0 0
  %7056 = vmatprep.subr.bf16.mxu0 0
  %7057 = vmatpush1.bf16.msra.mxu0 0
  %7058 = vmatprep.subr.bf16.mxu0 0
  %7059 = vmatpush1.bf16.msra.mxu0 0
  %7060 = vmatprep.subr.bf16.mxu0 0
  %7061 = vmatpush1.bf16.msra.mxu0 %v7044
  %7062 = vmatprep.subr.bf16.mxu0 0
  %7063 = vmatpush2.bf16.msra.mxu0 0
  %7064 = vmatprep.subr.bf16.mxu0 0
  %7065 = vmatpush2.bf16.msra.mxu0 0
  %7066 = vmatprep.subr.bf16.mxu0 0
  %7067 = vmatpush2.bf16.msra.mxu0 0
  %7068 = vmatprep.subr.bf16.mxu0 0
  %7069 = vmatpush2.bf16.msra.mxu0 0
  %7070 = vmatprep.subr.bf16.mxu0 0
  %7071 = vmatpush2.bf16.msra.mxu0 0
  %7072 = vmatprep.subr.bf16.mxu0 0
  %7073 = vmatpush2.bf16.msra.mxu0 0
  %7074 = vmatprep.subr.bf16.mxu0 0
  %7075 = vmatpush2.bf16.msra.mxu0 0
  %7076 = vmatprep.subr.bf16.mxu0 0
  %7077 = vmatpush2.bf16.msra.mxu0 0
  %7078 = vmatprep.mubr.bf16.mxu0 0
  %7079 = vmatmul.mubr.bf16.gmra.mxu0 %v7041
  %v7080 = vpop.f32.mrf.mxu0
  %v7081 = vadd.f32 0.0, %v7080
  %v7082 = vpop.f32.mrf.mxu0
  %v7083 = vpop.f32.mrf.mxu0
  %v7084 = vpop.f32.mrf.mxu0
  %7085 = vdwg.mxu0
  %7086 = vrot.lane.b32.xlu0 %v1287, 80
  %v7087 = vpop.permute.xlu0 %7086
  %v7089 = vsel %vm1084, %v6600, 0
  %v7092 = vsel %vm1296, %v7087, 0
  %7094 = vmatprep.subr.bf16.mxu0 0
  %7095 = vmatpush1.bf16.msra.mxu0 0
  %7096 = vmatprep.subr.bf16.mxu0 0
  %7097 = vmatpush1.bf16.msra.mxu0 0
  %7098 = vmatprep.subr.bf16.mxu0 0
  %7099 = vmatpush1.bf16.msra.mxu0 0
  %7100 = vmatprep.subr.bf16.mxu0 0
  %7101 = vmatpush1.bf16.msra.mxu0 0
  %7102 = vmatprep.subr.bf16.mxu0 0
  %7103 = vmatpush1.bf16.msra.mxu0 0
  %7104 = vmatprep.subr.bf16.mxu0 0
  %7105 = vmatpush1.bf16.msra.mxu0 0
  %7106 = vmatprep.subr.bf16.mxu0 0
  %7107 = vmatpush1.bf16.msra.mxu0 0
  %7108 = vmatprep.subr.bf16.mxu0 0
  %7109 = vmatpush1.bf16.msra.mxu0 %v7092
  %7110 = vmatprep.subr.bf16.mxu0 0
  %7111 = vmatpush2.bf16.msra.mxu0 0
  %7112 = vmatprep.subr.bf16.mxu0 0
  %7113 = vmatpush2.bf16.msra.mxu0 0
  %7114 = vmatprep.subr.bf16.mxu0 0
  %7115 = vmatpush2.bf16.msra.mxu0 0
  %7116 = vmatprep.subr.bf16.mxu0 0
  %7117 = vmatpush2.bf16.msra.mxu0 0
  %7118 = vmatprep.subr.bf16.mxu0 0
  %7119 = vmatpush2.bf16.msra.mxu0 0
  %7120 = vmatprep.subr.bf16.mxu0 0
  %7121 = vmatpush2.bf16.msra.mxu0 0
  %7122 = vmatprep.subr.bf16.mxu0 0
  %7123 = vmatpush2.bf16.msra.mxu0 0
  %7124 = vmatprep.subr.bf16.mxu0 0
  %7125 = vmatpush2.bf16.msra.mxu0 0
  %7126 = vmatprep.mubr.bf16.mxu0 0
  %7127 = vmatmul.mubr.bf16.gmra.mxu0 %v7089
  %v7128 = vpop.f32.mrf.mxu0
  %v7129 = vadd.f32 0.0, %v7128
  %v7130 = vpop.f32.mrf.mxu0
  %v7131 = vpop.f32.mrf.mxu0
  %v7132 = vpop.f32.mrf.mxu0
  %7133 = vdwg.mxu0
  %7134 = vrot.lane.b32.xlu0 %v1288, 80
  %v7135 = vpop.permute.xlu0 %7134
  %v7137 = vsel %vm1084, %v6601, 0
  %v7140 = vsel %vm1296, %v7135, 0
  %7142 = vmatprep.subr.bf16.mxu0 0
  %7143 = vmatpush1.bf16.msra.mxu0 0
  %7144 = vmatprep.subr.bf16.mxu0 0
  %7145 = vmatpush1.bf16.msra.mxu0 0
  %7146 = vmatprep.subr.bf16.mxu0 0
  %7147 = vmatpush1.bf16.msra.mxu0 0
  %7148 = vmatprep.subr.bf16.mxu0 0
  %7149 = vmatpush1.bf16.msra.mxu0 0
  %7150 = vmatprep.subr.bf16.mxu0 0
  %7151 = vmatpush1.bf16.msra.mxu0 0
  %7152 = vmatprep.subr.bf16.mxu0 0
  %7153 = vmatpush1.bf16.msra.mxu0 0
  %7154 = vmatprep.subr.bf16.mxu0 0
  %7155 = vmatpush1.bf16.msra.mxu0 0
  %7156 = vmatprep.subr.bf16.mxu0 0
  %7157 = vmatpush1.bf16.msra.mxu0 %v7140
  %7158 = vmatprep.subr.bf16.mxu0 0
  %7159 = vmatpush2.bf16.msra.mxu0 0
  %7160 = vmatprep.subr.bf16.mxu0 0
  %7161 = vmatpush2.bf16.msra.mxu0 0
  %7162 = vmatprep.subr.bf16.mxu0 0
  %7163 = vmatpush2.bf16.msra.mxu0 0
  %7164 = vmatprep.subr.bf16.mxu0 0
  %7165 = vmatpush2.bf16.msra.mxu0 0
  %7166 = vmatprep.subr.bf16.mxu0 0
  %7167 = vmatpush2.bf16.msra.mxu0 0
  %7168 = vmatprep.subr.bf16.mxu0 0
  %7169 = vmatpush2.bf16.msra.mxu0 0
  %7170 = vmatprep.subr.bf16.mxu0 0
  %7171 = vmatpush2.bf16.msra.mxu0 0
  %7172 = vmatprep.subr.bf16.mxu0 0
  %7173 = vmatpush2.bf16.msra.mxu0 0
  %7174 = vmatprep.mubr.bf16.mxu0 0
  %7175 = vmatmul.mubr.bf16.gmra.mxu0 %v7137
  %v7176 = vpop.f32.mrf.mxu0
  %v7177 = vadd.f32 0.0, %v7176
  %v7178 = vpop.f32.mrf.mxu0
  %v7179 = vpop.f32.mrf.mxu0
  %v7180 = vpop.f32.mrf.mxu0
  %7181 = vdwg.mxu0
  %7182 = vrot.lane.b32.xlu0 %v1289, 80
  %v7183 = vpop.permute.xlu0 %7182
  %v7185 = vsel %vm1084, %v6602, 0
  %v7188 = vsel %vm1296, %v7183, 0
  %7190 = vmatprep.subr.bf16.mxu0 0
  %7191 = vmatpush1.bf16.msra.mxu0 0
  %7192 = vmatprep.subr.bf16.mxu0 0
  %7193 = vmatpush1.bf16.msra.mxu0 0
  %7194 = vmatprep.subr.bf16.mxu0 0
  %7195 = vmatpush1.bf16.msra.mxu0 0
  %7196 = vmatprep.subr.bf16.mxu0 0
  %7197 = vmatpush1.bf16.msra.mxu0 0
  %7198 = vmatprep.subr.bf16.mxu0 0
  %7199 = vmatpush1.bf16.msra.mxu0 0
  %7200 = vmatprep.subr.bf16.mxu0 0
  %7201 = vmatpush1.bf16.msra.mxu0 0
  %7202 = vmatprep.subr.bf16.mxu0 0
  %7203 = vmatpush1.bf16.msra.mxu0 0
  %7204 = vmatprep.subr.bf16.mxu0 0
  %7205 = vmatpush1.bf16.msra.mxu0 %v7188
  %7206 = vmatprep.subr.bf16.mxu0 0
  %7207 = vmatpush2.bf16.msra.mxu0 0
  %7208 = vmatprep.subr.bf16.mxu0 0
  %7209 = vmatpush2.bf16.msra.mxu0 0
  %7210 = vmatprep.subr.bf16.mxu0 0
  %7211 = vmatpush2.bf16.msra.mxu0 0
  %7212 = vmatprep.subr.bf16.mxu0 0
  %7213 = vmatpush2.bf16.msra.mxu0 0
  %7214 = vmatprep.subr.bf16.mxu0 0
  %7215 = vmatpush2.bf16.msra.mxu0 0
  %7216 = vmatprep.subr.bf16.mxu0 0
  %7217 = vmatpush2.bf16.msra.mxu0 0
  %7218 = vmatprep.subr.bf16.mxu0 0
  %7219 = vmatpush2.bf16.msra.mxu0 0
  %7220 = vmatprep.subr.bf16.mxu0 0
  %7221 = vmatpush2.bf16.msra.mxu0 0
  %7222 = vmatprep.mubr.bf16.mxu0 0
  %7223 = vmatmul.mubr.bf16.gmra.mxu0 %v7185
  %v7224 = vpop.f32.mrf.mxu0
  %v7225 = vadd.f32 0.0, %v7224
  %v7226 = vpop.f32.mrf.mxu0
  %v7227 = vpop.f32.mrf.mxu0
  %v7228 = vpop.f32.mrf.mxu0
  %7229 = vdwg.mxu0
  %7230 = vrot.lane.b32.xlu0 %v1290, 80
  %v7231 = vpop.permute.xlu0 %7230
  %v7233 = vsel %vm1084, %v6603, 0
  %v7236 = vsel %vm1296, %v7231, 0
  %7238 = vmatprep.subr.bf16.mxu0 0
  %7239 = vmatpush1.bf16.msra.mxu0 0
  %7240 = vmatprep.subr.bf16.mxu0 0
  %7241 = vmatpush1.bf16.msra.mxu0 0
  %7242 = vmatprep.subr.bf16.mxu0 0
  %7243 = vmatpush1.bf16.msra.mxu0 0
  %7244 = vmatprep.subr.bf16.mxu0 0
  %7245 = vmatpush1.bf16.msra.mxu0 0
  %7246 = vmatprep.subr.bf16.mxu0 0
  %7247 = vmatpush1.bf16.msra.mxu0 0
  %7248 = vmatprep.subr.bf16.mxu0 0
  %7249 = vmatpush1.bf16.msra.mxu0 0
  %7250 = vmatprep.subr.bf16.mxu0 0
  %7251 = vmatpush1.bf16.msra.mxu0 0
  %7252 = vmatprep.subr.bf16.mxu0 0
  %7253 = vmatpush1.bf16.msra.mxu0 %v7236
  %7254 = vmatprep.subr.bf16.mxu0 0
  %7255 = vmatpush2.bf16.msra.mxu0 0
  %7256 = vmatprep.subr.bf16.mxu0 0
  %7257 = vmatpush2.bf16.msra.mxu0 0
  %7258 = vmatprep.subr.bf16.mxu0 0
  %7259 = vmatpush2.bf16.msra.mxu0 0
  %7260 = vmatprep.subr.bf16.mxu0 0
  %7261 = vmatpush2.bf16.msra.mxu0 0
  %7262 = vmatprep.subr.bf16.mxu0 0
  %7263 = vmatpush2.bf16.msra.mxu0 0
  %7264 = vmatprep.subr.bf16.mxu0 0
  %7265 = vmatpush2.bf16.msra.mxu0 0
  %7266 = vmatprep.subr.bf16.mxu0 0
  %7267 = vmatpush2.bf16.msra.mxu0 0
  %7268 = vmatprep.subr.bf16.mxu0 0
  %7269 = vmatpush2.bf16.msra.mxu0 0
  %7270 = vmatprep.mubr.bf16.mxu0 0
  %7271 = vmatmul.mubr.bf16.gmra.mxu0 %v7233
  %v7272 = vpop.f32.mrf.mxu0
  %v7273 = vadd.f32 0.0, %v7272
  %v7274 = vpop.f32.mrf.mxu0
  %v7275 = vpop.f32.mrf.mxu0
  %v7276 = vpop.f32.mrf.mxu0
  %7277 = vdwg.mxu0
  %7278 = vrot.lane.b32.xlu0 %v1291, 80
  %v7279 = vpop.permute.xlu0 %7278
  %v7281 = vsel %vm1084, %v6604, 0
  %v7284 = vsel %vm1296, %v7279, 0
  %7286 = vmatprep.subr.bf16.mxu0 0
  %7287 = vmatpush1.bf16.msra.mxu0 0
  %7288 = vmatprep.subr.bf16.mxu0 0
  %7289 = vmatpush1.bf16.msra.mxu0 0
  %7290 = vmatprep.subr.bf16.mxu0 0
  %7291 = vmatpush1.bf16.msra.mxu0 0
  %7292 = vmatprep.subr.bf16.mxu0 0
  %7293 = vmatpush1.bf16.msra.mxu0 0
  %7294 = vmatprep.subr.bf16.mxu0 0
  %7295 = vmatpush1.bf16.msra.mxu0 0
  %7296 = vmatprep.subr.bf16.mxu0 0
  %7297 = vmatpush1.bf16.msra.mxu0 0
  %7298 = vmatprep.subr.bf16.mxu0 0
  %7299 = vmatpush1.bf16.msra.mxu0 0
  %7300 = vmatprep.subr.bf16.mxu0 0
  %7301 = vmatpush1.bf16.msra.mxu0 %v7284
  %7302 = vmatprep.subr.bf16.mxu0 0
  %7303 = vmatpush2.bf16.msra.mxu0 0
  %7304 = vmatprep.subr.bf16.mxu0 0
  %7305 = vmatpush2.bf16.msra.mxu0 0
  %7306 = vmatprep.subr.bf16.mxu0 0
  %7307 = vmatpush2.bf16.msra.mxu0 0
  %7308 = vmatprep.subr.bf16.mxu0 0
  %7309 = vmatpush2.bf16.msra.mxu0 0
  %7310 = vmatprep.subr.bf16.mxu0 0
  %7311 = vmatpush2.bf16.msra.mxu0 0
  %7312 = vmatprep.subr.bf16.mxu0 0
  %7313 = vmatpush2.bf16.msra.mxu0 0
  %7314 = vmatprep.subr.bf16.mxu0 0
  %7315 = vmatpush2.bf16.msra.mxu0 0
  %7316 = vmatprep.subr.bf16.mxu0 0
  %7317 = vmatpush2.bf16.msra.mxu0 0
  %7318 = vmatprep.mubr.bf16.mxu0 0
  %7319 = vmatmul.mubr.bf16.gmra.mxu0 %v7281
  %v7320 = vpop.f32.mrf.mxu0
  %v7321 = vadd.f32 0.0, %v7320
  %v7322 = vpop.f32.mrf.mxu0
  %v7323 = vpop.f32.mrf.mxu0
  %v7324 = vpop.f32.mrf.mxu0
  %7325 = vdwg.mxu0
  %7326 = vrot.lane.b32.xlu0 %v1292, 80
  %v7327 = vpop.permute.xlu0 %7326
  %v7329 = vsel %vm1084, %v6605, 0
  %v7332 = vsel %vm1296, %v7327, 0
  %7334 = vmatprep.subr.bf16.mxu0 0
  %7335 = vmatpush1.bf16.msra.mxu0 0
  %7336 = vmatprep.subr.bf16.mxu0 0
  %7337 = vmatpush1.bf16.msra.mxu0 0
  %7338 = vmatprep.subr.bf16.mxu0 0
  %7339 = vmatpush1.bf16.msra.mxu0 0
  %7340 = vmatprep.subr.bf16.mxu0 0
  %7341 = vmatpush1.bf16.msra.mxu0 0
  %7342 = vmatprep.subr.bf16.mxu0 0
  %7343 = vmatpush1.bf16.msra.mxu0 0
  %7344 = vmatprep.subr.bf16.mxu0 0
  %7345 = vmatpush1.bf16.msra.mxu0 0
  %7346 = vmatprep.subr.bf16.mxu0 0
  %7347 = vmatpush1.bf16.msra.mxu0 0
  %7348 = vmatprep.subr.bf16.mxu0 0
  %7349 = vmatpush1.bf16.msra.mxu0 %v7332
  %7350 = vmatprep.subr.bf16.mxu0 0
  %7351 = vmatpush2.bf16.msra.mxu0 0
  %7352 = vmatprep.subr.bf16.mxu0 0
  %7353 = vmatpush2.bf16.msra.mxu0 0
  %7354 = vmatprep.subr.bf16.mxu0 0
  %7355 = vmatpush2.bf16.msra.mxu0 0
  %7356 = vmatprep.subr.bf16.mxu0 0
  %7357 = vmatpush2.bf16.msra.mxu0 0
  %7358 = vmatprep.subr.bf16.mxu0 0
  %7359 = vmatpush2.bf16.msra.mxu0 0
  %7360 = vmatprep.subr.bf16.mxu0 0
  %7361 = vmatpush2.bf16.msra.mxu0 0
  %7362 = vmatprep.subr.bf16.mxu0 0
  %7363 = vmatpush2.bf16.msra.mxu0 0
  %7364 = vmatprep.subr.bf16.mxu0 0
  %7365 = vmatpush2.bf16.msra.mxu0 0
  %7366 = vmatprep.mubr.bf16.mxu0 0
  %7367 = vmatmul.mubr.bf16.gmra.mxu0 %v7329
  %v7368 = vpop.f32.mrf.mxu0
  %v7369 = vadd.f32 0.0, %v7368
  %v7370 = vpop.f32.mrf.mxu0
  %v7371 = vpop.f32.mrf.mxu0
  %v7372 = vpop.f32.mrf.mxu0
  %7373 = vdwg.mxu0
  %7390 = vrot.lane.b32.xlu0 %v3082, 16
  %v7391 = vpop.permute.xlu0 %7390
  %7392 = vrot.lane.b32.xlu0 %v3131, 16
  %v7393 = vpop.permute.xlu0 %7392
  %7394 = vrot.lane.b32.xlu0 %v3180, 16
  %v7395 = vpop.permute.xlu0 %7394
  %7396 = vrot.lane.b32.xlu0 %v3229, 16
  %v7397 = vpop.permute.xlu0 %7396
  %7398 = vrot.lane.b32.xlu0 %v3278, 16
  %v7399 = vpop.permute.xlu0 %7398
  %7400 = vrot.lane.b32.xlu0 %v3327, 16
  %v7401 = vpop.permute.xlu0 %7400
  %7402 = vrot.lane.b32.xlu0 %v3376, 16
  %v7403 = vpop.permute.xlu0 %7402
  %7404 = vrot.lane.b32.xlu0 %v3425, 16
  %v7405 = vpop.permute.xlu0 %7404
  %7406 = vrot.lane.b32.xlu0 %v3474, 16
  %v7407 = vpop.permute.xlu0 %7406
  %7408 = vrot.lane.b32.xlu0 %v3523, 16
  %v7409 = vpop.permute.xlu0 %7408
  %7410 = vrot.lane.b32.xlu0 %v3572, 16
  %v7411 = vpop.permute.xlu0 %7410
  %7412 = vrot.lane.b32.xlu0 %v3621, 16
  %v7413 = vpop.permute.xlu0 %7412
  %7414 = vrot.lane.b32.xlu0 %v3670, 16
  %v7415 = vpop.permute.xlu0 %7414
  %7416 = vrot.lane.b32.xlu0 %v3719, 16
  %v7417 = vpop.permute.xlu0 %7416
  %7418 = vrot.lane.b32.xlu0 %v3768, 16
  %v7419 = vpop.permute.xlu0 %7418
  %7420 = vrot.lane.b32.xlu0 %v3817, 16
  %v7421 = vpop.permute.xlu0 %7420
  %7454 = vrot.lane.b32.xlu0 %v4873, 32
  %v7455 = vpop.permute.xlu0 %7454
  %7456 = vrot.lane.b32.xlu0 %v4921, 32
  %v7457 = vpop.permute.xlu0 %7456
  %7458 = vrot.lane.b32.xlu0 %v4969, 32
  %v7459 = vpop.permute.xlu0 %7458
  %7460 = vrot.lane.b32.xlu0 %v5017, 32
  %v7461 = vpop.permute.xlu0 %7460
  %7462 = vrot.lane.b32.xlu0 %v5065, 32
  %v7463 = vpop.permute.xlu0 %7462
  %7464 = vrot.lane.b32.xlu0 %v5113, 32
  %v7465 = vpop.permute.xlu0 %7464
  %7466 = vrot.lane.b32.xlu0 %v5161, 32
  %v7467 = vpop.permute.xlu0 %7466
  %7468 = vrot.lane.b32.xlu0 %v5209, 32
  %v7469 = vpop.permute.xlu0 %7468
  %7470 = vrot.lane.b32.xlu0 %v5257, 32
  %v7471 = vpop.permute.xlu0 %7470
  %7472 = vrot.lane.b32.xlu0 %v5305, 32
  %v7473 = vpop.permute.xlu0 %7472
  %7474 = vrot.lane.b32.xlu0 %v5353, 32
  %v7475 = vpop.permute.xlu0 %7474
  %7476 = vrot.lane.b32.xlu0 %v5401, 32
  %v7477 = vpop.permute.xlu0 %7476
  %7478 = vrot.lane.b32.xlu0 %v5449, 32
  %v7479 = vpop.permute.xlu0 %7478
  %7480 = vrot.lane.b32.xlu0 %v5497, 32
  %v7481 = vpop.permute.xlu0 %7480
  %7482 = vrot.lane.b32.xlu0 %v5545, 32
  %v7483 = vpop.permute.xlu0 %7482
  %7484 = vrot.lane.b32.xlu0 %v5593, 32
  %v7485 = vpop.permute.xlu0 %7484
  %7518 = vrot.lane.b32.xlu0 %v6649, 48
  %v7519 = vpop.permute.xlu0 %7518
  %7520 = vrot.lane.b32.xlu0 %v6697, 48
  %v7521 = vpop.permute.xlu0 %7520
  %7522 = vrot.lane.b32.xlu0 %v6745, 48
  %v7523 = vpop.permute.xlu0 %7522
  %7524 = vrot.lane.b32.xlu0 %v6793, 48
  %v7525 = vpop.permute.xlu0 %7524
  %7526 = vrot.lane.b32.xlu0 %v6841, 48
  %v7527 = vpop.permute.xlu0 %7526
  %7528 = vrot.lane.b32.xlu0 %v6889, 48
  %v7529 = vpop.permute.xlu0 %7528
  %7530 = vrot.lane.b32.xlu0 %v6937, 48
  %v7531 = vpop.permute.xlu0 %7530
  %7532 = vrot.lane.b32.xlu0 %v6985, 48
  %v7533 = vpop.permute.xlu0 %7532
  %7534 = vrot.lane.b32.xlu0 %v7033, 48
  %v7535 = vpop.permute.xlu0 %7534
  %7536 = vrot.lane.b32.xlu0 %v7081, 48
  %v7537 = vpop.permute.xlu0 %7536
  %7538 = vrot.lane.b32.xlu0 %v7129, 48
  %v7539 = vpop.permute.xlu0 %7538
  %7540 = vrot.lane.b32.xlu0 %v7177, 48
  %v7541 = vpop.permute.xlu0 %7540
  %7542 = vrot.lane.b32.xlu0 %v7225, 48
  %v7543 = vpop.permute.xlu0 %7542
  %7544 = vrot.lane.b32.xlu0 %v7273, 48
  %v7545 = vpop.permute.xlu0 %7544
  %7546 = vrot.lane.b32.xlu0 %v7321, 48
  %v7547 = vpop.permute.xlu0 %7546
  %7548 = vrot.lane.b32.xlu0 %v7369, 48
  %v7549 = vpop.permute.xlu0 %7548
  %v7566 = vsel %vm286, %v1335, %v7391
  %v7567 = vsel %vm286, %v1381, %v7393
  %v7568 = vsel %vm286, %v1427, %v7395
  %v7569 = vsel %vm286, %v1473, %v7397
  %v7570 = vsel %vm286, %v1519, %v7399
  %v7571 = vsel %vm286, %v1565, %v7401
  %v7572 = vsel %vm286, %v1611, %v7403
  %v7573 = vsel %vm286, %v1657, %v7405
  %v7574 = vsel %vm286, %v1703, %v7407
  %v7575 = vsel %vm286, %v1749, %v7409
  %v7576 = vsel %vm286, %v1795, %v7411
  %v7577 = vsel %vm286, %v1841, %v7413
  %v7578 = vsel %vm286, %v1887, %v7415
  %v7579 = vsel %vm286, %v1933, %v7417
  %v7580 = vsel %vm286, %v1979, %v7419
  %v7581 = vsel %vm286, %v2025, %v7421
  %vm7582 = vcmask 261120
  %v7583 = vsel %vm7582, %v7566, %v7455
  %v7584 = vsel %vm7582, %v7567, %v7457
  %v7585 = vsel %vm7582, %v7568, %v7459
  %v7586 = vsel %vm7582, %v7569, %v7461
  %v7587 = vsel %vm7582, %v7570, %v7463
  %v7588 = vsel %vm7582, %v7571, %v7465
  %v7589 = vsel %vm7582, %v7572, %v7467
  %v7590 = vsel %vm7582, %v7573, %v7469
  %v7591 = vsel %vm7582, %v7574, %v7471
  %v7592 = vsel %vm7582, %v7575, %v7473
  %v7593 = vsel %vm7582, %v7576, %v7475
  %v7594 = vsel %vm7582, %v7577, %v7477
  %v7595 = vsel %vm7582, %v7578, %v7479
  %v7596 = vsel %vm7582, %v7579, %v7481
  %v7597 = vsel %vm7582, %v7580, %v7483
  %v7598 = vsel %vm7582, %v7581, %v7485
  %vm7599 = vcmask 392192
  %v7600 = vsel %vm7599, %v7583, %v7519
  %v7601 = vsel %vm7599, %v7584, %v7521
  %v7602 = vsel %vm7599, %v7585, %v7523
  %v7603 = vsel %vm7599, %v7586, %v7525
  %v7604 = vsel %vm7599, %v7587, %v7527
  %v7605 = vsel %vm7599, %v7588, %v7529
  %v7606 = vsel %vm7599, %v7589, %v7531
  %v7607 = vsel %vm7599, %v7590, %v7533
  %v7608 = vsel %vm7599, %v7591, %v7535
  %v7609 = vsel %vm7599, %v7592, %v7537
  %v7610 = vsel %vm7599, %v7593, %v7539
  %v7611 = vsel %vm7599, %v7594, %v7541
  %v7612 = vsel %vm7599, %v7595, %v7543
  %v7613 = vsel %vm7599, %v7596, %v7545
  %v7614 = vsel %vm7599, %v7597, %v7547
  %v7615 = vsel %vm7599, %v7598, %v7549
  %v7616 = vpack.c.bf16 %v7601, %v7600
  %v7617 = vpack.c.bf16 %v7603, %v7602
  %v7618 = vpack.c.bf16 %v7605, %v7604
  %v7619 = vpack.c.bf16 %v7607, %v7606
  %v7620 = vpack.c.bf16 %v7609, %v7608
  %v7621 = vpack.c.bf16 %v7611, %v7610
  %v7622 = vpack.c.bf16 %v7613, %v7612
  %v7623 = vpack.c.bf16 %v7615, %v7614
  %v7624 = vld [vmem:[%s3] sm:$0xf]
  %v7625 = vld [vmem:[%s3 + $0x4] sm:$0xf]
  %v7626 = vld [vmem:[%s3 + $0x8] sm:$0xf]
  %v7627 = vld [vmem:[%s3 + $0xc] sm:$0xf]
  %v7628 = vld [vmem:[%s3 + $0x10] sm:$0xf]
  %v7629 = vld [vmem:[%s3 + $0x14] sm:$0xf]
  %v7630 = vld [vmem:[%s3 + $0x18] sm:$0xf]
  %v7631 = vld [vmem:[%s3 + $0x1c] sm:$0xf]
  %v7632 = vld [vmem:[%s4] sm:$0x1]
  %v7634 = vlaneseq
  %v7635 = vshrl.u32 %v7634, 7
  %v7636 = vsub.s32 0, %v7635
  %v7637 = vrot.slane %v7632, %v7636
  %v7647 = vunpack.c.l.b16 %v7624
  %v7648 = vunpack.c.l.b16 %v7625
  %v7649 = vunpack.c.l.b16 %v7626
  %v7650 = vunpack.c.l.b16 %v7627
  %v7651 = vunpack.c.l.b16 %v7628
  %v7652 = vunpack.c.l.b16 %v7629
  %v7653 = vunpack.c.l.b16 %v7630
  %v7654 = vunpack.c.l.b16 %v7631
  %v7655 = vpack.c.b16 %v7648, %v7647
  %v7656 = vpack.c.b16 %v7650, %v7649
  %v7657 = vpack.c.b16 %v7652, %v7651
  %v7658 = vpack.c.b16 %v7654, %v7653
  %v7664 = vsel %vm129, %v7616, 0
  %v7667 = vsel %vm129, %v7617, 0
  %v7670 = vsel %vm129, %v7618, 0
  %v7673 = vsel %vm129, %v7619, 0
  %v7676 = vsel %vm129, %v7620, 0
  %v7679 = vsel %vm129, %v7621, 0
  %v7682 = vsel %vm129, %v7622, 0
  %v7685 = vsel %vm129, %v7623, 0
  %7687 = vmatprep.subr.bf16.mxu0 0
  %7688 = vmatpush1.bf16.msra.mxu0 0
  %7689 = vmatprep.subr.bf16.mxu0 0
  %7690 = vmatpush1.bf16.msra.mxu0 0
  %7691 = vmatprep.subr.bf16.mxu0 0
  %7692 = vmatpush1.bf16.msra.mxu0 0
  %7693 = vmatprep.subr.bf16.mxu0 0
  %7694 = vmatpush1.bf16.msra.mxu0 0
  %7695 = vmatprep.subr.bf16.mxu0 0
  %7696 = vmatpush1.bf16.msra.mxu0 %v7658
  %7697 = vmatprep.subr.bf16.mxu0 0
  %7698 = vmatpush1.bf16.msra.mxu0 %v7657
  %7699 = vmatprep.subr.bf16.mxu0 0
  %7700 = vmatpush1.bf16.msra.mxu0 %v7656
  %7701 = vmatprep.subr.bf16.mxu0 0
  %7702 = vmatpush1.bf16.msra.mxu0 %v7655
  %7703 = vmatprep.subr.bf16.mxu0 0
  %7704 = vmatpush2.bf16.msra.mxu0 0
  %7705 = vmatprep.subr.bf16.mxu0 0
  %7706 = vmatpush2.bf16.msra.mxu0 0
  %7707 = vmatprep.subr.bf16.mxu0 0
  %7708 = vmatpush2.bf16.msra.mxu0 0
  %7709 = vmatprep.subr.bf16.mxu0 0
  %7710 = vmatpush2.bf16.msra.mxu0 0
  %7711 = vmatprep.subr.bf16.mxu0 0
  %7712 = vmatpush2.bf16.msra.mxu0 0
  %7713 = vmatprep.subr.bf16.mxu0 0
  %7714 = vmatpush2.bf16.msra.mxu0 0
  %7715 = vmatprep.subr.bf16.mxu0 0
  %7716 = vmatpush2.bf16.msra.mxu0 0
  %7717 = vmatprep.subr.bf16.mxu0 0
  %7718 = vmatpush2.bf16.msra.mxu0 0
  %7719 = vmatprep.mubr.bf16.mxu0 0
  %7720 = vmatmul.mubr.bf16.gmra.mxu0 %v7664
  %v7721 = vpop.f32.mrf.mxu0
  %v7722 = vadd.f32 %v7637, %v7721
  %v7723 = vpop.f32.mrf.mxu0
  %v7724 = vpop.f32.mrf.mxu0
  %v7725 = vadd.f32 %v7637, %v7724
  %v7726 = vpop.f32.mrf.mxu0
  %7727 = vmatprep.mubr.bf16.mxu0 0
  %7728 = vmatmul.mubr.bf16.gmra.mxu0 %v7667
  %v7729 = vpop.f32.mrf.mxu0
  %v7730 = vadd.f32 %v7637, %v7729
  %v7731 = vpop.f32.mrf.mxu0
  %v7732 = vpop.f32.mrf.mxu0
  %v7733 = vadd.f32 %v7637, %v7732
  %v7734 = vpop.f32.mrf.mxu0
  %7735 = vmatprep.mubr.bf16.mxu0 0
  %7736 = vmatmul.mubr.bf16.gmra.mxu0 %v7670
  %v7737 = vpop.f32.mrf.mxu0
  %v7738 = vadd.f32 %v7637, %v7737
  %v7739 = vpop.f32.mrf.mxu0
  %v7740 = vpop.f32.mrf.mxu0
  %v7741 = vadd.f32 %v7637, %v7740
  %v7742 = vpop.f32.mrf.mxu0
  %7743 = vmatprep.mubr.bf16.mxu0 0
  %7744 = vmatmul.mubr.bf16.gmra.mxu0 %v7673
  %v7745 = vpop.f32.mrf.mxu0
  %v7746 = vadd.f32 %v7637, %v7745
  %v7747 = vpop.f32.mrf.mxu0
  %v7748 = vpop.f32.mrf.mxu0
  %v7749 = vadd.f32 %v7637, %v7748
  %v7750 = vpop.f32.mrf.mxu0
  %7751 = vmatprep.mubr.bf16.mxu0 0
  %7752 = vmatmul.mubr.bf16.gmra.mxu0 %v7676
  %v7753 = vpop.f32.mrf.mxu0
  %v7754 = vadd.f32 %v7637, %v7753
  %v7755 = vpop.f32.mrf.mxu0
  %v7756 = vpop.f32.mrf.mxu0
  %v7757 = vadd.f32 %v7637, %v7756
  %v7758 = vpop.f32.mrf.mxu0
  %7759 = vmatprep.mubr.bf16.mxu0 0
  %7760 = vmatmul.mubr.bf16.gmra.mxu0 %v7679
  %v7761 = vpop.f32.mrf.mxu0
  %v7762 = vadd.f32 %v7637, %v7761
  %v7763 = vpop.f32.mrf.mxu0
  %v7764 = vpop.f32.mrf.mxu0
  %v7765 = vadd.f32 %v7637, %v7764
  %v7766 = vpop.f32.mrf.mxu0
  %7767 = vmatprep.mubr.bf16.mxu0 0
  %7768 = vmatmul.mubr.bf16.gmra.mxu0 %v7682
  %v7769 = vpop.f32.mrf.mxu0
  %v7770 = vadd.f32 %v7637, %v7769
  %v7771 = vpop.f32.mrf.mxu0
  %v7772 = vpop.f32.mrf.mxu0
  %v7773 = vadd.f32 %v7637, %v7772
  %v7774 = vpop.f32.mrf.mxu0
  %7775 = vmatprep.mubr.bf16.mxu0 0
  %7776 = vmatmul.mubr.bf16.gmra.mxu0 %v7685
  %v7777 = vpop.f32.mrf.mxu0
  %v7778 = vadd.f32 %v7637, %v7777
  %v7779 = vpop.f32.mrf.mxu0
  %v7780 = vpop.f32.mrf.mxu0
  %v7781 = vadd.f32 %v7637, %v7780
  %v7782 = vpop.f32.mrf.mxu0
  %7783 = vdwg.mxu0
  %v7784 = vadd.f32 %v45, %v7722
  %v7785 = vadd.f32 %v46, %v7725
  %v7786 = vadd.f32 %v47, %v7730
  %v7787 = vadd.f32 %v48, %v7733
  %v7788 = vadd.f32 %v49, %v7738
  %v7789 = vadd.f32 %v50, %v7741
  %v7790 = vadd.f32 %v51, %v7746
  %v7791 = vadd.f32 %v52, %v7749
  %v7792 = vadd.f32 %v53, %v7754
  %v7793 = vadd.f32 %v54, %v7757
  %v7794 = vadd.f32 %v55, %v7762
  %v7795 = vadd.f32 %v56, %v7765
  %v7796 = vadd.f32 %v57, %v7770
  %v7797 = vadd.f32 %v58, %v7773
  %v7798 = vadd.f32 %v59, %v7778
  %v7799 = vadd.f32 %v60, %v7781
  %v7800 = vld [vmem:[%s5] sm:$0x1]
  %v7801 = vld [vmem:[%s6] sm:$0x1]
  %v7802 = vsel %vm129, %v7784, 0.0
  %7803 = vadd.xlane.f32.xlu0 %v7802
  %v7804 = vpop.xlane.xlu0 %7803
  %v7805 = vsel %vm129, %v7785, 0.0
  %7806 = vadd.xlane.f32.xlu0 %v7805
  %v7807 = vpop.xlane.xlu0 %7806
  %v7808 = vsel %vm129, %v7786, 0.0
  %7809 = vadd.xlane.f32.xlu0 %v7808
  %v7810 = vpop.xlane.xlu0 %7809
  %v7811 = vsel %vm129, %v7787, 0.0
  %7812 = vadd.xlane.f32.xlu0 %v7811
  %v7813 = vpop.xlane.xlu0 %7812
  %v7814 = vsel %vm129, %v7788, 0.0
  %7815 = vadd.xlane.f32.xlu0 %v7814
  %v7816 = vpop.xlane.xlu0 %7815
  %v7817 = vsel %vm129, %v7789, 0.0
  %7818 = vadd.xlane.f32.xlu0 %v7817
  %v7819 = vpop.xlane.xlu0 %7818
  %v7820 = vsel %vm129, %v7790, 0.0
  %7821 = vadd.xlane.f32.xlu0 %v7820
  %v7822 = vpop.xlane.xlu0 %7821
  %v7823 = vsel %vm129, %v7791, 0.0
  %7824 = vadd.xlane.f32.xlu0 %v7823
  %v7825 = vpop.xlane.xlu0 %7824
  %v7826 = vsel %vm129, %v7792, 0.0
  %7827 = vadd.xlane.f32.xlu0 %v7826
  %v7828 = vpop.xlane.xlu0 %7827
  %v7829 = vsel %vm129, %v7793, 0.0
  %7830 = vadd.xlane.f32.xlu0 %v7829
  %v7831 = vpop.xlane.xlu0 %7830
  %v7832 = vsel %vm129, %v7794, 0.0
  %7833 = vadd.xlane.f32.xlu0 %v7832
  %v7834 = vpop.xlane.xlu0 %7833
  %v7835 = vsel %vm129, %v7795, 0.0
  %7836 = vadd.xlane.f32.xlu0 %v7835
  %v7837 = vpop.xlane.xlu0 %7836
  %v7838 = vsel %vm129, %v7796, 0.0
  %7839 = vadd.xlane.f32.xlu0 %v7838
  %v7840 = vpop.xlane.xlu0 %7839
  %v7841 = vsel %vm129, %v7797, 0.0
  %7842 = vadd.xlane.f32.xlu0 %v7841
  %v7843 = vpop.xlane.xlu0 %7842
  %v7844 = vsel %vm129, %v7798, 0.0
  %7845 = vadd.xlane.f32.xlu0 %v7844
  %v7846 = vpop.xlane.xlu0 %7845
  %v7847 = vsel %vm129, %v7799, 0.0
  %7848 = vadd.xlane.f32.xlu0 %v7847
  %v7849 = vpop.xlane.xlu0 %7848
  %v7850 = vrcp.pop 64.0
  %v7851 = vmul.f32 %v7804, %v7850
  %v7852 = vmul.f32 %v7807, %v7850
  %v7853 = vmul.f32 %v7810, %v7850
  %v7854 = vmul.f32 %v7813, %v7850
  %v7855 = vmul.f32 %v7816, %v7850
  %v7856 = vmul.f32 %v7819, %v7850
  %v7857 = vmul.f32 %v7822, %v7850
  %v7858 = vmul.f32 %v7825, %v7850
  %v7859 = vmul.f32 %v7828, %v7850
  %v7860 = vmul.f32 %v7831, %v7850
  %v7861 = vmul.f32 %v7834, %v7850
  %v7862 = vmul.f32 %v7837, %v7850
  %v7863 = vmul.f32 %v7840, %v7850
  %v7864 = vmul.f32 %v7843, %v7850
  %v7865 = vmul.f32 %v7846, %v7850
  %v7866 = vmul.f32 %v7849, %v7850
  %v7867 = vsub.f32 %v7784, %v7851
  %v7868 = vsub.f32 %v7785, %v7852
  %v7869 = vsub.f32 %v7786, %v7853
  %v7870 = vsub.f32 %v7787, %v7854
  %v7871 = vsub.f32 %v7788, %v7855
  %v7872 = vsub.f32 %v7789, %v7856
  %v7873 = vsub.f32 %v7790, %v7857
  %v7874 = vsub.f32 %v7791, %v7858
  %v7875 = vsub.f32 %v7792, %v7859
  %v7876 = vsub.f32 %v7793, %v7860
  %v7877 = vsub.f32 %v7794, %v7861
  %v7878 = vsub.f32 %v7795, %v7862
  %v7879 = vsub.f32 %v7796, %v7863
  %v7880 = vsub.f32 %v7797, %v7864
  %v7881 = vsub.f32 %v7798, %v7865
  %v7882 = vsub.f32 %v7799, %v7866
  %v7883 = vmul.f32 %v7867, %v7867
  %v7884 = vmul.f32 %v7868, %v7868
  %v7885 = vmul.f32 %v7869, %v7869
  %v7886 = vmul.f32 %v7870, %v7870
  %v7887 = vmul.f32 %v7871, %v7871
  %v7888 = vmul.f32 %v7872, %v7872
  %v7889 = vmul.f32 %v7873, %v7873
  %v7890 = vmul.f32 %v7874, %v7874
  %v7891 = vmul.f32 %v7875, %v7875
  %v7892 = vmul.f32 %v7876, %v7876
  %v7893 = vmul.f32 %v7877, %v7877
  %v7894 = vmul.f32 %v7878, %v7878
  %v7895 = vmul.f32 %v7879, %v7879
  %v7896 = vmul.f32 %v7880, %v7880
  %v7897 = vmul.f32 %v7881, %v7881
  %v7898 = vmul.f32 %v7882, %v7882
  %v7899 = vsel %vm129, %v7883, 0.0
  %7900 = vadd.xlane.f32.xlu0 %v7899
  %v7901 = vpop.xlane.xlu0 %7900
  %v7902 = vsel %vm129, %v7884, 0.0
  %7903 = vadd.xlane.f32.xlu0 %v7902
  %v7904 = vpop.xlane.xlu0 %7903
  %v7905 = vsel %vm129, %v7885, 0.0
  %7906 = vadd.xlane.f32.xlu0 %v7905
  %v7907 = vpop.xlane.xlu0 %7906
  %v7908 = vsel %vm129, %v7886, 0.0
  %7909 = vadd.xlane.f32.xlu0 %v7908
  %v7910 = vpop.xlane.xlu0 %7909
  %v7911 = vsel %vm129, %v7887, 0.0
  %7912 = vadd.xlane.f32.xlu0 %v7911
  %v7913 = vpop.xlane.xlu0 %7912
  %v7914 = vsel %vm129, %v7888, 0.0
  %7915 = vadd.xlane.f32.xlu0 %v7914
  %v7916 = vpop.xlane.xlu0 %7915
  %v7917 = vsel %vm129, %v7889, 0.0
  %7918 = vadd.xlane.f32.xlu0 %v7917
  %v7919 = vpop.xlane.xlu0 %7918
  %v7920 = vsel %vm129, %v7890, 0.0
  %7921 = vadd.xlane.f32.xlu0 %v7920
  %v7922 = vpop.xlane.xlu0 %7921
  %v7923 = vsel %vm129, %v7891, 0.0
  %7924 = vadd.xlane.f32.xlu0 %v7923
  %v7925 = vpop.xlane.xlu0 %7924
  %v7926 = vsel %vm129, %v7892, 0.0
  %7927 = vadd.xlane.f32.xlu0 %v7926
  %v7928 = vpop.xlane.xlu0 %7927
  %v7929 = vsel %vm129, %v7893, 0.0
  %7930 = vadd.xlane.f32.xlu0 %v7929
  %v7931 = vpop.xlane.xlu0 %7930
  %v7932 = vsel %vm129, %v7894, 0.0
  %7933 = vadd.xlane.f32.xlu0 %v7932
  %v7934 = vpop.xlane.xlu0 %7933
  %v7935 = vsel %vm129, %v7895, 0.0
  %7936 = vadd.xlane.f32.xlu0 %v7935
  %v7937 = vpop.xlane.xlu0 %7936
  %v7938 = vsel %vm129, %v7896, 0.0
  %7939 = vadd.xlane.f32.xlu0 %v7938
  %v7940 = vpop.xlane.xlu0 %7939
  %v7941 = vsel %vm129, %v7897, 0.0
  %7942 = vadd.xlane.f32.xlu0 %v7941
  %v7943 = vpop.xlane.xlu0 %7942
  %v7944 = vsel %vm129, %v7898, 0.0
  %7945 = vadd.xlane.f32.xlu0 %v7944
  %v7946 = vpop.xlane.xlu0 %7945
  %v7947 = vmul.f32 %v7901, %v7850
  %v7948 = vmul.f32 %v7904, %v7850
  %v7949 = vmul.f32 %v7907, %v7850
  %v7950 = vmul.f32 %v7910, %v7850
  %v7951 = vmul.f32 %v7913, %v7850
  %v7952 = vmul.f32 %v7916, %v7850
  %v7953 = vmul.f32 %v7919, %v7850
  %v7954 = vmul.f32 %v7922, %v7850
  %v7955 = vmul.f32 %v7925, %v7850
  %v7956 = vmul.f32 %v7928, %v7850
  %v7957 = vmul.f32 %v7931, %v7850
  %v7958 = vmul.f32 %v7934, %v7850
  %v7959 = vmul.f32 %v7937, %v7850
  %v7960 = vmul.f32 %v7940, %v7850
  %v7961 = vmul.f32 %v7943, %v7850
  %v7962 = vmul.f32 %v7946, %v7850
  %v7963 = vadd.f32 %v7947, 1e-05
  %v7964 = vadd.f32 %v7948, 1e-05
  %v7965 = vadd.f32 %v7949, 1e-05
  %v7966 = vadd.f32 %v7950, 1e-05
  %v7967 = vadd.f32 %v7951, 1e-05
  %v7968 = vadd.f32 %v7952, 1e-05
  %v7969 = vadd.f32 %v7953, 1e-05
  %v7970 = vadd.f32 %v7954, 1e-05
  %v7971 = vadd.f32 %v7955, 1e-05
  %v7972 = vadd.f32 %v7956, 1e-05
  %v7973 = vadd.f32 %v7957, 1e-05
  %v7974 = vadd.f32 %v7958, 1e-05
  %v7975 = vadd.f32 %v7959, 1e-05
  %v7976 = vadd.f32 %v7960, 1e-05
  %v7977 = vadd.f32 %v7961, 1e-05
  %v7978 = vadd.f32 %v7962, 1e-05
  %v7979 = vrsqrt.pop %v7963
  %v7980 = vrsqrt.pop %v7964
  %v7981 = vrsqrt.pop %v7965
  %v7982 = vrsqrt.pop %v7966
  %v7983 = vrsqrt.pop %v7967
  %v7984 = vrsqrt.pop %v7968
  %v7985 = vrsqrt.pop %v7969
  %v7986 = vrsqrt.pop %v7970
  %v7987 = vrsqrt.pop %v7971
  %v7988 = vrsqrt.pop %v7972
  %v7989 = vrsqrt.pop %v7973
  %v7990 = vrsqrt.pop %v7974
  %v7991 = vrsqrt.pop %v7975
  %v7992 = vrsqrt.pop %v7976
  %v7993 = vrsqrt.pop %v7977
  %v7994 = vrsqrt.pop %v7978
  %v7995 = vmul.f32 %v7867, %v7979
  %v7996 = vmul.f32 %v7868, %v7980
  %v7997 = vmul.f32 %v7869, %v7981
  %v7998 = vmul.f32 %v7870, %v7982
  %v7999 = vmul.f32 %v7871, %v7983
  %v8000 = vmul.f32 %v7872, %v7984
  %v8001 = vmul.f32 %v7873, %v7985
  %v8002 = vmul.f32 %v7874, %v7986
  %v8003 = vmul.f32 %v7875, %v7987
  %v8004 = vmul.f32 %v7876, %v7988
  %v8005 = vmul.f32 %v7877, %v7989
  %v8006 = vmul.f32 %v7878, %v7990
  %v8007 = vmul.f32 %v7879, %v7991
  %v8008 = vmul.f32 %v7880, %v7992
  %v8009 = vmul.f32 %v7881, %v7993
  %v8010 = vmul.f32 %v7882, %v7994
  %v8012 = vlaneseq
  %v8013 = vshrl.u32 %v8012, 7
  %v8014 = vsub.s32 0, %v8013
  %v8015 = vrot.slane %v7800, %v8014
  %v8017 = vmul.f32 %v7995, %v8015
  %v8018 = vmul.f32 %v7996, %v8015
  %v8019 = vmul.f32 %v7997, %v8015
  %v8020 = vmul.f32 %v7998, %v8015
  %v8021 = vmul.f32 %v7999, %v8015
  %v8022 = vmul.f32 %v8000, %v8015
  %v8023 = vmul.f32 %v8001, %v8015
  %v8024 = vmul.f32 %v8002, %v8015
  %v8025 = vmul.f32 %v8003, %v8015
  %v8026 = vmul.f32 %v8004, %v8015
  %v8027 = vmul.f32 %v8005, %v8015
  %v8028 = vmul.f32 %v8006, %v8015
  %v8029 = vmul.f32 %v8007, %v8015
  %v8030 = vmul.f32 %v8008, %v8015
  %v8031 = vmul.f32 %v8009, %v8015
  %v8032 = vmul.f32 %v8010, %v8015
  %v8034 = vlaneseq
  %v8035 = vshrl.u32 %v8034, 7
  %v8036 = vsub.s32 0, %v8035
  %v8037 = vrot.slane %v7801, %v8036
  %v8039 = vadd.f32 %v8017, %v8037
  %v8040 = vadd.f32 %v8018, %v8037
  %v8041 = vadd.f32 %v8019, %v8037
  %v8042 = vadd.f32 %v8020, %v8037
  %v8043 = vadd.f32 %v8021, %v8037
  %v8044 = vadd.f32 %v8022, %v8037
  %v8045 = vadd.f32 %v8023, %v8037
  %v8046 = vadd.f32 %v8024, %v8037
  %v8047 = vadd.f32 %v8025, %v8037
  %v8048 = vadd.f32 %v8026, %v8037
  %v8049 = vadd.f32 %v8027, %v8037
  %v8050 = vadd.f32 %v8028, %v8037
  %v8051 = vadd.f32 %v8029, %v8037
  %v8052 = vadd.f32 %v8030, %v8037
  %v8053 = vadd.f32 %v8031, %v8037
  %v8054 = vadd.f32 %v8032, %v8037
  %v8055 = vpack.c.bf16 %v8040, %v8039
  %v8056 = vpack.c.bf16 %v8042, %v8041
  %v8057 = vpack.c.bf16 %v8044, %v8043
  %v8058 = vpack.c.bf16 %v8046, %v8045
  %v8059 = vpack.c.bf16 %v8048, %v8047
  %v8060 = vpack.c.bf16 %v8050, %v8049
  %v8061 = vpack.c.bf16 %v8052, %v8051
  %v8062 = vpack.c.bf16 %v8054, %v8053
  %v8063 = vld [vmem:[%s7] sm:$0xff]
  %v8064 = vld [vmem:[%s7 + $0x8] sm:$0xff]
  %v8065 = vld [vmem:[%s7 + $0x10] sm:$0xff]
  %v8066 = vld [vmem:[%s7 + $0x18] sm:$0xff]
  %v8067 = vld [vmem:[%s7 + $0x20] sm:$0xff]
  %v8068 = vld [vmem:[%s7 + $0x28] sm:$0xff]
  %v8069 = vld [vmem:[%s7 + $0x30] sm:$0xff]
  %v8070 = vld [vmem:[%s7 + $0x38] sm:$0xff]
  %v8071 = vld [vmem:[%s7 + $0x40] sm:$0xff]
  %v8072 = vld [vmem:[%s7 + $0x48] sm:$0xff]
  %v8073 = vld [vmem:[%s7 + $0x50] sm:$0xff]
  %v8074 = vld [vmem:[%s7 + $0x58] sm:$0xff]
  %v8075 = vld [vmem:[%s7 + $0x60] sm:$0xff]
  %v8076 = vld [vmem:[%s7 + $0x68] sm:$0xff]
  %v8077 = vld [vmem:[%s7 + $0x70] sm:$0xff]
  %v8078 = vld [vmem:[%s7 + $0x78] sm:$0xff]
  %v8079 = vld [vmem:[%s8] sm:$0xf]
  %v8081 = vlaneseq
  %v8082 = vshrl.u32 %v8081, 7
  %v8083 = vsub.s32 0, %v8082
  %v8084 = vrot.slane %v8079, %v8083
  %v8085 = vlaneseq
  %v8086 = vshrl.u32 %v8085, 7
  %v8087 = vsub.s32 1, %v8086
  %v8088 = vrot.slane %v8079, %v8087
  %v8089 = vlaneseq
  %v8090 = vshrl.u32 %v8089, 7
  %v8091 = vsub.s32 2, %v8090
  %v8092 = vrot.slane %v8079, %v8091
  %v8093 = vlaneseq
  %v8094 = vshrl.u32 %v8093, 7
  %v8095 = vsub.s32 3, %v8094
  %v8096 = vrot.slane %v8079, %v8095
  %v8117 = vunpack.c.l.b16 %v8063
  %v8118 = vunpack.c.h.b16 %v8063
  %v8119 = vunpack.c.l.b16 %v8064
  %v8120 = vunpack.c.h.b16 %v8064
  %v8121 = vunpack.c.l.b16 %v8065
  %v8122 = vunpack.c.h.b16 %v8065
  %v8123 = vunpack.c.l.b16 %v8066
  %v8124 = vunpack.c.h.b16 %v8066
  %v8125 = vunpack.c.l.b16 %v8067
  %v8126 = vunpack.c.h.b16 %v8067
  %v8127 = vunpack.c.l.b16 %v8068
  %v8128 = vunpack.c.h.b16 %v8068
  %v8129 = vunpack.c.l.b16 %v8069
  %v8130 = vunpack.c.h.b16 %v8069
  %v8131 = vunpack.c.l.b16 %v8070
  %v8132 = vunpack.c.h.b16 %v8070
  %v8133 = vunpack.c.l.b16 %v8071
  %v8134 = vunpack.c.h.b16 %v8071
  %v8135 = vunpack.c.l.b16 %v8072
  %v8136 = vunpack.c.h.b16 %v8072
  %v8137 = vunpack.c.l.b16 %v8073
  %v8138 = vunpack.c.h.b16 %v8073
  %v8139 = vunpack.c.l.b16 %v8074
  %v8140 = vunpack.c.h.b16 %v8074
  %v8141 = vunpack.c.l.b16 %v8075
  %v8142 = vunpack.c.h.b16 %v8075
  %v8143 = vunpack.c.l.b16 %v8076
  %v8144 = vunpack.c.h.b16 %v8076
  %v8145 = vunpack.c.l.b16 %v8077
  %v8146 = vunpack.c.h.b16 %v8077
  %v8147 = vunpack.c.l.b16 %v8078
  %v8148 = vunpack.c.h.b16 %v8078
  %v8149 = vpack.c.b16 %v8121, %v8117
  %v8150 = vpack.c.b16 %v8122, %v8118
  %v8151 = vpack.c.b16 %v8123, %v8119
  %v8152 = vpack.c.b16 %v8124, %v8120
  %v8153 = vpack.c.b16 %v8129, %v8125
  %v8154 = vpack.c.b16 %v8130, %v8126
  %v8155 = vpack.c.b16 %v8131, %v8127
  %v8156 = vpack.c.b16 %v8132, %v8128
  %v8157 = vpack.c.b16 %v8137, %v8133
  %v8158 = vpack.c.b16 %v8138, %v8134
  %v8159 = vpack.c.b16 %v8139, %v8135
  %v8160 = vpack.c.b16 %v8140, %v8136
  %v8161 = vpack.c.b16 %v8145, %v8141
  %v8162 = vpack.c.b16 %v8146, %v8142
  %v8163 = vpack.c.b16 %v8147, %v8143
  %v8164 = vpack.c.b16 %v8148, %v8144
  %v8182 = vsel %vm129, %v8055, 0
  %v8185 = vsel %vm129, %v8056, 0
  %v8188 = vsel %vm129, %v8057, 0
  %v8191 = vsel %vm129, %v8058, 0
  %v8194 = vsel %vm129, %v8059, 0
  %v8197 = vsel %vm129, %v8060, 0
  %v8200 = vsel %vm129, %v8061, 0
  %v8203 = vsel %vm129, %v8062, 0
  %8205 = vmatprep.subr.bf16.mxu0 0
  %8206 = vmatpush1.bf16.msra.mxu0 0
  %8207 = vmatprep.subr.bf16.mxu0 0
  %8208 = vmatpush1.bf16.msra.mxu0 0
  %8209 = vmatprep.subr.bf16.mxu0 0
  %8210 = vmatpush1.bf16.msra.mxu0 0
  %8211 = vmatprep.subr.bf16.mxu0 0
  %8212 = vmatpush1.bf16.msra.mxu0 0
  %8213 = vmatprep.subr.bf16.mxu0 %v8162
  %8214 = vmatpush1.bf16.msra.mxu0 %v8161
  %8215 = vmatprep.subr.bf16.mxu0 %v8158
  %8216 = vmatpush1.bf16.msra.mxu0 %v8157
  %8217 = vmatprep.subr.bf16.mxu0 %v8154
  %8218 = vmatpush1.bf16.msra.mxu0 %v8153
  %8219 = vmatprep.subr.bf16.mxu0 %v8150
  %8220 = vmatpush1.bf16.msra.mxu0 %v8149
  %8221 = vmatprep.subr.bf16.mxu0 0
  %8222 = vmatpush2.bf16.msra.mxu0 0
  %8223 = vmatprep.subr.bf16.mxu0 0
  %8224 = vmatpush2.bf16.msra.mxu0 0
  %8225 = vmatprep.subr.bf16.mxu0 0
  %8226 = vmatpush2.bf16.msra.mxu0 0
  %8227 = vmatprep.subr.bf16.mxu0 0
  %8228 = vmatpush2.bf16.msra.mxu0 0
  %8229 = vmatprep.subr.bf16.mxu0 0
  %8230 = vmatpush2.bf16.msra.mxu0 0
  %8231 = vmatprep.subr.bf16.mxu0 0
  %8232 = vmatpush2.bf16.msra.mxu0 0
  %8233 = vmatprep.subr.bf16.mxu0 0
  %8234 = vmatpush2.bf16.msra.mxu0 0
  %8235 = vmatprep.subr.bf16.mxu0 0
  %8236 = vmatpush2.bf16.msra.mxu0 0
  %8237 = vmatprep.mubr.bf16.mxu0 0
  %8238 = vmatmul.mubr.bf16.gmra.mxu0 %v8182
  %v8239 = vpop.f32.mrf.mxu0
  %v8240 = vadd.f32 %v8084, %v8239
  %v8241 = vpop.f32.mrf.mxu0
  %v8242 = vadd.f32 %v8088, %v8241
  %v8243 = vpop.f32.mrf.mxu0
  %v8244 = vadd.f32 %v8084, %v8243
  %v8245 = vpop.f32.mrf.mxu0
  %v8246 = vadd.f32 %v8088, %v8245
  %8247 = vmatprep.mubr.bf16.mxu0 0
  %8248 = vmatmul.mubr.bf16.gmra.mxu0 %v8185
  %v8249 = vpop.f32.mrf.mxu0
  %v8250 = vadd.f32 %v8084, %v8249
  %v8251 = vpop.f32.mrf.mxu0
  %v8252 = vadd.f32 %v8088, %v8251
  %v8253 = vpop.f32.mrf.mxu0
  %v8254 = vadd.f32 %v8084, %v8253
  %v8255 = vpop.f32.mrf.mxu0
  %v8256 = vadd.f32 %v8088, %v8255
  %8257 = vmatprep.mubr.bf16.mxu0 0
  %8258 = vmatmul.mubr.bf16.gmra.mxu0 %v8188
  %v8259 = vpop.f32.mrf.mxu0
  %v8260 = vadd.f32 %v8084, %v8259
  %v8261 = vpop.f32.mrf.mxu0
  %v8262 = vadd.f32 %v8088, %v8261
  %v8263 = vpop.f32.mrf.mxu0
  %v8264 = vadd.f32 %v8084, %v8263
  %v8265 = vpop.f32.mrf.mxu0
  %v8266 = vadd.f32 %v8088, %v8265
  %8267 = vmatprep.mubr.bf16.mxu0 0
  %8268 = vmatmul.mubr.bf16.gmra.mxu0 %v8191
  %v8269 = vpop.f32.mrf.mxu0
  %v8270 = vadd.f32 %v8084, %v8269
  %v8271 = vpop.f32.mrf.mxu0
  %v8272 = vadd.f32 %v8088, %v8271
  %v8273 = vpop.f32.mrf.mxu0
  %v8274 = vadd.f32 %v8084, %v8273
  %v8275 = vpop.f32.mrf.mxu0
  %v8276 = vadd.f32 %v8088, %v8275
  %8277 = vmatprep.mubr.bf16.mxu0 0
  %8278 = vmatmul.mubr.bf16.gmra.mxu0 %v8194
  %v8279 = vpop.f32.mrf.mxu0
  %v8280 = vadd.f32 %v8084, %v8279
  %v8281 = vpop.f32.mrf.mxu0
  %v8282 = vadd.f32 %v8088, %v8281
  %v8283 = vpop.f32.mrf.mxu0
  %v8284 = vadd.f32 %v8084, %v8283
  %v8285 = vpop.f32.mrf.mxu0
  %v8286 = vadd.f32 %v8088, %v8285
  %8287 = vmatprep.mubr.bf16.mxu0 0
  %8288 = vmatmul.mubr.bf16.gmra.mxu0 %v8197
  %v8289 = vpop.f32.mrf.mxu0
  %v8290 = vadd.f32 %v8084, %v8289
  %v8291 = vpop.f32.mrf.mxu0
  %v8292 = vadd.f32 %v8088, %v8291
  %v8293 = vpop.f32.mrf.mxu0
  %v8294 = vadd.f32 %v8084, %v8293
  %v8295 = vpop.f32.mrf.mxu0
  %v8296 = vadd.f32 %v8088, %v8295
  %8297 = vmatprep.mubr.bf16.mxu0 0
  %8298 = vmatmul.mubr.bf16.gmra.mxu0 %v8200
  %v8299 = vpop.f32.mrf.mxu0
  %v8300 = vadd.f32 %v8084, %v8299
  %v8301 = vpop.f32.mrf.mxu0
  %v8302 = vadd.f32 %v8088, %v8301
  %v8303 = vpop.f32.mrf.mxu0
  %v8304 = vadd.f32 %v8084, %v8303
  %v8305 = vpop.f32.mrf.mxu0
  %v8306 = vadd.f32 %v8088, %v8305
  %8307 = vmatprep.mubr.bf16.mxu0 0
  %8308 = vmatmul.mubr.bf16.gmra.mxu0 %v8203
  %v8309 = vpop.f32.mrf.mxu0
  %v8310 = vadd.f32 %v8084, %v8309
  %v8311 = vpop.f32.mrf.mxu0
  %v8312 = vadd.f32 %v8088, %v8311
  %v8313 = vpop.f32.mrf.mxu0
  %v8314 = vadd.f32 %v8084, %v8313
  %v8315 = vpop.f32.mrf.mxu0
  %v8316 = vadd.f32 %v8088, %v8315
  %8317 = vdwg.mxu0
  %8318 = vmatprep.subr.bf16.mxu0 0
  %8319 = vmatpush1.bf16.msra.mxu0 0
  %8320 = vmatprep.subr.bf16.mxu0 0
  %8321 = vmatpush1.bf16.msra.mxu0 0
  %8322 = vmatprep.subr.bf16.mxu0 0
  %8323 = vmatpush1.bf16.msra.mxu0 0
  %8324 = vmatprep.subr.bf16.mxu0 0
  %8325 = vmatpush1.bf16.msra.mxu0 0
  %8326 = vmatprep.subr.bf16.mxu0 %v8164
  %8327 = vmatpush1.bf16.msra.mxu0 %v8163
  %8328 = vmatprep.subr.bf16.mxu0 %v8160
  %8329 = vmatpush1.bf16.msra.mxu0 %v8159
  %8330 = vmatprep.subr.bf16.mxu0 %v8156
  %8331 = vmatpush1.bf16.msra.mxu0 %v8155
  %8332 = vmatprep.subr.bf16.mxu0 %v8152
  %8333 = vmatpush1.bf16.msra.mxu0 %v8151
  %8334 = vmatprep.subr.bf16.mxu0 0
  %8335 = vmatpush2.bf16.msra.mxu0 0
  %8336 = vmatprep.subr.bf16.mxu0 0
  %8337 = vmatpush2.bf16.msra.mxu0 0
  %8338 = vmatprep.subr.bf16.mxu0 0
  %8339 = vmatpush2.bf16.msra.mxu0 0
  %8340 = vmatprep.subr.bf16.mxu0 0
  %8341 = vmatpush2.bf16.msra.mxu0 0
  %8342 = vmatprep.subr.bf16.mxu0 0
  %8343 = vmatpush2.bf16.msra.mxu0 0
  %8344 = vmatprep.subr.bf16.mxu0 0
  %8345 = vmatpush2.bf16.msra.mxu0 0
  %8346 = vmatprep.subr.bf16.mxu0 0
  %8347 = vmatpush2.bf16.msra.mxu0 0
  %8348 = vmatprep.subr.bf16.mxu0 0
  %8349 = vmatpush2.bf16.msra.mxu0 0
  %8350 = vmatprep.mubr.bf16.mxu0 0
  %8351 = vmatmul.mubr.bf16.gmra.mxu0 %v8182
  %v8352 = vpop.f32.mrf.mxu0
  %v8353 = vadd.f32 %v8092, %v8352
  %v8354 = vpop.f32.mrf.mxu0
  %v8355 = vadd.f32 %v8096, %v8354
  %v8356 = vpop.f32.mrf.mxu0
  %v8357 = vadd.f32 %v8092, %v8356
  %v8358 = vpop.f32.mrf.mxu0
  %v8359 = vadd.f32 %v8096, %v8358
  %8360 = vmatprep.mubr.bf16.mxu0 0
  %8361 = vmatmul.mubr.bf16.gmra.mxu0 %v8185
  %v8362 = vpop.f32.mrf.mxu0
  %v8363 = vadd.f32 %v8092, %v8362
  %v8364 = vpop.f32.mrf.mxu0
  %v8365 = vadd.f32 %v8096, %v8364
  %v8366 = vpop.f32.mrf.mxu0
  %v8367 = vadd.f32 %v8092, %v8366
  %v8368 = vpop.f32.mrf.mxu0
  %v8369 = vadd.f32 %v8096, %v8368
  %8370 = vmatprep.mubr.bf16.mxu0 0
  %8371 = vmatmul.mubr.bf16.gmra.mxu0 %v8188
  %v8372 = vpop.f32.mrf.mxu0
  %v8373 = vadd.f32 %v8092, %v8372
  %v8374 = vpop.f32.mrf.mxu0
  %v8375 = vadd.f32 %v8096, %v8374
  %v8376 = vpop.f32.mrf.mxu0
  %v8377 = vadd.f32 %v8092, %v8376
  %v8378 = vpop.f32.mrf.mxu0
  %v8379 = vadd.f32 %v8096, %v8378
  %8380 = vmatprep.mubr.bf16.mxu0 0
  %8381 = vmatmul.mubr.bf16.gmra.mxu0 %v8191
  %v8382 = vpop.f32.mrf.mxu0
  %v8383 = vadd.f32 %v8092, %v8382
  %v8384 = vpop.f32.mrf.mxu0
  %v8385 = vadd.f32 %v8096, %v8384
  %v8386 = vpop.f32.mrf.mxu0
  %v8387 = vadd.f32 %v8092, %v8386
  %v8388 = vpop.f32.mrf.mxu0
  %v8389 = vadd.f32 %v8096, %v8388
  %8390 = vmatprep.mubr.bf16.mxu0 0
  %8391 = vmatmul.mubr.bf16.gmra.mxu0 %v8194
  %v8392 = vpop.f32.mrf.mxu0
  %v8393 = vadd.f32 %v8092, %v8392
  %v8394 = vpop.f32.mrf.mxu0
  %v8395 = vadd.f32 %v8096, %v8394
  %v8396 = vpop.f32.mrf.mxu0
  %v8397 = vadd.f32 %v8092, %v8396
  %v8398 = vpop.f32.mrf.mxu0
  %v8399 = vadd.f32 %v8096, %v8398
  %8400 = vmatprep.mubr.bf16.mxu0 0
  %8401 = vmatmul.mubr.bf16.gmra.mxu0 %v8197
  %v8402 = vpop.f32.mrf.mxu0
  %v8403 = vadd.f32 %v8092, %v8402
  %v8404 = vpop.f32.mrf.mxu0
  %v8405 = vadd.f32 %v8096, %v8404
  %v8406 = vpop.f32.mrf.mxu0
  %v8407 = vadd.f32 %v8092, %v8406
  %v8408 = vpop.f32.mrf.mxu0
  %v8409 = vadd.f32 %v8096, %v8408
  %8410 = vmatprep.mubr.bf16.mxu0 0
  %8411 = vmatmul.mubr.bf16.gmra.mxu0 %v8200
  %v8412 = vpop.f32.mrf.mxu0
  %v8413 = vadd.f32 %v8092, %v8412
  %v8414 = vpop.f32.mrf.mxu0
  %v8415 = vadd.f32 %v8096, %v8414
  %v8416 = vpop.f32.mrf.mxu0
  %v8417 = vadd.f32 %v8092, %v8416
  %v8418 = vpop.f32.mrf.mxu0
  %v8419 = vadd.f32 %v8096, %v8418
  %8420 = vmatprep.mubr.bf16.mxu0 0
  %8421 = vmatmul.mubr.bf16.gmra.mxu0 %v8203
  %v8422 = vpop.f32.mrf.mxu0
  %v8423 = vadd.f32 %v8092, %v8422
  %v8424 = vpop.f32.mrf.mxu0
  %v8425 = vadd.f32 %v8096, %v8424
  %v8426 = vpop.f32.mrf.mxu0
  %v8427 = vadd.f32 %v8092, %v8426
  %v8428 = vpop.f32.mrf.mxu0
  %v8429 = vadd.f32 %v8096, %v8428
  %8430 = vdwg.mxu0
  %v8431 = vmax.f32 %v8240, 0.0
  %v8432 = vmax.f32 %v8242, 0.0
  %v8433 = vmax.f32 %v8353, 0.0
  %v8434 = vmax.f32 %v8355, 0.0
  %v8435 = vmax.f32 %v8244, 0.0
  %v8436 = vmax.f32 %v8246, 0.0
  %v8437 = vmax.f32 %v8357, 0.0
  %v8438 = vmax.f32 %v8359, 0.0
  %v8439 = vmax.f32 %v8250, 0.0
  %v8440 = vmax.f32 %v8252, 0.0
  %v8441 = vmax.f32 %v8363, 0.0
  %v8442 = vmax.f32 %v8365, 0.0
  %v8443 = vmax.f32 %v8254, 0.0
  %v8444 = vmax.f32 %v8256, 0.0
  %v8445 = vmax.f32 %v8367, 0.0
  %v8446 = vmax.f32 %v8369, 0.0
  %v8447 = vmax.f32 %v8260, 0.0
  %v8448 = vmax.f32 %v8262, 0.0
  %v8449 = vmax.f32 %v8373, 0.0
  %v8450 = vmax.f32 %v8375, 0.0
  %v8451 = vmax.f32 %v8264, 0.0
  %v8452 = vmax.f32 %v8266, 0.0
  %v8453 = vmax.f32 %v8377, 0.0
  %v8454 = vmax.f32 %v8379, 0.0
  %v8455 = vmax.f32 %v8270, 0.0
  %v8456 = vmax.f32 %v8272, 0.0
  %v8457 = vmax.f32 %v8383, 0.0
  %v8458 = vmax.f32 %v8385, 0.0
  %v8459 = vmax.f32 %v8274, 0.0
  %v8460 = vmax.f32 %v8276, 0.0
  %v8461 = vmax.f32 %v8387, 0.0
  %v8462 = vmax.f32 %v8389, 0.0
  %v8463 = vmax.f32 %v8280, 0.0
  %v8464 = vmax.f32 %v8282, 0.0
  %v8465 = vmax.f32 %v8393, 0.0
  %v8466 = vmax.f32 %v8395, 0.0
  %v8467 = vmax.f32 %v8284, 0.0
  %v8468 = vmax.f32 %v8286, 0.0
  %v8469 = vmax.f32 %v8397, 0.0
  %v8470 = vmax.f32 %v8399, 0.0
  %v8471 = vmax.f32 %v8290, 0.0
  %v8472 = vmax.f32 %v8292, 0.0
  %v8473 = vmax.f32 %v8403, 0.0
  %v8474 = vmax.f32 %v8405, 0.0
  %v8475 = vmax.f32 %v8294, 0.0
  %v8476 = vmax.f32 %v8296, 0.0
  %v8477 = vmax.f32 %v8407, 0.0
  %v8478 = vmax.f32 %v8409, 0.0
  %v8479 = vmax.f32 %v8300, 0.0
  %v8480 = vmax.f32 %v8302, 0.0
  %v8481 = vmax.f32 %v8413, 0.0
  %v8482 = vmax.f32 %v8415, 0.0
  %v8483 = vmax.f32 %v8304, 0.0
  %v8484 = vmax.f32 %v8306, 0.0
  %v8485 = vmax.f32 %v8417, 0.0
  %v8486 = vmax.f32 %v8419, 0.0
  %v8487 = vmax.f32 %v8310, 0.0
  %v8488 = vmax.f32 %v8312, 0.0
  %v8489 = vmax.f32 %v8423, 0.0
  %v8490 = vmax.f32 %v8425, 0.0
  %v8491 = vmax.f32 %v8314, 0.0
  %v8492 = vmax.f32 %v8316, 0.0
  %v8493 = vmax.f32 %v8427, 0.0
  %v8494 = vmax.f32 %v8429, 0.0
  %v8495 = vpack.c.bf16 %v8435, %v8431
  %v8496 = vpack.c.bf16 %v8436, %v8432
  %v8497 = vpack.c.bf16 %v8437, %v8433
  %v8498 = vpack.c.bf16 %v8438, %v8434
  %v8499 = vpack.c.bf16 %v8443, %v8439
  %v8500 = vpack.c.bf16 %v8444, %v8440
  %v8501 = vpack.c.bf16 %v8445, %v8441
  %v8502 = vpack.c.bf16 %v8446, %v8442
  %v8503 = vpack.c.bf16 %v8451, %v8447
  %v8504 = vpack.c.bf16 %v8452, %v8448
  %v8505 = vpack.c.bf16 %v8453, %v8449
  %v8506 = vpack.c.bf16 %v8454, %v8450
  %v8507 = vpack.c.bf16 %v8459, %v8455
  %v8508 = vpack.c.bf16 %v8460, %v8456
  %v8509 = vpack.c.bf16 %v8461, %v8457
  %v8510 = vpack.c.bf16 %v8462, %v8458
  %v8511 = vpack.c.bf16 %v8467, %v8463
  %v8512 = vpack.c.bf16 %v8468, %v8464
  %v8513 = vpack.c.bf16 %v8469, %v8465
  %v8514 = vpack.c.bf16 %v8470, %v8466
  %v8515 = vpack.c.bf16 %v8475, %v8471
  %v8516 = vpack.c.bf16 %v8476, %v8472
  %v8517 = vpack.c.bf16 %v8477, %v8473
  %v8518 = vpack.c.bf16 %v8478, %v8474
  %v8519 = vpack.c.bf16 %v8483, %v8479
  %v8520 = vpack.c.bf16 %v8484, %v8480
  %v8521 = vpack.c.bf16 %v8485, %v8481
  %v8522 = vpack.c.bf16 %v8486, %v8482
  %v8523 = vpack.c.bf16 %v8491, %v8487
  %v8524 = vpack.c.bf16 %v8492, %v8488
  %v8525 = vpack.c.bf16 %v8493, %v8489
  %v8526 = vpack.c.bf16 %v8494, %v8490
  %v8527 = vld [vmem:[%s9] sm:$0xf]
  %v8528 = vld [vmem:[%s9 + $0x4] sm:$0xf]
  %v8529 = vld [vmem:[%s9 + $0x8] sm:$0xf]
  %v8530 = vld [vmem:[%s9 + $0xc] sm:$0xf]
  %v8531 = vld [vmem:[%s9 + $0x10] sm:$0xf]
  %v8532 = vld [vmem:[%s9 + $0x14] sm:$0xf]
  %v8533 = vld [vmem:[%s9 + $0x18] sm:$0xf]
  %v8534 = vld [vmem:[%s9 + $0x1c] sm:$0xf]
  %v8535 = vld [vmem:[%s9 + $0x20] sm:$0xf]
  %v8536 = vld [vmem:[%s9 + $0x24] sm:$0xf]
  %v8537 = vld [vmem:[%s9 + $0x28] sm:$0xf]
  %v8538 = vld [vmem:[%s9 + $0x2c] sm:$0xf]
  %v8539 = vld [vmem:[%s9 + $0x30] sm:$0xf]
  %v8540 = vld [vmem:[%s9 + $0x34] sm:$0xf]
  %v8541 = vld [vmem:[%s9 + $0x38] sm:$0xf]
  %v8542 = vld [vmem:[%s9 + $0x3c] sm:$0xf]
  %v8543 = vld [vmem:[%s9 + $0x40] sm:$0xf]
  %v8544 = vld [vmem:[%s9 + $0x44] sm:$0xf]
  %v8545 = vld [vmem:[%s9 + $0x48] sm:$0xf]
  %v8546 = vld [vmem:[%s9 + $0x4c] sm:$0xf]
  %v8547 = vld [vmem:[%s9 + $0x50] sm:$0xf]
  %v8548 = vld [vmem:[%s9 + $0x54] sm:$0xf]
  %v8549 = vld [vmem:[%s9 + $0x58] sm:$0xf]
  %v8550 = vld [vmem:[%s9 + $0x5c] sm:$0xf]
  %v8551 = vld [vmem:[%s9 + $0x60] sm:$0xf]
  %v8552 = vld [vmem:[%s9 + $0x64] sm:$0xf]
  %v8553 = vld [vmem:[%s9 + $0x68] sm:$0xf]
  %v8554 = vld [vmem:[%s9 + $0x6c] sm:$0xf]
  %v8555 = vld [vmem:[%s9 + $0x70] sm:$0xf]
  %v8556 = vld [vmem:[%s9 + $0x74] sm:$0xf]
  %v8557 = vld [vmem:[%s9 + $0x78] sm:$0xf]
  %v8558 = vld [vmem:[%s9 + $0x7c] sm:$0xf]
  %v8559 = vld [vmem:[%s9 + $0x80] sm:$0xf]
  %v8560 = vld [vmem:[%s9 + $0x84] sm:$0xf]
  %v8561 = vld [vmem:[%s9 + $0x88] sm:$0xf]
  %v8562 = vld [vmem:[%s9 + $0x8c] sm:$0xf]
  %v8563 = vld [vmem:[%s9 + $0x90] sm:$0xf]
  %v8564 = vld [vmem:[%s9 + $0x94] sm:$0xf]
  %v8565 = vld [vmem:[%s9 + $0x98] sm:$0xf]
  %v8566 = vld [vmem:[%s9 + $0x9c] sm:$0xf]
  %v8567 = vld [vmem:[%s9 + $0xa0] sm:$0xf]
  %v8568 = vld [vmem:[%s9 + $0xa4] sm:$0xf]
  %v8569 = vld [vmem:[%s9 + $0xa8] sm:$0xf]
  %v8570 = vld [vmem:[%s9 + $0xac] sm:$0xf]
  %v8571 = vld [vmem:[%s9 + $0xb0] sm:$0xf]
  %v8572 = vld [vmem:[%s9 + $0xb4] sm:$0xf]
  %v8573 = vld [vmem:[%s9 + $0xb8] sm:$0xf]
  %v8574 = vld [vmem:[%s9 + $0xbc] sm:$0xf]
  %v8575 = vld [vmem:[%s9 + $0xc0] sm:$0xf]
  %v8576 = vld [vmem:[%s9 + $0xc4] sm:$0xf]
  %v8577 = vld [vmem:[%s9 + $0xc8] sm:$0xf]
  %v8578 = vld [vmem:[%s9 + $0xcc] sm:$0xf]
  %v8579 = vld [vmem:[%s9 + $0xd0] sm:$0xf]
  %v8580 = vld [vmem:[%s9 + $0xd4] sm:$0xf]
  %v8581 = vld [vmem:[%s9 + $0xd8] sm:$0xf]
  %v8582 = vld [vmem:[%s9 + $0xdc] sm:$0xf]
  %v8583 = vld [vmem:[%s9 + $0xe0] sm:$0xf]
  %v8584 = vld [vmem:[%s9 + $0xe4] sm:$0xf]
  %v8585 = vld [vmem:[%s9 + $0xe8] sm:$0xf]
  %v8586 = vld [vmem:[%s9 + $0xec] sm:$0xf]
  %v8587 = vld [vmem:[%s9 + $0xf0] sm:$0xf]
  %v8588 = vld [vmem:[%s9 + $0xf4] sm:$0xf]
  %v8589 = vld [vmem:[%s9 + $0xf8] sm:$0xf]
  %v8590 = vld [vmem:[%s9 + $0xfc] sm:$0xf]
  %v8591 = vld [vmem:[%s10] sm:$0x1]
  %v8593 = vlaneseq
  %v8594 = vshrl.u32 %v8593, 7
  %v8595 = vsub.s32 0, %v8594
  %v8596 = vrot.slane %v8591, %v8595
  %v8662 = vunpack.c.l.b16 %v8527
  %v8663 = vunpack.c.l.b16 %v8528
  %v8664 = vunpack.c.l.b16 %v8529
  %v8665 = vunpack.c.l.b16 %v8530
  %v8666 = vunpack.c.l.b16 %v8531
  %v8667 = vunpack.c.l.b16 %v8532
  %v8668 = vunpack.c.l.b16 %v8533
  %v8669 = vunpack.c.l.b16 %v8534
  %v8670 = vunpack.c.l.b16 %v8535
  %v8671 = vunpack.c.l.b16 %v8536
  %v8672 = vunpack.c.l.b16 %v8537
  %v8673 = vunpack.c.l.b16 %v8538
  %v8674 = vunpack.c.l.b16 %v8539
  %v8675 = vunpack.c.l.b16 %v8540
  %v8676 = vunpack.c.l.b16 %v8541
  %v8677 = vunpack.c.l.b16 %v8542
  %v8678 = vunpack.c.l.b16 %v8543
  %v8679 = vunpack.c.l.b16 %v8544
  %v8680 = vunpack.c.l.b16 %v8545
  %v8681 = vunpack.c.l.b16 %v8546
  %v8682 = vunpack.c.l.b16 %v8547
  %v8683 = vunpack.c.l.b16 %v8548
  %v8684 = vunpack.c.l.b16 %v8549
  %v8685 = vunpack.c.l.b16 %v8550
  %v8686 = vunpack.c.l.b16 %v8551
  %v8687 = vunpack.c.l.b16 %v8552
  %v8688 = vunpack.c.l.b16 %v8553
  %v8689 = vunpack.c.l.b16 %v8554
  %v8690 = vunpack.c.l.b16 %v8555
  %v8691 = vunpack.c.l.b16 %v8556
  %v8692 = vunpack.c.l.b16 %v8557
  %v8693 = vunpack.c.l.b16 %v8558
  %v8694 = vunpack.c.l.b16 %v8559
  %v8695 = vunpack.c.l.b16 %v8560
  %v8696 = vunpack.c.l.b16 %v8561
  %v8697 = vunpack.c.l.b16 %v8562
  %v8698 = vunpack.c.l.b16 %v8563
  %v8699 = vunpack.c.l.b16 %v8564
  %v8700 = vunpack.c.l.b16 %v8565
  %v8701 = vunpack.c.l.b16 %v8566
  %v8702 = vunpack.c.l.b16 %v8567
  %v8703 = vunpack.c.l.b16 %v8568
  %v8704 = vunpack.c.l.b16 %v8569
  %v8705 = vunpack.c.l.b16 %v8570
  %v8706 = vunpack.c.l.b16 %v8571
  %v8707 = vunpack.c.l.b16 %v8572
  %v8708 = vunpack.c.l.b16 %v8573
  %v8709 = vunpack.c.l.b16 %v8574
  %v8710 = vunpack.c.l.b16 %v8575
  %v8711 = vunpack.c.l.b16 %v8576
  %v8712 = vunpack.c.l.b16 %v8577
  %v8713 = vunpack.c.l.b16 %v8578
  %v8714 = vunpack.c.l.b16 %v8579
  %v8715 = vunpack.c.l.b16 %v8580
  %v8716 = vunpack.c.l.b16 %v8581
  %v8717 = vunpack.c.l.b16 %v8582
  %v8718 = vunpack.c.l.b16 %v8583
  %v8719 = vunpack.c.l.b16 %v8584
  %v8720 = vunpack.c.l.b16 %v8585
  %v8721 = vunpack.c.l.b16 %v8586
  %v8722 = vunpack.c.l.b16 %v8587
  %v8723 = vunpack.c.l.b16 %v8588
  %v8724 = vunpack.c.l.b16 %v8589
  %v8725 = vunpack.c.l.b16 %v8590
  %v8726 = vpack.c.b16 %v8663, %v8662
  %v8727 = vpack.c.b16 %v8665, %v8664
  %v8728 = vpack.c.b16 %v8667, %v8666
  %v8729 = vpack.c.b16 %v8669, %v8668
  %v8730 = vpack.c.b16 %v8671, %v8670
  %v8731 = vpack.c.b16 %v8673, %v8672
  %v8732 = vpack.c.b16 %v8675, %v8674
  %v8733 = vpack.c.b16 %v8677, %v8676
  %v8734 = vpack.c.b16 %v8679, %v8678
  %v8735 = vpack.c.b16 %v8681, %v8680
  %v8736 = vpack.c.b16 %v8683, %v8682
  %v8737 = vpack.c.b16 %v8685, %v8684
  %v8738 = vpack.c.b16 %v8687, %v8686
  %v8739 = vpack.c.b16 %v8689, %v8688
  %v8740 = vpack.c.b16 %v8691, %v8690
  %v8741 = vpack.c.b16 %v8693, %v8692
  %v8742 = vpack.c.b16 %v8695, %v8694
  %v8743 = vpack.c.b16 %v8697, %v8696
  %v8744 = vpack.c.b16 %v8699, %v8698
  %v8745 = vpack.c.b16 %v8701, %v8700
  %v8746 = vpack.c.b16 %v8703, %v8702
  %v8747 = vpack.c.b16 %v8705, %v8704
  %v8748 = vpack.c.b16 %v8707, %v8706
  %v8749 = vpack.c.b16 %v8709, %v8708
  %v8750 = vpack.c.b16 %v8711, %v8710
  %v8751 = vpack.c.b16 %v8713, %v8712
  %v8752 = vpack.c.b16 %v8715, %v8714
  %v8753 = vpack.c.b16 %v8717, %v8716
  %v8754 = vpack.c.b16 %v8719, %v8718
  %v8755 = vpack.c.b16 %v8721, %v8720
  %v8756 = vpack.c.b16 %v8723, %v8722
  %v8757 = vpack.c.b16 %v8725, %v8724
  %8790 = vmatprep.subr.bf16.mxu0 0
  %8791 = vmatpush1.bf16.msra.mxu0 %v8733
  %8792 = vmatprep.subr.bf16.mxu0 0
  %8793 = vmatpush1.bf16.msra.mxu0 %v8732
  %8794 = vmatprep.subr.bf16.mxu0 0
  %8795 = vmatpush1.bf16.msra.mxu0 %v8731
  %8796 = vmatprep.subr.bf16.mxu0 0
  %8797 = vmatpush1.bf16.msra.mxu0 %v8730
  %8798 = vmatprep.subr.bf16.mxu0 0
  %8799 = vmatpush1.bf16.msra.mxu0 %v8729
  %8800 = vmatprep.subr.bf16.mxu0 0
  %8801 = vmatpush1.bf16.msra.mxu0 %v8728
  %8802 = vmatprep.subr.bf16.mxu0 0
  %8803 = vmatpush1.bf16.msra.mxu0 %v8727
  %8804 = vmatprep.subr.bf16.mxu0 0
  %8805 = vmatpush1.bf16.msra.mxu0 %v8726
  %8806 = vmatprep.subr.bf16.mxu0 0
  %8807 = vmatpush2.bf16.msra.mxu0 %v8741
  %8808 = vmatprep.subr.bf16.mxu0 0
  %8809 = vmatpush2.bf16.msra.mxu0 %v8740
  %8810 = vmatprep.subr.bf16.mxu0 0
  %8811 = vmatpush2.bf16.msra.mxu0 %v8739
  %8812 = vmatprep.subr.bf16.mxu0 0
  %8813 = vmatpush2.bf16.msra.mxu0 %v8738
  %8814 = vmatprep.subr.bf16.mxu0 0
  %8815 = vmatpush2.bf16.msra.mxu0 %v8737
  %8816 = vmatprep.subr.bf16.mxu0 0
  %8817 = vmatpush2.bf16.msra.mxu0 %v8736
  %8818 = vmatprep.subr.bf16.mxu0 0
  %8819 = vmatpush2.bf16.msra.mxu0 %v8735
  %8820 = vmatprep.subr.bf16.mxu0 0
  %8821 = vmatpush2.bf16.msra.mxu0 %v8734
  %8822 = vmatprep.mubr.bf16.mxu0 %v8496
  %8823 = vmatmul.mubr.bf16.gmra.mxu0 %v8495
  %v8824 = vpop.f32.mrf.mxu0
  %v8825 = vadd.f32 %v8596, %v8824
  %v8826 = vpop.f32.mrf.mxu0
  %v8827 = vpop.f32.mrf.mxu0
  %v8828 = vadd.f32 %v8596, %v8827
  %v8829 = vpop.f32.mrf.mxu0
  %8830 = vmatprep.mubr.bf16.mxu0 %v8500
  %8831 = vmatmul.mubr.bf16.gmra.mxu0 %v8499
  %v8832 = vpop.f32.mrf.mxu0
  %v8833 = vadd.f32 %v8596, %v8832
  %v8834 = vpop.f32.mrf.mxu0
  %v8835 = vpop.f32.mrf.mxu0
  %v8836 = vadd.f32 %v8596, %v8835
  %v8837 = vpop.f32.mrf.mxu0
  %8838 = vmatprep.mubr.bf16.mxu0 %v8504
  %8839 = vmatmul.mubr.bf16.gmra.mxu0 %v8503
  %v8840 = vpop.f32.mrf.mxu0
  %v8841 = vadd.f32 %v8596, %v8840
  %v8842 = vpop.f32.mrf.mxu0
  %v8843 = vpop.f32.mrf.mxu0
  %v8844 = vadd.f32 %v8596, %v8843
  %v8845 = vpop.f32.mrf.mxu0
  %8846 = vmatprep.mubr.bf16.mxu0 %v8508
  %8847 = vmatmul.mubr.bf16.gmra.mxu0 %v8507
  %v8848 = vpop.f32.mrf.mxu0
  %v8849 = vadd.f32 %v8596, %v8848
  %v8850 = vpop.f32.mrf.mxu0
  %v8851 = vpop.f32.mrf.mxu0
  %v8852 = vadd.f32 %v8596, %v8851
  %v8853 = vpop.f32.mrf.mxu0
  %8854 = vmatprep.mubr.bf16.mxu0 %v8512
  %8855 = vmatmul.mubr.bf16.gmra.mxu0 %v8511
  %v8856 = vpop.f32.mrf.mxu0
  %v8857 = vadd.f32 %v8596, %v8856
  %v8858 = vpop.f32.mrf.mxu0
  %v8859 = vpop.f32.mrf.mxu0
  %v8860 = vadd.f32 %v8596, %v8859
  %v8861 = vpop.f32.mrf.mxu0
  %8862 = vmatprep.mubr.bf16.mxu0 %v8516
  %8863 = vmatmul.mubr.bf16.gmra.mxu0 %v8515
  %v8864 = vpop.f32.mrf.mxu0
  %v8865 = vadd.f32 %v8596, %v8864
  %v8866 = vpop.f32.mrf.mxu0
  %v8867 = vpop.f32.mrf.mxu0
  %v8868 = vadd.f32 %v8596, %v8867
  %v8869 = vpop.f32.mrf.mxu0
  %8870 = vmatprep.mubr.bf16.mxu0 %v8520
  %8871 = vmatmul.mubr.bf16.gmra.mxu0 %v8519
  %v8872 = vpop.f32.mrf.mxu0
  %v8873 = vadd.f32 %v8596, %v8872
  %v8874 = vpop.f32.mrf.mxu0
  %v8875 = vpop.f32.mrf.mxu0
  %v8876 = vadd.f32 %v8596, %v8875
  %v8877 = vpop.f32.mrf.mxu0
  %8878 = vmatprep.mubr.bf16.mxu0 %v8524
  %8879 = vmatmul.mubr.bf16.gmra.mxu0 %v8523
  %v8880 = vpop.f32.mrf.mxu0
  %v8881 = vadd.f32 %v8596, %v8880
  %v8882 = vpop.f32.mrf.mxu0
  %v8883 = vpop.f32.mrf.mxu0
  %v8884 = vadd.f32 %v8596, %v8883
  %v8885 = vpop.f32.mrf.mxu0
  %8886 = vdwg.mxu0
  %8887 = vmatprep.subr.bf16.mxu0 0
  %8888 = vmatpush1.bf16.msra.mxu0 %v8749
  %8889 = vmatprep.subr.bf16.mxu0 0
  %8890 = vmatpush1.bf16.msra.mxu0 %v8748
  %8891 = vmatprep.subr.bf16.mxu0 0
  %8892 = vmatpush1.bf16.msra.mxu0 %v8747
  %8893 = vmatprep.subr.bf16.mxu0 0
  %8894 = vmatpush1.bf16.msra.mxu0 %v8746
  %8895 = vmatprep.subr.bf16.mxu0 0
  %8896 = vmatpush1.bf16.msra.mxu0 %v8745
  %8897 = vmatprep.subr.bf16.mxu0 0
  %8898 = vmatpush1.bf16.msra.mxu0 %v8744
  %8899 = vmatprep.subr.bf16.mxu0 0
  %8900 = vmatpush1.bf16.msra.mxu0 %v8743
  %8901 = vmatprep.subr.bf16.mxu0 0
  %8902 = vmatpush1.bf16.msra.mxu0 %v8742
  %8903 = vmatprep.subr.bf16.mxu0 0
  %8904 = vmatpush2.bf16.msra.mxu0 %v8757
  %8905 = vmatprep.subr.bf16.mxu0 0
  %8906 = vmatpush2.bf16.msra.mxu0 %v8756
  %8907 = vmatprep.subr.bf16.mxu0 0
  %8908 = vmatpush2.bf16.msra.mxu0 %v8755
  %8909 = vmatprep.subr.bf16.mxu0 0
  %8910 = vmatpush2.bf16.msra.mxu0 %v8754
  %8911 = vmatprep.subr.bf16.mxu0 0
  %8912 = vmatpush2.bf16.msra.mxu0 %v8753
  %8913 = vmatprep.subr.bf16.mxu0 0
  %8914 = vmatpush2.bf16.msra.mxu0 %v8752
  %8915 = vmatprep.subr.bf16.mxu0 0
  %8916 = vmatpush2.bf16.msra.mxu0 %v8751
  %8917 = vmatprep.subr.bf16.mxu0 0
  %8918 = vmatpush2.bf16.msra.mxu0 %v8750
  %8919 = vmatprep.mubr.bf16.mxu0 %v8498
  %8920 = vmatmul.mubr.bf16.gmra.mxu0 %v8497
  %v8921 = vpop.f32.mrf.mxu0
  %v8922 = vadd.f32 %v8825, %v8921
  %v8923 = vpop.f32.mrf.mxu0
  %v8924 = vpop.f32.mrf.mxu0
  %v8925 = vadd.f32 %v8828, %v8924
  %v8926 = vpop.f32.mrf.mxu0
  %8927 = vmatprep.mubr.bf16.mxu0 %v8502
  %8928 = vmatmul.mubr.bf16.gmra.mxu0 %v8501
  %v8929 = vpop.f32.mrf.mxu0
  %v8930 = vadd.f32 %v8833, %v8929
  %v8931 = vpop.f32.mrf.mxu0
  %v8932 = vpop.f32.mrf.mxu0
  %v8933 = vadd.f32 %v8836, %v8932
  %v8934 = vpop.f32.mrf.mxu0
  %8935 = vmatprep.mubr.bf16.mxu0 %v8506
  %8936 = vmatmul.mubr.bf16.gmra.mxu0 %v8505
  %v8937 = vpop.f32.mrf.mxu0
  %v8938 = vadd.f32 %v8841, %v8937
  %v8939 = vpop.f32.mrf.mxu0
  %v8940 = vpop.f32.mrf.mxu0
  %v8941 = vadd.f32 %v8844, %v8940
  %v8942 = vpop.f32.mrf.mxu0
  %8943 = vmatprep.mubr.bf16.mxu0 %v8510
  %8944 = vmatmul.mubr.bf16.gmra.mxu0 %v8509
  %v8945 = vpop.f32.mrf.mxu0
  %v8946 = vadd.f32 %v8849, %v8945
  %v8947 = vpop.f32.mrf.mxu0
  %v8948 = vpop.f32.mrf.mxu0
  %v8949 = vadd.f32 %v8852, %v8948
  %v8950 = vpop.f32.mrf.mxu0
  %8951 = vmatprep.mubr.bf16.mxu0 %v8514
  %8952 = vmatmul.mubr.bf16.gmra.mxu0 %v8513
  %v8953 = vpop.f32.mrf.mxu0
  %v8954 = vadd.f32 %v8857, %v8953
  %v8955 = vpop.f32.mrf.mxu0
  %v8956 = vpop.f32.mrf.mxu0
  %v8957 = vadd.f32 %v8860, %v8956
  %v8958 = vpop.f32.mrf.mxu0
  %8959 = vmatprep.mubr.bf16.mxu0 %v8518
  %8960 = vmatmul.mubr.bf16.gmra.mxu0 %v8517
  %v8961 = vpop.f32.mrf.mxu0
  %v8962 = vadd.f32 %v8865, %v8961
  %v8963 = vpop.f32.mrf.mxu0
  %v8964 = vpop.f32.mrf.mxu0
  %v8965 = vadd.f32 %v8868, %v8964
  %v8966 = vpop.f32.mrf.mxu0
  %8967 = vmatprep.mubr.bf16.mxu0 %v8522
  %8968 = vmatmul.mubr.bf16.gmra.mxu0 %v8521
  %v8969 = vpop.f32.mrf.mxu0
  %v8970 = vadd.f32 %v8873, %v8969
  %v8971 = vpop.f32.mrf.mxu0
  %v8972 = vpop.f32.mrf.mxu0
  %v8973 = vadd.f32 %v8876, %v8972
  %v8974 = vpop.f32.mrf.mxu0
  %8975 = vmatprep.mubr.bf16.mxu0 %v8526
  %8976 = vmatmul.mubr.bf16.gmra.mxu0 %v8525
  %v8977 = vpop.f32.mrf.mxu0
  %v8978 = vadd.f32 %v8881, %v8977
  %v8979 = vpop.f32.mrf.mxu0
  %v8980 = vpop.f32.mrf.mxu0
  %v8981 = vadd.f32 %v8884, %v8980
  %v8982 = vpop.f32.mrf.mxu0
  %8983 = vdwg.mxu0
  %v8984 = vadd.f32 %v8039, %v8922
  %v8985 = vadd.f32 %v8040, %v8925
  %v8986 = vadd.f32 %v8041, %v8930
  %v8987 = vadd.f32 %v8042, %v8933
  %v8988 = vadd.f32 %v8043, %v8938
  %v8989 = vadd.f32 %v8044, %v8941
  %v8990 = vadd.f32 %v8045, %v8946
  %v8991 = vadd.f32 %v8046, %v8949
  %v8992 = vadd.f32 %v8047, %v8954
  %v8993 = vadd.f32 %v8048, %v8957
  %v8994 = vadd.f32 %v8049, %v8962
  %v8995 = vadd.f32 %v8050, %v8965
  %v8996 = vadd.f32 %v8051, %v8970
  %v8997 = vadd.f32 %v8052, %v8973
  %v8998 = vadd.f32 %v8053, %v8978
  %v8999 = vadd.f32 %v8054, %v8981
  %v9000 = vld [vmem:[%s11] sm:$0x1]
  %v9001 = vld [vmem:[%s12] sm:$0x1]
  %v9002 = vsel %vm129, %v8984, 0.0
  %9003 = vadd.xlane.f32.xlu0 %v9002
  %v9004 = vpop.xlane.xlu0 %9003
  %v9005 = vsel %vm129, %v8985, 0.0
  %9006 = vadd.xlane.f32.xlu0 %v9005
  %v9007 = vpop.xlane.xlu0 %9006
  %v9008 = vsel %vm129, %v8986, 0.0
  %9009 = vadd.xlane.f32.xlu0 %v9008
  %v9010 = vpop.xlane.xlu0 %9009
  %v9011 = vsel %vm129, %v8987, 0.0
  %9012 = vadd.xlane.f32.xlu0 %v9011
  %v9013 = vpop.xlane.xlu0 %9012
  %v9014 = vsel %vm129, %v8988, 0.0
  %9015 = vadd.xlane.f32.xlu0 %v9014
  %v9016 = vpop.xlane.xlu0 %9015
  %v9017 = vsel %vm129, %v8989, 0.0
  %9018 = vadd.xlane.f32.xlu0 %v9017
  %v9019 = vpop.xlane.xlu0 %9018
  %v9020 = vsel %vm129, %v8990, 0.0
  %9021 = vadd.xlane.f32.xlu0 %v9020
  %v9022 = vpop.xlane.xlu0 %9021
  %v9023 = vsel %vm129, %v8991, 0.0
  %9024 = vadd.xlane.f32.xlu0 %v9023
  %v9025 = vpop.xlane.xlu0 %9024
  %v9026 = vsel %vm129, %v8992, 0.0
  %9027 = vadd.xlane.f32.xlu0 %v9026
  %v9028 = vpop.xlane.xlu0 %9027
  %v9029 = vsel %vm129, %v8993, 0.0
  %9030 = vadd.xlane.f32.xlu0 %v9029
  %v9031 = vpop.xlane.xlu0 %9030
  %v9032 = vsel %vm129, %v8994, 0.0
  %9033 = vadd.xlane.f32.xlu0 %v9032
  %v9034 = vpop.xlane.xlu0 %9033
  %v9035 = vsel %vm129, %v8995, 0.0
  %9036 = vadd.xlane.f32.xlu0 %v9035
  %v9037 = vpop.xlane.xlu0 %9036
  %v9038 = vsel %vm129, %v8996, 0.0
  %9039 = vadd.xlane.f32.xlu0 %v9038
  %v9040 = vpop.xlane.xlu0 %9039
  %v9041 = vsel %vm129, %v8997, 0.0
  %9042 = vadd.xlane.f32.xlu0 %v9041
  %v9043 = vpop.xlane.xlu0 %9042
  %v9044 = vsel %vm129, %v8998, 0.0
  %9045 = vadd.xlane.f32.xlu0 %v9044
  %v9046 = vpop.xlane.xlu0 %9045
  %v9047 = vsel %vm129, %v8999, 0.0
  %9048 = vadd.xlane.f32.xlu0 %v9047
  %v9049 = vpop.xlane.xlu0 %9048
  %v9050 = vmul.f32 %v9004, %v7850
  %v9051 = vmul.f32 %v9007, %v7850
  %v9052 = vmul.f32 %v9010, %v7850
  %v9053 = vmul.f32 %v9013, %v7850
  %v9054 = vmul.f32 %v9016, %v7850
  %v9055 = vmul.f32 %v9019, %v7850
  %v9056 = vmul.f32 %v9022, %v7850
  %v9057 = vmul.f32 %v9025, %v7850
  %v9058 = vmul.f32 %v9028, %v7850
  %v9059 = vmul.f32 %v9031, %v7850
  %v9060 = vmul.f32 %v9034, %v7850
  %v9061 = vmul.f32 %v9037, %v7850
  %v9062 = vmul.f32 %v9040, %v7850
  %v9063 = vmul.f32 %v9043, %v7850
  %v9064 = vmul.f32 %v9046, %v7850
  %v9065 = vmul.f32 %v9049, %v7850
  %v9066 = vsub.f32 %v8984, %v9050
  %v9067 = vsub.f32 %v8985, %v9051
  %v9068 = vsub.f32 %v8986, %v9052
  %v9069 = vsub.f32 %v8987, %v9053
  %v9070 = vsub.f32 %v8988, %v9054
  %v9071 = vsub.f32 %v8989, %v9055
  %v9072 = vsub.f32 %v8990, %v9056
  %v9073 = vsub.f32 %v8991, %v9057
  %v9074 = vsub.f32 %v8992, %v9058
  %v9075 = vsub.f32 %v8993, %v9059
  %v9076 = vsub.f32 %v8994, %v9060
  %v9077 = vsub.f32 %v8995, %v9061
  %v9078 = vsub.f32 %v8996, %v9062
  %v9079 = vsub.f32 %v8997, %v9063
  %v9080 = vsub.f32 %v8998, %v9064
  %v9081 = vsub.f32 %v8999, %v9065
  %v9082 = vmul.f32 %v9066, %v9066
  %v9083 = vmul.f32 %v9067, %v9067
  %v9084 = vmul.f32 %v9068, %v9068
  %v9085 = vmul.f32 %v9069, %v9069
  %v9086 = vmul.f32 %v9070, %v9070
  %v9087 = vmul.f32 %v9071, %v9071
  %v9088 = vmul.f32 %v9072, %v9072
  %v9089 = vmul.f32 %v9073, %v9073
  %v9090 = vmul.f32 %v9074, %v9074
  %v9091 = vmul.f32 %v9075, %v9075
  %v9092 = vmul.f32 %v9076, %v9076
  %v9093 = vmul.f32 %v9077, %v9077
  %v9094 = vmul.f32 %v9078, %v9078
  %v9095 = vmul.f32 %v9079, %v9079
  %v9096 = vmul.f32 %v9080, %v9080
  %v9097 = vmul.f32 %v9081, %v9081
  %v9098 = vsel %vm129, %v9082, 0.0
  %9099 = vadd.xlane.f32.xlu0 %v9098
  %v9100 = vpop.xlane.xlu0 %9099
  %v9101 = vsel %vm129, %v9083, 0.0
  %9102 = vadd.xlane.f32.xlu0 %v9101
  %v9103 = vpop.xlane.xlu0 %9102
  %v9104 = vsel %vm129, %v9084, 0.0
  %9105 = vadd.xlane.f32.xlu0 %v9104
  %v9106 = vpop.xlane.xlu0 %9105
  %v9107 = vsel %vm129, %v9085, 0.0
  %9108 = vadd.xlane.f32.xlu0 %v9107
  %v9109 = vpop.xlane.xlu0 %9108
  %v9110 = vsel %vm129, %v9086, 0.0
  %9111 = vadd.xlane.f32.xlu0 %v9110
  %v9112 = vpop.xlane.xlu0 %9111
  %v9113 = vsel %vm129, %v9087, 0.0
  %9114 = vadd.xlane.f32.xlu0 %v9113
  %v9115 = vpop.xlane.xlu0 %9114
  %v9116 = vsel %vm129, %v9088, 0.0
  %9117 = vadd.xlane.f32.xlu0 %v9116
  %v9118 = vpop.xlane.xlu0 %9117
  %v9119 = vsel %vm129, %v9089, 0.0
  %9120 = vadd.xlane.f32.xlu0 %v9119
  %v9121 = vpop.xlane.xlu0 %9120
  %v9122 = vsel %vm129, %v9090, 0.0
  %9123 = vadd.xlane.f32.xlu0 %v9122
  %v9124 = vpop.xlane.xlu0 %9123
  %v9125 = vsel %vm129, %v9091, 0.0
  %9126 = vadd.xlane.f32.xlu0 %v9125
  %v9127 = vpop.xlane.xlu0 %9126
  %v9128 = vsel %vm129, %v9092, 0.0
  %9129 = vadd.xlane.f32.xlu0 %v9128
  %v9130 = vpop.xlane.xlu0 %9129
  %v9131 = vsel %vm129, %v9093, 0.0
  %9132 = vadd.xlane.f32.xlu0 %v9131
  %v9133 = vpop.xlane.xlu0 %9132
  %v9134 = vsel %vm129, %v9094, 0.0
  %9135 = vadd.xlane.f32.xlu0 %v9134
  %v9136 = vpop.xlane.xlu0 %9135
  %v9137 = vsel %vm129, %v9095, 0.0
  %9138 = vadd.xlane.f32.xlu0 %v9137
  %v9139 = vpop.xlane.xlu0 %9138
  %v9140 = vsel %vm129, %v9096, 0.0
  %9141 = vadd.xlane.f32.xlu0 %v9140
  %v9142 = vpop.xlane.xlu0 %9141
  %v9143 = vsel %vm129, %v9097, 0.0
  %9144 = vadd.xlane.f32.xlu0 %v9143
  %v9145 = vpop.xlane.xlu0 %9144
  %v9146 = vmul.f32 %v9100, %v7850
  %v9147 = vmul.f32 %v9103, %v7850
  %v9148 = vmul.f32 %v9106, %v7850
  %v9149 = vmul.f32 %v9109, %v7850
  %v9150 = vmul.f32 %v9112, %v7850
  %v9151 = vmul.f32 %v9115, %v7850
  %v9152 = vmul.f32 %v9118, %v7850
  %v9153 = vmul.f32 %v9121, %v7850
  %v9154 = vmul.f32 %v9124, %v7850
  %v9155 = vmul.f32 %v9127, %v7850
  %v9156 = vmul.f32 %v9130, %v7850
  %v9157 = vmul.f32 %v9133, %v7850
  %v9158 = vmul.f32 %v9136, %v7850
  %v9159 = vmul.f32 %v9139, %v7850
  %v9160 = vmul.f32 %v9142, %v7850
  %v9161 = vmul.f32 %v9145, %v7850
  %v9162 = vadd.f32 %v9146, 1e-05
  %v9163 = vadd.f32 %v9147, 1e-05
  %v9164 = vadd.f32 %v9148, 1e-05
  %v9165 = vadd.f32 %v9149, 1e-05
  %v9166 = vadd.f32 %v9150, 1e-05
  %v9167 = vadd.f32 %v9151, 1e-05
  %v9168 = vadd.f32 %v9152, 1e-05
  %v9169 = vadd.f32 %v9153, 1e-05
  %v9170 = vadd.f32 %v9154, 1e-05
  %v9171 = vadd.f32 %v9155, 1e-05
  %v9172 = vadd.f32 %v9156, 1e-05
  %v9173 = vadd.f32 %v9157, 1e-05
  %v9174 = vadd.f32 %v9158, 1e-05
  %v9175 = vadd.f32 %v9159, 1e-05
  %v9176 = vadd.f32 %v9160, 1e-05
  %v9177 = vadd.f32 %v9161, 1e-05
  %v9178 = vrsqrt.pop %v9162
  %v9179 = vrsqrt.pop %v9163
  %v9180 = vrsqrt.pop %v9164
  %v9181 = vrsqrt.pop %v9165
  %v9182 = vrsqrt.pop %v9166
  %v9183 = vrsqrt.pop %v9167
  %v9184 = vrsqrt.pop %v9168
  %v9185 = vrsqrt.pop %v9169
  %v9186 = vrsqrt.pop %v9170
  %v9187 = vrsqrt.pop %v9171
  %v9188 = vrsqrt.pop %v9172
  %v9189 = vrsqrt.pop %v9173
  %v9190 = vrsqrt.pop %v9174
  %v9191 = vrsqrt.pop %v9175
  %v9192 = vrsqrt.pop %v9176
  %v9193 = vrsqrt.pop %v9177
  %v9194 = vmul.f32 %v9066, %v9178
  %v9195 = vmul.f32 %v9067, %v9179
  %v9196 = vmul.f32 %v9068, %v9180
  %v9197 = vmul.f32 %v9069, %v9181
  %v9198 = vmul.f32 %v9070, %v9182
  %v9199 = vmul.f32 %v9071, %v9183
  %v9200 = vmul.f32 %v9072, %v9184
  %v9201 = vmul.f32 %v9073, %v9185
  %v9202 = vmul.f32 %v9074, %v9186
  %v9203 = vmul.f32 %v9075, %v9187
  %v9204 = vmul.f32 %v9076, %v9188
  %v9205 = vmul.f32 %v9077, %v9189
  %v9206 = vmul.f32 %v9078, %v9190
  %v9207 = vmul.f32 %v9079, %v9191
  %v9208 = vmul.f32 %v9080, %v9192
  %v9209 = vmul.f32 %v9081, %v9193
  %v9211 = vlaneseq
  %v9212 = vshrl.u32 %v9211, 7
  %v9213 = vsub.s32 0, %v9212
  %v9214 = vrot.slane %v9000, %v9213
  %v9216 = vmul.f32 %v9194, %v9214
  %v9217 = vmul.f32 %v9195, %v9214
  %v9218 = vmul.f32 %v9196, %v9214
  %v9219 = vmul.f32 %v9197, %v9214
  %v9220 = vmul.f32 %v9198, %v9214
  %v9221 = vmul.f32 %v9199, %v9214
  %v9222 = vmul.f32 %v9200, %v9214
  %v9223 = vmul.f32 %v9201, %v9214
  %v9224 = vmul.f32 %v9202, %v9214
  %v9225 = vmul.f32 %v9203, %v9214
  %v9226 = vmul.f32 %v9204, %v9214
  %v9227 = vmul.f32 %v9205, %v9214
  %v9228 = vmul.f32 %v9206, %v9214
  %v9229 = vmul.f32 %v9207, %v9214
  %v9230 = vmul.f32 %v9208, %v9214
  %v9231 = vmul.f32 %v9209, %v9214
  %v9233 = vlaneseq
  %v9234 = vshrl.u32 %v9233, 7
  %v9235 = vsub.s32 0, %v9234
  %v9236 = vrot.slane %v9001, %v9235
  %v9238 = vadd.f32 %v9216, %v9236
  %v9239 = vadd.f32 %v9217, %v9236
  %v9240 = vadd.f32 %v9218, %v9236
  %v9241 = vadd.f32 %v9219, %v9236
  %v9242 = vadd.f32 %v9220, %v9236
  %v9243 = vadd.f32 %v9221, %v9236
  %v9244 = vadd.f32 %v9222, %v9236
  %v9245 = vadd.f32 %v9223, %v9236
  %v9246 = vadd.f32 %v9224, %v9236
  %v9247 = vadd.f32 %v9225, %v9236
  %v9248 = vadd.f32 %v9226, %v9236
  %v9249 = vadd.f32 %v9227, %v9236
  %v9250 = vadd.f32 %v9228, %v9236
  %v9251 = vadd.f32 %v9229, %v9236
  %v9252 = vadd.f32 %v9230, %v9236
  %v9253 = vadd.f32 %v9231, %v9236
  %9254 = vst.msk [vmem:[%s13] sm:$0xff] %vm129, %v9238
  %9255 = vst.msk [vmem:[%s13 + $0x8] sm:$0xff] %vm129, %v9239
  %9256 = vst.msk [vmem:[%s13 + $0x10] sm:$0xff] %vm129, %v9240
  %9257 = vst.msk [vmem:[%s13 + $0x18] sm:$0xff] %vm129, %v9241
  %9258 = vst.msk [vmem:[%s13 + $0x20] sm:$0xff] %vm129, %v9242
  %9259 = vst.msk [vmem:[%s13 + $0x28] sm:$0xff] %vm129, %v9243
  %9260 = vst.msk [vmem:[%s13 + $0x30] sm:$0xff] %vm129, %v9244
  %9261 = vst.msk [vmem:[%s13 + $0x38] sm:$0xff] %vm129, %v9245
  %9262 = vst.msk [vmem:[%s13 + $0x40] sm:$0xff] %vm129, %v9246
  %9263 = vst.msk [vmem:[%s13 + $0x48] sm:$0xff] %vm129, %v9247
  %9264 = vst.msk [vmem:[%s13 + $0x50] sm:$0xff] %vm129, %v9248
  %9265 = vst.msk [vmem:[%s13 + $0x58] sm:$0xff] %vm129, %v9249
  %9266 = vst.msk [vmem:[%s13 + $0x60] sm:$0xff] %vm129, %v9250
  %9267 = vst.msk [vmem:[%s13 + $0x68] sm:$0xff] %vm129, %v9251
  %9268 = vst.msk [vmem:[%s13 + $0x70] sm:$0xff] %vm129, %v9252
  %9269 = vst.msk [vmem:[%s13 + $0x78] sm:$0xff] %vm129, %v9253
  // Predicated region
  $region54: #{dual_rnn_block_forward.6} parent=0 // pred_check
    _
  $region55: #{dual_rnn_block_forward.6} parent=0 // pred_check_branch
    %9271 = sbr.rel (0) target = $region57
  $region56: #{dual_rnn_block_forward.6} parent=0 // pred_region
    _
  $region57: #{dual_rnn_block_forward.6} parent=0 // pred_fallthru
    _
  // Predicated region
  $region58: #{dual_rnn_block_forward.6} parent=0 // pred_check
    _
  $region59: #{dual_rnn_block_forward.6} parent=0 // pred_check_branch
    %9273 = sbr.rel (0) target = $region61
  $region60: #{dual_rnn_block_forward.6} parent=0 // pred_region
    _
  $region61: #{dual_rnn_block_forward.6} parent=0 // pred_fallthru
    _

</llo_original>
